<compile_context>
chip_gen: v7x
topology: tpu7x:2x2x1
jax: 0.10.0
libtpu: 0.0.40
codegen_flags: <defaults>
</compile_context>

<pallas_src>
import functools

import jax
import jax.numpy as jnp
from jax.experimental import pallas as pl
from jax.experimental.pallas import tpu as pltpu


# ----------------------------------------------------------------------------
# In-kernel helpers
# ----------------------------------------------------------------------------
def _stack9(a, *, wp, p):
    """Stack the 9 shifted 3x3 taps of `a` (C, P) along the contraction axis.

    `a` is in zero-border padded layout, so a lane rotation by dy*wp+dx gives
    the (dy, dx) tap for every interior pixel; wrapped values only land on
    border/tail output positions, which are masked to zero afterwards.
    Returns (9*C, P) with row order (ky, kx, cin).
    """
    pieces = []
    for dy in (-1, 0, 1):
        for dx in (-1, 0, 1):
            s = dy * wp + dx
            if s == 0:
                pieces.append(a)
            else:
                pieces.append(pltpu.roll(a, (-s) % p, axis=1))
    return jnp.concatenate(pieces, axis=0)


def _conv(s, w_ref, b_ref, m, *, relu):
    acc = jnp.dot(w_ref[...], s, preferred_element_type=jnp.float32)
    acc = acc + b_ref[...]
    if relu:
        acc = jnp.maximum(acc, 0.0)
    return acc * m            # zero the border -> padding for the next layer


def _conv2(sa, sb, wa_ref, wb_ref, b_ref, m, *, relu):
    # conv(concat([a, b], channel)) == dot(Wa, taps(a)) + dot(Wb, taps(b))
    acc = jnp.dot(wa_ref[...], sa, preferred_element_type=jnp.float32)
    acc = acc + jnp.dot(wb_ref[...], sb, preferred_element_type=jnp.float32)
    acc = acc + b_ref[...]
    if relu:
        acc = jnp.maximum(acc, 0.0)
    return acc * m


# ----------------------------------------------------------------------------
# Fused Zero-DCE kernel: one image per grid step, everything VMEM resident.
# ----------------------------------------------------------------------------
def _zrdce_kernel(x_ref, mask_ref,
                  w1_ref, b1_ref, wb_ref, bb_ref,
                  wca_ref, wcb_ref, bc_ref,
                  wla_ref, wlb_ref, bl_ref,
                  enh_ref, r_ref, *, wp, p, img_c, n_maps):
    m = mask_ref[...]                 # (1, P): 1.0 on interior pixels else 0.0
    a0 = x_ref[0]                     # (Cpad, P) padded input image

    s0 = _stack9(a0, wp=wp, p=p)
    a1 = _conv(s0, w1_ref, b1_ref, m, relu=True)                  # conv_input
    s1 = _stack9(a1, wp=wp, p=p)
    a2 = _conv(s1, wb_ref, bb_ref, m, relu=True)                  # conv_block
    s2 = _stack9(a2, wp=wp, p=p)
    a3 = _conv(s2, wb_ref, bb_ref, m, relu=True)
    s3 = _stack9(a3, wp=wp, p=p)
    a4 = _conv(s3, wb_ref, bb_ref, m, relu=True)
    s4 = _stack9(a4, wp=wp, p=p)
    a5 = _conv2(s3, s4, wca_ref, wcb_ref, bc_ref, m, relu=True)   # cat(x3,x4)
    s5 = _stack9(a5, wp=wp, p=p)
    a6 = _conv2(s2, s5, wca_ref, wcb_ref, bc_ref, m, relu=True)   # cat(x2,x5)
    s6 = _stack9(a6, wp=wp, p=p)
    # TODO(synk): flip relu=True if this repo's ConvolutionConcatBlock applies
    # ReLU on the last block too (canonical Zero-DCE keeps curve maps signed).
    a7 = _conv2(s1, s6, wla_ref, wlb_ref, bl_ref, m, relu=False)  # cat(x1,x6)

    x_r = jnp.tanh(a7)                # (24, P) curve maps
    v = a0[:img_c, :]                 # original image (3, P)
    for i in range(n_maps):
        r_i = x_r[img_c * i:img_c * (i + 1), :]
        v = v + r_i * (v * v - v)

    enh_ref[...] = v[None]
    r_ref[...] = x_r[None]


# ----------------------------------------------------------------------------
# Wrapper: weight re-layout + single fused pallas_call
# ----------------------------------------------------------------------------
def zrdce_forward(params, x):
    """x: (N, 3, H, W) float32 (NCHW). Returns (enhance (N,3,H,W), r (N,24,H,W))."""
    w_in, b_in = params["conv_input"]                       # (32,  3, 3, 3)
    w_blk, b_blk = params["conv_block"]                     # (32, 32, 3, 3)
    w_cat, b_cat = params["conv_concat_block"]              # (32, 64, 3, 3)
    w_last, b_last = params["conv_concat_last_block"]       # (24, 64, 3, 3)

    n, cin, h, w = x.shape
    hidden = w_blk.shape[0]
    cout = w_last.shape[0]
    hp, wp = h + 2, w + 2
    p = ((hp * wp + 127) // 128) * 128          # lane-padded flattened spatial
    cpad = 8                                    # pad 3 input channels to 8

    def to_col(wt):   # torch (Cout, Cin, 3, 3) -> (Cout, 9*Cin), order (ky,kx,ci)
        co, ci = wt.shape[0], wt.shape[1]
        return jnp.transpose(wt, (0, 2, 3, 1)).reshape(co, 9 * ci)

    w1c = to_col(jnp.pad(w_in, ((0, 0), (0, cpad - cin), (0, 0), (0, 0))))
    wbc = to_col(w_blk)
    wca, wcb = to_col(w_cat[:, :hidden]), to_col(w_cat[:, hidden:])
    wla, wlb = to_col(w_last[:, :hidden]), to_col(w_last[:, hidden:])
    b1 = b_in.reshape(-1, 1)
    bb = b_blk.reshape(-1, 1)
    bc = b_cat.reshape(-1, 1)
    bl = b_last.reshape(-1, 1)

    # Zero-pad ONLY the tiny network input (channels 3->8, spatial halo of 1),
    # then flatten the padded spatial grid onto the lane axis.
    xpad = jnp.pad(x, ((0, 0), (0, cpad - cin), (1, 1), (1, 1)))
    xpad = xpad.reshape(n, cpad, hp * wp)
    xpad = jnp.pad(xpad, ((0, 0), (0, 0), (0, p - hp * wp)))

    # Interior mask: 1.0 on real pixels, 0.0 on the halo / lane tail.
    m2 = jnp.zeros((hp, wp), jnp.float32).at[1:h + 1, 1:w + 1].set(1.0)
    mask = jnp.pad(m2.reshape(1, hp * wp), ((0, 0), (0, p - hp * wp)))

    kernel = functools.partial(_zrdce_kernel, wp=wp, p=p, img_c=cin,
                               n_maps=cout // cin)

    flops = int(2 * n * p * (w1c.shape[0] * w1c.shape[1]
                             + 3 * wbc.shape[0] * wbc.shape[1]
                             + 2 * (wca.shape[0] * wca.shape[1]
                                    + wcb.shape[0] * wcb.shape[1])
                             + wla.shape[0] * wla.shape[1]
                             + wlb.shape[0] * wlb.shape[1]))
    bytes_accessed = int(4 * (xpad.size + mask.size + w1c.size + wbc.size
                              + wca.size + wcb.size + wla.size + wlb.size
                              + b1.size + bb.size + bc.size + bl.size
                              + n * (cin + cout) * p))

    def full(arr):
        return pl.BlockSpec(arr.shape, lambda i, _nd=arr.ndim: (0,) * _nd)

    enh_p, r_p = pl.pallas_call(
        kernel,
        out_shape=(jax.ShapeDtypeStruct((n, cin, p), jnp.float32),
                   jax.ShapeDtypeStruct((n, cout, p), jnp.float32)),
        grid_spec=pltpu.PrefetchScalarGridSpec(
            num_scalar_prefetch=0,
            grid=(n,),
            in_specs=[
                pl.BlockSpec((1, cpad, p), lambda i: (i, 0, 0)),
                full(mask),
                full(w1c), full(b1),
                full(wbc), full(bb),
                full(wca), full(wcb), full(bc),
                full(wla), full(wlb), full(bl),
            ],
            out_specs=[
                pl.BlockSpec((1, cin, p), lambda i: (i, 0, 0)),
                pl.BlockSpec((1, cout, p), lambda i: (i, 0, 0)),
            ],
        ),
        compiler_params=pltpu.CompilerParams(
            dimension_semantics=("parallel",)),
        cost_estimate=pl.CostEstimate(flops=flops,
                                      transcendentals=int(n * cout * p),
                                      bytes_accessed=bytes_accessed),
    )(xpad, mask, w1c, b1, wbc, bb, wca, wcb, bc, wla, wlb, bl)

    def unpad(y, c):
        y = y[:, :, :hp * wp].reshape(n, c, hp, wp)
        return y[:, :, 1:h + 1, 1:w + 1]

    return unpad(enh_p, cin), unpad(r_p, cout)


# ----------------------------------------------------------------------------
# Params (deterministic, PyTorch-like uniform(+-1/sqrt(fan_in)), torch layout)
# ----------------------------------------------------------------------------
def _init_conv(key, cin, cout):
    kw, kb = jax.random.split(key)
    bound = 1.0 / (cin * 9) ** 0.5
    wgt = jax.random.uniform(kw, (cout, cin, 3, 3), jnp.float32, -bound, bound)
    bias = jax.random.uniform(kb, (cout,), jnp.float32, -bound, bound)
    return wgt, bias


def make_params(key, in_channels=3, out_channels=24, hidden_channels=32):
    k1, k2, k3, k4 = jax.random.split(key, 4)
    return {
        "conv_input": _init_conv(k1, in_channels, hidden_channels),
        "conv_block": _init_conv(k2, hidden_channels, hidden_channels),
        "conv_concat_block": _init_conv(k3, 2 * hidden_channels, hidden_channels),
        "conv_concat_last_block": _init_conv(k4, 2 * hidden_channels, out_channels),
    }


# ----------------------------------------------------------------------------
# Pure-JAX reference (same semantics) used only for the correctness check.
# ----------------------------------------------------------------------------
def _conv_ref(x, wgt, bias, relu):
    y = jax.lax.conv_general_dilated(
        x, wgt, window_strides=(1, 1), padding=((1, 1), (1, 1)),
        dimension_numbers=("NCHW", "OIHW", "NCHW"),
        precision=jax.lax.Precision.HIGHEST)
    y = y + bias.reshape(1, -1, 1, 1)
    return jnp.maximum(y, 0.0) if relu else y


def zrdce_reference(params, x):
    w_in, b_in = params["conv_input"]
    w_blk, b_blk = params["conv_block"]
    w_cat, b_cat = params["conv_concat_block"]
    w_last, b_last = params["conv_concat_last_block"]
    x1 = _conv_ref(x, w_in, b_in, True)
    x2 = _conv_ref(x1, w_blk, b_blk, True)
    x3 = _conv_ref(x2, w_blk, b_blk, True)
    x4 = _conv_ref(x3, w_blk, b_blk, True)
    x5 = _conv_ref(jnp.concatenate([x3, x4], axis=1), w_cat, b_cat, True)
    x6 = _conv_ref(jnp.concatenate([x2, x5], axis=1), w_cat, b_cat, True)
    x7 = _conv_ref(jnp.concatenate([x1, x6], axis=1), w_last, b_last, False)
    x_r = jnp.tanh(x7)
    v = x
    for i in range(x_r.shape[1] // x.shape[1]):
        r_i = x_r[:, 3 * i:3 * (i + 1)]
        v = v + r_i * (v * v - v)
    return v, x_r


if __name__ == "__main__":
    key = jax.random.PRNGKey(0)
    kp, kx = jax.random.split(key)

    params = make_params(kp)
    x = jax.random.uniform(kx, (2, 3, 16, 16), jnp.float32)   # NCHW like torch

    enhance_image, r = jax.jit(zrdce_forward)(params, x)
    jax.block_until_ready((enhance_image, r))

    assert enhance_image.shape == (2, 3, 16, 16)
    assert r.shape == (2, 24, 16, 16)

    ref_e, ref_r = zrdce_reference(params, x)
    assert float(jnp.max(jnp.abs(enhance_image - ref_e))) < 5e-2
    assert float(jnp.max(jnp.abs(r - ref_r))) < 5e-2
    print("KERNEL_OK")
</pallas_src>

<mosaic_0001>
module attributes {stable_mosaic.version = 11 : i64} {
  func.func @_zrdce_kernel(%arg0: i32, %arg1: memref<1x8x384xf32, #tpu.memory_space<vmem>>, %arg2: memref<1x384xf32, #tpu.memory_space<vmem>>, %arg3: memref<32x72xf32, #tpu.memory_space<vmem>>, %arg4: memref<32x1xf32, #tpu.memory_space<vmem>>, %arg5: memref<32x288xf32, #tpu.memory_space<vmem>>, %arg6: memref<32x1xf32, #tpu.memory_space<vmem>>, %arg7: memref<32x288xf32, #tpu.memory_space<vmem>>, %arg8: memref<32x288xf32, #tpu.memory_space<vmem>>, %arg9: memref<32x1xf32, #tpu.memory_space<vmem>>, %arg10: memref<24x288xf32, #tpu.memory_space<vmem>>, %arg11: memref<24x288xf32, #tpu.memory_space<vmem>>, %arg12: memref<24x1xf32, #tpu.memory_space<vmem>>, %arg13: memref<1x3x384xf32, #tpu.memory_space<vmem>>, %arg14: memref<1x24x384xf32, #tpu.memory_space<vmem>>) attributes {dimension_semantics = [#tpu.dimension_semantics<parallel>], iteration_bounds = array<i64: 2>, scalar_prefetch = 0 : i64, scratch_operands = 0 : i64, tpu.core_type = #tpu.core_type<tc>, window_params = [{transform_indices = @transform_0, window_bounds = array<i64: 1, 8, 384>}, {pipeline_mode = #tpu.pipeline_mode<synchronous>, transform_indices = @transform_1, window_bounds = array<i64: 1, 384>}, {pipeline_mode = #tpu.pipeline_mode<synchronous>, transform_indices = @transform_2, window_bounds = array<i64: 32, 72>}, {pipeline_mode = #tpu.pipeline_mode<synchronous>, transform_indices = @transform_3, window_bounds = array<i64: 32, 1>}, {pipeline_mode = #tpu.pipeline_mode<synchronous>, transform_indices = @transform_4, window_bounds = array<i64: 32, 288>}, {pipeline_mode = #tpu.pipeline_mode<synchronous>, transform_indices = @transform_5, window_bounds = array<i64: 32, 1>}, {pipeline_mode = #tpu.pipeline_mode<synchronous>, transform_indices = @transform_6, window_bounds = array<i64: 32, 288>}, {pipeline_mode = #tpu.pipeline_mode<synchronous>, transform_indices = @transform_7, window_bounds = array<i64: 32, 288>}, {pipeline_mode = #tpu.pipeline_mode<synchronous>, transform_indices = @transform_8, window_bounds = array<i64: 32, 1>}, {pipeline_mode = #tpu.pipeline_mode<synchronous>, transform_indices = @transform_9, window_bounds = array<i64: 24, 288>}, {pipeline_mode = #tpu.pipeline_mode<synchronous>, transform_indices = @transform_10, window_bounds = array<i64: 24, 288>}, {pipeline_mode = #tpu.pipeline_mode<synchronous>, transform_indices = @transform_11, window_bounds = array<i64: 24, 1>}, {transform_indices = @transform_12, window_bounds = array<i64: 1, 3, 384>}, {transform_indices = @transform_13, window_bounds = array<i64: 1, 24, 384>}]} {
    %c0 = arith.constant 0 : index
    %c0_0 = arith.constant 0 : index
    %0 = vector.load %arg2[%c0, %c0_0] : memref<1x384xf32, #tpu.memory_space<vmem>>, vector<1x384xf32>
    %c0_1 = arith.constant 0 : index
    %c0_2 = arith.constant 0 : index
    %c0_3 = arith.constant 0 : index
    %1 = vector.load %arg1[%c0_1, %c0_2, %c0_3] : memref<1x8x384xf32, #tpu.memory_space<vmem>>, vector<1x8x384xf32>
    %2 = vector.shape_cast %1 : vector<1x8x384xf32> to vector<8x384xf32>
    %c19_i32 = arith.constant 19 : i32
    %3 = tpu.dynamic_rotate %2 by %c19_i32 dim 1 : vector<8x384xf32>, i32 -> vector<8x384xf32>
    %c18_i32 = arith.constant 18 : i32
    %4 = tpu.dynamic_rotate %2 by %c18_i32 dim 1 : vector<8x384xf32>, i32 -> vector<8x384xf32>
    %c17_i32 = arith.constant 17 : i32
    %5 = tpu.dynamic_rotate %2 by %c17_i32 dim 1 : vector<8x384xf32>, i32 -> vector<8x384xf32>
    %c1_i32 = arith.constant 1 : i32
    %6 = tpu.dynamic_rotate %2 by %c1_i32 dim 1 : vector<8x384xf32>, i32 -> vector<8x384xf32>
    %c383_i32 = arith.constant 383 : i32
    %7 = tpu.dynamic_rotate %2 by %c383_i32 dim 1 : vector<8x384xf32>, i32 -> vector<8x384xf32>
    %c367_i32 = arith.constant 367 : i32
    %8 = tpu.dynamic_rotate %2 by %c367_i32 dim 1 : vector<8x384xf32>, i32 -> vector<8x384xf32>
    %c366_i32 = arith.constant 366 : i32
    %9 = tpu.dynamic_rotate %2 by %c366_i32 dim 1 : vector<8x384xf32>, i32 -> vector<8x384xf32>
    %c365_i32 = arith.constant 365 : i32
    %10 = tpu.dynamic_rotate %2 by %c365_i32 dim 1 : vector<8x384xf32>, i32 -> vector<8x384xf32>
    %11 = tpu.concatenate %3, %4, %5, %6, %2, %7, %8, %9, %10 in 0 : vector<8x384xf32>, vector<8x384xf32>, vector<8x384xf32>, vector<8x384xf32>, vector<8x384xf32>, vector<8x384xf32>, vector<8x384xf32>, vector<8x384xf32>, vector<8x384xf32> -> vector<72x384xf32>
    %c0_4 = arith.constant 0 : index
    %c0_5 = arith.constant 0 : index
    %12 = vector.load %arg3[%c0_4, %c0_5] : memref<32x72xf32, #tpu.memory_space<vmem>>, vector<32x72xf32>
    %cst = arith.constant dense<0.000000e+00> : vector<32x384xf32>
    %13 = tpu.matmul %12, %11, %cst {dimension_numbers = #tpu.dot_dimension_numbers<[1], [0], [0], [1], [0, 0, 1, 1], [], []>} : vector<32x72xf32>, vector<72x384xf32>, vector<32x384xf32> -> vector<32x384xf32>
    %c0_6 = arith.constant 0 : index
    %c0_7 = arith.constant 0 : index
    %14 = vector.load %arg4[%c0_6, %c0_7] : memref<32x1xf32, #tpu.memory_space<vmem>>, vector<32x1xf32>
    %15 = vector.broadcast %14 : vector<32x1xf32> to vector<32x384xf32>
    %16 = arith.addf %13, %15 : vector<32x384xf32>
    %cst_8 = arith.constant 0.000000e+00 : f32
    %17 = vector.broadcast %cst_8 : f32 to vector<32x384xf32>
    %18 = arith.maximumf %16, %17 : vector<32x384xf32>
    %19 = vector.broadcast %0 : vector<1x384xf32> to vector<32x384xf32>
    %20 = arith.mulf %18, %19 : vector<32x384xf32>
    %c19_i32_9 = arith.constant 19 : i32
    %21 = tpu.dynamic_rotate %20 by %c19_i32_9 dim 1 : vector<32x384xf32>, i32 -> vector<32x384xf32>
    %c18_i32_10 = arith.constant 18 : i32
    %22 = tpu.dynamic_rotate %20 by %c18_i32_10 dim 1 : vector<32x384xf32>, i32 -> vector<32x384xf32>
    %c17_i32_11 = arith.constant 17 : i32
    %23 = tpu.dynamic_rotate %20 by %c17_i32_11 dim 1 : vector<32x384xf32>, i32 -> vector<32x384xf32>
    %c1_i32_12 = arith.constant 1 : i32
    %24 = tpu.dynamic_rotate %20 by %c1_i32_12 dim 1 : vector<32x384xf32>, i32 -> vector<32x384xf32>
    %c383_i32_13 = arith.constant 383 : i32
    %25 = tpu.dynamic_rotate %20 by %c383_i32_13 dim 1 : vector<32x384xf32>, i32 -> vector<32x384xf32>
    %c367_i32_14 = arith.constant 367 : i32
    %26 = tpu.dynamic_rotate %20 by %c367_i32_14 dim 1 : vector<32x384xf32>, i32 -> vector<32x384xf32>
    %c366_i32_15 = arith.constant 366 : i32
    %27 = tpu.dynamic_rotate %20 by %c366_i32_15 dim 1 : vector<32x384xf32>, i32 -> vector<32x384xf32>
    %c365_i32_16 = arith.constant 365 : i32
    %28 = tpu.dynamic_rotate %20 by %c365_i32_16 dim 1 : vector<32x384xf32>, i32 -> vector<32x384xf32>
    %29 = tpu.concatenate %21, %22, %23, %24, %20, %25, %26, %27, %28 in 0 : vector<32x384xf32>, vector<32x384xf32>, vector<32x384xf32>, vector<32x384xf32>, vector<32x384xf32>, vector<32x384xf32>, vector<32x384xf32>, vector<32x384xf32>, vector<32x384xf32> -> vector<288x384xf32>
    %c0_17 = arith.constant 0 : index
    %c0_18 = arith.constant 0 : index
    %30 = vector.load %arg5[%c0_17, %c0_18] : memref<32x288xf32, #tpu.memory_space<vmem>>, vector<32x288xf32>
    %cst_19 = arith.constant dense<0.000000e+00> : vector<32x384xf32>
    %31 = tpu.matmul %30, %29, %cst_19 {dimension_numbers = #tpu.dot_dimension_numbers<[1], [0], [0], [1], [0, 0, 1, 1], [], []>} : vector<32x288xf32>, vector<288x384xf32>, vector<32x384xf32> -> vector<32x384xf32>
    %c0_20 = arith.constant 0 : index
    %c0_21 = arith.constant 0 : index
    %32 = vector.load %arg6[%c0_20, %c0_21] : memref<32x1xf32, #tpu.memory_space<vmem>>, vector<32x1xf32>
    %33 = vector.broadcast %32 : vector<32x1xf32> to vector<32x384xf32>
    %34 = arith.addf %31, %33 : vector<32x384xf32>
    %cst_22 = arith.constant 0.000000e+00 : f32
    %35 = vector.broadcast %cst_22 : f32 to vector<32x384xf32>
    %36 = arith.maximumf %34, %35 : vector<32x384xf32>
    %37 = vector.broadcast %0 : vector<1x384xf32> to vector<32x384xf32>
    %38 = arith.mulf %36, %37 : vector<32x384xf32>
    %c19_i32_23 = arith.constant 19 : i32
    %39 = tpu.dynamic_rotate %38 by %c19_i32_23 dim 1 : vector<32x384xf32>, i32 -> vector<32x384xf32>
    %c18_i32_24 = arith.constant 18 : i32
    %40 = tpu.dynamic_rotate %38 by %c18_i32_24 dim 1 : vector<32x384xf32>, i32 -> vector<32x384xf32>
    %c17_i32_25 = arith.constant 17 : i32
    %41 = tpu.dynamic_rotate %38 by %c17_i32_25 dim 1 : vector<32x384xf32>, i32 -> vector<32x384xf32>
    %c1_i32_26 = arith.constant 1 : i32
    %42 = tpu.dynamic_rotate %38 by %c1_i32_26 dim 1 : vector<32x384xf32>, i32 -> vector<32x384xf32>
    %c383_i32_27 = arith.constant 383 : i32
    %43 = tpu.dynamic_rotate %38 by %c383_i32_27 dim 1 : vector<32x384xf32>, i32 -> vector<32x384xf32>
    %c367_i32_28 = arith.constant 367 : i32
    %44 = tpu.dynamic_rotate %38 by %c367_i32_28 dim 1 : vector<32x384xf32>, i32 -> vector<32x384xf32>
    %c366_i32_29 = arith.constant 366 : i32
    %45 = tpu.dynamic_rotate %38 by %c366_i32_29 dim 1 : vector<32x384xf32>, i32 -> vector<32x384xf32>
    %c365_i32_30 = arith.constant 365 : i32
    %46 = tpu.dynamic_rotate %38 by %c365_i32_30 dim 1 : vector<32x384xf32>, i32 -> vector<32x384xf32>
    %47 = tpu.concatenate %39, %40, %41, %42, %38, %43, %44, %45, %46 in 0 : vector<32x384xf32>, vector<32x384xf32>, vector<32x384xf32>, vector<32x384xf32>, vector<32x384xf32>, vector<32x384xf32>, vector<32x384xf32>, vector<32x384xf32>, vector<32x384xf32> -> vector<288x384xf32>
    %c0_31 = arith.constant 0 : index
    %c0_32 = arith.constant 0 : index
    %48 = vector.load %arg5[%c0_31, %c0_32] : memref<32x288xf32, #tpu.memory_space<vmem>>, vector<32x288xf32>
    %cst_33 = arith.constant dense<0.000000e+00> : vector<32x384xf32>
    %49 = tpu.matmul %48, %47, %cst_33 {dimension_numbers = #tpu.dot_dimension_numbers<[1], [0], [0], [1], [0, 0, 1, 1], [], []>} : vector<32x288xf32>, vector<288x384xf32>, vector<32x384xf32> -> vector<32x384xf32>
    %c0_34 = arith.constant 0 : index
    %c0_35 = arith.constant 0 : index
    %50 = vector.load %arg6[%c0_34, %c0_35] : memref<32x1xf32, #tpu.memory_space<vmem>>, vector<32x1xf32>
    %51 = vector.broadcast %50 : vector<32x1xf32> to vector<32x384xf32>
    %52 = arith.addf %49, %51 : vector<32x384xf32>
    %cst_36 = arith.constant 0.000000e+00 : f32
    %53 = vector.broadcast %cst_36 : f32 to vector<32x384xf32>
    %54 = arith.maximumf %52, %53 : vector<32x384xf32>
    %55 = vector.broadcast %0 : vector<1x384xf32> to vector<32x384xf32>
    %56 = arith.mulf %54, %55 : vector<32x384xf32>
    %c19_i32_37 = arith.constant 19 : i32
    %57 = tpu.dynamic_rotate %56 by %c19_i32_37 dim 1 : vector<32x384xf32>, i32 -> vector<32x384xf32>
    %c18_i32_38 = arith.constant 18 : i32
    %58 = tpu.dynamic_rotate %56 by %c18_i32_38 dim 1 : vector<32x384xf32>, i32 -> vector<32x384xf32>
    %c17_i32_39 = arith.constant 17 : i32
    %59 = tpu.dynamic_rotate %56 by %c17_i32_39 dim 1 : vector<32x384xf32>, i32 -> vector<32x384xf32>
    %c1_i32_40 = arith.constant 1 : i32
    %60 = tpu.dynamic_rotate %56 by %c1_i32_40 dim 1 : vector<32x384xf32>, i32 -> vector<32x384xf32>
    %c383_i32_41 = arith.constant 383 : i32
    %61 = tpu.dynamic_rotate %56 by %c383_i32_41 dim 1 : vector<32x384xf32>, i32 -> vector<32x384xf32>
    %c367_i32_42 = arith.constant 367 : i32
    %62 = tpu.dynamic_rotate %56 by %c367_i32_42 dim 1 : vector<32x384xf32>, i32 -> vector<32x384xf32>
    %c366_i32_43 = arith.constant 366 : i32
    %63 = tpu.dynamic_rotate %56 by %c366_i32_43 dim 1 : vector<32x384xf32>, i32 -> vector<32x384xf32>
    %c365_i32_44 = arith.constant 365 : i32
    %64 = tpu.dynamic_rotate %56 by %c365_i32_44 dim 1 : vector<32x384xf32>, i32 -> vector<32x384xf32>
    %65 = tpu.concatenate %57, %58, %59, %60, %56, %61, %62, %63, %64 in 0 : vector<32x384xf32>, vector<32x384xf32>, vector<32x384xf32>, vector<32x384xf32>, vector<32x384xf32>, vector<32x384xf32>, vector<32x384xf32>, vector<32x384xf32>, vector<32x384xf32> -> vector<288x384xf32>
    %c0_45 = arith.constant 0 : index
    %c0_46 = arith.constant 0 : index
    %66 = vector.load %arg5[%c0_45, %c0_46] : memref<32x288xf32, #tpu.memory_space<vmem>>, vector<32x288xf32>
    %cst_47 = arith.constant dense<0.000000e+00> : vector<32x384xf32>
    %67 = tpu.matmul %66, %65, %cst_47 {dimension_numbers = #tpu.dot_dimension_numbers<[1], [0], [0], [1], [0, 0, 1, 1], [], []>} : vector<32x288xf32>, vector<288x384xf32>, vector<32x384xf32> -> vector<32x384xf32>
    %c0_48 = arith.constant 0 : index
    %c0_49 = arith.constant 0 : index
    %68 = vector.load %arg6[%c0_48, %c0_49] : memref<32x1xf32, #tpu.memory_space<vmem>>, vector<32x1xf32>
    %69 = vector.broadcast %68 : vector<32x1xf32> to vector<32x384xf32>
    %70 = arith.addf %67, %69 : vector<32x384xf32>
    %cst_50 = arith.constant 0.000000e+00 : f32
    %71 = vector.broadcast %cst_50 : f32 to vector<32x384xf32>
    %72 = arith.maximumf %70, %71 : vector<32x384xf32>
    %73 = vector.broadcast %0 : vector<1x384xf32> to vector<32x384xf32>
    %74 = arith.mulf %72, %73 : vector<32x384xf32>
    %c19_i32_51 = arith.constant 19 : i32
    %75 = tpu.dynamic_rotate %74 by %c19_i32_51 dim 1 : vector<32x384xf32>, i32 -> vector<32x384xf32>
    %c18_i32_52 = arith.constant 18 : i32
    %76 = tpu.dynamic_rotate %74 by %c18_i32_52 dim 1 : vector<32x384xf32>, i32 -> vector<32x384xf32>
    %c17_i32_53 = arith.constant 17 : i32
    %77 = tpu.dynamic_rotate %74 by %c17_i32_53 dim 1 : vector<32x384xf32>, i32 -> vector<32x384xf32>
    %c1_i32_54 = arith.constant 1 : i32
    %78 = tpu.dynamic_rotate %74 by %c1_i32_54 dim 1 : vector<32x384xf32>, i32 -> vector<32x384xf32>
    %c383_i32_55 = arith.constant 383 : i32
    %79 = tpu.dynamic_rotate %74 by %c383_i32_55 dim 1 : vector<32x384xf32>, i32 -> vector<32x384xf32>
    %c367_i32_56 = arith.constant 367 : i32
    %80 = tpu.dynamic_rotate %74 by %c367_i32_56 dim 1 : vector<32x384xf32>, i32 -> vector<32x384xf32>
    %c366_i32_57 = arith.constant 366 : i32
    %81 = tpu.dynamic_rotate %74 by %c366_i32_57 dim 1 : vector<32x384xf32>, i32 -> vector<32x384xf32>
    %c365_i32_58 = arith.constant 365 : i32
    %82 = tpu.dynamic_rotate %74 by %c365_i32_58 dim 1 : vector<32x384xf32>, i32 -> vector<32x384xf32>
    %83 = tpu.concatenate %75, %76, %77, %78, %74, %79, %80, %81, %82 in 0 : vector<32x384xf32>, vector<32x384xf32>, vector<32x384xf32>, vector<32x384xf32>, vector<32x384xf32>, vector<32x384xf32>, vector<32x384xf32>, vector<32x384xf32>, vector<32x384xf32> -> vector<288x384xf32>
    %c0_59 = arith.constant 0 : index
    %c0_60 = arith.constant 0 : index
    %84 = vector.load %arg7[%c0_59, %c0_60] : memref<32x288xf32, #tpu.memory_space<vmem>>, vector<32x288xf32>
    %cst_61 = arith.constant dense<0.000000e+00> : vector<32x384xf32>
    %85 = tpu.matmul %84, %65, %cst_61 {dimension_numbers = #tpu.dot_dimension_numbers<[1], [0], [0], [1], [0, 0, 1, 1], [], []>} : vector<32x288xf32>, vector<288x384xf32>, vector<32x384xf32> -> vector<32x384xf32>
    %c0_62 = arith.constant 0 : index
    %c0_63 = arith.constant 0 : index
    %86 = vector.load %arg8[%c0_62, %c0_63] : memref<32x288xf32, #tpu.memory_space<vmem>>, vector<32x288xf32>
    %cst_64 = arith.constant dense<0.000000e+00> : vector<32x384xf32>
    %87 = tpu.matmul %86, %83, %cst_64 {dimension_numbers = #tpu.dot_dimension_numbers<[1], [0], [0], [1], [0, 0, 1, 1], [], []>} : vector<32x288xf32>, vector<288x384xf32>, vector<32x384xf32> -> vector<32x384xf32>
    %88 = arith.addf %85, %87 : vector<32x384xf32>
    %c0_65 = arith.constant 0 : index
    %c0_66 = arith.constant 0 : index
    %89 = vector.load %arg9[%c0_65, %c0_66] : memref<32x1xf32, #tpu.memory_space<vmem>>, vector<32x1xf32>
    %90 = vector.broadcast %89 : vector<32x1xf32> to vector<32x384xf32>
    %91 = arith.addf %88, %90 : vector<32x384xf32>
    %cst_67 = arith.constant 0.000000e+00 : f32
    %92 = vector.broadcast %cst_67 : f32 to vector<32x384xf32>
    %93 = arith.maximumf %91, %92 : vector<32x384xf32>
    %94 = vector.broadcast %0 : vector<1x384xf32> to vector<32x384xf32>
    %95 = arith.mulf %93, %94 : vector<32x384xf32>
    %c19_i32_68 = arith.constant 19 : i32
    %96 = tpu.dynamic_rotate %95 by %c19_i32_68 dim 1 : vector<32x384xf32>, i32 -> vector<32x384xf32>
    %c18_i32_69 = arith.constant 18 : i32
    %97 = tpu.dynamic_rotate %95 by %c18_i32_69 dim 1 : vector<32x384xf32>, i32 -> vector<32x384xf32>
    %c17_i32_70 = arith.constant 17 : i32
    %98 = tpu.dynamic_rotate %95 by %c17_i32_70 dim 1 : vector<32x384xf32>, i32 -> vector<32x384xf32>
    %c1_i32_71 = arith.constant 1 : i32
    %99 = tpu.dynamic_rotate %95 by %c1_i32_71 dim 1 : vector<32x384xf32>, i32 -> vector<32x384xf32>
    %c383_i32_72 = arith.constant 383 : i32
    %100 = tpu.dynamic_rotate %95 by %c383_i32_72 dim 1 : vector<32x384xf32>, i32 -> vector<32x384xf32>
    %c367_i32_73 = arith.constant 367 : i32
    %101 = tpu.dynamic_rotate %95 by %c367_i32_73 dim 1 : vector<32x384xf32>, i32 -> vector<32x384xf32>
    %c366_i32_74 = arith.constant 366 : i32
    %102 = tpu.dynamic_rotate %95 by %c366_i32_74 dim 1 : vector<32x384xf32>, i32 -> vector<32x384xf32>
    %c365_i32_75 = arith.constant 365 : i32
    %103 = tpu.dynamic_rotate %95 by %c365_i32_75 dim 1 : vector<32x384xf32>, i32 -> vector<32x384xf32>
    %104 = tpu.concatenate %96, %97, %98, %99, %95, %100, %101, %102, %103 in 0 : vector<32x384xf32>, vector<32x384xf32>, vector<32x384xf32>, vector<32x384xf32>, vector<32x384xf32>, vector<32x384xf32>, vector<32x384xf32>, vector<32x384xf32>, vector<32x384xf32> -> vector<288x384xf32>
    %c0_76 = arith.constant 0 : index
    %c0_77 = arith.constant 0 : index
    %105 = vector.load %arg7[%c0_76, %c0_77] : memref<32x288xf32, #tpu.memory_space<vmem>>, vector<32x288xf32>
    %cst_78 = arith.constant dense<0.000000e+00> : vector<32x384xf32>
    %106 = tpu.matmul %105, %47, %cst_78 {dimension_numbers = #tpu.dot_dimension_numbers<[1], [0], [0], [1], [0, 0, 1, 1], [], []>} : vector<32x288xf32>, vector<288x384xf32>, vector<32x384xf32> -> vector<32x384xf32>
    %c0_79 = arith.constant 0 : index
    %c0_80 = arith.constant 0 : index
    %107 = vector.load %arg8[%c0_79, %c0_80] : memref<32x288xf32, #tpu.memory_space<vmem>>, vector<32x288xf32>
    %cst_81 = arith.constant dense<0.000000e+00> : vector<32x384xf32>
    %108 = tpu.matmul %107, %104, %cst_81 {dimension_numbers = #tpu.dot_dimension_numbers<[1], [0], [0], [1], [0, 0, 1, 1], [], []>} : vector<32x288xf32>, vector<288x384xf32>, vector<32x384xf32> -> vector<32x384xf32>
    %109 = arith.addf %106, %108 : vector<32x384xf32>
    %c0_82 = arith.constant 0 : index
    %c0_83 = arith.constant 0 : index
    %110 = vector.load %arg9[%c0_82, %c0_83] : memref<32x1xf32, #tpu.memory_space<vmem>>, vector<32x1xf32>
    %111 = vector.broadcast %110 : vector<32x1xf32> to vector<32x384xf32>
    %112 = arith.addf %109, %111 : vector<32x384xf32>
    %cst_84 = arith.constant 0.000000e+00 : f32
    %113 = vector.broadcast %cst_84 : f32 to vector<32x384xf32>
    %114 = arith.maximumf %112, %113 : vector<32x384xf32>
    %115 = vector.broadcast %0 : vector<1x384xf32> to vector<32x384xf32>
    %116 = arith.mulf %114, %115 : vector<32x384xf32>
    %c19_i32_85 = arith.constant 19 : i32
    %117 = tpu.dynamic_rotate %116 by %c19_i32_85 dim 1 : vector<32x384xf32>, i32 -> vector<32x384xf32>
    %c18_i32_86 = arith.constant 18 : i32
    %118 = tpu.dynamic_rotate %116 by %c18_i32_86 dim 1 : vector<32x384xf32>, i32 -> vector<32x384xf32>
    %c17_i32_87 = arith.constant 17 : i32
    %119 = tpu.dynamic_rotate %116 by %c17_i32_87 dim 1 : vector<32x384xf32>, i32 -> vector<32x384xf32>
    %c1_i32_88 = arith.constant 1 : i32
    %120 = tpu.dynamic_rotate %116 by %c1_i32_88 dim 1 : vector<32x384xf32>, i32 -> vector<32x384xf32>
    %c383_i32_89 = arith.constant 383 : i32
    %121 = tpu.dynamic_rotate %116 by %c383_i32_89 dim 1 : vector<32x384xf32>, i32 -> vector<32x384xf32>
    %c367_i32_90 = arith.constant 367 : i32
    %122 = tpu.dynamic_rotate %116 by %c367_i32_90 dim 1 : vector<32x384xf32>, i32 -> vector<32x384xf32>
    %c366_i32_91 = arith.constant 366 : i32
    %123 = tpu.dynamic_rotate %116 by %c366_i32_91 dim 1 : vector<32x384xf32>, i32 -> vector<32x384xf32>
    %c365_i32_92 = arith.constant 365 : i32
    %124 = tpu.dynamic_rotate %116 by %c365_i32_92 dim 1 : vector<32x384xf32>, i32 -> vector<32x384xf32>
    %125 = tpu.concatenate %117, %118, %119, %120, %116, %121, %122, %123, %124 in 0 : vector<32x384xf32>, vector<32x384xf32>, vector<32x384xf32>, vector<32x384xf32>, vector<32x384xf32>, vector<32x384xf32>, vector<32x384xf32>, vector<32x384xf32>, vector<32x384xf32> -> vector<288x384xf32>
    %c0_93 = arith.constant 0 : index
    %c0_94 = arith.constant 0 : index
    %126 = vector.load %arg10[%c0_93, %c0_94] : memref<24x288xf32, #tpu.memory_space<vmem>>, vector<24x288xf32>
    %cst_95 = arith.constant dense<0.000000e+00> : vector<24x384xf32>
    %127 = tpu.matmul %126, %29, %cst_95 {dimension_numbers = #tpu.dot_dimension_numbers<[1], [0], [0], [1], [0, 0, 1, 1], [], []>} : vector<24x288xf32>, vector<288x384xf32>, vector<24x384xf32> -> vector<24x384xf32>
    %c0_96 = arith.constant 0 : index
    %c0_97 = arith.constant 0 : index
    %128 = vector.load %arg11[%c0_96, %c0_97] : memref<24x288xf32, #tpu.memory_space<vmem>>, vector<24x288xf32>
    %cst_98 = arith.constant dense<0.000000e+00> : vector<24x384xf32>
    %129 = tpu.matmul %128, %125, %cst_98 {dimension_numbers = #tpu.dot_dimension_numbers<[1], [0], [0], [1], [0, 0, 1, 1], [], []>} : vector<24x288xf32>, vector<288x384xf32>, vector<24x384xf32> -> vector<24x384xf32>
    %130 = arith.addf %127, %129 : vector<24x384xf32>
    %c0_99 = arith.constant 0 : index
    %c0_100 = arith.constant 0 : index
    %131 = vector.load %arg12[%c0_99, %c0_100] : memref<24x1xf32, #tpu.memory_space<vmem>>, vector<24x1xf32>
    %132 = vector.broadcast %131 : vector<24x1xf32> to vector<24x384xf32>
    %133 = arith.addf %130, %132 : vector<24x384xf32>
    %134 = vector.broadcast %0 : vector<1x384xf32> to vector<24x384xf32>
    %135 = arith.mulf %133, %134 : vector<24x384xf32>
    %136 = math.tanh %135 : vector<24x384xf32>
    %137 = vector.extract_strided_slice %2 {offsets = [0, 0], sizes = [3, 384], strides = [1, 1]} : vector<8x384xf32> to vector<3x384xf32>
    %138 = vector.extract_strided_slice %136 {offsets = [0, 0], sizes = [3, 384], strides = [1, 1]} : vector<24x384xf32> to vector<3x384xf32>
    %139 = arith.mulf %137, %137 : vector<3x384xf32>
    %140 = arith.subf %139, %137 : vector<3x384xf32>
    %141 = arith.mulf %138, %140 : vector<3x384xf32>
    %142 = arith.addf %137, %141 : vector<3x384xf32>
    %143 = vector.extract_strided_slice %136 {offsets = [3, 0], sizes = [3, 384], strides = [1, 1]} : vector<24x384xf32> to vector<3x384xf32>
    %144 = arith.mulf %142, %142 : vector<3x384xf32>
    %145 = arith.subf %144, %142 : vector<3x384xf32>
    %146 = arith.mulf %143, %145 : vector<3x384xf32>
    %147 = arith.addf %142, %146 : vector<3x384xf32>
    %148 = vector.extract_strided_slice %136 {offsets = [6, 0], sizes = [3, 384], strides = [1, 1]} : vector<24x384xf32> to vector<3x384xf32>
    %149 = arith.mulf %147, %147 : vector<3x384xf32>
    %150 = arith.subf %149, %147 : vector<3x384xf32>
    %151 = arith.mulf %148, %150 : vector<3x384xf32>
    %152 = arith.addf %147, %151 : vector<3x384xf32>
    %153 = vector.extract_strided_slice %136 {offsets = [9, 0], sizes = [3, 384], strides = [1, 1]} : vector<24x384xf32> to vector<3x384xf32>
    %154 = arith.mulf %152, %152 : vector<3x384xf32>
    %155 = arith.subf %154, %152 : vector<3x384xf32>
    %156 = arith.mulf %153, %155 : vector<3x384xf32>
    %157 = arith.addf %152, %156 : vector<3x384xf32>
    %158 = vector.extract_strided_slice %136 {offsets = [12, 0], sizes = [3, 384], strides = [1, 1]} : vector<24x384xf32> to vector<3x384xf32>
    %159 = arith.mulf %157, %157 : vector<3x384xf32>
    %160 = arith.subf %159, %157 : vector<3x384xf32>
    %161 = arith.mulf %158, %160 : vector<3x384xf32>
    %162 = arith.addf %157, %161 : vector<3x384xf32>
    %163 = vector.extract_strided_slice %136 {offsets = [15, 0], sizes = [3, 384], strides = [1, 1]} : vector<24x384xf32> to vector<3x384xf32>
    %164 = arith.mulf %162, %162 : vector<3x384xf32>
    %165 = arith.subf %164, %162 : vector<3x384xf32>
    %166 = arith.mulf %163, %165 : vector<3x384xf32>
    %167 = arith.addf %162, %166 : vector<3x384xf32>
    %168 = vector.extract_strided_slice %136 {offsets = [18, 0], sizes = [3, 384], strides = [1, 1]} : vector<24x384xf32> to vector<3x384xf32>
    %169 = arith.mulf %167, %167 : vector<3x384xf32>
    %170 = arith.subf %169, %167 : vector<3x384xf32>
    %171 = arith.mulf %168, %170 : vector<3x384xf32>
    %172 = arith.addf %167, %171 : vector<3x384xf32>
    %173 = vector.extract_strided_slice %136 {offsets = [21, 0], sizes = [3, 384], strides = [1, 1]} : vector<24x384xf32> to vector<3x384xf32>
    %174 = arith.mulf %172, %172 : vector<3x384xf32>
    %175 = arith.subf %174, %172 : vector<3x384xf32>
    %176 = arith.mulf %173, %175 : vector<3x384xf32>
    %177 = arith.addf %172, %176 : vector<3x384xf32>
    %178 = vector.shape_cast %177 : vector<3x384xf32> to vector<1x3x384xf32>
    %c0_101 = arith.constant 0 : index
    %c0_102 = arith.constant 0 : index
    %c0_103 = arith.constant 0 : index
    %179 = vector.load %arg13[%c0_101, %c0_102, %c0_103] : memref<1x3x384xf32, #tpu.memory_space<vmem>>, vector<1x3x384xf32>
    tpu.vector_store %arg13[%c0_101, %c0_102, %c0_103], %178 {strides = array<i32>} : memref<1x3x384xf32, #tpu.memory_space<vmem>>, vector<1x3x384xf32>,
    %180 = vector.shape_cast %136 : vector<24x384xf32> to vector<1x24x384xf32>
    %c0_104 = arith.constant 0 : index
    %c0_105 = arith.constant 0 : index
    %c0_106 = arith.constant 0 : index
    %181 = vector.load %arg14[%c0_104, %c0_105, %c0_106] : memref<1x24x384xf32, #tpu.memory_space<vmem>>, vector<1x24x384xf32>
    tpu.vector_store %arg14[%c0_104, %c0_105, %c0_106], %180 {strides = array<i32>} : memref<1x24x384xf32, #tpu.memory_space<vmem>>, vector<1x24x384xf32>,
    return
  }
  func.func @transform_0(%arg0: i32) -> (i32, i32, i32) {
    %c0_i32 = arith.constant 0 : i32
    %c0_i32_0 = arith.constant 0 : i32
    %c0_i32_1 = arith.constant 0 : i32
    return %arg0, %c0_i32, %c0_i32_0 : i32, i32, i32
  }
  func.func @transform_1(%arg0: i32) -> (i32, i32) {
    %c0_i32 = arith.constant 0 : i32
    %c0_i32_0 = arith.constant 0 : i32
    %c0_i32_1 = arith.constant 0 : i32
    return %c0_i32, %c0_i32_0 : i32, i32
  }
  func.func @transform_2(%arg0: i32) -> (i32, i32) {
    %c0_i32 = arith.constant 0 : i32
    %c0_i32_0 = arith.constant 0 : i32
    %c0_i32_1 = arith.constant 0 : i32
    return %c0_i32, %c0_i32_0 : i32, i32
  }
  func.func @transform_3(%arg0: i32) -> (i32, i32) {
    %c0_i32 = arith.constant 0 : i32
    %c0_i32_0 = arith.constant 0 : i32
    %c0_i32_1 = arith.constant 0 : i32
    return %c0_i32, %c0_i32_0 : i32, i32
  }
  func.func @transform_4(%arg0: i32) -> (i32, i32) {
    %c0_i32 = arith.constant 0 : i32
    %c0_i32_0 = arith.constant 0 : i32
    %c0_i32_1 = arith.constant 0 : i32
    return %c0_i32, %c0_i32_0 : i32, i32
  }
  func.func @transform_5(%arg0: i32) -> (i32, i32) {
    %c0_i32 = arith.constant 0 : i32
    %c0_i32_0 = arith.constant 0 : i32
    %c0_i32_1 = arith.constant 0 : i32
    return %c0_i32, %c0_i32_0 : i32, i32
  }
  func.func @transform_6(%arg0: i32) -> (i32, i32) {
    %c0_i32 = arith.constant 0 : i32
    %c0_i32_0 = arith.constant 0 : i32
    %c0_i32_1 = arith.constant 0 : i32
    return %c0_i32, %c0_i32_0 : i32, i32
  }
  func.func @transform_7(%arg0: i32) -> (i32, i32) {
    %c0_i32 = arith.constant 0 : i32
    %c0_i32_0 = arith.constant 0 : i32
    %c0_i32_1 = arith.constant 0 : i32
    return %c0_i32, %c0_i32_0 : i32, i32
  }
  func.func @transform_8(%arg0: i32) -> (i32, i32) {
    %c0_i32 = arith.constant 0 : i32
    %c0_i32_0 = arith.constant 0 : i32
    %c0_i32_1 = arith.constant 0 : i32
    return %c0_i32, %c0_i32_0 : i32, i32
  }
  func.func @transform_9(%arg0: i32) -> (i32, i32) {
    %c0_i32 = arith.constant 0 : i32
    %c0_i32_0 = arith.constant 0 : i32
    %c0_i32_1 = arith.constant 0 : i32
    return %c0_i32, %c0_i32_0 : i32, i32
  }
  func.func @transform_10(%arg0: i32) -> (i32, i32) {
    %c0_i32 = arith.constant 0 : i32
    %c0_i32_0 = arith.constant 0 : i32
    %c0_i32_1 = arith.constant 0 : i32
    return %c0_i32, %c0_i32_0 : i32, i32
  }
  func.func @transform_11(%arg0: i32) -> (i32, i32) {
    %c0_i32 = arith.constant 0 : i32
    %c0_i32_0 = arith.constant 0 : i32
    %c0_i32_1 = arith.constant 0 : i32
    return %c0_i32, %c0_i32_0 : i32, i32
  }
  func.func @transform_12(%arg0: i32) -> (i32, i32, i32) {
    %c0_i32 = arith.constant 0 : i32
    %c0_i32_0 = arith.constant 0 : i32
    %c0_i32_1 = arith.constant 0 : i32
    return %arg0, %c0_i32, %c0_i32_0 : i32, i32, i32
  }
  func.func @transform_13(%arg0: i32) -> (i32, i32, i32) {
    %c0_i32 = arith.constant 0 : i32
    %c0_i32_0 = arith.constant 0 : i32
    %c0_i32_1 = arith.constant 0 : i32
    return %arg0, %c0_i32, %c0_i32_0 : i32, i32, i32
  }
}

</mosaic_0001>

<llo_original>
// kernel: zrdce_forward.1
$region0: #{zrdce_forward.1}
  #allocation0 [shape = 'u32[]', space=smem, size = 0x4, offset = 0x4, fixed_abs, tag = 'smem constant byte address 0x4 - core index']
  #allocation1 [shape = 'u32[144,128]{1,0:T(1,128)}', space=vmem, size = 0x12000, scoped, tag = 'internal scratch']
  %s0 = inlined_call_operand.vmem [shape: f32[2,8,384], index: 0, kind: input, shape index: {}]
  %s1 = inlined_call_operand.vmem [shape: f32[1,384], index: 1, kind: input, shape index: {}]
  %s2 = inlined_call_operand.vmem [shape: f32[32,72], index: 2, kind: input, shape index: {}]
  %s3 = inlined_call_operand.vmem [shape: f32[32,1], index: 3, kind: input, shape index: {}]
  %s4 = inlined_call_operand.vmem [shape: f32[32,288], index: 4, kind: input, shape index: {}]
  %s5 = inlined_call_operand.vmem [shape: f32[32,1], index: 5, kind: input, shape index: {}]
  %s6 = inlined_call_operand.vmem [shape: f32[32,288], index: 6, kind: input, shape index: {}]
  %s7 = inlined_call_operand.vmem [shape: f32[32,288], index: 7, kind: input, shape index: {}]
  %s8 = inlined_call_operand.vmem [shape: f32[32,1], index: 8, kind: input, shape index: {}]
  %s9 = inlined_call_operand.vmem [shape: f32[24,288], index: 9, kind: input, shape index: {}]
  %s10 = inlined_call_operand.vmem [shape: f32[24,288], index: 10, kind: input, shape index: {}]
  %s11 = inlined_call_operand.vmem [shape: f32[24,1], index: 11, kind: input, shape index: {}]
  %s12 = inlined_call_operand.vmem [shape: f32[2,3,384], index: 12, kind: output, shape index: {0}]
  %s13 = inlined_call_operand.vmem [shape: f32[2,24,384], index: 13, kind: output, shape index: {1}]
  %14 = xla_tuple %s12, %s13
  %s15 = sld [smem:[#allocation0]]
  $region89: #{zrdce_forward.1} parent=0
    _
  %s17 = ssub.s32 1, %s15
  %s18 = scalar_select 0, %s17, %s15
  loop: start=0, step=1, limit=4
  $region2: #{zrdce_forward.1} parent=0 // loop_pre_header
    _
  $region3: #{zrdce_forward.1} parent=0 // loop_header
    %s20 = sphi 0, %s24
    %p21 = scmp.ge.s32.totalorder %s20, 4
    %s30 = sphi 0, %s32
    %s33 = sphi 0, %s30
    %s34 = sphi 0, %s33
    %s50 = sphi 0, %s34
    %s54 = sphi 0, %s54
    %s56 = sphi 0, %s54
    %s57 = sphi 0, %s56
    %s71 = sphi 0, %s57
    %s75 = sphi 0, %s75
    %s77 = sphi 0, %s75
    %s78 = sphi 0, %s77
    %s92 = sphi 0, %s78
    %s96 = sphi 0, %s96
    %s98 = sphi 0, %s96
    %s99 = sphi 0, %s98
    %s113 = sphi 0, %s99
    %s117 = sphi 0, %s117
    %s119 = sphi 0, %s117
    %s120 = sphi 0, %s119
    %s134 = sphi 0, %s120
    %s138 = sphi 0, %s138
    %s140 = sphi 0, %s138
    %s141 = sphi 0, %s140
    %s155 = sphi 0, %s141
    %s159 = sphi 0, %s159
    %s161 = sphi 0, %s159
    %s162 = sphi 0, %s161
    %s176 = sphi 0, %s162
    %s180 = sphi 0, %s180
    %s182 = sphi 0, %s180
    %s183 = sphi 0, %s182
    %s197 = sphi 0, %s183
    %s201 = sphi 0, %s201
    %s203 = sphi 0, %s201
    %s204 = sphi 0, %s203
    %s218 = sphi 0, %s204
    %s222 = sphi 0, %s222
    %s224 = sphi 0, %s222
    %s225 = sphi 0, %s224
    %s239 = sphi 0, %s225
    %s243 = sphi 0, %s243
    %s245 = sphi 0, %s243
    %s246 = sphi 0, %s245
    %s260 = sphi 0, %s246
    %s264 = sphi 0, %s264
    %s266 = sphi 0, %s264
    %s267 = sphi 0, %s266
    %s281 = sphi 0, %s267
    %s287 = sphi 0, %s289
    %s290 = sphi 0, %s287
    %s291 = sphi 0, %s290
    %s307 = sphi 0, %s291
    %s313 = sphi 0, %s315
    %s316 = sphi 0, %s313
    %s317 = sphi 0, %s316
    %s333 = sphi 0, %s317
  $region4: #{zrdce_forward.1} parent=0 // loop_header_branch
    %23 = sbr.rel (%p21) target = $region8
  $region5: #{zrdce_forward.1} parent=0 // loop_body
    %s25 = ssub.s32 %s20, 1
    %s26 = ssub.s32 %s20, 2
    %s27 = sadd.s32 %s20, 1
    %s28 = ssub.s32 %s20, %s27
    %p29 = scmp.eq.s32.totalorder %s28, 0
    %s31 = sadd.s32 %s30, 1
    %s32 = scalar_select %p29, %s30, %s31
    %p35 = pneg %p29
    %p36 = scmp.eq.s32.totalorder %s20, 1
    %p37 = por %p35, %p36
    %p38 = scmp.ne.s32.totalorder %s30, %s33
    %p39 = scmp.eq.s32.totalorder %s20, 0
    %p40 = por %p38, %p39
    %p41 = scmp.ne.s32.totalorder %s30, %s33
    %p42 = scmp.eq.s32.totalorder %s25, 1
    %p43 = por %p41, %p42
    %p44 = scmp.ne.s32.totalorder %s33, %s34
    %p45 = scmp.eq.s32.totalorder %s25, 0
    %p46 = por %p44, %p45
    %p47 = scmp.ne.s32.totalorder %s33, %s34
    %p48 = scmp.eq.s32.totalorder %s26, 1
    %p49 = por %p47, %p48
    %p51 = scmp.ne.s32.totalorder %s34, %s50
    %p52 = scmp.eq.s32.totalorder %s26, 0
    %p53 = por %p51, %p52
    %s55 = sadd.s32 %s54, 1
    %p58 = scmp.eq.s32.totalorder %s20, 1
    %p59 = scmp.ne.s32.totalorder %s54, %s56
    %p60 = scmp.eq.s32.totalorder %s20, 0
    %p61 = por %p59, %p60
    %p62 = scmp.ne.s32.totalorder %s54, %s56
    %p63 = scmp.eq.s32.totalorder %s25, 1
    %p64 = por %p62, %p63
    %p65 = scmp.ne.s32.totalorder %s56, %s57
    %p66 = scmp.eq.s32.totalorder %s25, 0
    %p67 = por %p65, %p66
    %p68 = scmp.ne.s32.totalorder %s56, %s57
    %p69 = scmp.eq.s32.totalorder %s26, 1
    %p70 = por %p68, %p69
    %p72 = scmp.ne.s32.totalorder %s57, %s71
    %p73 = scmp.eq.s32.totalorder %s26, 0
    %p74 = por %p72, %p73
    %s76 = sadd.s32 %s75, 1
    %p79 = scmp.eq.s32.totalorder %s20, 1
    %p80 = scmp.ne.s32.totalorder %s75, %s77
    %p81 = scmp.eq.s32.totalorder %s20, 0
    %p82 = por %p80, %p81
    %p83 = scmp.ne.s32.totalorder %s75, %s77
    %p84 = scmp.eq.s32.totalorder %s25, 1
    %p85 = por %p83, %p84
    %p86 = scmp.ne.s32.totalorder %s77, %s78
    %p87 = scmp.eq.s32.totalorder %s25, 0
    %p88 = por %p86, %p87
    %p89 = scmp.ne.s32.totalorder %s77, %s78
    %p90 = scmp.eq.s32.totalorder %s26, 1
    %p91 = por %p89, %p90
    %p93 = scmp.ne.s32.totalorder %s78, %s92
    %p94 = scmp.eq.s32.totalorder %s26, 0
    %p95 = por %p93, %p94
    %s97 = sadd.s32 %s96, 1
    %p100 = scmp.eq.s32.totalorder %s20, 1
    %p101 = scmp.ne.s32.totalorder %s96, %s98
    %p102 = scmp.eq.s32.totalorder %s20, 0
    %p103 = por %p101, %p102
    %p104 = scmp.ne.s32.totalorder %s96, %s98
    %p105 = scmp.eq.s32.totalorder %s25, 1
    %p106 = por %p104, %p105
    %p107 = scmp.ne.s32.totalorder %s98, %s99
    %p108 = scmp.eq.s32.totalorder %s25, 0
    %p109 = por %p107, %p108
    %p110 = scmp.ne.s32.totalorder %s98, %s99
    %p111 = scmp.eq.s32.totalorder %s26, 1
    %p112 = por %p110, %p111
    %p114 = scmp.ne.s32.totalorder %s99, %s113
    %p115 = scmp.eq.s32.totalorder %s26, 0
    %p116 = por %p114, %p115
    %s118 = sadd.s32 %s117, 1
    %p121 = scmp.eq.s32.totalorder %s20, 1
    %p122 = scmp.ne.s32.totalorder %s117, %s119
    %p123 = scmp.eq.s32.totalorder %s20, 0
    %p124 = por %p122, %p123
    %p125 = scmp.ne.s32.totalorder %s117, %s119
    %p126 = scmp.eq.s32.totalorder %s25, 1
    %p127 = por %p125, %p126
    %p128 = scmp.ne.s32.totalorder %s119, %s120
    %p129 = scmp.eq.s32.totalorder %s25, 0
    %p130 = por %p128, %p129
    %p131 = scmp.ne.s32.totalorder %s119, %s120
    %p132 = scmp.eq.s32.totalorder %s26, 1
    %p133 = por %p131, %p132
    %p135 = scmp.ne.s32.totalorder %s120, %s134
    %p136 = scmp.eq.s32.totalorder %s26, 0
    %p137 = por %p135, %p136
    %s139 = sadd.s32 %s138, 1
    %p142 = scmp.eq.s32.totalorder %s20, 1
    %p143 = scmp.ne.s32.totalorder %s138, %s140
    %p144 = scmp.eq.s32.totalorder %s20, 0
    %p145 = por %p143, %p144
    %p146 = scmp.ne.s32.totalorder %s138, %s140
    %p147 = scmp.eq.s32.totalorder %s25, 1
    %p148 = por %p146, %p147
    %p149 = scmp.ne.s32.totalorder %s140, %s141
    %p150 = scmp.eq.s32.totalorder %s25, 0
    %p151 = por %p149, %p150
    %p152 = scmp.ne.s32.totalorder %s140, %s141
    %p153 = scmp.eq.s32.totalorder %s26, 1
    %p154 = por %p152, %p153
    %p156 = scmp.ne.s32.totalorder %s141, %s155
    %p157 = scmp.eq.s32.totalorder %s26, 0
    %p158 = por %p156, %p157
    %s160 = sadd.s32 %s159, 1
    %p163 = scmp.eq.s32.totalorder %s20, 1
    %p164 = scmp.ne.s32.totalorder %s159, %s161
    %p165 = scmp.eq.s32.totalorder %s20, 0
    %p166 = por %p164, %p165
    %p167 = scmp.ne.s32.totalorder %s159, %s161
    %p168 = scmp.eq.s32.totalorder %s25, 1
    %p169 = por %p167, %p168
    %p170 = scmp.ne.s32.totalorder %s161, %s162
    %p171 = scmp.eq.s32.totalorder %s25, 0
    %p172 = por %p170, %p171
    %p173 = scmp.ne.s32.totalorder %s161, %s162
    %p174 = scmp.eq.s32.totalorder %s26, 1
    %p175 = por %p173, %p174
    %p177 = scmp.ne.s32.totalorder %s162, %s176
    %p178 = scmp.eq.s32.totalorder %s26, 0
    %p179 = por %p177, %p178
    %s181 = sadd.s32 %s180, 1
    %p184 = scmp.eq.s32.totalorder %s20, 1
    %p185 = scmp.ne.s32.totalorder %s180, %s182
    %p186 = scmp.eq.s32.totalorder %s20, 0
    %p187 = por %p185, %p186
    %p188 = scmp.ne.s32.totalorder %s180, %s182
    %p189 = scmp.eq.s32.totalorder %s25, 1
    %p190 = por %p188, %p189
    %p191 = scmp.ne.s32.totalorder %s182, %s183
    %p192 = scmp.eq.s32.totalorder %s25, 0
    %p193 = por %p191, %p192
    %p194 = scmp.ne.s32.totalorder %s182, %s183
    %p195 = scmp.eq.s32.totalorder %s26, 1
    %p196 = por %p194, %p195
    %p198 = scmp.ne.s32.totalorder %s183, %s197
    %p199 = scmp.eq.s32.totalorder %s26, 0
    %p200 = por %p198, %p199
    %s202 = sadd.s32 %s201, 1
    %p205 = scmp.eq.s32.totalorder %s20, 1
    %p206 = scmp.ne.s32.totalorder %s201, %s203
    %p207 = scmp.eq.s32.totalorder %s20, 0
    %p208 = por %p206, %p207
    %p209 = scmp.ne.s32.totalorder %s201, %s203
    %p210 = scmp.eq.s32.totalorder %s25, 1
    %p211 = por %p209, %p210
    %p212 = scmp.ne.s32.totalorder %s203, %s204
    %p213 = scmp.eq.s32.totalorder %s25, 0
    %p214 = por %p212, %p213
    %p215 = scmp.ne.s32.totalorder %s203, %s204
    %p216 = scmp.eq.s32.totalorder %s26, 1
    %p217 = por %p215, %p216
    %p219 = scmp.ne.s32.totalorder %s204, %s218
    %p220 = scmp.eq.s32.totalorder %s26, 0
    %p221 = por %p219, %p220
    %s223 = sadd.s32 %s222, 1
    %p226 = scmp.eq.s32.totalorder %s20, 1
    %p227 = scmp.ne.s32.totalorder %s222, %s224
    %p228 = scmp.eq.s32.totalorder %s20, 0
    %p229 = por %p227, %p228
    %p230 = scmp.ne.s32.totalorder %s222, %s224
    %p231 = scmp.eq.s32.totalorder %s25, 1
    %p232 = por %p230, %p231
    %p233 = scmp.ne.s32.totalorder %s224, %s225
    %p234 = scmp.eq.s32.totalorder %s25, 0
    %p235 = por %p233, %p234
    %p236 = scmp.ne.s32.totalorder %s224, %s225
    %p237 = scmp.eq.s32.totalorder %s26, 1
    %p238 = por %p236, %p237
    %p240 = scmp.ne.s32.totalorder %s225, %s239
    %p241 = scmp.eq.s32.totalorder %s26, 0
    %p242 = por %p240, %p241
    %s244 = sadd.s32 %s243, 1
    %p247 = scmp.eq.s32.totalorder %s20, 1
    %p248 = scmp.ne.s32.totalorder %s243, %s245
    %p249 = scmp.eq.s32.totalorder %s20, 0
    %p250 = por %p248, %p249
    %p251 = scmp.ne.s32.totalorder %s243, %s245
    %p252 = scmp.eq.s32.totalorder %s25, 1
    %p253 = por %p251, %p252
    %p254 = scmp.ne.s32.totalorder %s245, %s246
    %p255 = scmp.eq.s32.totalorder %s25, 0
    %p256 = por %p254, %p255
    %p257 = scmp.ne.s32.totalorder %s245, %s246
    %p258 = scmp.eq.s32.totalorder %s26, 1
    %p259 = por %p257, %p258
    %p261 = scmp.ne.s32.totalorder %s246, %s260
    %p262 = scmp.eq.s32.totalorder %s26, 0
    %p263 = por %p261, %p262
    %s265 = sadd.s32 %s264, 1
    %p268 = scmp.eq.s32.totalorder %s20, 1
    %p269 = scmp.ne.s32.totalorder %s264, %s266
    %p270 = scmp.eq.s32.totalorder %s20, 0
    %p271 = por %p269, %p270
    %p272 = scmp.ne.s32.totalorder %s264, %s266
    %p273 = scmp.eq.s32.totalorder %s25, 1
    %p274 = por %p272, %p273
    %p275 = scmp.ne.s32.totalorder %s266, %s267
    %p276 = scmp.eq.s32.totalorder %s25, 0
    %p277 = por %p275, %p276
    %p278 = scmp.ne.s32.totalorder %s266, %s267
    %p279 = scmp.eq.s32.totalorder %s26, 1
    %p280 = por %p278, %p279
    %p282 = scmp.ne.s32.totalorder %s267, %s281
    %p283 = scmp.eq.s32.totalorder %s26, 0
    %p284 = por %p282, %p283
    %s285 = ssub.s32 %s20, %s27
    %p286 = scmp.eq.s32.totalorder %s285, 0
    %s288 = sadd.s32 %s287, 1
    %s289 = scalar_select %p286, %s287, %s288
    %p292 = pneg %p286
    %p293 = scmp.eq.s32.totalorder %s20, 1
    %p294 = por %p292, %p293
    %p295 = scmp.ne.s32.totalorder %s287, %s290
    %p296 = scmp.eq.s32.totalorder %s20, 0
    %p297 = por %p295, %p296
    %p298 = scmp.ne.s32.totalorder %s287, %s290
    %p299 = scmp.eq.s32.totalorder %s25, 1
    %p300 = por %p298, %p299
    %p301 = scmp.ne.s32.totalorder %s290, %s291
    %p302 = scmp.eq.s32.totalorder %s25, 0
    %p303 = por %p301, %p302
    %p304 = scmp.ne.s32.totalorder %s290, %s291
    %p305 = scmp.eq.s32.totalorder %s26, 1
    %p306 = por %p304, %p305
    %p308 = scmp.ne.s32.totalorder %s291, %s307
    %p309 = scmp.eq.s32.totalorder %s26, 0
    %p310 = por %p308, %p309
    %s311 = ssub.s32 %s20, %s27
    %p312 = scmp.eq.s32.totalorder %s311, 0
    %s314 = sadd.s32 %s313, 1
    %s315 = scalar_select %p312, %s313, %s314
    %p318 = pneg %p312
    %p319 = scmp.eq.s32.totalorder %s20, 1
    %p320 = por %p318, %p319
    %p321 = scmp.ne.s32.totalorder %s313, %s316
    %p322 = scmp.eq.s32.totalorder %s20, 0
    %p323 = por %p321, %p322
    %p324 = scmp.ne.s32.totalorder %s313, %s316
    %p325 = scmp.eq.s32.totalorder %s25, 1
    %p326 = por %p324, %p325
    %p327 = scmp.ne.s32.totalorder %s316, %s317
    %p328 = scmp.eq.s32.totalorder %s25, 0
    %p329 = por %p327, %p328
    %p330 = scmp.ne.s32.totalorder %s316, %s317
    %p331 = scmp.eq.s32.totalorder %s26, 1
    %p332 = por %p330, %p331
    %p334 = scmp.ne.s32.totalorder %s317, %s333
    %p335 = scmp.eq.s32.totalorder %s26, 0
    %p336 = por %p334, %p335
    %p337 = scmp.le.s32.totalorder 1, %s20
    %p338 = scmp.lt.s32.totalorder %s20, 3
    %p339 = pnand %p337, %p338
    %p340 = pneg %p339
    // Predicated region
    $region9: #{zrdce_forward.1} parent=5 // pred_check
      _
    $region10: #{zrdce_forward.1} parent=5 // pred_check_branch
      %342 = sbr.rel (%p339) target = $region12
    $region11: #{zrdce_forward.1} parent=5 // pred_region
      %s343 = ssub.s32 %s20, 1
      // Predicated region
      $region13: #{zrdce_forward.1} parent=11 // pred_check
        %p344 = pneg %p67
      $region14: #{zrdce_forward.1} parent=11 // pred_check_branch
        %346 = sbr.rel (%p344) target = $region16
      $region15: #{zrdce_forward.1} parent=11 // pred_region
        _
      $region16: #{zrdce_forward.1} parent=11 // pred_fallthru
        _
      // Predicated region
      $region17: #{zrdce_forward.1} parent=11 // pred_check
        %p347 = pneg %p88
      $region18: #{zrdce_forward.1} parent=11 // pred_check_branch
        %349 = sbr.rel (%p347) target = $region20
      $region19: #{zrdce_forward.1} parent=11 // pred_region
        _
      $region20: #{zrdce_forward.1} parent=11 // pred_fallthru
        _
      // Predicated region
      $region21: #{zrdce_forward.1} parent=11 // pred_check
        %p350 = pneg %p109
      $region22: #{zrdce_forward.1} parent=11 // pred_check_branch
        %352 = sbr.rel (%p350) target = $region24
      $region23: #{zrdce_forward.1} parent=11 // pred_region
        _
      $region24: #{zrdce_forward.1} parent=11 // pred_fallthru
        _
      // Predicated region
      $region25: #{zrdce_forward.1} parent=11 // pred_check
        %p353 = pneg %p130
      $region26: #{zrdce_forward.1} parent=11 // pred_check_branch
        %355 = sbr.rel (%p353) target = $region28
      $region27: #{zrdce_forward.1} parent=11 // pred_region
        _
      $region28: #{zrdce_forward.1} parent=11 // pred_fallthru
        _
      // Predicated region
      $region29: #{zrdce_forward.1} parent=11 // pred_check
        %p356 = pneg %p151
      $region30: #{zrdce_forward.1} parent=11 // pred_check_branch
        %358 = sbr.rel (%p356) target = $region32
      $region31: #{zrdce_forward.1} parent=11 // pred_region
        _
      $region32: #{zrdce_forward.1} parent=11 // pred_fallthru
        _
      // Predicated region
      $region33: #{zrdce_forward.1} parent=11 // pred_check
        %p359 = pneg %p172
      $region34: #{zrdce_forward.1} parent=11 // pred_check_branch
        %361 = sbr.rel (%p359) target = $region36
      $region35: #{zrdce_forward.1} parent=11 // pred_region
        _
      $region36: #{zrdce_forward.1} parent=11 // pred_fallthru
        _
      // Predicated region
      $region37: #{zrdce_forward.1} parent=11 // pred_check
        %p362 = pneg %p193
      $region38: #{zrdce_forward.1} parent=11 // pred_check_branch
        %364 = sbr.rel (%p362) target = $region40
      $region39: #{zrdce_forward.1} parent=11 // pred_region
        _
      $region40: #{zrdce_forward.1} parent=11 // pred_fallthru
        _
      // Predicated region
      $region41: #{zrdce_forward.1} parent=11 // pred_check
        %p365 = pneg %p214
      $region42: #{zrdce_forward.1} parent=11 // pred_check_branch
        %367 = sbr.rel (%p365) target = $region44
      $region43: #{zrdce_forward.1} parent=11 // pred_region
        _
      $region44: #{zrdce_forward.1} parent=11 // pred_fallthru
        _
      // Predicated region
      $region45: #{zrdce_forward.1} parent=11 // pred_check
        %p368 = pneg %p235
      $region46: #{zrdce_forward.1} parent=11 // pred_check_branch
        %370 = sbr.rel (%p368) target = $region48
      $region47: #{zrdce_forward.1} parent=11 // pred_region
        _
      $region48: #{zrdce_forward.1} parent=11 // pred_fallthru
        _
      // Predicated region
      $region49: #{zrdce_forward.1} parent=11 // pred_check
        %p371 = pneg %p256
      $region50: #{zrdce_forward.1} parent=11 // pred_check_branch
        %373 = sbr.rel (%p371) target = $region52
      $region51: #{zrdce_forward.1} parent=11 // pred_region
        _
      $region52: #{zrdce_forward.1} parent=11 // pred_fallthru
        _
      // Predicated region
      $region53: #{zrdce_forward.1} parent=11 // pred_check
        %p374 = pneg %p277
      $region54: #{zrdce_forward.1} parent=11 // pred_check_branch
        %376 = sbr.rel (%p374) target = $region56
      $region55: #{zrdce_forward.1} parent=11 // pred_region
        _
      $region56: #{zrdce_forward.1} parent=11 // pred_fallthru
        _
    $region12: #{zrdce_forward.1} parent=5 // pred_fallthru
      _
    %p377 = scmp.lt.s32.totalorder %s20, 2
    // Predicated region
    $region57: #{zrdce_forward.1} parent=5 // pred_check
      %p378 = pneg %p377
    $region58: #{zrdce_forward.1} parent=5 // pred_check_branch
      %380 = sbr.rel (%p378) target = $region60
    $region59: #{zrdce_forward.1} parent=5 // pred_region
      // Predicated region
      $region61: #{zrdce_forward.1} parent=59 // pred_check
        %p381 = pneg %p40
      $region62: #{zrdce_forward.1} parent=59 // pred_check_branch
        %383 = sbr.rel (%p381) target = $region64
      $region63: #{zrdce_forward.1} parent=59 // pred_region
        %p384 = scmp.lt.s32.totalorder %s20, 1
        %s385 = scalar_select %p384, %s20, 1
        %s386 = smul.addr %s385, 3
        %s387 = smul.addr %s386, 8
        %s388 = scalar_lea.vmem %s0, %s387
      $region64: #{zrdce_forward.1} parent=59 // pred_fallthru
        _
    $region60: #{zrdce_forward.1} parent=5 // pred_fallthru
      _
    %p389 = scmp.le.s32.totalorder 1, %s20
    %p390 = scmp.lt.s32.totalorder %s20, 3
    %p391 = pnand %p389, %p390
    %p392 = pneg %p391
    // Predicated region
    $region65: #{zrdce_forward.1} parent=5 // pred_check
      _
    $region66: #{zrdce_forward.1} parent=5 // pred_check_branch
      %394 = sbr.rel (%p391) target = $region68
    $region67: #{zrdce_forward.1} parent=5 // pred_region
      %s395 = ssub.s32 %s20, 1
      %p396 = scmp.lt.s32.totalorder %s25, 1
      %s397 = scalar_select %p396, %s25, 1
      %s398 = smul.addr %s397, 3
      %s399 = smul.addr %s398, 8
      %s400 = scalar_lea.vmem %s0, %s399
      %p401 = pneg %p46
      %p402 = pneg %p43
      %p403 = pneg %p67
      %p404 = pneg %p64
      %p405 = pneg %p88
      %p406 = pneg %p85
      %p407 = pneg %p109
      %p408 = pneg %p106
      %p409 = pneg %p130
      %p410 = pneg %p127
      %p411 = pneg %p151
      %p412 = pneg %p148
      %p413 = pneg %p172
      %p414 = pneg %p169
      %p415 = pneg %p193
      %p416 = pneg %p190
      %p417 = pneg %p214
      %p418 = pneg %p211
      %p419 = pneg %p235
      %p420 = pneg %p232
      %p421 = pneg %p256
      %p422 = pneg %p253
      %p423 = pneg %p277
      %p424 = pneg %p274
      %p425 = pneg %p303
      %p426 = pneg %p300
      %p427 = scmp.lt.s32.totalorder %s25, 1
      %s428 = scalar_select %p427, %s25, 1
      %s429 = smul.addr %s428, 3
      %s430 = smul.addr %s429, 4
      %s431 = scalar_lea.vmem %s12, %s430
      %p432 = pneg %p329
      %p433 = pneg %p326
      %p434 = scmp.lt.s32.totalorder %s25, 1
      %s435 = scalar_select %p434, %s25, 1
      %s436 = smul.addr %s435, 9
      %s437 = smul.addr %s436, 8
      %s438 = scalar_lea.vmem %s13, %s437
      %p439 = scmp.lt.s32.totalorder %s25, 1
      %s440 = scalar_select %p439, %s25, 1
      %s441 = smul.addr %s440, 3
      %s442 = smul.addr %s441, 8
      %s443 = scalar_lea.vmem %s0, %s442
      %p444 = scmp.lt.s32.totalorder %s25, 1
      %s445 = scalar_select %p444, %s25, 1
      %s446 = smul.addr %s445, 3
      %s447 = smul.addr %s446, 4
      %s448 = scalar_lea.vmem %s12, %s447
      %p449 = scmp.lt.s32.totalorder %s25, 1
      %s450 = scalar_select %p449, %s25, 1
      %s451 = smul.addr %s450, 9
      %s452 = smul.addr %s451, 8
      %s453 = scalar_lea.vmem %s13, %s452
      %v454 = vld [vmem:[%s1] sm:$0x7]
      %v455 = vld [vmem:[%s443] sm:$0xff]
      %v456 = vld [vmem:[%s443 + $0x8] sm:$0xff]
      %v457 = vld [vmem:[%s443 + $0x10] sm:$0xff]
      %458 = vrot.lane.b32.xlu0 %v455, 19
      %v459 = vpop.permute.xlu0 %458
      %460 = vrot.lane.b32.xlu0 %v456, 19
      %v461 = vpop.permute.xlu0 %460
      %462 = vrot.lane.b32.xlu0 %v457, 19
      %v463 = vpop.permute.xlu0 %462
      %v464 = vlaneseq
      %v465 = vand.u32 %v464, 127
      %vm466 = vcmp.lt.s32.totalorder %v465, 19
      %v467 = vsel %vm466, %v461, %v463
      %v468 = vsel %vm466, %v459, %v461
      %v469 = vsel %vm466, %v463, %v459
      %470 = vrot.lane.b32.xlu0 %v455, 18
      %v471 = vpop.permute.xlu0 %470
      %472 = vrot.lane.b32.xlu0 %v456, 18
      %v473 = vpop.permute.xlu0 %472
      %474 = vrot.lane.b32.xlu0 %v457, 18
      %v475 = vpop.permute.xlu0 %474
      %vm476 = vcmp.lt.s32.totalorder %v465, 18
      %v477 = vsel %vm476, %v473, %v475
      %v478 = vsel %vm476, %v471, %v473
      %v479 = vsel %vm476, %v475, %v471
      %480 = vrot.lane.b32.xlu0 %v455, 17
      %v481 = vpop.permute.xlu0 %480
      %482 = vrot.lane.b32.xlu0 %v456, 17
      %v483 = vpop.permute.xlu0 %482
      %484 = vrot.lane.b32.xlu0 %v457, 17
      %v485 = vpop.permute.xlu0 %484
      %vm486 = vcmp.lt.s32.totalorder %v465, 17
      %v487 = vsel %vm486, %v483, %v485
      %v488 = vsel %vm486, %v481, %v483
      %v489 = vsel %vm486, %v485, %v481
      %490 = vrot.lane.b32.xlu0 %v455, 1
      %v491 = vpop.permute.xlu0 %490
      %492 = vrot.lane.b32.xlu0 %v456, 1
      %v493 = vpop.permute.xlu0 %492
      %494 = vrot.lane.b32.xlu0 %v457, 1
      %v495 = vpop.permute.xlu0 %494
      %vm496 = vcmp.lt.s32.totalorder %v465, 1
      %v497 = vsel %vm496, %v493, %v495
      %v498 = vsel %vm496, %v491, %v493
      %v499 = vsel %vm496, %v495, %v491
      %500 = vrot.lane.b32.xlu0 %v455, 127
      %v501 = vpop.permute.xlu0 %500
      %502 = vrot.lane.b32.xlu0 %v456, 127
      %v503 = vpop.permute.xlu0 %502
      %504 = vrot.lane.b32.xlu0 %v457, 127
      %v505 = vpop.permute.xlu0 %504
      %vm506 = vcmp.lt.s32.totalorder %v465, 127
      %v507 = vsel %vm506, %v503, %v505
      %v508 = vsel %vm506, %v501, %v503
      %v509 = vsel %vm506, %v505, %v501
      %510 = vrot.lane.b32.xlu0 %v455, 111
      %v511 = vpop.permute.xlu0 %510
      %512 = vrot.lane.b32.xlu0 %v456, 111
      %v513 = vpop.permute.xlu0 %512
      %514 = vrot.lane.b32.xlu0 %v457, 111
      %v515 = vpop.permute.xlu0 %514
      %vm516 = vcmp.lt.s32.totalorder %v465, 111
      %v517 = vsel %vm516, %v513, %v515
      %v518 = vsel %vm516, %v511, %v513
      %v519 = vsel %vm516, %v515, %v511
      %520 = vrot.lane.b32.xlu0 %v455, 110
      %v521 = vpop.permute.xlu0 %520
      %522 = vrot.lane.b32.xlu0 %v456, 110
      %v523 = vpop.permute.xlu0 %522
      %524 = vrot.lane.b32.xlu0 %v457, 110
      %v525 = vpop.permute.xlu0 %524
      %vm526 = vcmp.lt.s32.totalorder %v465, 110
      %v527 = vsel %vm526, %v523, %v525
      %v528 = vsel %vm526, %v521, %v523
      %v529 = vsel %vm526, %v525, %v521
      %530 = vrot.lane.b32.xlu0 %v455, 109
      %v531 = vpop.permute.xlu0 %530
      %532 = vrot.lane.b32.xlu0 %v456, 109
      %v533 = vpop.permute.xlu0 %532
      %534 = vrot.lane.b32.xlu0 %v457, 109
      %v535 = vpop.permute.xlu0 %534
      %vm536 = vcmp.lt.s32.totalorder %v465, 109
      %v537 = vsel %vm536, %v533, %v535
      %v538 = vsel %vm536, %v531, %v533
      %v539 = vsel %vm536, %v535, %v531
      %v540 = vld [vmem:[%s2] sm:$0xff]
      %v541 = vld [vmem:[%s2 + $0x8] sm:$0xff]
      %v542 = vld [vmem:[%s2 + $0x10] sm:$0xff]
      %v543 = vld [vmem:[%s2 + $0x18] sm:$0xff]
      %v544 = vld [vmem:[%s3] sm:$0xff]
      %v545 = vld [vmem:[%s3 + $0x8] sm:$0xff]
      %v546 = vld [vmem:[%s3 + $0x10] sm:$0xff]
      %v547 = vld [vmem:[%s3 + $0x18] sm:$0xff]
      %549 = vset.pattern.permute.xlu0 0
      %550 = vperm.xlu0 %549, %v544
      %v551 = vpop.permute.xlu0 %550
      %554 = vset.pattern.permute.xlu0 0
      %555 = vperm.xlu0 %554, %v545
      %v556 = vpop.permute.xlu0 %555
      %559 = vset.pattern.permute.xlu0 0
      %560 = vperm.xlu0 %559, %v546
      %v561 = vpop.permute.xlu0 %560
      %564 = vset.pattern.permute.xlu0 0
      %565 = vperm.xlu0 %564, %v547
      %v566 = vpop.permute.xlu0 %565
      %vm568 = vcmask 588800
      %v570 = vsel %vm568, %v540, 0
      %v573 = vsel %vm568, %v541, 0
      %v576 = vsel %vm568, %v542, 0
      %v579 = vsel %vm568, %v543, 0
      %581 = vmatprep.subr.mxu0 %v468
      %582 = vmatpush1.msra.mxu0 %v469
      %583 = vmatprep.subr.mxu0 %v478
      %584 = vmatpush1.msra.mxu0 %v479
      %585 = vmatprep.subr.mxu0 %v488
      %586 = vmatpush1.msra.mxu0 %v489
      %587 = vmatprep.subr.mxu0 %v498
      %588 = vmatpush1.msra.mxu0 %v499
      %589 = vmatprep.subr.mxu0 %v456
      %590 = vmatpush1.msra.mxu0 %v455
      %591 = vmatprep.subr.mxu0 %v507
      %592 = vmatpush1.msra.mxu0 %v508
      %593 = vmatprep.subr.mxu0 %v517
      %594 = vmatpush1.msra.mxu0 %v518
      %595 = vmatprep.subr.mxu0 %v527
      %596 = vmatpush1.msra.mxu0 %v528
      %597 = vmatprep.subr.mxu0 %v537
      %598 = vmatpush1.msra.mxu0 %v538
      %599 = vmatprep.subr.mxu0 0.0
      %600 = vmatpush1.msra.mxu0 0.0
      %601 = vmatprep.subr.mxu0 0.0
      %602 = vmatpush1.msra.mxu0 0.0
      %603 = vmatprep.subr.mxu0 0.0
      %604 = vmatpush1.msra.mxu0 0.0
      %605 = vmatprep.subr.mxu0 0.0
      %606 = vmatpush1.msra.mxu0 0.0
      %607 = vmatprep.subr.mxu0 0.0
      %608 = vmatpush1.msra.mxu0 0.0
      %609 = vmatprep.subr.mxu0 0.0
      %610 = vmatpush1.msra.mxu0 0.0
      %611 = vmatprep.subr.mxu0 0.0
      %612 = vmatpush1.msra.mxu0 0.0
      %613 = vmatprep.subr.mxu0 0.0
      %614 = vmatpush1.msra.mxu0 0.0
      %615 = vmatprep.subr.mxu0 0.0
      %616 = vmatpush1.msra.mxu0 0.0
      %617 = vmatprep.subr.mxu0 0.0
      %618 = vmatpush1.msra.mxu0 0.0
      %619 = vmatprep.subr.mxu0 0.0
      %620 = vmatpush1.msra.mxu0 0.0
      %621 = vmatprep.subr.mxu0 0.0
      %622 = vmatpush1.msra.mxu0 0.0
      %623 = vmatprep.subr.mxu0 0.0
      %624 = vmatpush1.msra.mxu0 0.0
      %625 = vmatprep.subr.mxu0 0.0
      %626 = vmatpush1.msra.mxu0 0.0
      %627 = vmatprep.subr.mxu0 0.0
      %628 = vmatpush1.msra.mxu0 0.0
      %629 = vmatprep.subr.mxu0 0.0
      %630 = vmatpush1.msra.mxu0 0.0
      %631 = vmatprep.subr.mxu0 0.0
      %632 = vmatpush1.msra.mxu0 0.0
      %633 = vmatprep.subr.mxu0 0.0
      %634 = vmatpush1.msra.mxu0 0.0
      %635 = vmatprep.subr.mxu0 0.0
      %636 = vmatpush1.msra.mxu0 0.0
      %637 = vmatprep.subr.mxu0 0.0
      %638 = vmatpush1.msra.mxu0 0.0
      %639 = vmatprep.subr.mxu0 0.0
      %640 = vmatpush1.msra.mxu0 0.0
      %641 = vmatprep.subr.mxu0 0.0
      %642 = vmatpush1.msra.mxu0 0.0
      %643 = vmatprep.subr.mxu0 0.0
      %644 = vmatpush1.msra.mxu0 0.0
      %645 = vmatprep.mubr.f32.mxu0 0.0
      %646 = vmatmul.mubr.f32.gmra.mrb[0].mxu0 %v570
      %v647 = vpop.f32.mrb[0].mxu0
      %v648 = vadd.f32 %v551, %v647
      %v649 = vpop.f32.mrb[0].mxu0
      %v650 = vadd.f32 %v551, %v649
      %651 = vmatprep.mubr.f32.mxu0 0.0
      %652 = vmatmul.mubr.f32.gmra.mrb[0].mxu0 %v573
      %v653 = vpop.f32.mrb[0].mxu0
      %v654 = vadd.f32 %v556, %v653
      %v655 = vpop.f32.mrb[0].mxu0
      %v656 = vadd.f32 %v556, %v655
      %657 = vmatprep.mubr.f32.mxu0 0.0
      %658 = vmatmul.mubr.f32.gmra.mrb[0].mxu0 %v576
      %v659 = vpop.f32.mrb[0].mxu0
      %v660 = vadd.f32 %v561, %v659
      %v661 = vpop.f32.mrb[0].mxu0
      %v662 = vadd.f32 %v561, %v661
      %663 = vmatprep.mubr.f32.mxu0 0.0
      %664 = vmatmul.mubr.f32.gmra.mrb[0].mxu0 %v579
      %v665 = vpop.f32.mrb[0].mxu0
      %v666 = vadd.f32 %v566, %v665
      %v667 = vpop.f32.mrb[0].mxu0
      %v668 = vadd.f32 %v566, %v667
      %669 = vdwg.mxu0
      %670 = vmatprep.subr.mxu0 0.0
      %671 = vmatpush1.msra.mxu0 %v467
      %672 = vmatprep.subr.mxu0 0.0
      %673 = vmatpush1.msra.mxu0 %v477
      %674 = vmatprep.subr.mxu0 0.0
      %675 = vmatpush1.msra.mxu0 %v487
      %676 = vmatprep.subr.mxu0 0.0
      %677 = vmatpush1.msra.mxu0 %v497
      %678 = vmatprep.subr.mxu0 0.0
      %679 = vmatpush1.msra.mxu0 %v457
      %680 = vmatprep.subr.mxu0 0.0
      %681 = vmatpush1.msra.mxu0 %v509
      %682 = vmatprep.subr.mxu0 0.0
      %683 = vmatpush1.msra.mxu0 %v519
      %684 = vmatprep.subr.mxu0 0.0
      %685 = vmatpush1.msra.mxu0 %v529
      %686 = vmatprep.subr.mxu0 0.0
      %687 = vmatpush1.msra.mxu0 %v539
      %688 = vmatprep.subr.mxu0 0.0
      %689 = vmatpush1.msra.mxu0 0.0
      %690 = vmatprep.subr.mxu0 0.0
      %691 = vmatpush1.msra.mxu0 0.0
      %692 = vmatprep.subr.mxu0 0.0
      %693 = vmatpush1.msra.mxu0 0.0
      %694 = vmatprep.subr.mxu0 0.0
      %695 = vmatpush1.msra.mxu0 0.0
      %696 = vmatprep.subr.mxu0 0.0
      %697 = vmatpush1.msra.mxu0 0.0
      %698 = vmatprep.subr.mxu0 0.0
      %699 = vmatpush1.msra.mxu0 0.0
      %700 = vmatprep.subr.mxu0 0.0
      %701 = vmatpush1.msra.mxu0 0.0
      %702 = vmatprep.subr.mxu0 0.0
      %703 = vmatpush1.msra.mxu0 0.0
      %704 = vmatprep.subr.mxu0 0.0
      %705 = vmatpush1.msra.mxu0 0.0
      %706 = vmatprep.subr.mxu0 0.0
      %707 = vmatpush1.msra.mxu0 0.0
      %708 = vmatprep.subr.mxu0 0.0
      %709 = vmatpush1.msra.mxu0 0.0
      %710 = vmatprep.subr.mxu0 0.0
      %711 = vmatpush1.msra.mxu0 0.0
      %712 = vmatprep.subr.mxu0 0.0
      %713 = vmatpush1.msra.mxu0 0.0
      %714 = vmatprep.subr.mxu0 0.0
      %715 = vmatpush1.msra.mxu0 0.0
      %716 = vmatprep.subr.mxu0 0.0
      %717 = vmatpush1.msra.mxu0 0.0
      %718 = vmatprep.subr.mxu0 0.0
      %719 = vmatpush1.msra.mxu0 0.0
      %720 = vmatprep.subr.mxu0 0.0
      %721 = vmatpush1.msra.mxu0 0.0
      %722 = vmatprep.subr.mxu0 0.0
      %723 = vmatpush1.msra.mxu0 0.0
      %724 = vmatprep.subr.mxu0 0.0
      %725 = vmatpush1.msra.mxu0 0.0
      %726 = vmatprep.subr.mxu0 0.0
      %727 = vmatpush1.msra.mxu0 0.0
      %728 = vmatprep.subr.mxu0 0.0
      %729 = vmatpush1.msra.mxu0 0.0
      %730 = vmatprep.subr.mxu0 0.0
      %731 = vmatpush1.msra.mxu0 0.0
      %732 = vmatprep.subr.mxu0 0.0
      %733 = vmatpush1.msra.mxu0 0.0
      %734 = vmatprep.mubr.f32.mxu0 0.0
      %735 = vmatmul.mubr.f32.gmra.mrb[0].mxu0 %v570
      %v736 = vpop.f32.mrb[0].mxu0
      %v737 = vadd.f32 %v551, %v736
      %v738 = vpop.f32.mrb[0].mxu0
      %739 = vmatprep.mubr.f32.mxu0 0.0
      %740 = vmatmul.mubr.f32.gmra.mrb[0].mxu0 %v573
      %v741 = vpop.f32.mrb[0].mxu0
      %v742 = vadd.f32 %v556, %v741
      %v743 = vpop.f32.mrb[0].mxu0
      %744 = vmatprep.mubr.f32.mxu0 0.0
      %745 = vmatmul.mubr.f32.gmra.mrb[0].mxu0 %v576
      %v746 = vpop.f32.mrb[0].mxu0
      %v747 = vadd.f32 %v561, %v746
      %v748 = vpop.f32.mrb[0].mxu0
      %749 = vmatprep.mubr.f32.mxu0 0.0
      %750 = vmatmul.mubr.f32.gmra.mrb[0].mxu0 %v579
      %v751 = vpop.f32.mrb[0].mxu0
      %v752 = vadd.f32 %v566, %v751
      %v753 = vpop.f32.mrb[0].mxu0
      %754 = vdwg.mxu0
      %v755 = vmax.f32 %v648, 0.0
      %v756 = vmax.f32 %v650, 0.0
      %v757 = vmax.f32 %v737, 0.0
      %v758 = vmax.f32 %v654, 0.0
      %v759 = vmax.f32 %v656, 0.0
      %v760 = vmax.f32 %v742, 0.0
      %v761 = vmax.f32 %v660, 0.0
      %v762 = vmax.f32 %v662, 0.0
      %v763 = vmax.f32 %v747, 0.0
      %v764 = vmax.f32 %v666, 0.0
      %v765 = vmax.f32 %v668, 0.0
      %v766 = vmax.f32 %v752, 0.0
      %v768 = vlaneseq
      %v769 = vshrl.u32 %v768, 7
      %v770 = vsub.s32 0, %v769
      %v771 = vrot.slane %v454, %v770
      %v772 = vlaneseq
      %v773 = vshrl.u32 %v772, 7
      %v774 = vsub.s32 1, %v773
      %v775 = vrot.slane %v454, %v774
      %v776 = vlaneseq
      %v777 = vshrl.u32 %v776, 7
      %v778 = vsub.s32 2, %v777
      %v779 = vrot.slane %v454, %v778
      %v783 = vmul.f32 %v755, %v771
      %v784 = vmul.f32 %v756, %v775
      %v785 = vmul.f32 %v757, %v779
      %v786 = vmul.f32 %v758, %v771
      %v787 = vmul.f32 %v759, %v775
      %v788 = vmul.f32 %v760, %v779
      %v789 = vmul.f32 %v761, %v771
      %v790 = vmul.f32 %v762, %v775
      %v791 = vmul.f32 %v763, %v779
      %v792 = vmul.f32 %v764, %v771
      %v793 = vmul.f32 %v765, %v775
      %v794 = vmul.f32 %v766, %v779
      %795 = vrot.lane.b32.xlu0 %v783, 19
      %v796 = vpop.permute.xlu0 %795
      %797 = vrot.lane.b32.xlu0 %v786, 19
      %v798 = vpop.permute.xlu0 %797
      %799 = vrot.lane.b32.xlu0 %v789, 19
      %v800 = vpop.permute.xlu0 %799
      %801 = vrot.lane.b32.xlu0 %v792, 19
      %v802 = vpop.permute.xlu0 %801
      %803 = vrot.lane.b32.xlu0 %v784, 19
      %v804 = vpop.permute.xlu0 %803
      %805 = vrot.lane.b32.xlu0 %v787, 19
      %v806 = vpop.permute.xlu0 %805
      %807 = vrot.lane.b32.xlu0 %v790, 19
      %v808 = vpop.permute.xlu0 %807
      %809 = vrot.lane.b32.xlu0 %v793, 19
      %v810 = vpop.permute.xlu0 %809
      %811 = vrot.lane.b32.xlu0 %v785, 19
      %v812 = vpop.permute.xlu0 %811
      %813 = vrot.lane.b32.xlu0 %v788, 19
      %v814 = vpop.permute.xlu0 %813
      %815 = vrot.lane.b32.xlu0 %v791, 19
      %v816 = vpop.permute.xlu0 %815
      %817 = vrot.lane.b32.xlu0 %v794, 19
      %v818 = vpop.permute.xlu0 %817
      %v819 = vsel %vm466, %v804, %v812
      %v820 = vsel %vm466, %v806, %v814
      %v821 = vsel %vm466, %v808, %v816
      %v822 = vsel %vm466, %v810, %v818
      %v823 = vsel %vm466, %v796, %v804
      %v824 = vsel %vm466, %v798, %v806
      %v825 = vsel %vm466, %v800, %v808
      %v826 = vsel %vm466, %v802, %v810
      %v827 = vsel %vm466, %v812, %v796
      %v828 = vsel %vm466, %v814, %v798
      %v829 = vsel %vm466, %v816, %v800
      %v830 = vsel %vm466, %v818, %v802
      %831 = vrot.lane.b32.xlu0 %v783, 18
      %v832 = vpop.permute.xlu0 %831
      %833 = vrot.lane.b32.xlu0 %v786, 18
      %v834 = vpop.permute.xlu0 %833
      %835 = vrot.lane.b32.xlu0 %v789, 18
      %v836 = vpop.permute.xlu0 %835
      %837 = vrot.lane.b32.xlu0 %v792, 18
      %v838 = vpop.permute.xlu0 %837
      %839 = vrot.lane.b32.xlu0 %v784, 18
      %v840 = vpop.permute.xlu0 %839
      %841 = vrot.lane.b32.xlu0 %v787, 18
      %v842 = vpop.permute.xlu0 %841
      %843 = vrot.lane.b32.xlu0 %v790, 18
      %v844 = vpop.permute.xlu0 %843
      %845 = vrot.lane.b32.xlu0 %v793, 18
      %v846 = vpop.permute.xlu0 %845
      %847 = vrot.lane.b32.xlu0 %v785, 18
      %v848 = vpop.permute.xlu0 %847
      %849 = vrot.lane.b32.xlu0 %v788, 18
      %v850 = vpop.permute.xlu0 %849
      %851 = vrot.lane.b32.xlu0 %v791, 18
      %v852 = vpop.permute.xlu0 %851
      %853 = vrot.lane.b32.xlu0 %v794, 18
      %v854 = vpop.permute.xlu0 %853
      %v855 = vsel %vm476, %v840, %v848
      %v856 = vsel %vm476, %v842, %v850
      %v857 = vsel %vm476, %v844, %v852
      %v858 = vsel %vm476, %v846, %v854
      %v859 = vsel %vm476, %v832, %v840
      %v860 = vsel %vm476, %v834, %v842
      %v861 = vsel %vm476, %v836, %v844
      %v862 = vsel %vm476, %v838, %v846
      %v863 = vsel %vm476, %v848, %v832
      %v864 = vsel %vm476, %v850, %v834
      %v865 = vsel %vm476, %v852, %v836
      %v866 = vsel %vm476, %v854, %v838
      %867 = vrot.lane.b32.xlu0 %v783, 17
      %v868 = vpop.permute.xlu0 %867
      %869 = vrot.lane.b32.xlu0 %v786, 17
      %v870 = vpop.permute.xlu0 %869
      %871 = vrot.lane.b32.xlu0 %v789, 17
      %v872 = vpop.permute.xlu0 %871
      %873 = vrot.lane.b32.xlu0 %v792, 17
      %v874 = vpop.permute.xlu0 %873
      %875 = vrot.lane.b32.xlu0 %v784, 17
      %v876 = vpop.permute.xlu0 %875
      %877 = vrot.lane.b32.xlu0 %v787, 17
      %v878 = vpop.permute.xlu0 %877
      %879 = vrot.lane.b32.xlu0 %v790, 17
      %v880 = vpop.permute.xlu0 %879
      %881 = vrot.lane.b32.xlu0 %v793, 17
      %v882 = vpop.permute.xlu0 %881
      %883 = vrot.lane.b32.xlu0 %v785, 17
      %v884 = vpop.permute.xlu0 %883
      %885 = vrot.lane.b32.xlu0 %v788, 17
      %v886 = vpop.permute.xlu0 %885
      %887 = vrot.lane.b32.xlu0 %v791, 17
      %v888 = vpop.permute.xlu0 %887
      %889 = vrot.lane.b32.xlu0 %v794, 17
      %v890 = vpop.permute.xlu0 %889
      %v891 = vsel %vm486, %v876, %v884
      %v892 = vsel %vm486, %v878, %v886
      %v893 = vsel %vm486, %v880, %v888
      %v894 = vsel %vm486, %v882, %v890
      %v895 = vsel %vm486, %v868, %v876
      %v896 = vsel %vm486, %v870, %v878
      %v897 = vsel %vm486, %v872, %v880
      %v898 = vsel %vm486, %v874, %v882
      %v899 = vsel %vm486, %v884, %v868
      %v900 = vsel %vm486, %v886, %v870
      %v901 = vsel %vm486, %v888, %v872
      %v902 = vsel %vm486, %v890, %v874
      %903 = vrot.lane.b32.xlu0 %v783, 1
      %v904 = vpop.permute.xlu0 %903
      %905 = vrot.lane.b32.xlu0 %v786, 1
      %v906 = vpop.permute.xlu0 %905
      %907 = vrot.lane.b32.xlu0 %v789, 1
      %v908 = vpop.permute.xlu0 %907
      %909 = vrot.lane.b32.xlu0 %v792, 1
      %v910 = vpop.permute.xlu0 %909
      %911 = vrot.lane.b32.xlu0 %v784, 1
      %v912 = vpop.permute.xlu0 %911
      %913 = vrot.lane.b32.xlu0 %v787, 1
      %v914 = vpop.permute.xlu0 %913
      %915 = vrot.lane.b32.xlu0 %v790, 1
      %v916 = vpop.permute.xlu0 %915
      %917 = vrot.lane.b32.xlu0 %v793, 1
      %v918 = vpop.permute.xlu0 %917
      %919 = vrot.lane.b32.xlu0 %v785, 1
      %v920 = vpop.permute.xlu0 %919
      %921 = vrot.lane.b32.xlu0 %v788, 1
      %v922 = vpop.permute.xlu0 %921
      %923 = vrot.lane.b32.xlu0 %v791, 1
      %v924 = vpop.permute.xlu0 %923
      %925 = vrot.lane.b32.xlu0 %v794, 1
      %v926 = vpop.permute.xlu0 %925
      %v927 = vsel %vm496, %v912, %v920
      %v928 = vsel %vm496, %v914, %v922
      %v929 = vsel %vm496, %v916, %v924
      %v930 = vsel %vm496, %v918, %v926
      %v931 = vsel %vm496, %v904, %v912
      %v932 = vsel %vm496, %v906, %v914
      %v933 = vsel %vm496, %v908, %v916
      %v934 = vsel %vm496, %v910, %v918
      %v935 = vsel %vm496, %v920, %v904
      %v936 = vsel %vm496, %v922, %v906
      %v937 = vsel %vm496, %v924, %v908
      %v938 = vsel %vm496, %v926, %v910
      %939 = vrot.lane.b32.xlu0 %v783, 127
      %v940 = vpop.permute.xlu0 %939
      %941 = vrot.lane.b32.xlu0 %v786, 127
      %v942 = vpop.permute.xlu0 %941
      %943 = vrot.lane.b32.xlu0 %v789, 127
      %v944 = vpop.permute.xlu0 %943
      %945 = vrot.lane.b32.xlu0 %v792, 127
      %v946 = vpop.permute.xlu0 %945
      %947 = vrot.lane.b32.xlu0 %v784, 127
      %v948 = vpop.permute.xlu0 %947
      %949 = vrot.lane.b32.xlu0 %v787, 127
      %v950 = vpop.permute.xlu0 %949
      %951 = vrot.lane.b32.xlu0 %v790, 127
      %v952 = vpop.permute.xlu0 %951
      %953 = vrot.lane.b32.xlu0 %v793, 127
      %v954 = vpop.permute.xlu0 %953
      %955 = vrot.lane.b32.xlu0 %v785, 127
      %v956 = vpop.permute.xlu0 %955
      %957 = vrot.lane.b32.xlu0 %v788, 127
      %v958 = vpop.permute.xlu0 %957
      %959 = vrot.lane.b32.xlu0 %v791, 127
      %v960 = vpop.permute.xlu0 %959
      %961 = vrot.lane.b32.xlu0 %v794, 127
      %v962 = vpop.permute.xlu0 %961
      %v963 = vsel %vm506, %v948, %v956
      %v964 = vsel %vm506, %v950, %v958
      %v965 = vsel %vm506, %v952, %v960
      %v966 = vsel %vm506, %v954, %v962
      %v967 = vsel %vm506, %v940, %v948
      %v968 = vsel %vm506, %v942, %v950
      %v969 = vsel %vm506, %v944, %v952
      %v970 = vsel %vm506, %v946, %v954
      %v971 = vsel %vm506, %v956, %v940
      %v972 = vsel %vm506, %v958, %v942
      %v973 = vsel %vm506, %v960, %v944
      %v974 = vsel %vm506, %v962, %v946
      %975 = vrot.lane.b32.xlu0 %v783, 111
      %v976 = vpop.permute.xlu0 %975
      %977 = vrot.lane.b32.xlu0 %v786, 111
      %v978 = vpop.permute.xlu0 %977
      %979 = vrot.lane.b32.xlu0 %v789, 111
      %v980 = vpop.permute.xlu0 %979
      %981 = vrot.lane.b32.xlu0 %v792, 111
      %v982 = vpop.permute.xlu0 %981
      %983 = vrot.lane.b32.xlu0 %v784, 111
      %v984 = vpop.permute.xlu0 %983
      %985 = vrot.lane.b32.xlu0 %v787, 111
      %v986 = vpop.permute.xlu0 %985
      %987 = vrot.lane.b32.xlu0 %v790, 111
      %v988 = vpop.permute.xlu0 %987
      %989 = vrot.lane.b32.xlu0 %v793, 111
      %v990 = vpop.permute.xlu0 %989
      %991 = vrot.lane.b32.xlu0 %v785, 111
      %v992 = vpop.permute.xlu0 %991
      %993 = vrot.lane.b32.xlu0 %v788, 111
      %v994 = vpop.permute.xlu0 %993
      %995 = vrot.lane.b32.xlu0 %v791, 111
      %v996 = vpop.permute.xlu0 %995
      %997 = vrot.lane.b32.xlu0 %v794, 111
      %v998 = vpop.permute.xlu0 %997
      %v999 = vsel %vm516, %v984, %v992
      %v1000 = vsel %vm516, %v986, %v994
      %v1001 = vsel %vm516, %v988, %v996
      %v1002 = vsel %vm516, %v990, %v998
      %v1003 = vsel %vm516, %v976, %v984
      %v1004 = vsel %vm516, %v978, %v986
      %v1005 = vsel %vm516, %v980, %v988
      %v1006 = vsel %vm516, %v982, %v990
      %v1007 = vsel %vm516, %v992, %v976
      %v1008 = vsel %vm516, %v994, %v978
      %v1009 = vsel %vm516, %v996, %v980
      %v1010 = vsel %vm516, %v998, %v982
      %1011 = vrot.lane.b32.xlu0 %v783, 110
      %v1012 = vpop.permute.xlu0 %1011
      %1013 = vrot.lane.b32.xlu0 %v786, 110
      %v1014 = vpop.permute.xlu0 %1013
      %1015 = vrot.lane.b32.xlu0 %v789, 110
      %v1016 = vpop.permute.xlu0 %1015
      %1017 = vrot.lane.b32.xlu0 %v792, 110
      %v1018 = vpop.permute.xlu0 %1017
      %1019 = vrot.lane.b32.xlu0 %v784, 110
      %v1020 = vpop.permute.xlu0 %1019
      %1021 = vrot.lane.b32.xlu0 %v787, 110
      %v1022 = vpop.permute.xlu0 %1021
      %1023 = vrot.lane.b32.xlu0 %v790, 110
      %v1024 = vpop.permute.xlu0 %1023
      %1025 = vrot.lane.b32.xlu0 %v793, 110
      %v1026 = vpop.permute.xlu0 %1025
      %1027 = vrot.lane.b32.xlu0 %v785, 110
      %v1028 = vpop.permute.xlu0 %1027
      %1029 = vrot.lane.b32.xlu0 %v788, 110
      %v1030 = vpop.permute.xlu0 %1029
      %1031 = vrot.lane.b32.xlu0 %v791, 110
      %v1032 = vpop.permute.xlu0 %1031
      %1033 = vrot.lane.b32.xlu0 %v794, 110
      %v1034 = vpop.permute.xlu0 %1033
      %v1035 = vsel %vm526, %v1020, %v1028
      %v1036 = vsel %vm526, %v1022, %v1030
      %v1037 = vsel %vm526, %v1024, %v1032
      %v1038 = vsel %vm526, %v1026, %v1034
      %v1039 = vsel %vm526, %v1012, %v1020
      %v1040 = vsel %vm526, %v1014, %v1022
      %v1041 = vsel %vm526, %v1016, %v1024
      %v1042 = vsel %vm526, %v1018, %v1026
      %v1043 = vsel %vm526, %v1028, %v1012
      %v1044 = vsel %vm526, %v1030, %v1014
      %v1045 = vsel %vm526, %v1032, %v1016
      %v1046 = vsel %vm526, %v1034, %v1018
      %1047 = vrot.lane.b32.xlu0 %v783, 109
      %v1048 = vpop.permute.xlu0 %1047
      %1049 = vrot.lane.b32.xlu0 %v786, 109
      %v1050 = vpop.permute.xlu0 %1049
      %1051 = vrot.lane.b32.xlu0 %v789, 109
      %v1052 = vpop.permute.xlu0 %1051
      %1053 = vrot.lane.b32.xlu0 %v792, 109
      %v1054 = vpop.permute.xlu0 %1053
      %1055 = vrot.lane.b32.xlu0 %v784, 109
      %v1056 = vpop.permute.xlu0 %1055
      %1057 = vrot.lane.b32.xlu0 %v787, 109
      %v1058 = vpop.permute.xlu0 %1057
      %1059 = vrot.lane.b32.xlu0 %v790, 109
      %v1060 = vpop.permute.xlu0 %1059
      %1061 = vrot.lane.b32.xlu0 %v793, 109
      %v1062 = vpop.permute.xlu0 %1061
      %1063 = vrot.lane.b32.xlu0 %v785, 109
      %v1064 = vpop.permute.xlu0 %1063
      %1065 = vrot.lane.b32.xlu0 %v788, 109
      %v1066 = vpop.permute.xlu0 %1065
      %1067 = vrot.lane.b32.xlu0 %v791, 109
      %v1068 = vpop.permute.xlu0 %1067
      %1069 = vrot.lane.b32.xlu0 %v794, 109
      %v1070 = vpop.permute.xlu0 %1069
      %v1071 = vsel %vm536, %v1056, %v1064
      %v1072 = vsel %vm536, %v1058, %v1066
      %v1073 = vsel %vm536, %v1060, %v1068
      %v1074 = vsel %vm536, %v1062, %v1070
      %v1075 = vsel %vm536, %v1048, %v1056
      %v1076 = vsel %vm536, %v1050, %v1058
      %v1077 = vsel %vm536, %v1052, %v1060
      %v1078 = vsel %vm536, %v1054, %v1062
      %v1079 = vsel %vm536, %v1064, %v1048
      %v1080 = vsel %vm536, %v1066, %v1050
      %v1081 = vsel %vm536, %v1068, %v1052
      %v1082 = vsel %vm536, %v1070, %v1054
      %v1083 = vld [vmem:[%s4] sm:$0xff]
      %v1084 = vld [vmem:[%s4 + $0x8] sm:$0xff]
      %v1085 = vld [vmem:[%s4 + $0x10] sm:$0xff]
      %v1086 = vld [vmem:[%s4 + $0x18] sm:$0xff]
      %v1087 = vld [vmem:[%s4 + $0x20] sm:$0xff]
      %v1088 = vld [vmem:[%s4 + $0x28] sm:$0xff]
      %v1089 = vld [vmem:[%s4 + $0x30] sm:$0xff]
      %v1090 = vld [vmem:[%s4 + $0x38] sm:$0xff]
      %v1091 = vld [vmem:[%s4 + $0x40] sm:$0xff]
      %v1092 = vld [vmem:[%s4 + $0x48] sm:$0xff]
      %v1093 = vld [vmem:[%s4 + $0x50] sm:$0xff]
      %v1094 = vld [vmem:[%s4 + $0x58] sm:$0xff]
      %v1095 = vld [vmem:[%s5] sm:$0xff]
      %v1096 = vld [vmem:[%s5 + $0x8] sm:$0xff]
      %v1097 = vld [vmem:[%s5 + $0x10] sm:$0xff]
      %v1098 = vld [vmem:[%s5 + $0x18] sm:$0xff]
      %1100 = vset.pattern.permute.xlu0 0
      %1101 = vperm.xlu0 %1100, %v1095
      %v1102 = vpop.permute.xlu0 %1101
      %1105 = vset.pattern.permute.xlu0 0
      %1106 = vperm.xlu0 %1105, %v1096
      %v1107 = vpop.permute.xlu0 %1106
      %1110 = vset.pattern.permute.xlu0 0
      %1111 = vperm.xlu0 %1110, %v1097
      %v1112 = vpop.permute.xlu0 %1111
      %1115 = vset.pattern.permute.xlu0 0
      %1116 = vperm.xlu0 %1115, %v1098
      %v1117 = vpop.permute.xlu0 %1116
      %vm1119 = vcmask 261120
      %v1121 = vsel %vm1119, %v1085, 0
      %v1124 = vsel %vm1119, %v1088, 0
      %v1127 = vsel %vm1119, %v1091, 0
      %v1130 = vsel %vm1119, %v1094, 0
      %1132 = vmatprep.subr.mxu0 %v823
      %1133 = vmatpush1.msra.mxu0 %v827
      %1134 = vmatprep.subr.mxu0 %v824
      %1135 = vmatpush1.msra.mxu0 %v828
      %1136 = vmatprep.subr.mxu0 %v825
      %1137 = vmatpush1.msra.mxu0 %v829
      %1138 = vmatprep.subr.mxu0 %v826
      %1139 = vmatpush1.msra.mxu0 %v830
      %1140 = vmatprep.subr.mxu0 %v859
      %1141 = vmatpush1.msra.mxu0 %v863
      %1142 = vmatprep.subr.mxu0 %v860
      %1143 = vmatpush1.msra.mxu0 %v864
      %1144 = vmatprep.subr.mxu0 %v861
      %1145 = vmatpush1.msra.mxu0 %v865
      %1146 = vmatprep.subr.mxu0 %v862
      %1147 = vmatpush1.msra.mxu0 %v866
      %1148 = vmatprep.subr.mxu0 %v895
      %1149 = vmatpush1.msra.mxu0 %v899
      %1150 = vmatprep.subr.mxu0 %v896
      %1151 = vmatpush1.msra.mxu0 %v900
      %1152 = vmatprep.subr.mxu0 %v897
      %1153 = vmatpush1.msra.mxu0 %v901
      %1154 = vmatprep.subr.mxu0 %v898
      %1155 = vmatpush1.msra.mxu0 %v902
      %1156 = vmatprep.subr.mxu0 %v931
      %1157 = vmatpush1.msra.mxu0 %v935
      %1158 = vmatprep.subr.mxu0 %v932
      %1159 = vmatpush1.msra.mxu0 %v936
      %1160 = vmatprep.subr.mxu0 %v933
      %1161 = vmatpush1.msra.mxu0 %v937
      %1162 = vmatprep.subr.mxu0 %v934
      %1163 = vmatpush1.msra.mxu0 %v938
      %1164 = vmatprep.subr.mxu0 %v784
      %1165 = vmatpush1.msra.mxu0 %v783
      %1166 = vmatprep.subr.mxu0 %v787
      %1167 = vmatpush1.msra.mxu0 %v786
      %1168 = vmatprep.subr.mxu0 %v790
      %1169 = vmatpush1.msra.mxu0 %v789
      %1170 = vmatprep.subr.mxu0 %v793
      %1171 = vmatpush1.msra.mxu0 %v792
      %1172 = vmatprep.subr.mxu0 %v963
      %1173 = vmatpush1.msra.mxu0 %v967
      %1174 = vmatprep.subr.mxu0 %v964
      %1175 = vmatpush1.msra.mxu0 %v968
      %1176 = vmatprep.subr.mxu0 %v965
      %1177 = vmatpush1.msra.mxu0 %v969
      %1178 = vmatprep.subr.mxu0 %v966
      %1179 = vmatpush1.msra.mxu0 %v970
      %1180 = vmatprep.subr.mxu0 %v999
      %1181 = vmatpush1.msra.mxu0 %v1003
      %1182 = vmatprep.subr.mxu0 %v1000
      %1183 = vmatpush1.msra.mxu0 %v1004
      %1184 = vmatprep.subr.mxu0 %v1001
      %1185 = vmatpush1.msra.mxu0 %v1005
      %1186 = vmatprep.subr.mxu0 %v1002
      %1187 = vmatpush1.msra.mxu0 %v1006
      %1188 = vmatprep.subr.mxu0 %v1035
      %1189 = vmatpush1.msra.mxu0 %v1039
      %1190 = vmatprep.subr.mxu0 %v1036
      %1191 = vmatpush1.msra.mxu0 %v1040
      %1192 = vmatprep.subr.mxu0 %v1037
      %1193 = vmatpush1.msra.mxu0 %v1041
      %1194 = vmatprep.subr.mxu0 %v1038
      %1195 = vmatpush1.msra.mxu0 %v1042
      %1196 = vmatprep.mubr.f32.mxu0 %v1084
      %1197 = vmatmul.mubr.f32.gmra.mrb[0].mxu0 %v1083
      %v1198 = vpop.f32.mrb[0].mxu0
      %v1199 = vadd.f32 %v1102, %v1198
      %v1200 = vpop.f32.mrb[0].mxu0
      %v1201 = vadd.f32 %v1102, %v1200
      %1202 = vmatprep.mubr.f32.mxu0 %v1087
      %1203 = vmatmul.mubr.f32.gmra.mrb[0].mxu0 %v1086
      %v1204 = vpop.f32.mrb[0].mxu0
      %v1205 = vadd.f32 %v1107, %v1204
      %v1206 = vpop.f32.mrb[0].mxu0
      %v1207 = vadd.f32 %v1107, %v1206
      %1208 = vmatprep.mubr.f32.mxu0 %v1090
      %1209 = vmatmul.mubr.f32.gmra.mrb[0].mxu0 %v1089
      %v1210 = vpop.f32.mrb[0].mxu0
      %v1211 = vadd.f32 %v1112, %v1210
      %v1212 = vpop.f32.mrb[0].mxu0
      %v1213 = vadd.f32 %v1112, %v1212
      %1214 = vmatprep.mubr.f32.mxu0 %v1093
      %1215 = vmatmul.mubr.f32.gmra.mrb[0].mxu0 %v1092
      %v1216 = vpop.f32.mrb[0].mxu0
      %v1217 = vadd.f32 %v1117, %v1216
      %v1218 = vpop.f32.mrb[0].mxu0
      %v1219 = vadd.f32 %v1117, %v1218
      %1220 = vdwg.mxu0
      %1221 = vmatprep.subr.mxu0 %v1071
      %1222 = vmatpush1.msra.mxu0 %v1075
      %1223 = vmatprep.subr.mxu0 %v1072
      %1224 = vmatpush1.msra.mxu0 %v1076
      %1225 = vmatprep.subr.mxu0 %v1073
      %1226 = vmatpush1.msra.mxu0 %v1077
      %1227 = vmatprep.subr.mxu0 %v1074
      %1228 = vmatpush1.msra.mxu0 %v1078
      %1229 = vmatprep.subr.mxu0 0.0
      %1230 = vmatpush1.msra.mxu0 0.0
      %1231 = vmatprep.subr.mxu0 0.0
      %1232 = vmatpush1.msra.mxu0 0.0
      %1233 = vmatprep.subr.mxu0 0.0
      %1234 = vmatpush1.msra.mxu0 0.0
      %1235 = vmatprep.subr.mxu0 0.0
      %1236 = vmatpush1.msra.mxu0 0.0
      %1237 = vmatprep.subr.mxu0 0.0
      %1238 = vmatpush1.msra.mxu0 0.0
      %1239 = vmatprep.subr.mxu0 0.0
      %1240 = vmatpush1.msra.mxu0 0.0
      %1241 = vmatprep.subr.mxu0 0.0
      %1242 = vmatpush1.msra.mxu0 0.0
      %1243 = vmatprep.subr.mxu0 0.0
      %1244 = vmatpush1.msra.mxu0 0.0
      %1245 = vmatprep.subr.mxu0 0.0
      %1246 = vmatpush1.msra.mxu0 0.0
      %1247 = vmatprep.subr.mxu0 0.0
      %1248 = vmatpush1.msra.mxu0 0.0
      %1249 = vmatprep.subr.mxu0 0.0
      %1250 = vmatpush1.msra.mxu0 0.0
      %1251 = vmatprep.subr.mxu0 0.0
      %1252 = vmatpush1.msra.mxu0 0.0
      %1253 = vmatprep.subr.mxu0 0.0
      %1254 = vmatpush1.msra.mxu0 0.0
      %1255 = vmatprep.subr.mxu0 0.0
      %1256 = vmatpush1.msra.mxu0 0.0
      %1257 = vmatprep.subr.mxu0 0.0
      %1258 = vmatpush1.msra.mxu0 0.0
      %1259 = vmatprep.subr.mxu0 0.0
      %1260 = vmatpush1.msra.mxu0 0.0
      %1261 = vmatprep.subr.mxu0 0.0
      %1262 = vmatpush1.msra.mxu0 0.0
      %1263 = vmatprep.subr.mxu0 0.0
      %1264 = vmatpush1.msra.mxu0 0.0
      %1265 = vmatprep.subr.mxu0 0.0
      %1266 = vmatpush1.msra.mxu0 0.0
      %1267 = vmatprep.subr.mxu0 0.0
      %1268 = vmatpush1.msra.mxu0 0.0
      %1269 = vmatprep.subr.mxu0 0.0
      %1270 = vmatpush1.msra.mxu0 0.0
      %1271 = vmatprep.subr.mxu0 0.0
      %1272 = vmatpush1.msra.mxu0 0.0
      %1273 = vmatprep.subr.mxu0 0.0
      %1274 = vmatpush1.msra.mxu0 0.0
      %1275 = vmatprep.subr.mxu0 0.0
      %1276 = vmatpush1.msra.mxu0 0.0
      %1277 = vmatprep.subr.mxu0 0.0
      %1278 = vmatpush1.msra.mxu0 0.0
      %1279 = vmatprep.subr.mxu0 0.0
      %1280 = vmatpush1.msra.mxu0 0.0
      %1281 = vmatprep.subr.mxu0 0.0
      %1282 = vmatpush1.msra.mxu0 0.0
      %1283 = vmatprep.subr.mxu0 0.0
      %1284 = vmatpush1.msra.mxu0 0.0
      %1285 = vmatprep.mubr.f32.mxu0 0.0
      %1286 = vmatmul.mubr.f32.gmra.mrb[0].mxu0 %v1121
      %v1287 = vpop.f32.mrb[0].mxu0
      %v1288 = vadd.f32 %v1199, %v1287
      %v1289 = vpop.f32.mrb[0].mxu0
      %v1290 = vadd.f32 %v1201, %v1289
      %1291 = vmatprep.mubr.f32.mxu0 0.0
      %1292 = vmatmul.mubr.f32.gmra.mrb[0].mxu0 %v1124
      %v1293 = vpop.f32.mrb[0].mxu0
      %v1294 = vadd.f32 %v1205, %v1293
      %v1295 = vpop.f32.mrb[0].mxu0
      %v1296 = vadd.f32 %v1207, %v1295
      %1297 = vmatprep.mubr.f32.mxu0 0.0
      %1298 = vmatmul.mubr.f32.gmra.mrb[0].mxu0 %v1127
      %v1299 = vpop.f32.mrb[0].mxu0
      %v1300 = vadd.f32 %v1211, %v1299
      %v1301 = vpop.f32.mrb[0].mxu0
      %v1302 = vadd.f32 %v1213, %v1301
      %1303 = vmatprep.mubr.f32.mxu0 0.0
      %1304 = vmatmul.mubr.f32.gmra.mrb[0].mxu0 %v1130
      %v1305 = vpop.f32.mrb[0].mxu0
      %v1306 = vadd.f32 %v1217, %v1305
      %v1307 = vpop.f32.mrb[0].mxu0
      %v1308 = vadd.f32 %v1219, %v1307
      %1309 = vdwg.mxu0
      %1310 = vmatprep.subr.mxu0 0.0
      %1311 = vmatpush1.msra.mxu0 %v819
      %1312 = vmatprep.subr.mxu0 0.0
      %1313 = vmatpush1.msra.mxu0 %v820
      %1314 = vmatprep.subr.mxu0 0.0
      %1315 = vmatpush1.msra.mxu0 %v821
      %1316 = vmatprep.subr.mxu0 0.0
      %1317 = vmatpush1.msra.mxu0 %v822
      %1318 = vmatprep.subr.mxu0 0.0
      %1319 = vmatpush1.msra.mxu0 %v855
      %1320 = vmatprep.subr.mxu0 0.0
      %1321 = vmatpush1.msra.mxu0 %v856
      %1322 = vmatprep.subr.mxu0 0.0
      %1323 = vmatpush1.msra.mxu0 %v857
      %1324 = vmatprep.subr.mxu0 0.0
      %1325 = vmatpush1.msra.mxu0 %v858
      %1326 = vmatprep.subr.mxu0 0.0
      %1327 = vmatpush1.msra.mxu0 %v891
      %1328 = vmatprep.subr.mxu0 0.0
      %1329 = vmatpush1.msra.mxu0 %v892
      %1330 = vmatprep.subr.mxu0 0.0
      %1331 = vmatpush1.msra.mxu0 %v893
      %1332 = vmatprep.subr.mxu0 0.0
      %1333 = vmatpush1.msra.mxu0 %v894
      %1334 = vmatprep.subr.mxu0 0.0
      %1335 = vmatpush1.msra.mxu0 %v927
      %1336 = vmatprep.subr.mxu0 0.0
      %1337 = vmatpush1.msra.mxu0 %v928
      %1338 = vmatprep.subr.mxu0 0.0
      %1339 = vmatpush1.msra.mxu0 %v929
      %1340 = vmatprep.subr.mxu0 0.0
      %1341 = vmatpush1.msra.mxu0 %v930
      %1342 = vmatprep.subr.mxu0 0.0
      %1343 = vmatpush1.msra.mxu0 %v785
      %1344 = vmatprep.subr.mxu0 0.0
      %1345 = vmatpush1.msra.mxu0 %v788
      %1346 = vmatprep.subr.mxu0 0.0
      %1347 = vmatpush1.msra.mxu0 %v791
      %1348 = vmatprep.subr.mxu0 0.0
      %1349 = vmatpush1.msra.mxu0 %v794
      %1350 = vmatprep.subr.mxu0 0.0
      %1351 = vmatpush1.msra.mxu0 %v971
      %1352 = vmatprep.subr.mxu0 0.0
      %1353 = vmatpush1.msra.mxu0 %v972
      %1354 = vmatprep.subr.mxu0 0.0
      %1355 = vmatpush1.msra.mxu0 %v973
      %1356 = vmatprep.subr.mxu0 0.0
      %1357 = vmatpush1.msra.mxu0 %v974
      %1358 = vmatprep.subr.mxu0 0.0
      %1359 = vmatpush1.msra.mxu0 %v1007
      %1360 = vmatprep.subr.mxu0 0.0
      %1361 = vmatpush1.msra.mxu0 %v1008
      %1362 = vmatprep.subr.mxu0 0.0
      %1363 = vmatpush1.msra.mxu0 %v1009
      %1364 = vmatprep.subr.mxu0 0.0
      %1365 = vmatpush1.msra.mxu0 %v1010
      %1366 = vmatprep.subr.mxu0 0.0
      %1367 = vmatpush1.msra.mxu0 %v1043
      %1368 = vmatprep.subr.mxu0 0.0
      %1369 = vmatpush1.msra.mxu0 %v1044
      %1370 = vmatprep.subr.mxu0 0.0
      %1371 = vmatpush1.msra.mxu0 %v1045
      %1372 = vmatprep.subr.mxu0 0.0
      %1373 = vmatpush1.msra.mxu0 %v1046
      %1374 = vmatprep.mubr.f32.mxu0 %v1084
      %1375 = vmatmul.mubr.f32.gmra.mrb[0].mxu0 %v1083
      %v1376 = vpop.f32.mrb[0].mxu0
      %v1377 = vadd.f32 %v1102, %v1376
      %v1378 = vpop.f32.mrb[0].mxu0
      %1379 = vmatprep.mubr.f32.mxu0 %v1087
      %1380 = vmatmul.mubr.f32.gmra.mrb[0].mxu0 %v1086
      %v1381 = vpop.f32.mrb[0].mxu0
      %v1382 = vadd.f32 %v1107, %v1381
      %v1383 = vpop.f32.mrb[0].mxu0
      %1384 = vmatprep.mubr.f32.mxu0 %v1090
      %1385 = vmatmul.mubr.f32.gmra.mrb[0].mxu0 %v1089
      %v1386 = vpop.f32.mrb[0].mxu0
      %v1387 = vadd.f32 %v1112, %v1386
      %v1388 = vpop.f32.mrb[0].mxu0
      %1389 = vmatprep.mubr.f32.mxu0 %v1093
      %1390 = vmatmul.mubr.f32.gmra.mrb[0].mxu0 %v1092
      %v1391 = vpop.f32.mrb[0].mxu0
      %v1392 = vadd.f32 %v1117, %v1391
      %v1393 = vpop.f32.mrb[0].mxu0
      %1394 = vdwg.mxu0
      %1395 = vmatprep.subr.mxu0 0.0
      %1396 = vmatpush1.msra.mxu0 %v1079
      %1397 = vmatprep.subr.mxu0 0.0
      %1398 = vmatpush1.msra.mxu0 %v1080
      %1399 = vmatprep.subr.mxu0 0.0
      %1400 = vmatpush1.msra.mxu0 %v1081
      %1401 = vmatprep.subr.mxu0 0.0
      %1402 = vmatpush1.msra.mxu0 %v1082
      %1403 = vmatprep.subr.mxu0 0.0
      %1404 = vmatpush1.msra.mxu0 0.0
      %1405 = vmatprep.subr.mxu0 0.0
      %1406 = vmatpush1.msra.mxu0 0.0
      %1407 = vmatprep.subr.mxu0 0.0
      %1408 = vmatpush1.msra.mxu0 0.0
      %1409 = vmatprep.subr.mxu0 0.0
      %1410 = vmatpush1.msra.mxu0 0.0
      %1411 = vmatprep.subr.mxu0 0.0
      %1412 = vmatpush1.msra.mxu0 0.0
      %1413 = vmatprep.subr.mxu0 0.0
      %1414 = vmatpush1.msra.mxu0 0.0
      %1415 = vmatprep.subr.mxu0 0.0
      %1416 = vmatpush1.msra.mxu0 0.0
      %1417 = vmatprep.subr.mxu0 0.0
      %1418 = vmatpush1.msra.mxu0 0.0
      %1419 = vmatprep.subr.mxu0 0.0
      %1420 = vmatpush1.msra.mxu0 0.0
      %1421 = vmatprep.subr.mxu0 0.0
      %1422 = vmatpush1.msra.mxu0 0.0
      %1423 = vmatprep.subr.mxu0 0.0
      %1424 = vmatpush1.msra.mxu0 0.0
      %1425 = vmatprep.subr.mxu0 0.0
      %1426 = vmatpush1.msra.mxu0 0.0
      %1427 = vmatprep.subr.mxu0 0.0
      %1428 = vmatpush1.msra.mxu0 0.0
      %1429 = vmatprep.subr.mxu0 0.0
      %1430 = vmatpush1.msra.mxu0 0.0
      %1431 = vmatprep.subr.mxu0 0.0
      %1432 = vmatpush1.msra.mxu0 0.0
      %1433 = vmatprep.subr.mxu0 0.0
      %1434 = vmatpush1.msra.mxu0 0.0
      %1435 = vmatprep.subr.mxu0 0.0
      %1436 = vmatpush1.msra.mxu0 0.0
      %1437 = vmatprep.subr.mxu0 0.0
      %1438 = vmatpush1.msra.mxu0 0.0
      %1439 = vmatprep.subr.mxu0 0.0
      %1440 = vmatpush1.msra.mxu0 0.0
      %1441 = vmatprep.subr.mxu0 0.0
      %1442 = vmatpush1.msra.mxu0 0.0
      %1443 = vmatprep.subr.mxu0 0.0
      %1444 = vmatpush1.msra.mxu0 0.0
      %1445 = vmatprep.subr.mxu0 0.0
      %1446 = vmatpush1.msra.mxu0 0.0
      %1447 = vmatprep.subr.mxu0 0.0
      %1448 = vmatpush1.msra.mxu0 0.0
      %1449 = vmatprep.subr.mxu0 0.0
      %1450 = vmatpush1.msra.mxu0 0.0
      %1451 = vmatprep.subr.mxu0 0.0
      %1452 = vmatpush1.msra.mxu0 0.0
      %1453 = vmatprep.subr.mxu0 0.0
      %1454 = vmatpush1.msra.mxu0 0.0
      %1455 = vmatprep.subr.mxu0 0.0
      %1456 = vmatpush1.msra.mxu0 0.0
      %1457 = vmatprep.subr.mxu0 0.0
      %1458 = vmatpush1.msra.mxu0 0.0
      %1459 = vmatprep.mubr.f32.mxu0 0.0
      %1460 = vmatmul.mubr.f32.gmra.mrb[0].mxu0 %v1121
      %v1461 = vpop.f32.mrb[0].mxu0
      %v1462 = vadd.f32 %v1377, %v1461
      %v1463 = vpop.f32.mrb[0].mxu0
      %1464 = vmatprep.mubr.f32.mxu0 0.0
      %1465 = vmatmul.mubr.f32.gmra.mrb[0].mxu0 %v1124
      %v1466 = vpop.f32.mrb[0].mxu0
      %v1467 = vadd.f32 %v1382, %v1466
      %v1468 = vpop.f32.mrb[0].mxu0
      %1469 = vmatprep.mubr.f32.mxu0 0.0
      %1470 = vmatmul.mubr.f32.gmra.mrb[0].mxu0 %v1127
      %v1471 = vpop.f32.mrb[0].mxu0
      %v1472 = vadd.f32 %v1387, %v1471
      %v1473 = vpop.f32.mrb[0].mxu0
      %1474 = vmatprep.mubr.f32.mxu0 0.0
      %1475 = vmatmul.mubr.f32.gmra.mrb[0].mxu0 %v1130
      %v1476 = vpop.f32.mrb[0].mxu0
      %v1477 = vadd.f32 %v1392, %v1476
      %v1478 = vpop.f32.mrb[0].mxu0
      %1479 = vdwg.mxu0
      %v1480 = vmax.f32 %v1288, 0.0
      %v1481 = vmax.f32 %v1290, 0.0
      %v1482 = vmax.f32 %v1462, 0.0
      %v1483 = vmax.f32 %v1294, 0.0
      %v1484 = vmax.f32 %v1296, 0.0
      %v1485 = vmax.f32 %v1467, 0.0
      %v1486 = vmax.f32 %v1300, 0.0
      %v1487 = vmax.f32 %v1302, 0.0
      %v1488 = vmax.f32 %v1472, 0.0
      %v1489 = vmax.f32 %v1306, 0.0
      %v1490 = vmax.f32 %v1308, 0.0
      %v1491 = vmax.f32 %v1477, 0.0
      %v1492 = vmul.f32 %v1480, %v771
      %v1493 = vmul.f32 %v1481, %v775
      %v1494 = vmul.f32 %v1482, %v779
      %v1495 = vmul.f32 %v1483, %v771
      %v1496 = vmul.f32 %v1484, %v775
      %v1497 = vmul.f32 %v1485, %v779
      %v1498 = vmul.f32 %v1486, %v771
      %v1499 = vmul.f32 %v1487, %v775
      %v1500 = vmul.f32 %v1488, %v779
      %v1501 = vmul.f32 %v1489, %v771
      %v1502 = vmul.f32 %v1490, %v775
      %v1503 = vmul.f32 %v1491, %v779
      %1504 = vrot.lane.b32.xlu0 %v1492, 19
      %v1505 = vpop.permute.xlu0 %1504
      %1506 = vrot.lane.b32.xlu0 %v1495, 19
      %v1507 = vpop.permute.xlu0 %1506
      %1508 = vrot.lane.b32.xlu0 %v1498, 19
      %v1509 = vpop.permute.xlu0 %1508
      %1510 = vrot.lane.b32.xlu0 %v1501, 19
      %v1511 = vpop.permute.xlu0 %1510
      %1512 = vrot.lane.b32.xlu0 %v1493, 19
      %v1513 = vpop.permute.xlu0 %1512
      %1514 = vrot.lane.b32.xlu0 %v1496, 19
      %v1515 = vpop.permute.xlu0 %1514
      %1516 = vrot.lane.b32.xlu0 %v1499, 19
      %v1517 = vpop.permute.xlu0 %1516
      %1518 = vrot.lane.b32.xlu0 %v1502, 19
      %v1519 = vpop.permute.xlu0 %1518
      %1520 = vrot.lane.b32.xlu0 %v1494, 19
      %v1521 = vpop.permute.xlu0 %1520
      %1522 = vrot.lane.b32.xlu0 %v1497, 19
      %v1523 = vpop.permute.xlu0 %1522
      %1524 = vrot.lane.b32.xlu0 %v1500, 19
      %v1525 = vpop.permute.xlu0 %1524
      %1526 = vrot.lane.b32.xlu0 %v1503, 19
      %v1527 = vpop.permute.xlu0 %1526
      %v1528 = vsel %vm466, %v1513, %v1521
      %v1529 = vsel %vm466, %v1515, %v1523
      %v1530 = vsel %vm466, %v1517, %v1525
      %v1531 = vsel %vm466, %v1519, %v1527
      %v1532 = vsel %vm466, %v1505, %v1513
      %v1533 = vsel %vm466, %v1507, %v1515
      %v1534 = vsel %vm466, %v1509, %v1517
      %v1535 = vsel %vm466, %v1511, %v1519
      %v1536 = vsel %vm466, %v1521, %v1505
      %v1537 = vsel %vm466, %v1523, %v1507
      %v1538 = vsel %vm466, %v1525, %v1509
      %v1539 = vsel %vm466, %v1527, %v1511
      %1540 = vrot.lane.b32.xlu0 %v1492, 18
      %v1541 = vpop.permute.xlu0 %1540
      %1542 = vrot.lane.b32.xlu0 %v1495, 18
      %v1543 = vpop.permute.xlu0 %1542
      %1544 = vrot.lane.b32.xlu0 %v1498, 18
      %v1545 = vpop.permute.xlu0 %1544
      %1546 = vrot.lane.b32.xlu0 %v1501, 18
      %v1547 = vpop.permute.xlu0 %1546
      %1548 = vrot.lane.b32.xlu0 %v1493, 18
      %v1549 = vpop.permute.xlu0 %1548
      %1550 = vrot.lane.b32.xlu0 %v1496, 18
      %v1551 = vpop.permute.xlu0 %1550
      %1552 = vrot.lane.b32.xlu0 %v1499, 18
      %v1553 = vpop.permute.xlu0 %1552
      %1554 = vrot.lane.b32.xlu0 %v1502, 18
      %v1555 = vpop.permute.xlu0 %1554
      %1556 = vrot.lane.b32.xlu0 %v1494, 18
      %v1557 = vpop.permute.xlu0 %1556
      %1558 = vrot.lane.b32.xlu0 %v1497, 18
      %v1559 = vpop.permute.xlu0 %1558
      %1560 = vrot.lane.b32.xlu0 %v1500, 18
      %v1561 = vpop.permute.xlu0 %1560
      %1562 = vrot.lane.b32.xlu0 %v1503, 18
      %v1563 = vpop.permute.xlu0 %1562
      %v1564 = vsel %vm476, %v1549, %v1557
      %v1565 = vsel %vm476, %v1551, %v1559
      %v1566 = vsel %vm476, %v1553, %v1561
      %v1567 = vsel %vm476, %v1555, %v1563
      %v1568 = vsel %vm476, %v1541, %v1549
      %v1569 = vsel %vm476, %v1543, %v1551
      %v1570 = vsel %vm476, %v1545, %v1553
      %v1571 = vsel %vm476, %v1547, %v1555
      %v1572 = vsel %vm476, %v1557, %v1541
      %v1573 = vsel %vm476, %v1559, %v1543
      %v1574 = vsel %vm476, %v1561, %v1545
      %v1575 = vsel %vm476, %v1563, %v1547
      %1576 = vrot.lane.b32.xlu0 %v1492, 17
      %v1577 = vpop.permute.xlu0 %1576
      %1578 = vrot.lane.b32.xlu0 %v1495, 17
      %v1579 = vpop.permute.xlu0 %1578
      %1580 = vrot.lane.b32.xlu0 %v1498, 17
      %v1581 = vpop.permute.xlu0 %1580
      %1582 = vrot.lane.b32.xlu0 %v1501, 17
      %v1583 = vpop.permute.xlu0 %1582
      %1584 = vrot.lane.b32.xlu0 %v1493, 17
      %v1585 = vpop.permute.xlu0 %1584
      %1586 = vrot.lane.b32.xlu0 %v1496, 17
      %v1587 = vpop.permute.xlu0 %1586
      %1588 = vrot.lane.b32.xlu0 %v1499, 17
      %v1589 = vpop.permute.xlu0 %1588
      %1590 = vrot.lane.b32.xlu0 %v1502, 17
      %v1591 = vpop.permute.xlu0 %1590
      %1592 = vrot.lane.b32.xlu0 %v1494, 17
      %v1593 = vpop.permute.xlu0 %1592
      %1594 = vrot.lane.b32.xlu0 %v1497, 17
      %v1595 = vpop.permute.xlu0 %1594
      %1596 = vrot.lane.b32.xlu0 %v1500, 17
      %v1597 = vpop.permute.xlu0 %1596
      %1598 = vrot.lane.b32.xlu0 %v1503, 17
      %v1599 = vpop.permute.xlu0 %1598
      %v1600 = vsel %vm486, %v1585, %v1593
      %v1601 = vsel %vm486, %v1587, %v1595
      %v1602 = vsel %vm486, %v1589, %v1597
      %v1603 = vsel %vm486, %v1591, %v1599
      %v1604 = vsel %vm486, %v1577, %v1585
      %v1605 = vsel %vm486, %v1579, %v1587
      %v1606 = vsel %vm486, %v1581, %v1589
      %v1607 = vsel %vm486, %v1583, %v1591
      %v1608 = vsel %vm486, %v1593, %v1577
      %v1609 = vsel %vm486, %v1595, %v1579
      %v1610 = vsel %vm486, %v1597, %v1581
      %v1611 = vsel %vm486, %v1599, %v1583
      %1612 = vrot.lane.b32.xlu0 %v1492, 1
      %v1613 = vpop.permute.xlu0 %1612
      %1614 = vrot.lane.b32.xlu0 %v1495, 1
      %v1615 = vpop.permute.xlu0 %1614
      %1616 = vrot.lane.b32.xlu0 %v1498, 1
      %v1617 = vpop.permute.xlu0 %1616
      %1618 = vrot.lane.b32.xlu0 %v1501, 1
      %v1619 = vpop.permute.xlu0 %1618
      %1620 = vrot.lane.b32.xlu0 %v1493, 1
      %v1621 = vpop.permute.xlu0 %1620
      %1622 = vrot.lane.b32.xlu0 %v1496, 1
      %v1623 = vpop.permute.xlu0 %1622
      %1624 = vrot.lane.b32.xlu0 %v1499, 1
      %v1625 = vpop.permute.xlu0 %1624
      %1626 = vrot.lane.b32.xlu0 %v1502, 1
      %v1627 = vpop.permute.xlu0 %1626
      %1628 = vrot.lane.b32.xlu0 %v1494, 1
      %v1629 = vpop.permute.xlu0 %1628
      %1630 = vrot.lane.b32.xlu0 %v1497, 1
      %v1631 = vpop.permute.xlu0 %1630
      %1632 = vrot.lane.b32.xlu0 %v1500, 1
      %v1633 = vpop.permute.xlu0 %1632
      %1634 = vrot.lane.b32.xlu0 %v1503, 1
      %v1635 = vpop.permute.xlu0 %1634
      %v1636 = vsel %vm496, %v1621, %v1629
      %v1637 = vsel %vm496, %v1623, %v1631
      %v1638 = vsel %vm496, %v1625, %v1633
      %v1639 = vsel %vm496, %v1627, %v1635
      %v1640 = vsel %vm496, %v1613, %v1621
      %v1641 = vsel %vm496, %v1615, %v1623
      %v1642 = vsel %vm496, %v1617, %v1625
      %v1643 = vsel %vm496, %v1619, %v1627
      %v1644 = vsel %vm496, %v1629, %v1613
      %v1645 = vsel %vm496, %v1631, %v1615
      %v1646 = vsel %vm496, %v1633, %v1617
      %v1647 = vsel %vm496, %v1635, %v1619
      %1648 = vrot.lane.b32.xlu0 %v1492, 127
      %v1649 = vpop.permute.xlu0 %1648
      %1650 = vrot.lane.b32.xlu0 %v1495, 127
      %v1651 = vpop.permute.xlu0 %1650
      %1652 = vrot.lane.b32.xlu0 %v1498, 127
      %v1653 = vpop.permute.xlu0 %1652
      %1654 = vrot.lane.b32.xlu0 %v1501, 127
      %v1655 = vpop.permute.xlu0 %1654
      %1656 = vrot.lane.b32.xlu0 %v1493, 127
      %v1657 = vpop.permute.xlu0 %1656
      %1658 = vrot.lane.b32.xlu0 %v1496, 127
      %v1659 = vpop.permute.xlu0 %1658
      %1660 = vrot.lane.b32.xlu0 %v1499, 127
      %v1661 = vpop.permute.xlu0 %1660
      %1662 = vrot.lane.b32.xlu0 %v1502, 127
      %v1663 = vpop.permute.xlu0 %1662
      %1664 = vrot.lane.b32.xlu0 %v1494, 127
      %v1665 = vpop.permute.xlu0 %1664
      %1666 = vrot.lane.b32.xlu0 %v1497, 127
      %v1667 = vpop.permute.xlu0 %1666
      %1668 = vrot.lane.b32.xlu0 %v1500, 127
      %v1669 = vpop.permute.xlu0 %1668
      %1670 = vrot.lane.b32.xlu0 %v1503, 127
      %v1671 = vpop.permute.xlu0 %1670
      %v1672 = vsel %vm506, %v1657, %v1665
      %v1673 = vsel %vm506, %v1659, %v1667
      %v1674 = vsel %vm506, %v1661, %v1669
      %v1675 = vsel %vm506, %v1663, %v1671
      %v1676 = vsel %vm506, %v1649, %v1657
      %v1677 = vsel %vm506, %v1651, %v1659
      %v1678 = vsel %vm506, %v1653, %v1661
      %v1679 = vsel %vm506, %v1655, %v1663
      %v1680 = vsel %vm506, %v1665, %v1649
      %v1681 = vsel %vm506, %v1667, %v1651
      %v1682 = vsel %vm506, %v1669, %v1653
      %v1683 = vsel %vm506, %v1671, %v1655
      %1684 = vrot.lane.b32.xlu0 %v1492, 111
      %v1685 = vpop.permute.xlu0 %1684
      %1686 = vrot.lane.b32.xlu0 %v1495, 111
      %v1687 = vpop.permute.xlu0 %1686
      %1688 = vrot.lane.b32.xlu0 %v1498, 111
      %v1689 = vpop.permute.xlu0 %1688
      %1690 = vrot.lane.b32.xlu0 %v1501, 111
      %v1691 = vpop.permute.xlu0 %1690
      %1692 = vrot.lane.b32.xlu0 %v1493, 111
      %v1693 = vpop.permute.xlu0 %1692
      %1694 = vrot.lane.b32.xlu0 %v1496, 111
      %v1695 = vpop.permute.xlu0 %1694
      %1696 = vrot.lane.b32.xlu0 %v1499, 111
      %v1697 = vpop.permute.xlu0 %1696
      %1698 = vrot.lane.b32.xlu0 %v1502, 111
      %v1699 = vpop.permute.xlu0 %1698
      %1700 = vrot.lane.b32.xlu0 %v1494, 111
      %v1701 = vpop.permute.xlu0 %1700
      %1702 = vrot.lane.b32.xlu0 %v1497, 111
      %v1703 = vpop.permute.xlu0 %1702
      %1704 = vrot.lane.b32.xlu0 %v1500, 111
      %v1705 = vpop.permute.xlu0 %1704
      %1706 = vrot.lane.b32.xlu0 %v1503, 111
      %v1707 = vpop.permute.xlu0 %1706
      %v1708 = vsel %vm516, %v1693, %v1701
      %v1709 = vsel %vm516, %v1695, %v1703
      %v1710 = vsel %vm516, %v1697, %v1705
      %v1711 = vsel %vm516, %v1699, %v1707
      %v1712 = vsel %vm516, %v1685, %v1693
      %v1713 = vsel %vm516, %v1687, %v1695
      %v1714 = vsel %vm516, %v1689, %v1697
      %v1715 = vsel %vm516, %v1691, %v1699
      %v1716 = vsel %vm516, %v1701, %v1685
      %v1717 = vsel %vm516, %v1703, %v1687
      %v1718 = vsel %vm516, %v1705, %v1689
      %v1719 = vsel %vm516, %v1707, %v1691
      %1720 = vrot.lane.b32.xlu0 %v1492, 110
      %v1721 = vpop.permute.xlu0 %1720
      %1722 = vrot.lane.b32.xlu0 %v1495, 110
      %v1723 = vpop.permute.xlu0 %1722
      %1724 = vrot.lane.b32.xlu0 %v1498, 110
      %v1725 = vpop.permute.xlu0 %1724
      %1726 = vrot.lane.b32.xlu0 %v1501, 110
      %v1727 = vpop.permute.xlu0 %1726
      %1728 = vrot.lane.b32.xlu0 %v1493, 110
      %v1729 = vpop.permute.xlu0 %1728
      %1730 = vrot.lane.b32.xlu0 %v1496, 110
      %v1731 = vpop.permute.xlu0 %1730
      %1732 = vrot.lane.b32.xlu0 %v1499, 110
      %v1733 = vpop.permute.xlu0 %1732
      %1734 = vrot.lane.b32.xlu0 %v1502, 110
      %v1735 = vpop.permute.xlu0 %1734
      %1736 = vrot.lane.b32.xlu0 %v1494, 110
      %v1737 = vpop.permute.xlu0 %1736
      %1738 = vrot.lane.b32.xlu0 %v1497, 110
      %v1739 = vpop.permute.xlu0 %1738
      %1740 = vrot.lane.b32.xlu0 %v1500, 110
      %v1741 = vpop.permute.xlu0 %1740
      %1742 = vrot.lane.b32.xlu0 %v1503, 110
      %v1743 = vpop.permute.xlu0 %1742
      %v1744 = vsel %vm526, %v1729, %v1737
      %v1745 = vsel %vm526, %v1731, %v1739
      %v1746 = vsel %vm526, %v1733, %v1741
      %v1747 = vsel %vm526, %v1735, %v1743
      %v1748 = vsel %vm526, %v1721, %v1729
      %v1749 = vsel %vm526, %v1723, %v1731
      %v1750 = vsel %vm526, %v1725, %v1733
      %v1751 = vsel %vm526, %v1727, %v1735
      %v1752 = vsel %vm526, %v1737, %v1721
      %v1753 = vsel %vm526, %v1739, %v1723
      %v1754 = vsel %vm526, %v1741, %v1725
      %v1755 = vsel %vm526, %v1743, %v1727
      %1756 = vrot.lane.b32.xlu0 %v1492, 109
      %v1757 = vpop.permute.xlu0 %1756
      %1758 = vrot.lane.b32.xlu0 %v1495, 109
      %v1759 = vpop.permute.xlu0 %1758
      %1760 = vrot.lane.b32.xlu0 %v1498, 109
      %v1761 = vpop.permute.xlu0 %1760
      %1762 = vrot.lane.b32.xlu0 %v1501, 109
      %v1763 = vpop.permute.xlu0 %1762
      %1764 = vrot.lane.b32.xlu0 %v1493, 109
      %v1765 = vpop.permute.xlu0 %1764
      %1766 = vrot.lane.b32.xlu0 %v1496, 109
      %v1767 = vpop.permute.xlu0 %1766
      %1768 = vrot.lane.b32.xlu0 %v1499, 109
      %v1769 = vpop.permute.xlu0 %1768
      %1770 = vrot.lane.b32.xlu0 %v1502, 109
      %v1771 = vpop.permute.xlu0 %1770
      %1772 = vrot.lane.b32.xlu0 %v1494, 109
      %v1773 = vpop.permute.xlu0 %1772
      %1774 = vrot.lane.b32.xlu0 %v1497, 109
      %v1775 = vpop.permute.xlu0 %1774
      %1776 = vrot.lane.b32.xlu0 %v1500, 109
      %v1777 = vpop.permute.xlu0 %1776
      %1778 = vrot.lane.b32.xlu0 %v1503, 109
      %v1779 = vpop.permute.xlu0 %1778
      %v1780 = vsel %vm536, %v1765, %v1773
      %v1781 = vsel %vm536, %v1767, %v1775
      %v1782 = vsel %vm536, %v1769, %v1777
      %v1783 = vsel %vm536, %v1771, %v1779
      %v1784 = vsel %vm536, %v1757, %v1765
      %v1785 = vsel %vm536, %v1759, %v1767
      %v1786 = vsel %vm536, %v1761, %v1769
      %v1787 = vsel %vm536, %v1763, %v1771
      %v1788 = vsel %vm536, %v1773, %v1757
      %v1789 = vsel %vm536, %v1775, %v1759
      %v1790 = vsel %vm536, %v1777, %v1761
      %v1791 = vsel %vm536, %v1779, %v1763
      %1792 = vmatprep.subr.mxu0 %v1532
      %1793 = vmatpush1.msra.mxu0 %v1536
      %1794 = vmatprep.subr.mxu0 %v1533
      %1795 = vmatpush1.msra.mxu0 %v1537
      %1796 = vmatprep.subr.mxu0 %v1534
      %1797 = vmatpush1.msra.mxu0 %v1538
      %1798 = vmatprep.subr.mxu0 %v1535
      %1799 = vmatpush1.msra.mxu0 %v1539
      %1800 = vmatprep.subr.mxu0 %v1568
      %1801 = vmatpush1.msra.mxu0 %v1572
      %1802 = vmatprep.subr.mxu0 %v1569
      %1803 = vmatpush1.msra.mxu0 %v1573
      %1804 = vmatprep.subr.mxu0 %v1570
      %1805 = vmatpush1.msra.mxu0 %v1574
      %1806 = vmatprep.subr.mxu0 %v1571
      %1807 = vmatpush1.msra.mxu0 %v1575
      %1808 = vmatprep.subr.mxu0 %v1604
      %1809 = vmatpush1.msra.mxu0 %v1608
      %1810 = vmatprep.subr.mxu0 %v1605
      %1811 = vmatpush1.msra.mxu0 %v1609
      %1812 = vmatprep.subr.mxu0 %v1606
      %1813 = vmatpush1.msra.mxu0 %v1610
      %1814 = vmatprep.subr.mxu0 %v1607
      %1815 = vmatpush1.msra.mxu0 %v1611
      %1816 = vmatprep.subr.mxu0 %v1640
      %1817 = vmatpush1.msra.mxu0 %v1644
      %1818 = vmatprep.subr.mxu0 %v1641
      %1819 = vmatpush1.msra.mxu0 %v1645
      %1820 = vmatprep.subr.mxu0 %v1642
      %1821 = vmatpush1.msra.mxu0 %v1646
      %1822 = vmatprep.subr.mxu0 %v1643
      %1823 = vmatpush1.msra.mxu0 %v1647
      %1824 = vmatprep.subr.mxu0 %v1493
      %1825 = vmatpush1.msra.mxu0 %v1492
      %1826 = vmatprep.subr.mxu0 %v1496
      %1827 = vmatpush1.msra.mxu0 %v1495
      %1828 = vmatprep.subr.mxu0 %v1499
      %1829 = vmatpush1.msra.mxu0 %v1498
      %1830 = vmatprep.subr.mxu0 %v1502
      %1831 = vmatpush1.msra.mxu0 %v1501
      %1832 = vmatprep.subr.mxu0 %v1672
      %1833 = vmatpush1.msra.mxu0 %v1676
      %1834 = vmatprep.subr.mxu0 %v1673
      %1835 = vmatpush1.msra.mxu0 %v1677
      %1836 = vmatprep.subr.mxu0 %v1674
      %1837 = vmatpush1.msra.mxu0 %v1678
      %1838 = vmatprep.subr.mxu0 %v1675
      %1839 = vmatpush1.msra.mxu0 %v1679
      %1840 = vmatprep.subr.mxu0 %v1708
      %1841 = vmatpush1.msra.mxu0 %v1712
      %1842 = vmatprep.subr.mxu0 %v1709
      %1843 = vmatpush1.msra.mxu0 %v1713
      %1844 = vmatprep.subr.mxu0 %v1710
      %1845 = vmatpush1.msra.mxu0 %v1714
      %1846 = vmatprep.subr.mxu0 %v1711
      %1847 = vmatpush1.msra.mxu0 %v1715
      %1848 = vmatprep.subr.mxu0 %v1744
      %1849 = vmatpush1.msra.mxu0 %v1748
      %1850 = vmatprep.subr.mxu0 %v1745
      %1851 = vmatpush1.msra.mxu0 %v1749
      %1852 = vmatprep.subr.mxu0 %v1746
      %1853 = vmatpush1.msra.mxu0 %v1750
      %1854 = vmatprep.subr.mxu0 %v1747
      %1855 = vmatpush1.msra.mxu0 %v1751
      %1856 = vmatprep.mubr.f32.mxu0 %v1084
      %1857 = vmatmul.mubr.f32.gmra.mrb[0].mxu0 %v1083
      %v1858 = vpop.f32.mrb[0].mxu0
      %v1859 = vadd.f32 %v1102, %v1858
      %v1860 = vpop.f32.mrb[0].mxu0
      %v1861 = vadd.f32 %v1102, %v1860
      %1862 = vmatprep.mubr.f32.mxu0 %v1087
      %1863 = vmatmul.mubr.f32.gmra.mrb[0].mxu0 %v1086
      %v1864 = vpop.f32.mrb[0].mxu0
      %v1865 = vadd.f32 %v1107, %v1864
      %v1866 = vpop.f32.mrb[0].mxu0
      %v1867 = vadd.f32 %v1107, %v1866
      %1868 = vmatprep.mubr.f32.mxu0 %v1090
      %1869 = vmatmul.mubr.f32.gmra.mrb[0].mxu0 %v1089
      %v1870 = vpop.f32.mrb[0].mxu0
      %v1871 = vadd.f32 %v1112, %v1870
      %v1872 = vpop.f32.mrb[0].mxu0
      %v1873 = vadd.f32 %v1112, %v1872
      %1874 = vmatprep.mubr.f32.mxu0 %v1093
      %1875 = vmatmul.mubr.f32.gmra.mrb[0].mxu0 %v1092
      %v1876 = vpop.f32.mrb[0].mxu0
      %v1877 = vadd.f32 %v1117, %v1876
      %v1878 = vpop.f32.mrb[0].mxu0
      %v1879 = vadd.f32 %v1117, %v1878
      %1880 = vdwg.mxu0
      %1881 = vmatprep.subr.mxu0 %v1780
      %1882 = vmatpush1.msra.mxu0 %v1784
      %1883 = vmatprep.subr.mxu0 %v1781
      %1884 = vmatpush1.msra.mxu0 %v1785
      %1885 = vmatprep.subr.mxu0 %v1782
      %1886 = vmatpush1.msra.mxu0 %v1786
      %1887 = vmatprep.subr.mxu0 %v1783
      %1888 = vmatpush1.msra.mxu0 %v1787
      %1889 = vmatprep.subr.mxu0 0.0
      %1890 = vmatpush1.msra.mxu0 0.0
      %1891 = vmatprep.subr.mxu0 0.0
      %1892 = vmatpush1.msra.mxu0 0.0
      %1893 = vmatprep.subr.mxu0 0.0
      %1894 = vmatpush1.msra.mxu0 0.0
      %1895 = vmatprep.subr.mxu0 0.0
      %1896 = vmatpush1.msra.mxu0 0.0
      %1897 = vmatprep.subr.mxu0 0.0
      %1898 = vmatpush1.msra.mxu0 0.0
      %1899 = vmatprep.subr.mxu0 0.0
      %1900 = vmatpush1.msra.mxu0 0.0
      %1901 = vmatprep.subr.mxu0 0.0
      %1902 = vmatpush1.msra.mxu0 0.0
      %1903 = vmatprep.subr.mxu0 0.0
      %1904 = vmatpush1.msra.mxu0 0.0
      %1905 = vmatprep.subr.mxu0 0.0
      %1906 = vmatpush1.msra.mxu0 0.0
      %1907 = vmatprep.subr.mxu0 0.0
      %1908 = vmatpush1.msra.mxu0 0.0
      %1909 = vmatprep.subr.mxu0 0.0
      %1910 = vmatpush1.msra.mxu0 0.0
      %1911 = vmatprep.subr.mxu0 0.0
      %1912 = vmatpush1.msra.mxu0 0.0
      %1913 = vmatprep.subr.mxu0 0.0
      %1914 = vmatpush1.msra.mxu0 0.0
      %1915 = vmatprep.subr.mxu0 0.0
      %1916 = vmatpush1.msra.mxu0 0.0
      %1917 = vmatprep.subr.mxu0 0.0
      %1918 = vmatpush1.msra.mxu0 0.0
      %1919 = vmatprep.subr.mxu0 0.0
      %1920 = vmatpush1.msra.mxu0 0.0
      %1921 = vmatprep.subr.mxu0 0.0
      %1922 = vmatpush1.msra.mxu0 0.0
      %1923 = vmatprep.subr.mxu0 0.0
      %1924 = vmatpush1.msra.mxu0 0.0
      %1925 = vmatprep.subr.mxu0 0.0
      %1926 = vmatpush1.msra.mxu0 0.0
      %1927 = vmatprep.subr.mxu0 0.0
      %1928 = vmatpush1.msra.mxu0 0.0
      %1929 = vmatprep.subr.mxu0 0.0
      %1930 = vmatpush1.msra.mxu0 0.0
      %1931 = vmatprep.subr.mxu0 0.0
      %1932 = vmatpush1.msra.mxu0 0.0
      %1933 = vmatprep.subr.mxu0 0.0
      %1934 = vmatpush1.msra.mxu0 0.0
      %1935 = vmatprep.subr.mxu0 0.0
      %1936 = vmatpush1.msra.mxu0 0.0
      %1937 = vmatprep.subr.mxu0 0.0
      %1938 = vmatpush1.msra.mxu0 0.0
      %1939 = vmatprep.subr.mxu0 0.0
      %1940 = vmatpush1.msra.mxu0 0.0
      %1941 = vmatprep.subr.mxu0 0.0
      %1942 = vmatpush1.msra.mxu0 0.0
      %1943 = vmatprep.subr.mxu0 0.0
      %1944 = vmatpush1.msra.mxu0 0.0
      %1945 = vmatprep.mubr.f32.mxu0 0.0
      %1946 = vmatmul.mubr.f32.gmra.mrb[0].mxu0 %v1121
      %v1947 = vpop.f32.mrb[0].mxu0
      %v1948 = vadd.f32 %v1859, %v1947
      %v1949 = vpop.f32.mrb[0].mxu0
      %v1950 = vadd.f32 %v1861, %v1949
      %1951 = vmatprep.mubr.f32.mxu0 0.0
      %1952 = vmatmul.mubr.f32.gmra.mrb[0].mxu0 %v1124
      %v1953 = vpop.f32.mrb[0].mxu0
      %v1954 = vadd.f32 %v1865, %v1953
      %v1955 = vpop.f32.mrb[0].mxu0
      %v1956 = vadd.f32 %v1867, %v1955
      %1957 = vmatprep.mubr.f32.mxu0 0.0
      %1958 = vmatmul.mubr.f32.gmra.mrb[0].mxu0 %v1127
      %v1959 = vpop.f32.mrb[0].mxu0
      %v1960 = vadd.f32 %v1871, %v1959
      %v1961 = vpop.f32.mrb[0].mxu0
      %v1962 = vadd.f32 %v1873, %v1961
      %1963 = vmatprep.mubr.f32.mxu0 0.0
      %1964 = vmatmul.mubr.f32.gmra.mrb[0].mxu0 %v1130
      %v1965 = vpop.f32.mrb[0].mxu0
      %v1966 = vadd.f32 %v1877, %v1965
      %v1967 = vpop.f32.mrb[0].mxu0
      %v1968 = vadd.f32 %v1879, %v1967
      %1969 = vdwg.mxu0
      %1970 = vmatprep.subr.mxu0 0.0
      %1971 = vmatpush1.msra.mxu0 %v1528
      %1972 = vmatprep.subr.mxu0 0.0
      %1973 = vmatpush1.msra.mxu0 %v1529
      %1974 = vmatprep.subr.mxu0 0.0
      %1975 = vmatpush1.msra.mxu0 %v1530
      %1976 = vmatprep.subr.mxu0 0.0
      %1977 = vmatpush1.msra.mxu0 %v1531
      %1978 = vmatprep.subr.mxu0 0.0
      %1979 = vmatpush1.msra.mxu0 %v1564
      %1980 = vmatprep.subr.mxu0 0.0
      %1981 = vmatpush1.msra.mxu0 %v1565
      %1982 = vmatprep.subr.mxu0 0.0
      %1983 = vmatpush1.msra.mxu0 %v1566
      %1984 = vmatprep.subr.mxu0 0.0
      %1985 = vmatpush1.msra.mxu0 %v1567
      %1986 = vmatprep.subr.mxu0 0.0
      %1987 = vmatpush1.msra.mxu0 %v1600
      %1988 = vmatprep.subr.mxu0 0.0
      %1989 = vmatpush1.msra.mxu0 %v1601
      %1990 = vmatprep.subr.mxu0 0.0
      %1991 = vmatpush1.msra.mxu0 %v1602
      %1992 = vmatprep.subr.mxu0 0.0
      %1993 = vmatpush1.msra.mxu0 %v1603
      %1994 = vmatprep.subr.mxu0 0.0
      %1995 = vmatpush1.msra.mxu0 %v1636
      %1996 = vmatprep.subr.mxu0 0.0
      %1997 = vmatpush1.msra.mxu0 %v1637
      %1998 = vmatprep.subr.mxu0 0.0
      %1999 = vmatpush1.msra.mxu0 %v1638
      %2000 = vmatprep.subr.mxu0 0.0
      %2001 = vmatpush1.msra.mxu0 %v1639
      %2002 = vmatprep.subr.mxu0 0.0
      %2003 = vmatpush1.msra.mxu0 %v1494
      %2004 = vmatprep.subr.mxu0 0.0
      %2005 = vmatpush1.msra.mxu0 %v1497
      %2006 = vmatprep.subr.mxu0 0.0
      %2007 = vmatpush1.msra.mxu0 %v1500
      %2008 = vmatprep.subr.mxu0 0.0
      %2009 = vmatpush1.msra.mxu0 %v1503
      %2010 = vmatprep.subr.mxu0 0.0
      %2011 = vmatpush1.msra.mxu0 %v1680
      %2012 = vmatprep.subr.mxu0 0.0
      %2013 = vmatpush1.msra.mxu0 %v1681
      %2014 = vmatprep.subr.mxu0 0.0
      %2015 = vmatpush1.msra.mxu0 %v1682
      %2016 = vmatprep.subr.mxu0 0.0
      %2017 = vmatpush1.msra.mxu0 %v1683
      %2018 = vmatprep.subr.mxu0 0.0
      %2019 = vmatpush1.msra.mxu0 %v1716
      %2020 = vmatprep.subr.mxu0 0.0
      %2021 = vmatpush1.msra.mxu0 %v1717
      %2022 = vmatprep.subr.mxu0 0.0
      %2023 = vmatpush1.msra.mxu0 %v1718
      %2024 = vmatprep.subr.mxu0 0.0
      %2025 = vmatpush1.msra.mxu0 %v1719
      %2026 = vmatprep.subr.mxu0 0.0
      %2027 = vmatpush1.msra.mxu0 %v1752
      %2028 = vmatprep.subr.mxu0 0.0
      %2029 = vmatpush1.msra.mxu0 %v1753
      %2030 = vmatprep.subr.mxu0 0.0
      %2031 = vmatpush1.msra.mxu0 %v1754
      %2032 = vmatprep.subr.mxu0 0.0
      %2033 = vmatpush1.msra.mxu0 %v1755
      %2034 = vmatprep.mubr.f32.mxu0 %v1084
      %2035 = vmatmul.mubr.f32.gmra.mrb[0].mxu0 %v1083
      %v2036 = vpop.f32.mrb[0].mxu0
      %v2037 = vadd.f32 %v1102, %v2036
      %v2038 = vpop.f32.mrb[0].mxu0
      %2039 = vmatprep.mubr.f32.mxu0 %v1087
      %2040 = vmatmul.mubr.f32.gmra.mrb[0].mxu0 %v1086
      %v2041 = vpop.f32.mrb[0].mxu0
      %v2042 = vadd.f32 %v1107, %v2041
      %v2043 = vpop.f32.mrb[0].mxu0
      %2044 = vmatprep.mubr.f32.mxu0 %v1090
      %2045 = vmatmul.mubr.f32.gmra.mrb[0].mxu0 %v1089
      %v2046 = vpop.f32.mrb[0].mxu0
      %v2047 = vadd.f32 %v1112, %v2046
      %v2048 = vpop.f32.mrb[0].mxu0
      %2049 = vmatprep.mubr.f32.mxu0 %v1093
      %2050 = vmatmul.mubr.f32.gmra.mrb[0].mxu0 %v1092
      %v2051 = vpop.f32.mrb[0].mxu0
      %v2052 = vadd.f32 %v1117, %v2051
      %v2053 = vpop.f32.mrb[0].mxu0
      %2054 = vdwg.mxu0
      %2055 = vmatprep.subr.mxu0 0.0
      %2056 = vmatpush1.msra.mxu0 %v1788
      %2057 = vmatprep.subr.mxu0 0.0
      %2058 = vmatpush1.msra.mxu0 %v1789
      %2059 = vmatprep.subr.mxu0 0.0
      %2060 = vmatpush1.msra.mxu0 %v1790
      %2061 = vmatprep.subr.mxu0 0.0
      %2062 = vmatpush1.msra.mxu0 %v1791
      %2063 = vmatprep.subr.mxu0 0.0
      %2064 = vmatpush1.msra.mxu0 0.0
      %2065 = vmatprep.subr.mxu0 0.0
      %2066 = vmatpush1.msra.mxu0 0.0
      %2067 = vmatprep.subr.mxu0 0.0
      %2068 = vmatpush1.msra.mxu0 0.0
      %2069 = vmatprep.subr.mxu0 0.0
      %2070 = vmatpush1.msra.mxu0 0.0
      %2071 = vmatprep.subr.mxu0 0.0
      %2072 = vmatpush1.msra.mxu0 0.0
      %2073 = vmatprep.subr.mxu0 0.0
      %2074 = vmatpush1.msra.mxu0 0.0
      %2075 = vmatprep.subr.mxu0 0.0
      %2076 = vmatpush1.msra.mxu0 0.0
      %2077 = vmatprep.subr.mxu0 0.0
      %2078 = vmatpush1.msra.mxu0 0.0
      %2079 = vmatprep.subr.mxu0 0.0
      %2080 = vmatpush1.msra.mxu0 0.0
      %2081 = vmatprep.subr.mxu0 0.0
      %2082 = vmatpush1.msra.mxu0 0.0
      %2083 = vmatprep.subr.mxu0 0.0
      %2084 = vmatpush1.msra.mxu0 0.0
      %2085 = vmatprep.subr.mxu0 0.0
      %2086 = vmatpush1.msra.mxu0 0.0
      %2087 = vmatprep.subr.mxu0 0.0
      %2088 = vmatpush1.msra.mxu0 0.0
      %2089 = vmatprep.subr.mxu0 0.0
      %2090 = vmatpush1.msra.mxu0 0.0
      %2091 = vmatprep.subr.mxu0 0.0
      %2092 = vmatpush1.msra.mxu0 0.0
      %2093 = vmatprep.subr.mxu0 0.0
      %2094 = vmatpush1.msra.mxu0 0.0
      %2095 = vmatprep.subr.mxu0 0.0
      %2096 = vmatpush1.msra.mxu0 0.0
      %2097 = vmatprep.subr.mxu0 0.0
      %2098 = vmatpush1.msra.mxu0 0.0
      %2099 = vmatprep.subr.mxu0 0.0
      %2100 = vmatpush1.msra.mxu0 0.0
      %2101 = vmatprep.subr.mxu0 0.0
      %2102 = vmatpush1.msra.mxu0 0.0
      %2103 = vmatprep.subr.mxu0 0.0
      %2104 = vmatpush1.msra.mxu0 0.0
      %2105 = vmatprep.subr.mxu0 0.0
      %2106 = vmatpush1.msra.mxu0 0.0
      %2107 = vmatprep.subr.mxu0 0.0
      %2108 = vmatpush1.msra.mxu0 0.0
      %2109 = vmatprep.subr.mxu0 0.0
      %2110 = vmatpush1.msra.mxu0 0.0
      %2111 = vmatprep.subr.mxu0 0.0
      %2112 = vmatpush1.msra.mxu0 0.0
      %2113 = vmatprep.subr.mxu0 0.0
      %2114 = vmatpush1.msra.mxu0 0.0
      %2115 = vmatprep.subr.mxu0 0.0
      %2116 = vmatpush1.msra.mxu0 0.0
      %2117 = vmatprep.subr.mxu0 0.0
      %2118 = vmatpush1.msra.mxu0 0.0
      %2119 = vmatprep.mubr.f32.mxu0 0.0
      %2120 = vmatmul.mubr.f32.gmra.mrb[0].mxu0 %v1121
      %v2121 = vpop.f32.mrb[0].mxu0
      %v2122 = vadd.f32 %v2037, %v2121
      %v2123 = vpop.f32.mrb[0].mxu0
      %2124 = vmatprep.mubr.f32.mxu0 0.0
      %2125 = vmatmul.mubr.f32.gmra.mrb[0].mxu0 %v1124
      %v2126 = vpop.f32.mrb[0].mxu0
      %v2127 = vadd.f32 %v2042, %v2126
      %v2128 = vpop.f32.mrb[0].mxu0
      %2129 = vmatprep.mubr.f32.mxu0 0.0
      %2130 = vmatmul.mubr.f32.gmra.mrb[0].mxu0 %v1127
      %v2131 = vpop.f32.mrb[0].mxu0
      %v2132 = vadd.f32 %v2047, %v2131
      %v2133 = vpop.f32.mrb[0].mxu0
      %2134 = vmatprep.mubr.f32.mxu0 0.0
      %2135 = vmatmul.mubr.f32.gmra.mrb[0].mxu0 %v1130
      %v2136 = vpop.f32.mrb[0].mxu0
      %v2137 = vadd.f32 %v2052, %v2136
      %v2138 = vpop.f32.mrb[0].mxu0
      %2139 = vdwg.mxu0
      %v2140 = vmax.f32 %v1948, 0.0
      %v2141 = vmax.f32 %v1950, 0.0
      %v2142 = vmax.f32 %v2122, 0.0
      %v2143 = vmax.f32 %v1954, 0.0
      %v2144 = vmax.f32 %v1956, 0.0
      %v2145 = vmax.f32 %v2127, 0.0
      %v2146 = vmax.f32 %v1960, 0.0
      %v2147 = vmax.f32 %v1962, 0.0
      %v2148 = vmax.f32 %v2132, 0.0
      %v2149 = vmax.f32 %v1966, 0.0
      %v2150 = vmax.f32 %v1968, 0.0
      %v2151 = vmax.f32 %v2137, 0.0
      %v2152 = vmul.f32 %v2140, %v771
      %v2153 = vmul.f32 %v2141, %v775
      %v2154 = vmul.f32 %v2142, %v779
      %v2155 = vmul.f32 %v2143, %v771
      %v2156 = vmul.f32 %v2144, %v775
      %v2157 = vmul.f32 %v2145, %v779
      %v2158 = vmul.f32 %v2146, %v771
      %v2159 = vmul.f32 %v2147, %v775
      %v2160 = vmul.f32 %v2148, %v779
      %v2161 = vmul.f32 %v2149, %v771
      %v2162 = vmul.f32 %v2150, %v775
      %v2163 = vmul.f32 %v2151, %v779
      %2164 = vrot.lane.b32.xlu0 %v2152, 19
      %v2165 = vpop.permute.xlu0 %2164
      %2166 = vrot.lane.b32.xlu0 %v2155, 19
      %v2167 = vpop.permute.xlu0 %2166
      %2168 = vrot.lane.b32.xlu0 %v2158, 19
      %v2169 = vpop.permute.xlu0 %2168
      %2170 = vrot.lane.b32.xlu0 %v2161, 19
      %v2171 = vpop.permute.xlu0 %2170
      %2172 = vrot.lane.b32.xlu0 %v2153, 19
      %v2173 = vpop.permute.xlu0 %2172
      %2174 = vrot.lane.b32.xlu0 %v2156, 19
      %v2175 = vpop.permute.xlu0 %2174
      %2176 = vrot.lane.b32.xlu0 %v2159, 19
      %v2177 = vpop.permute.xlu0 %2176
      %2178 = vrot.lane.b32.xlu0 %v2162, 19
      %v2179 = vpop.permute.xlu0 %2178
      %2180 = vrot.lane.b32.xlu0 %v2154, 19
      %v2181 = vpop.permute.xlu0 %2180
      %2182 = vrot.lane.b32.xlu0 %v2157, 19
      %v2183 = vpop.permute.xlu0 %2182
      %2184 = vrot.lane.b32.xlu0 %v2160, 19
      %v2185 = vpop.permute.xlu0 %2184
      %2186 = vrot.lane.b32.xlu0 %v2163, 19
      %v2187 = vpop.permute.xlu0 %2186
      %v2188 = vsel %vm466, %v2173, %v2181
      %v2189 = vsel %vm466, %v2175, %v2183
      %v2190 = vsel %vm466, %v2177, %v2185
      %v2191 = vsel %vm466, %v2179, %v2187
      %v2192 = vsel %vm466, %v2165, %v2173
      %v2193 = vsel %vm466, %v2167, %v2175
      %v2194 = vsel %vm466, %v2169, %v2177
      %v2195 = vsel %vm466, %v2171, %v2179
      %v2196 = vsel %vm466, %v2181, %v2165
      %v2197 = vsel %vm466, %v2183, %v2167
      %v2198 = vsel %vm466, %v2185, %v2169
      %v2199 = vsel %vm466, %v2187, %v2171
      %2200 = vrot.lane.b32.xlu0 %v2152, 18
      %v2201 = vpop.permute.xlu0 %2200
      %2202 = vrot.lane.b32.xlu0 %v2155, 18
      %v2203 = vpop.permute.xlu0 %2202
      %2204 = vrot.lane.b32.xlu0 %v2158, 18
      %v2205 = vpop.permute.xlu0 %2204
      %2206 = vrot.lane.b32.xlu0 %v2161, 18
      %v2207 = vpop.permute.xlu0 %2206
      %2208 = vrot.lane.b32.xlu0 %v2153, 18
      %v2209 = vpop.permute.xlu0 %2208
      %2210 = vrot.lane.b32.xlu0 %v2156, 18
      %v2211 = vpop.permute.xlu0 %2210
      %2212 = vrot.lane.b32.xlu0 %v2159, 18
      %v2213 = vpop.permute.xlu0 %2212
      %2214 = vrot.lane.b32.xlu0 %v2162, 18
      %v2215 = vpop.permute.xlu0 %2214
      %2216 = vrot.lane.b32.xlu0 %v2154, 18
      %v2217 = vpop.permute.xlu0 %2216
      %2218 = vrot.lane.b32.xlu0 %v2157, 18
      %v2219 = vpop.permute.xlu0 %2218
      %2220 = vrot.lane.b32.xlu0 %v2160, 18
      %v2221 = vpop.permute.xlu0 %2220
      %2222 = vrot.lane.b32.xlu0 %v2163, 18
      %v2223 = vpop.permute.xlu0 %2222
      %v2224 = vsel %vm476, %v2209, %v2217
      %v2225 = vsel %vm476, %v2211, %v2219
      %v2226 = vsel %vm476, %v2213, %v2221
      %v2227 = vsel %vm476, %v2215, %v2223
      %v2228 = vsel %vm476, %v2201, %v2209
      %v2229 = vsel %vm476, %v2203, %v2211
      %v2230 = vsel %vm476, %v2205, %v2213
      %v2231 = vsel %vm476, %v2207, %v2215
      %v2232 = vsel %vm476, %v2217, %v2201
      %v2233 = vsel %vm476, %v2219, %v2203
      %v2234 = vsel %vm476, %v2221, %v2205
      %v2235 = vsel %vm476, %v2223, %v2207
      %2236 = vrot.lane.b32.xlu0 %v2152, 17
      %v2237 = vpop.permute.xlu0 %2236
      %2238 = vrot.lane.b32.xlu0 %v2155, 17
      %v2239 = vpop.permute.xlu0 %2238
      %2240 = vrot.lane.b32.xlu0 %v2158, 17
      %v2241 = vpop.permute.xlu0 %2240
      %2242 = vrot.lane.b32.xlu0 %v2161, 17
      %v2243 = vpop.permute.xlu0 %2242
      %2244 = vrot.lane.b32.xlu0 %v2153, 17
      %v2245 = vpop.permute.xlu0 %2244
      %2246 = vrot.lane.b32.xlu0 %v2156, 17
      %v2247 = vpop.permute.xlu0 %2246
      %2248 = vrot.lane.b32.xlu0 %v2159, 17
      %v2249 = vpop.permute.xlu0 %2248
      %2250 = vrot.lane.b32.xlu0 %v2162, 17
      %v2251 = vpop.permute.xlu0 %2250
      %2252 = vrot.lane.b32.xlu0 %v2154, 17
      %v2253 = vpop.permute.xlu0 %2252
      %2254 = vrot.lane.b32.xlu0 %v2157, 17
      %v2255 = vpop.permute.xlu0 %2254
      %2256 = vrot.lane.b32.xlu0 %v2160, 17
      %v2257 = vpop.permute.xlu0 %2256
      %2258 = vrot.lane.b32.xlu0 %v2163, 17
      %v2259 = vpop.permute.xlu0 %2258
      %v2260 = vsel %vm486, %v2245, %v2253
      %v2261 = vsel %vm486, %v2247, %v2255
      %v2262 = vsel %vm486, %v2249, %v2257
      %v2263 = vsel %vm486, %v2251, %v2259
      %v2264 = vsel %vm486, %v2237, %v2245
      %v2265 = vsel %vm486, %v2239, %v2247
      %v2266 = vsel %vm486, %v2241, %v2249
      %v2267 = vsel %vm486, %v2243, %v2251
      %v2268 = vsel %vm486, %v2253, %v2237
      %v2269 = vsel %vm486, %v2255, %v2239
      %v2270 = vsel %vm486, %v2257, %v2241
      %v2271 = vsel %vm486, %v2259, %v2243
      %2272 = vrot.lane.b32.xlu0 %v2152, 1
      %v2273 = vpop.permute.xlu0 %2272
      %2274 = vrot.lane.b32.xlu0 %v2155, 1
      %v2275 = vpop.permute.xlu0 %2274
      %2276 = vrot.lane.b32.xlu0 %v2158, 1
      %v2277 = vpop.permute.xlu0 %2276
      %2278 = vrot.lane.b32.xlu0 %v2161, 1
      %v2279 = vpop.permute.xlu0 %2278
      %2280 = vrot.lane.b32.xlu0 %v2153, 1
      %v2281 = vpop.permute.xlu0 %2280
      %2282 = vrot.lane.b32.xlu0 %v2156, 1
      %v2283 = vpop.permute.xlu0 %2282
      %2284 = vrot.lane.b32.xlu0 %v2159, 1
      %v2285 = vpop.permute.xlu0 %2284
      %2286 = vrot.lane.b32.xlu0 %v2162, 1
      %v2287 = vpop.permute.xlu0 %2286
      %2288 = vrot.lane.b32.xlu0 %v2154, 1
      %v2289 = vpop.permute.xlu0 %2288
      %2290 = vrot.lane.b32.xlu0 %v2157, 1
      %v2291 = vpop.permute.xlu0 %2290
      %2292 = vrot.lane.b32.xlu0 %v2160, 1
      %v2293 = vpop.permute.xlu0 %2292
      %2294 = vrot.lane.b32.xlu0 %v2163, 1
      %v2295 = vpop.permute.xlu0 %2294
      %v2296 = vsel %vm496, %v2281, %v2289
      %v2297 = vsel %vm496, %v2283, %v2291
      %v2298 = vsel %vm496, %v2285, %v2293
      %v2299 = vsel %vm496, %v2287, %v2295
      %v2300 = vsel %vm496, %v2273, %v2281
      %v2301 = vsel %vm496, %v2275, %v2283
      %v2302 = vsel %vm496, %v2277, %v2285
      %v2303 = vsel %vm496, %v2279, %v2287
      %v2304 = vsel %vm496, %v2289, %v2273
      %v2305 = vsel %vm496, %v2291, %v2275
      %v2306 = vsel %vm496, %v2293, %v2277
      %v2307 = vsel %vm496, %v2295, %v2279
      %2308 = vrot.lane.b32.xlu0 %v2152, 127
      %v2309 = vpop.permute.xlu0 %2308
      %2310 = vrot.lane.b32.xlu0 %v2155, 127
      %v2311 = vpop.permute.xlu0 %2310
      %2312 = vrot.lane.b32.xlu0 %v2158, 127
      %v2313 = vpop.permute.xlu0 %2312
      %2314 = vrot.lane.b32.xlu0 %v2161, 127
      %v2315 = vpop.permute.xlu0 %2314
      %2316 = vrot.lane.b32.xlu0 %v2153, 127
      %v2317 = vpop.permute.xlu0 %2316
      %2318 = vrot.lane.b32.xlu0 %v2156, 127
      %v2319 = vpop.permute.xlu0 %2318
      %2320 = vrot.lane.b32.xlu0 %v2159, 127
      %v2321 = vpop.permute.xlu0 %2320
      %2322 = vrot.lane.b32.xlu0 %v2162, 127
      %v2323 = vpop.permute.xlu0 %2322
      %2324 = vrot.lane.b32.xlu0 %v2154, 127
      %v2325 = vpop.permute.xlu0 %2324
      %2326 = vrot.lane.b32.xlu0 %v2157, 127
      %v2327 = vpop.permute.xlu0 %2326
      %2328 = vrot.lane.b32.xlu0 %v2160, 127
      %v2329 = vpop.permute.xlu0 %2328
      %2330 = vrot.lane.b32.xlu0 %v2163, 127
      %v2331 = vpop.permute.xlu0 %2330
      %v2332 = vsel %vm506, %v2317, %v2325
      %v2333 = vsel %vm506, %v2319, %v2327
      %v2334 = vsel %vm506, %v2321, %v2329
      %v2335 = vsel %vm506, %v2323, %v2331
      %v2336 = vsel %vm506, %v2309, %v2317
      %v2337 = vsel %vm506, %v2311, %v2319
      %v2338 = vsel %vm506, %v2313, %v2321
      %v2339 = vsel %vm506, %v2315, %v2323
      %v2340 = vsel %vm506, %v2325, %v2309
      %v2341 = vsel %vm506, %v2327, %v2311
      %v2342 = vsel %vm506, %v2329, %v2313
      %v2343 = vsel %vm506, %v2331, %v2315
      %2344 = vrot.lane.b32.xlu0 %v2152, 111
      %v2345 = vpop.permute.xlu0 %2344
      %2346 = vrot.lane.b32.xlu0 %v2155, 111
      %v2347 = vpop.permute.xlu0 %2346
      %2348 = vrot.lane.b32.xlu0 %v2158, 111
      %v2349 = vpop.permute.xlu0 %2348
      %2350 = vrot.lane.b32.xlu0 %v2161, 111
      %v2351 = vpop.permute.xlu0 %2350
      %2352 = vrot.lane.b32.xlu0 %v2153, 111
      %v2353 = vpop.permute.xlu0 %2352
      %2354 = vrot.lane.b32.xlu0 %v2156, 111
      %v2355 = vpop.permute.xlu0 %2354
      %2356 = vrot.lane.b32.xlu0 %v2159, 111
      %v2357 = vpop.permute.xlu0 %2356
      %2358 = vrot.lane.b32.xlu0 %v2162, 111
      %v2359 = vpop.permute.xlu0 %2358
      %2360 = vrot.lane.b32.xlu0 %v2154, 111
      %v2361 = vpop.permute.xlu0 %2360
      %2362 = vrot.lane.b32.xlu0 %v2157, 111
      %v2363 = vpop.permute.xlu0 %2362
      %2364 = vrot.lane.b32.xlu0 %v2160, 111
      %v2365 = vpop.permute.xlu0 %2364
      %2366 = vrot.lane.b32.xlu0 %v2163, 111
      %v2367 = vpop.permute.xlu0 %2366
      %v2368 = vsel %vm516, %v2353, %v2361
      %v2369 = vsel %vm516, %v2355, %v2363
      %v2370 = vsel %vm516, %v2357, %v2365
      %v2371 = vsel %vm516, %v2359, %v2367
      %v2372 = vsel %vm516, %v2345, %v2353
      %v2373 = vsel %vm516, %v2347, %v2355
      %v2374 = vsel %vm516, %v2349, %v2357
      %v2375 = vsel %vm516, %v2351, %v2359
      %v2376 = vsel %vm516, %v2361, %v2345
      %v2377 = vsel %vm516, %v2363, %v2347
      %v2378 = vsel %vm516, %v2365, %v2349
      %v2379 = vsel %vm516, %v2367, %v2351
      %2380 = vrot.lane.b32.xlu0 %v2152, 110
      %v2381 = vpop.permute.xlu0 %2380
      %2382 = vrot.lane.b32.xlu0 %v2155, 110
      %v2383 = vpop.permute.xlu0 %2382
      %2384 = vrot.lane.b32.xlu0 %v2158, 110
      %v2385 = vpop.permute.xlu0 %2384
      %2386 = vrot.lane.b32.xlu0 %v2161, 110
      %v2387 = vpop.permute.xlu0 %2386
      %2388 = vrot.lane.b32.xlu0 %v2153, 110
      %v2389 = vpop.permute.xlu0 %2388
      %2390 = vrot.lane.b32.xlu0 %v2156, 110
      %v2391 = vpop.permute.xlu0 %2390
      %2392 = vrot.lane.b32.xlu0 %v2159, 110
      %v2393 = vpop.permute.xlu0 %2392
      %2394 = vrot.lane.b32.xlu0 %v2162, 110
      %v2395 = vpop.permute.xlu0 %2394
      %2396 = vrot.lane.b32.xlu0 %v2154, 110
      %v2397 = vpop.permute.xlu0 %2396
      %2398 = vrot.lane.b32.xlu0 %v2157, 110
      %v2399 = vpop.permute.xlu0 %2398
      %2400 = vrot.lane.b32.xlu0 %v2160, 110
      %v2401 = vpop.permute.xlu0 %2400
      %2402 = vrot.lane.b32.xlu0 %v2163, 110
      %v2403 = vpop.permute.xlu0 %2402
      %v2404 = vsel %vm526, %v2389, %v2397
      %v2405 = vsel %vm526, %v2391, %v2399
      %v2406 = vsel %vm526, %v2393, %v2401
      %v2407 = vsel %vm526, %v2395, %v2403
      %v2408 = vsel %vm526, %v2381, %v2389
      %v2409 = vsel %vm526, %v2383, %v2391
      %v2410 = vsel %vm526, %v2385, %v2393
      %v2411 = vsel %vm526, %v2387, %v2395
      %v2412 = vsel %vm526, %v2397, %v2381
      %v2413 = vsel %vm526, %v2399, %v2383
      %v2414 = vsel %vm526, %v2401, %v2385
      %v2415 = vsel %vm526, %v2403, %v2387
      %2416 = vrot.lane.b32.xlu0 %v2152, 109
      %v2417 = vpop.permute.xlu0 %2416
      %2418 = vrot.lane.b32.xlu0 %v2155, 109
      %v2419 = vpop.permute.xlu0 %2418
      %2420 = vrot.lane.b32.xlu0 %v2158, 109
      %v2421 = vpop.permute.xlu0 %2420
      %2422 = vrot.lane.b32.xlu0 %v2161, 109
      %v2423 = vpop.permute.xlu0 %2422
      %2424 = vrot.lane.b32.xlu0 %v2153, 109
      %v2425 = vpop.permute.xlu0 %2424
      %2426 = vrot.lane.b32.xlu0 %v2156, 109
      %v2427 = vpop.permute.xlu0 %2426
      %2428 = vrot.lane.b32.xlu0 %v2159, 109
      %v2429 = vpop.permute.xlu0 %2428
      %2430 = vrot.lane.b32.xlu0 %v2162, 109
      %v2431 = vpop.permute.xlu0 %2430
      %2432 = vrot.lane.b32.xlu0 %v2154, 109
      %v2433 = vpop.permute.xlu0 %2432
      %2434 = vrot.lane.b32.xlu0 %v2157, 109
      %v2435 = vpop.permute.xlu0 %2434
      %2436 = vrot.lane.b32.xlu0 %v2160, 109
      %v2437 = vpop.permute.xlu0 %2436
      %2438 = vrot.lane.b32.xlu0 %v2163, 109
      %v2439 = vpop.permute.xlu0 %2438
      %v2440 = vsel %vm536, %v2425, %v2433
      %v2441 = vsel %vm536, %v2427, %v2435
      %v2442 = vsel %vm536, %v2429, %v2437
      %v2443 = vsel %vm536, %v2431, %v2439
      %v2444 = vsel %vm536, %v2417, %v2425
      %v2445 = vsel %vm536, %v2419, %v2427
      %v2446 = vsel %vm536, %v2421, %v2429
      %v2447 = vsel %vm536, %v2423, %v2431
      %v2448 = vsel %vm536, %v2433, %v2417
      %v2449 = vsel %vm536, %v2435, %v2419
      %v2450 = vsel %vm536, %v2437, %v2421
      %v2451 = vsel %vm536, %v2439, %v2423
      %2452 = vmatprep.subr.mxu0 %v2192
      %2453 = vmatpush1.msra.mxu0 %v2196
      %2454 = vmatprep.subr.mxu0 %v2193
      %2455 = vmatpush1.msra.mxu0 %v2197
      %2456 = vmatprep.subr.mxu0 %v2194
      %2457 = vmatpush1.msra.mxu0 %v2198
      %2458 = vmatprep.subr.mxu0 %v2195
      %2459 = vmatpush1.msra.mxu0 %v2199
      %2460 = vmatprep.subr.mxu0 %v2228
      %2461 = vmatpush1.msra.mxu0 %v2232
      %2462 = vmatprep.subr.mxu0 %v2229
      %2463 = vmatpush1.msra.mxu0 %v2233
      %2464 = vmatprep.subr.mxu0 %v2230
      %2465 = vmatpush1.msra.mxu0 %v2234
      %2466 = vmatprep.subr.mxu0 %v2231
      %2467 = vmatpush1.msra.mxu0 %v2235
      %2468 = vmatprep.subr.mxu0 %v2264
      %2469 = vmatpush1.msra.mxu0 %v2268
      %2470 = vmatprep.subr.mxu0 %v2265
      %2471 = vmatpush1.msra.mxu0 %v2269
      %2472 = vmatprep.subr.mxu0 %v2266
      %2473 = vmatpush1.msra.mxu0 %v2270
      %2474 = vmatprep.subr.mxu0 %v2267
      %2475 = vmatpush1.msra.mxu0 %v2271
      %2476 = vmatprep.subr.mxu0 %v2300
      %2477 = vmatpush1.msra.mxu0 %v2304
      %2478 = vmatprep.subr.mxu0 %v2301
      %2479 = vmatpush1.msra.mxu0 %v2305
      %2480 = vmatprep.subr.mxu0 %v2302
      %2481 = vmatpush1.msra.mxu0 %v2306
      %2482 = vmatprep.subr.mxu0 %v2303
      %2483 = vmatpush1.msra.mxu0 %v2307
      %2484 = vmatprep.subr.mxu0 %v2153
      %2485 = vmatpush1.msra.mxu0 %v2152
      %2486 = vmatprep.subr.mxu0 %v2156
      %2487 = vmatpush1.msra.mxu0 %v2155
      %2488 = vmatprep.subr.mxu0 %v2159
      %2489 = vmatpush1.msra.mxu0 %v2158
      %2490 = vmatprep.subr.mxu0 %v2162
      %2491 = vmatpush1.msra.mxu0 %v2161
      %2492 = vmatprep.subr.mxu0 %v2332
      %2493 = vmatpush1.msra.mxu0 %v2336
      %2494 = vmatprep.subr.mxu0 %v2333
      %2495 = vmatpush1.msra.mxu0 %v2337
      %2496 = vmatprep.subr.mxu0 %v2334
      %2497 = vmatpush1.msra.mxu0 %v2338
      %2498 = vmatprep.subr.mxu0 %v2335
      %2499 = vmatpush1.msra.mxu0 %v2339
      %2500 = vmatprep.subr.mxu0 %v2368
      %2501 = vmatpush1.msra.mxu0 %v2372
      %2502 = vmatprep.subr.mxu0 %v2369
      %2503 = vmatpush1.msra.mxu0 %v2373
      %2504 = vmatprep.subr.mxu0 %v2370
      %2505 = vmatpush1.msra.mxu0 %v2374
      %2506 = vmatprep.subr.mxu0 %v2371
      %2507 = vmatpush1.msra.mxu0 %v2375
      %2508 = vmatprep.subr.mxu0 %v2404
      %2509 = vmatpush1.msra.mxu0 %v2408
      %2510 = vmatprep.subr.mxu0 %v2405
      %2511 = vmatpush1.msra.mxu0 %v2409
      %2512 = vmatprep.subr.mxu0 %v2406
      %2513 = vmatpush1.msra.mxu0 %v2410
      %2514 = vmatprep.subr.mxu0 %v2407
      %2515 = vmatpush1.msra.mxu0 %v2411
      %2516 = vmatprep.mubr.f32.mxu0 %v1084
      %2517 = vmatmul.mubr.f32.gmra.mrb[0].mxu0 %v1083
      %v2518 = vpop.f32.mrb[0].mxu0
      %v2519 = vadd.f32 %v1102, %v2518
      %v2520 = vpop.f32.mrb[0].mxu0
      %v2521 = vadd.f32 %v1102, %v2520
      %2522 = vmatprep.mubr.f32.mxu0 %v1087
      %2523 = vmatmul.mubr.f32.gmra.mrb[0].mxu0 %v1086
      %v2524 = vpop.f32.mrb[0].mxu0
      %v2525 = vadd.f32 %v1107, %v2524
      %v2526 = vpop.f32.mrb[0].mxu0
      %v2527 = vadd.f32 %v1107, %v2526
      %2528 = vmatprep.mubr.f32.mxu0 %v1090
      %2529 = vmatmul.mubr.f32.gmra.mrb[0].mxu0 %v1089
      %v2530 = vpop.f32.mrb[0].mxu0
      %v2531 = vadd.f32 %v1112, %v2530
      %v2532 = vpop.f32.mrb[0].mxu0
      %v2533 = vadd.f32 %v1112, %v2532
      %2534 = vmatprep.mubr.f32.mxu0 %v1093
      %2535 = vmatmul.mubr.f32.gmra.mrb[0].mxu0 %v1092
      %v2536 = vpop.f32.mrb[0].mxu0
      %v2537 = vadd.f32 %v1117, %v2536
      %v2538 = vpop.f32.mrb[0].mxu0
      %v2539 = vadd.f32 %v1117, %v2538
      %2540 = vdwg.mxu0
      %2541 = vmatprep.subr.mxu0 %v2440
      %2542 = vmatpush1.msra.mxu0 %v2444
      %2543 = vmatprep.subr.mxu0 %v2441
      %2544 = vmatpush1.msra.mxu0 %v2445
      %2545 = vmatprep.subr.mxu0 %v2442
      %2546 = vmatpush1.msra.mxu0 %v2446
      %2547 = vmatprep.subr.mxu0 %v2443
      %2548 = vmatpush1.msra.mxu0 %v2447
      %2549 = vmatprep.subr.mxu0 0.0
      %2550 = vmatpush1.msra.mxu0 0.0
      %2551 = vmatprep.subr.mxu0 0.0
      %2552 = vmatpush1.msra.mxu0 0.0
      %2553 = vmatprep.subr.mxu0 0.0
      %2554 = vmatpush1.msra.mxu0 0.0
      %2555 = vmatprep.subr.mxu0 0.0
      %2556 = vmatpush1.msra.mxu0 0.0
      %2557 = vmatprep.subr.mxu0 0.0
      %2558 = vmatpush1.msra.mxu0 0.0
      %2559 = vmatprep.subr.mxu0 0.0
      %2560 = vmatpush1.msra.mxu0 0.0
      %2561 = vmatprep.subr.mxu0 0.0
      %2562 = vmatpush1.msra.mxu0 0.0
      %2563 = vmatprep.subr.mxu0 0.0
      %2564 = vmatpush1.msra.mxu0 0.0
      %2565 = vmatprep.subr.mxu0 0.0
      %2566 = vmatpush1.msra.mxu0 0.0
      %2567 = vmatprep.subr.mxu0 0.0
      %2568 = vmatpush1.msra.mxu0 0.0
      %2569 = vmatprep.subr.mxu0 0.0
      %2570 = vmatpush1.msra.mxu0 0.0
      %2571 = vmatprep.subr.mxu0 0.0
      %2572 = vmatpush1.msra.mxu0 0.0
      %2573 = vmatprep.subr.mxu0 0.0
      %2574 = vmatpush1.msra.mxu0 0.0
      %2575 = vmatprep.subr.mxu0 0.0
      %2576 = vmatpush1.msra.mxu0 0.0
      %2577 = vmatprep.subr.mxu0 0.0
      %2578 = vmatpush1.msra.mxu0 0.0
      %2579 = vmatprep.subr.mxu0 0.0
      %2580 = vmatpush1.msra.mxu0 0.0
      %2581 = vmatprep.subr.mxu0 0.0
      %2582 = vmatpush1.msra.mxu0 0.0
      %2583 = vmatprep.subr.mxu0 0.0
      %2584 = vmatpush1.msra.mxu0 0.0
      %2585 = vmatprep.subr.mxu0 0.0
      %2586 = vmatpush1.msra.mxu0 0.0
      %2587 = vmatprep.subr.mxu0 0.0
      %2588 = vmatpush1.msra.mxu0 0.0
      %2589 = vmatprep.subr.mxu0 0.0
      %2590 = vmatpush1.msra.mxu0 0.0
      %2591 = vmatprep.subr.mxu0 0.0
      %2592 = vmatpush1.msra.mxu0 0.0
      %2593 = vmatprep.subr.mxu0 0.0
      %2594 = vmatpush1.msra.mxu0 0.0
      %2595 = vmatprep.subr.mxu0 0.0
      %2596 = vmatpush1.msra.mxu0 0.0
      %2597 = vmatprep.subr.mxu0 0.0
      %2598 = vmatpush1.msra.mxu0 0.0
      %2599 = vmatprep.subr.mxu0 0.0
      %2600 = vmatpush1.msra.mxu0 0.0
      %2601 = vmatprep.subr.mxu0 0.0
      %2602 = vmatpush1.msra.mxu0 0.0
      %2603 = vmatprep.subr.mxu0 0.0
      %2604 = vmatpush1.msra.mxu0 0.0
      %2605 = vmatprep.mubr.f32.mxu0 0.0
      %2606 = vmatmul.mubr.f32.gmra.mrb[0].mxu0 %v1121
      %v2607 = vpop.f32.mrb[0].mxu0
      %v2608 = vadd.f32 %v2519, %v2607
      %v2609 = vpop.f32.mrb[0].mxu0
      %v2610 = vadd.f32 %v2521, %v2609
      %2611 = vmatprep.mubr.f32.mxu0 0.0
      %2612 = vmatmul.mubr.f32.gmra.mrb[0].mxu0 %v1124
      %v2613 = vpop.f32.mrb[0].mxu0
      %v2614 = vadd.f32 %v2525, %v2613
      %v2615 = vpop.f32.mrb[0].mxu0
      %v2616 = vadd.f32 %v2527, %v2615
      %2617 = vmatprep.mubr.f32.mxu0 0.0
      %2618 = vmatmul.mubr.f32.gmra.mrb[0].mxu0 %v1127
      %v2619 = vpop.f32.mrb[0].mxu0
      %v2620 = vadd.f32 %v2531, %v2619
      %v2621 = vpop.f32.mrb[0].mxu0
      %v2622 = vadd.f32 %v2533, %v2621
      %2623 = vmatprep.mubr.f32.mxu0 0.0
      %2624 = vmatmul.mubr.f32.gmra.mrb[0].mxu0 %v1130
      %v2625 = vpop.f32.mrb[0].mxu0
      %v2626 = vadd.f32 %v2537, %v2625
      %v2627 = vpop.f32.mrb[0].mxu0
      %v2628 = vadd.f32 %v2539, %v2627
      %2629 = vdwg.mxu0
      %2630 = vmatprep.subr.mxu0 0.0
      %2631 = vmatpush1.msra.mxu0 %v2188
      %2632 = vmatprep.subr.mxu0 0.0
      %2633 = vmatpush1.msra.mxu0 %v2189
      %2634 = vmatprep.subr.mxu0 0.0
      %2635 = vmatpush1.msra.mxu0 %v2190
      %2636 = vmatprep.subr.mxu0 0.0
      %2637 = vmatpush1.msra.mxu0 %v2191
      %2638 = vmatprep.subr.mxu0 0.0
      %2639 = vmatpush1.msra.mxu0 %v2224
      %2640 = vmatprep.subr.mxu0 0.0
      %2641 = vmatpush1.msra.mxu0 %v2225
      %2642 = vmatprep.subr.mxu0 0.0
      %2643 = vmatpush1.msra.mxu0 %v2226
      %2644 = vmatprep.subr.mxu0 0.0
      %2645 = vmatpush1.msra.mxu0 %v2227
      %2646 = vmatprep.subr.mxu0 0.0
      %2647 = vmatpush1.msra.mxu0 %v2260
      %2648 = vmatprep.subr.mxu0 0.0
      %2649 = vmatpush1.msra.mxu0 %v2261
      %2650 = vmatprep.subr.mxu0 0.0
      %2651 = vmatpush1.msra.mxu0 %v2262
      %2652 = vmatprep.subr.mxu0 0.0
      %2653 = vmatpush1.msra.mxu0 %v2263
      %2654 = vmatprep.subr.mxu0 0.0
      %2655 = vmatpush1.msra.mxu0 %v2296
      %2656 = vmatprep.subr.mxu0 0.0
      %2657 = vmatpush1.msra.mxu0 %v2297
      %2658 = vmatprep.subr.mxu0 0.0
      %2659 = vmatpush1.msra.mxu0 %v2298
      %2660 = vmatprep.subr.mxu0 0.0
      %2661 = vmatpush1.msra.mxu0 %v2299
      %2662 = vmatprep.subr.mxu0 0.0
      %2663 = vmatpush1.msra.mxu0 %v2154
      %2664 = vmatprep.subr.mxu0 0.0
      %2665 = vmatpush1.msra.mxu0 %v2157
      %2666 = vmatprep.subr.mxu0 0.0
      %2667 = vmatpush1.msra.mxu0 %v2160
      %2668 = vmatprep.subr.mxu0 0.0
      %2669 = vmatpush1.msra.mxu0 %v2163
      %2670 = vmatprep.subr.mxu0 0.0
      %2671 = vmatpush1.msra.mxu0 %v2340
      %2672 = vmatprep.subr.mxu0 0.0
      %2673 = vmatpush1.msra.mxu0 %v2341
      %2674 = vmatprep.subr.mxu0 0.0
      %2675 = vmatpush1.msra.mxu0 %v2342
      %2676 = vmatprep.subr.mxu0 0.0
      %2677 = vmatpush1.msra.mxu0 %v2343
      %2678 = vmatprep.subr.mxu0 0.0
      %2679 = vmatpush1.msra.mxu0 %v2376
      %2680 = vmatprep.subr.mxu0 0.0
      %2681 = vmatpush1.msra.mxu0 %v2377
      %2682 = vmatprep.subr.mxu0 0.0
      %2683 = vmatpush1.msra.mxu0 %v2378
      %2684 = vmatprep.subr.mxu0 0.0
      %2685 = vmatpush1.msra.mxu0 %v2379
      %2686 = vmatprep.subr.mxu0 0.0
      %2687 = vmatpush1.msra.mxu0 %v2412
      %2688 = vmatprep.subr.mxu0 0.0
      %2689 = vmatpush1.msra.mxu0 %v2413
      %2690 = vmatprep.subr.mxu0 0.0
      %2691 = vmatpush1.msra.mxu0 %v2414
      %2692 = vmatprep.subr.mxu0 0.0
      %2693 = vmatpush1.msra.mxu0 %v2415
      %2694 = vmatprep.mubr.f32.mxu0 %v1084
      %2695 = vmatmul.mubr.f32.gmra.mrb[0].mxu0 %v1083
      %v2696 = vpop.f32.mrb[0].mxu0
      %v2697 = vadd.f32 %v1102, %v2696
      %v2698 = vpop.f32.mrb[0].mxu0
      %2699 = vmatprep.mubr.f32.mxu0 %v1087
      %2700 = vmatmul.mubr.f32.gmra.mrb[0].mxu0 %v1086
      %v2701 = vpop.f32.mrb[0].mxu0
      %v2702 = vadd.f32 %v1107, %v2701
      %v2703 = vpop.f32.mrb[0].mxu0
      %2704 = vmatprep.mubr.f32.mxu0 %v1090
      %2705 = vmatmul.mubr.f32.gmra.mrb[0].mxu0 %v1089
      %v2706 = vpop.f32.mrb[0].mxu0
      %v2707 = vadd.f32 %v1112, %v2706
      %v2708 = vpop.f32.mrb[0].mxu0
      %2709 = vmatprep.mubr.f32.mxu0 %v1093
      %2710 = vmatmul.mubr.f32.gmra.mrb[0].mxu0 %v1092
      %v2711 = vpop.f32.mrb[0].mxu0
      %v2712 = vadd.f32 %v1117, %v2711
      %v2713 = vpop.f32.mrb[0].mxu0
      %2714 = vdwg.mxu0
      %2715 = vmatprep.subr.mxu0 0.0
      %2716 = vmatpush1.msra.mxu0 %v2448
      %2717 = vmatprep.subr.mxu0 0.0
      %2718 = vmatpush1.msra.mxu0 %v2449
      %2719 = vmatprep.subr.mxu0 0.0
      %2720 = vmatpush1.msra.mxu0 %v2450
      %2721 = vmatprep.subr.mxu0 0.0
      %2722 = vmatpush1.msra.mxu0 %v2451
      %2723 = vmatprep.subr.mxu0 0.0
      %2724 = vmatpush1.msra.mxu0 0.0
      %2725 = vmatprep.subr.mxu0 0.0
      %2726 = vmatpush1.msra.mxu0 0.0
      %2727 = vmatprep.subr.mxu0 0.0
      %2728 = vmatpush1.msra.mxu0 0.0
      %2729 = vmatprep.subr.mxu0 0.0
      %2730 = vmatpush1.msra.mxu0 0.0
      %2731 = vmatprep.subr.mxu0 0.0
      %2732 = vmatpush1.msra.mxu0 0.0
      %2733 = vmatprep.subr.mxu0 0.0
      %2734 = vmatpush1.msra.mxu0 0.0
      %2735 = vmatprep.subr.mxu0 0.0
      %2736 = vmatpush1.msra.mxu0 0.0
      %2737 = vmatprep.subr.mxu0 0.0
      %2738 = vmatpush1.msra.mxu0 0.0
      %2739 = vmatprep.subr.mxu0 0.0
      %2740 = vmatpush1.msra.mxu0 0.0
      %2741 = vmatprep.subr.mxu0 0.0
      %2742 = vmatpush1.msra.mxu0 0.0
      %2743 = vmatprep.subr.mxu0 0.0
      %2744 = vmatpush1.msra.mxu0 0.0
      %2745 = vmatprep.subr.mxu0 0.0
      %2746 = vmatpush1.msra.mxu0 0.0
      %2747 = vmatprep.subr.mxu0 0.0
      %2748 = vmatpush1.msra.mxu0 0.0
      %2749 = vmatprep.subr.mxu0 0.0
      %2750 = vmatpush1.msra.mxu0 0.0
      %2751 = vmatprep.subr.mxu0 0.0
      %2752 = vmatpush1.msra.mxu0 0.0
      %2753 = vmatprep.subr.mxu0 0.0
      %2754 = vmatpush1.msra.mxu0 0.0
      %2755 = vmatprep.subr.mxu0 0.0
      %2756 = vmatpush1.msra.mxu0 0.0
      %2757 = vmatprep.subr.mxu0 0.0
      %2758 = vmatpush1.msra.mxu0 0.0
      %2759 = vmatprep.subr.mxu0 0.0
      %2760 = vmatpush1.msra.mxu0 0.0
      %2761 = vmatprep.subr.mxu0 0.0
      %2762 = vmatpush1.msra.mxu0 0.0
      %2763 = vmatprep.subr.mxu0 0.0
      %2764 = vmatpush1.msra.mxu0 0.0
      %2765 = vmatprep.subr.mxu0 0.0
      %2766 = vmatpush1.msra.mxu0 0.0
      %2767 = vmatprep.subr.mxu0 0.0
      %2768 = vmatpush1.msra.mxu0 0.0
      %2769 = vmatprep.subr.mxu0 0.0
      %2770 = vmatpush1.msra.mxu0 0.0
      %2771 = vmatprep.subr.mxu0 0.0
      %2772 = vmatpush1.msra.mxu0 0.0
      %2773 = vmatprep.subr.mxu0 0.0
      %2774 = vmatpush1.msra.mxu0 0.0
      %2775 = vmatprep.subr.mxu0 0.0
      %2776 = vmatpush1.msra.mxu0 0.0
      %2777 = vmatprep.subr.mxu0 0.0
      %2778 = vmatpush1.msra.mxu0 0.0
      %2779 = vmatprep.mubr.f32.mxu0 0.0
      %2780 = vmatmul.mubr.f32.gmra.mrb[0].mxu0 %v1121
      %v2781 = vpop.f32.mrb[0].mxu0
      %v2782 = vadd.f32 %v2697, %v2781
      %v2783 = vpop.f32.mrb[0].mxu0
      %2784 = vmatprep.mubr.f32.mxu0 0.0
      %2785 = vmatmul.mubr.f32.gmra.mrb[0].mxu0 %v1124
      %v2786 = vpop.f32.mrb[0].mxu0
      %v2787 = vadd.f32 %v2702, %v2786
      %v2788 = vpop.f32.mrb[0].mxu0
      %2789 = vmatprep.mubr.f32.mxu0 0.0
      %2790 = vmatmul.mubr.f32.gmra.mrb[0].mxu0 %v1127
      %v2791 = vpop.f32.mrb[0].mxu0
      %v2792 = vadd.f32 %v2707, %v2791
      %v2793 = vpop.f32.mrb[0].mxu0
      %2794 = vmatprep.mubr.f32.mxu0 0.0
      %2795 = vmatmul.mubr.f32.gmra.mrb[0].mxu0 %v1130
      %v2796 = vpop.f32.mrb[0].mxu0
      %v2797 = vadd.f32 %v2712, %v2796
      %v2798 = vpop.f32.mrb[0].mxu0
      %2799 = vdwg.mxu0
      %v2800 = vmax.f32 %v2608, 0.0
      %v2801 = vmax.f32 %v2610, 0.0
      %v2802 = vmax.f32 %v2782, 0.0
      %v2803 = vmax.f32 %v2614, 0.0
      %v2804 = vmax.f32 %v2616, 0.0
      %v2805 = vmax.f32 %v2787, 0.0
      %v2806 = vmax.f32 %v2620, 0.0
      %v2807 = vmax.f32 %v2622, 0.0
      %v2808 = vmax.f32 %v2792, 0.0
      %v2809 = vmax.f32 %v2626, 0.0
      %v2810 = vmax.f32 %v2628, 0.0
      %v2811 = vmax.f32 %v2797, 0.0
      %v2812 = vmul.f32 %v2800, %v771
      %v2813 = vmul.f32 %v2801, %v775
      %v2814 = vmul.f32 %v2802, %v779
      %v2815 = vmul.f32 %v2803, %v771
      %v2816 = vmul.f32 %v2804, %v775
      %v2817 = vmul.f32 %v2805, %v779
      %v2818 = vmul.f32 %v2806, %v771
      %v2819 = vmul.f32 %v2807, %v775
      %v2820 = vmul.f32 %v2808, %v779
      %v2821 = vmul.f32 %v2809, %v771
      %v2822 = vmul.f32 %v2810, %v775
      %v2823 = vmul.f32 %v2811, %v779
      %2824 = vrot.lane.b32.xlu0 %v2812, 19
      %v2825 = vpop.permute.xlu0 %2824
      %2826 = vrot.lane.b32.xlu0 %v2815, 19
      %v2827 = vpop.permute.xlu0 %2826
      %2828 = vrot.lane.b32.xlu0 %v2818, 19
      %v2829 = vpop.permute.xlu0 %2828
      %2830 = vrot.lane.b32.xlu0 %v2821, 19
      %v2831 = vpop.permute.xlu0 %2830
      %2832 = vrot.lane.b32.xlu0 %v2813, 19
      %v2833 = vpop.permute.xlu0 %2832
      %2834 = vrot.lane.b32.xlu0 %v2816, 19
      %v2835 = vpop.permute.xlu0 %2834
      %2836 = vrot.lane.b32.xlu0 %v2819, 19
      %v2837 = vpop.permute.xlu0 %2836
      %2838 = vrot.lane.b32.xlu0 %v2822, 19
      %v2839 = vpop.permute.xlu0 %2838
      %2840 = vrot.lane.b32.xlu0 %v2814, 19
      %v2841 = vpop.permute.xlu0 %2840
      %2842 = vrot.lane.b32.xlu0 %v2817, 19
      %v2843 = vpop.permute.xlu0 %2842
      %2844 = vrot.lane.b32.xlu0 %v2820, 19
      %v2845 = vpop.permute.xlu0 %2844
      %2846 = vrot.lane.b32.xlu0 %v2823, 19
      %v2847 = vpop.permute.xlu0 %2846
      %v2848 = vsel %vm466, %v2833, %v2841
      %v2849 = vsel %vm466, %v2835, %v2843
      %v2850 = vsel %vm466, %v2837, %v2845
      %v2851 = vsel %vm466, %v2839, %v2847
      %v2852 = vsel %vm466, %v2825, %v2833
      %v2853 = vsel %vm466, %v2827, %v2835
      %v2854 = vsel %vm466, %v2829, %v2837
      %v2855 = vsel %vm466, %v2831, %v2839
      %v2856 = vsel %vm466, %v2841, %v2825
      %v2857 = vsel %vm466, %v2843, %v2827
      %v2858 = vsel %vm466, %v2845, %v2829
      %v2859 = vsel %vm466, %v2847, %v2831
      %2860 = vrot.lane.b32.xlu0 %v2812, 18
      %v2861 = vpop.permute.xlu0 %2860
      %2862 = vrot.lane.b32.xlu0 %v2815, 18
      %v2863 = vpop.permute.xlu0 %2862
      %2864 = vrot.lane.b32.xlu0 %v2818, 18
      %v2865 = vpop.permute.xlu0 %2864
      %2866 = vrot.lane.b32.xlu0 %v2821, 18
      %v2867 = vpop.permute.xlu0 %2866
      %2868 = vrot.lane.b32.xlu0 %v2813, 18
      %v2869 = vpop.permute.xlu0 %2868
      %2870 = vrot.lane.b32.xlu0 %v2816, 18
      %v2871 = vpop.permute.xlu0 %2870
      %2872 = vrot.lane.b32.xlu0 %v2819, 18
      %v2873 = vpop.permute.xlu0 %2872
      %2874 = vrot.lane.b32.xlu0 %v2822, 18
      %v2875 = vpop.permute.xlu0 %2874
      %2876 = vrot.lane.b32.xlu0 %v2814, 18
      %v2877 = vpop.permute.xlu0 %2876
      %2878 = vrot.lane.b32.xlu0 %v2817, 18
      %v2879 = vpop.permute.xlu0 %2878
      %2880 = vrot.lane.b32.xlu0 %v2820, 18
      %v2881 = vpop.permute.xlu0 %2880
      %2882 = vrot.lane.b32.xlu0 %v2823, 18
      %v2883 = vpop.permute.xlu0 %2882
      %v2884 = vsel %vm476, %v2869, %v2877
      %v2885 = vsel %vm476, %v2871, %v2879
      %v2886 = vsel %vm476, %v2873, %v2881
      %v2887 = vsel %vm476, %v2875, %v2883
      %v2888 = vsel %vm476, %v2861, %v2869
      %v2889 = vsel %vm476, %v2863, %v2871
      %v2890 = vsel %vm476, %v2865, %v2873
      %v2891 = vsel %vm476, %v2867, %v2875
      %v2892 = vsel %vm476, %v2877, %v2861
      %v2893 = vsel %vm476, %v2879, %v2863
      %v2894 = vsel %vm476, %v2881, %v2865
      %v2895 = vsel %vm476, %v2883, %v2867
      %2896 = vrot.lane.b32.xlu0 %v2812, 17
      %v2897 = vpop.permute.xlu0 %2896
      %2898 = vrot.lane.b32.xlu0 %v2815, 17
      %v2899 = vpop.permute.xlu0 %2898
      %2900 = vrot.lane.b32.xlu0 %v2818, 17
      %v2901 = vpop.permute.xlu0 %2900
      %2902 = vrot.lane.b32.xlu0 %v2821, 17
      %v2903 = vpop.permute.xlu0 %2902
      %2904 = vrot.lane.b32.xlu0 %v2813, 17
      %v2905 = vpop.permute.xlu0 %2904
      %2906 = vrot.lane.b32.xlu0 %v2816, 17
      %v2907 = vpop.permute.xlu0 %2906
      %2908 = vrot.lane.b32.xlu0 %v2819, 17
      %v2909 = vpop.permute.xlu0 %2908
      %2910 = vrot.lane.b32.xlu0 %v2822, 17
      %v2911 = vpop.permute.xlu0 %2910
      %2912 = vrot.lane.b32.xlu0 %v2814, 17
      %v2913 = vpop.permute.xlu0 %2912
      %2914 = vrot.lane.b32.xlu0 %v2817, 17
      %v2915 = vpop.permute.xlu0 %2914
      %2916 = vrot.lane.b32.xlu0 %v2820, 17
      %v2917 = vpop.permute.xlu0 %2916
      %2918 = vrot.lane.b32.xlu0 %v2823, 17
      %v2919 = vpop.permute.xlu0 %2918
      %v2920 = vsel %vm486, %v2905, %v2913
      %v2921 = vsel %vm486, %v2907, %v2915
      %v2922 = vsel %vm486, %v2909, %v2917
      %v2923 = vsel %vm486, %v2911, %v2919
      %v2924 = vsel %vm486, %v2897, %v2905
      %v2925 = vsel %vm486, %v2899, %v2907
      %v2926 = vsel %vm486, %v2901, %v2909
      %v2927 = vsel %vm486, %v2903, %v2911
      %v2928 = vsel %vm486, %v2913, %v2897
      %v2929 = vsel %vm486, %v2915, %v2899
      %v2930 = vsel %vm486, %v2917, %v2901
      %v2931 = vsel %vm486, %v2919, %v2903
      %2932 = vrot.lane.b32.xlu0 %v2812, 1
      %v2933 = vpop.permute.xlu0 %2932
      %2934 = vrot.lane.b32.xlu0 %v2815, 1
      %v2935 = vpop.permute.xlu0 %2934
      %2936 = vrot.lane.b32.xlu0 %v2818, 1
      %v2937 = vpop.permute.xlu0 %2936
      %2938 = vrot.lane.b32.xlu0 %v2821, 1
      %v2939 = vpop.permute.xlu0 %2938
      %2940 = vrot.lane.b32.xlu0 %v2813, 1
      %v2941 = vpop.permute.xlu0 %2940
      %2942 = vrot.lane.b32.xlu0 %v2816, 1
      %v2943 = vpop.permute.xlu0 %2942
      %2944 = vrot.lane.b32.xlu0 %v2819, 1
      %v2945 = vpop.permute.xlu0 %2944
      %2946 = vrot.lane.b32.xlu0 %v2822, 1
      %v2947 = vpop.permute.xlu0 %2946
      %2948 = vrot.lane.b32.xlu0 %v2814, 1
      %v2949 = vpop.permute.xlu0 %2948
      %2950 = vrot.lane.b32.xlu0 %v2817, 1
      %v2951 = vpop.permute.xlu0 %2950
      %2952 = vrot.lane.b32.xlu0 %v2820, 1
      %v2953 = vpop.permute.xlu0 %2952
      %2954 = vrot.lane.b32.xlu0 %v2823, 1
      %v2955 = vpop.permute.xlu0 %2954
      %v2956 = vsel %vm496, %v2941, %v2949
      %v2957 = vsel %vm496, %v2943, %v2951
      %v2958 = vsel %vm496, %v2945, %v2953
      %v2959 = vsel %vm496, %v2947, %v2955
      %v2960 = vsel %vm496, %v2933, %v2941
      %v2961 = vsel %vm496, %v2935, %v2943
      %v2962 = vsel %vm496, %v2937, %v2945
      %v2963 = vsel %vm496, %v2939, %v2947
      %v2964 = vsel %vm496, %v2949, %v2933
      %v2965 = vsel %vm496, %v2951, %v2935
      %v2966 = vsel %vm496, %v2953, %v2937
      %v2967 = vsel %vm496, %v2955, %v2939
      %2968 = vrot.lane.b32.xlu0 %v2812, 127
      %v2969 = vpop.permute.xlu0 %2968
      %2970 = vrot.lane.b32.xlu0 %v2815, 127
      %v2971 = vpop.permute.xlu0 %2970
      %2972 = vrot.lane.b32.xlu0 %v2818, 127
      %v2973 = vpop.permute.xlu0 %2972
      %2974 = vrot.lane.b32.xlu0 %v2821, 127
      %v2975 = vpop.permute.xlu0 %2974
      %2976 = vrot.lane.b32.xlu0 %v2813, 127
      %v2977 = vpop.permute.xlu0 %2976
      %2978 = vrot.lane.b32.xlu0 %v2816, 127
      %v2979 = vpop.permute.xlu0 %2978
      %2980 = vrot.lane.b32.xlu0 %v2819, 127
      %v2981 = vpop.permute.xlu0 %2980
      %2982 = vrot.lane.b32.xlu0 %v2822, 127
      %v2983 = vpop.permute.xlu0 %2982
      %2984 = vrot.lane.b32.xlu0 %v2814, 127
      %v2985 = vpop.permute.xlu0 %2984
      %2986 = vrot.lane.b32.xlu0 %v2817, 127
      %v2987 = vpop.permute.xlu0 %2986
      %2988 = vrot.lane.b32.xlu0 %v2820, 127
      %v2989 = vpop.permute.xlu0 %2988
      %2990 = vrot.lane.b32.xlu0 %v2823, 127
      %v2991 = vpop.permute.xlu0 %2990
      %v2992 = vsel %vm506, %v2977, %v2985
      %v2993 = vsel %vm506, %v2979, %v2987
      %v2994 = vsel %vm506, %v2981, %v2989
      %v2995 = vsel %vm506, %v2983, %v2991
      %v2996 = vsel %vm506, %v2969, %v2977
      %v2997 = vsel %vm506, %v2971, %v2979
      %v2998 = vsel %vm506, %v2973, %v2981
      %v2999 = vsel %vm506, %v2975, %v2983
      %v3000 = vsel %vm506, %v2985, %v2969
      %v3001 = vsel %vm506, %v2987, %v2971
      %v3002 = vsel %vm506, %v2989, %v2973
      %v3003 = vsel %vm506, %v2991, %v2975
      %3004 = vrot.lane.b32.xlu0 %v2812, 111
      %v3005 = vpop.permute.xlu0 %3004
      %3006 = vrot.lane.b32.xlu0 %v2815, 111
      %v3007 = vpop.permute.xlu0 %3006
      %3008 = vrot.lane.b32.xlu0 %v2818, 111
      %v3009 = vpop.permute.xlu0 %3008
      %3010 = vrot.lane.b32.xlu0 %v2821, 111
      %v3011 = vpop.permute.xlu0 %3010
      %3012 = vrot.lane.b32.xlu0 %v2813, 111
      %v3013 = vpop.permute.xlu0 %3012
      %3014 = vrot.lane.b32.xlu0 %v2816, 111
      %v3015 = vpop.permute.xlu0 %3014
      %3016 = vrot.lane.b32.xlu0 %v2819, 111
      %v3017 = vpop.permute.xlu0 %3016
      %3018 = vrot.lane.b32.xlu0 %v2822, 111
      %v3019 = vpop.permute.xlu0 %3018
      %3020 = vrot.lane.b32.xlu0 %v2814, 111
      %v3021 = vpop.permute.xlu0 %3020
      %3022 = vrot.lane.b32.xlu0 %v2817, 111
      %v3023 = vpop.permute.xlu0 %3022
      %3024 = vrot.lane.b32.xlu0 %v2820, 111
      %v3025 = vpop.permute.xlu0 %3024
      %3026 = vrot.lane.b32.xlu0 %v2823, 111
      %v3027 = vpop.permute.xlu0 %3026
      %v3028 = vsel %vm516, %v3013, %v3021
      %v3029 = vsel %vm516, %v3015, %v3023
      %v3030 = vsel %vm516, %v3017, %v3025
      %v3031 = vsel %vm516, %v3019, %v3027
      %v3032 = vsel %vm516, %v3005, %v3013
      %v3033 = vsel %vm516, %v3007, %v3015
      %v3034 = vsel %vm516, %v3009, %v3017
      %v3035 = vsel %vm516, %v3011, %v3019
      %v3036 = vsel %vm516, %v3021, %v3005
      %v3037 = vsel %vm516, %v3023, %v3007
      %v3038 = vsel %vm516, %v3025, %v3009
      %v3039 = vsel %vm516, %v3027, %v3011
      %3040 = vrot.lane.b32.xlu0 %v2812, 110
      %v3041 = vpop.permute.xlu0 %3040
      %3042 = vrot.lane.b32.xlu0 %v2815, 110
      %v3043 = vpop.permute.xlu0 %3042
      %3044 = vrot.lane.b32.xlu0 %v2818, 110
      %v3045 = vpop.permute.xlu0 %3044
      %3046 = vrot.lane.b32.xlu0 %v2821, 110
      %v3047 = vpop.permute.xlu0 %3046
      %3048 = vrot.lane.b32.xlu0 %v2813, 110
      %v3049 = vpop.permute.xlu0 %3048
      %3050 = vrot.lane.b32.xlu0 %v2816, 110
      %v3051 = vpop.permute.xlu0 %3050
      %3052 = vrot.lane.b32.xlu0 %v2819, 110
      %v3053 = vpop.permute.xlu0 %3052
      %3054 = vrot.lane.b32.xlu0 %v2822, 110
      %v3055 = vpop.permute.xlu0 %3054
      %3056 = vrot.lane.b32.xlu0 %v2814, 110
      %v3057 = vpop.permute.xlu0 %3056
      %3058 = vrot.lane.b32.xlu0 %v2817, 110
      %v3059 = vpop.permute.xlu0 %3058
      %3060 = vrot.lane.b32.xlu0 %v2820, 110
      %v3061 = vpop.permute.xlu0 %3060
      %3062 = vrot.lane.b32.xlu0 %v2823, 110
      %v3063 = vpop.permute.xlu0 %3062
      %v3064 = vsel %vm526, %v3049, %v3057
      %v3065 = vsel %vm526, %v3051, %v3059
      %v3066 = vsel %vm526, %v3053, %v3061
      %v3067 = vsel %vm526, %v3055, %v3063
      %v3068 = vsel %vm526, %v3041, %v3049
      %v3069 = vsel %vm526, %v3043, %v3051
      %v3070 = vsel %vm526, %v3045, %v3053
      %v3071 = vsel %vm526, %v3047, %v3055
      %v3072 = vsel %vm526, %v3057, %v3041
      %v3073 = vsel %vm526, %v3059, %v3043
      %v3074 = vsel %vm526, %v3061, %v3045
      %v3075 = vsel %vm526, %v3063, %v3047
      %3076 = vrot.lane.b32.xlu0 %v2812, 109
      %v3077 = vpop.permute.xlu0 %3076
      %3078 = vrot.lane.b32.xlu0 %v2815, 109
      %v3079 = vpop.permute.xlu0 %3078
      %3080 = vrot.lane.b32.xlu0 %v2818, 109
      %v3081 = vpop.permute.xlu0 %3080
      %3082 = vrot.lane.b32.xlu0 %v2821, 109
      %v3083 = vpop.permute.xlu0 %3082
      %3084 = vrot.lane.b32.xlu0 %v2813, 109
      %v3085 = vpop.permute.xlu0 %3084
      %3086 = vrot.lane.b32.xlu0 %v2816, 109
      %v3087 = vpop.permute.xlu0 %3086
      %3088 = vrot.lane.b32.xlu0 %v2819, 109
      %v3089 = vpop.permute.xlu0 %3088
      %3090 = vrot.lane.b32.xlu0 %v2822, 109
      %v3091 = vpop.permute.xlu0 %3090
      %3092 = vrot.lane.b32.xlu0 %v2814, 109
      %v3093 = vpop.permute.xlu0 %3092
      %3094 = vrot.lane.b32.xlu0 %v2817, 109
      %v3095 = vpop.permute.xlu0 %3094
      %3096 = vrot.lane.b32.xlu0 %v2820, 109
      %v3097 = vpop.permute.xlu0 %3096
      %3098 = vrot.lane.b32.xlu0 %v2823, 109
      %v3099 = vpop.permute.xlu0 %3098
      %v3100 = vsel %vm536, %v3085, %v3093
      %v3101 = vsel %vm536, %v3087, %v3095
      %v3102 = vsel %vm536, %v3089, %v3097
      %v3103 = vsel %vm536, %v3091, %v3099
      %v3104 = vsel %vm536, %v3077, %v3085
      %v3105 = vsel %vm536, %v3079, %v3087
      %v3106 = vsel %vm536, %v3081, %v3089
      %v3107 = vsel %vm536, %v3083, %v3091
      %v3108 = vsel %vm536, %v3093, %v3077
      %v3109 = vsel %vm536, %v3095, %v3079
      %v3110 = vsel %vm536, %v3097, %v3081
      %v3111 = vsel %vm536, %v3099, %v3083
      %v3112 = vld [vmem:[%s6] sm:$0xff]
      %v3113 = vld [vmem:[%s6 + $0x8] sm:$0xff]
      %v3114 = vld [vmem:[%s6 + $0x10] sm:$0xff]
      %v3115 = vld [vmem:[%s6 + $0x18] sm:$0xff]
      %v3116 = vld [vmem:[%s6 + $0x20] sm:$0xff]
      %v3117 = vld [vmem:[%s6 + $0x28] sm:$0xff]
      %v3118 = vld [vmem:[%s6 + $0x30] sm:$0xff]
      %v3119 = vld [vmem:[%s6 + $0x38] sm:$0xff]
      %v3120 = vld [vmem:[%s6 + $0x40] sm:$0xff]
      %v3121 = vld [vmem:[%s6 + $0x48] sm:$0xff]
      %v3122 = vld [vmem:[%s6 + $0x50] sm:$0xff]
      %v3123 = vld [vmem:[%s6 + $0x58] sm:$0xff]
      %v3124 = vld [vmem:[%s7] sm:$0xff]
      %v3125 = vld [vmem:[%s7 + $0x8] sm:$0xff]
      %v3126 = vld [vmem:[%s7 + $0x10] sm:$0xff]
      %v3127 = vld [vmem:[%s7 + $0x18] sm:$0xff]
      %v3128 = vld [vmem:[%s7 + $0x20] sm:$0xff]
      %v3129 = vld [vmem:[%s7 + $0x28] sm:$0xff]
      %v3130 = vld [vmem:[%s7 + $0x30] sm:$0xff]
      %v3131 = vld [vmem:[%s7 + $0x38] sm:$0xff]
      %v3132 = vld [vmem:[%s7 + $0x40] sm:$0xff]
      %v3133 = vld [vmem:[%s7 + $0x48] sm:$0xff]
      %v3134 = vld [vmem:[%s7 + $0x50] sm:$0xff]
      %v3135 = vld [vmem:[%s7 + $0x58] sm:$0xff]
      %v3137 = vsel %vm1119, %v3126, 0
      %v3140 = vsel %vm1119, %v3129, 0
      %v3143 = vsel %vm1119, %v3132, 0
      %v3146 = vsel %vm1119, %v3135, 0
      %3148 = vmatprep.subr.mxu0 %v2852
      %3149 = vmatpush1.msra.mxu0 %v2856
      %3150 = vmatprep.subr.mxu0 %v2853
      %3151 = vmatpush1.msra.mxu0 %v2857
      %3152 = vmatprep.subr.mxu0 %v2854
      %3153 = vmatpush1.msra.mxu0 %v2858
      %3154 = vmatprep.subr.mxu0 %v2855
      %3155 = vmatpush1.msra.mxu0 %v2859
      %3156 = vmatprep.subr.mxu0 %v2888
      %3157 = vmatpush1.msra.mxu0 %v2892
      %3158 = vmatprep.subr.mxu0 %v2889
      %3159 = vmatpush1.msra.mxu0 %v2893
      %3160 = vmatprep.subr.mxu0 %v2890
      %3161 = vmatpush1.msra.mxu0 %v2894
      %3162 = vmatprep.subr.mxu0 %v2891
      %3163 = vmatpush1.msra.mxu0 %v2895
      %3164 = vmatprep.subr.mxu0 %v2924
      %3165 = vmatpush1.msra.mxu0 %v2928
      %3166 = vmatprep.subr.mxu0 %v2925
      %3167 = vmatpush1.msra.mxu0 %v2929
      %3168 = vmatprep.subr.mxu0 %v2926
      %3169 = vmatpush1.msra.mxu0 %v2930
      %3170 = vmatprep.subr.mxu0 %v2927
      %3171 = vmatpush1.msra.mxu0 %v2931
      %3172 = vmatprep.subr.mxu0 %v2960
      %3173 = vmatpush1.msra.mxu0 %v2964
      %3174 = vmatprep.subr.mxu0 %v2961
      %3175 = vmatpush1.msra.mxu0 %v2965
      %3176 = vmatprep.subr.mxu0 %v2962
      %3177 = vmatpush1.msra.mxu0 %v2966
      %3178 = vmatprep.subr.mxu0 %v2963
      %3179 = vmatpush1.msra.mxu0 %v2967
      %3180 = vmatprep.subr.mxu0 %v2813
      %3181 = vmatpush1.msra.mxu0 %v2812
      %3182 = vmatprep.subr.mxu0 %v2816
      %3183 = vmatpush1.msra.mxu0 %v2815
      %3184 = vmatprep.subr.mxu0 %v2819
      %3185 = vmatpush1.msra.mxu0 %v2818
      %3186 = vmatprep.subr.mxu0 %v2822
      %3187 = vmatpush1.msra.mxu0 %v2821
      %3188 = vmatprep.subr.mxu0 %v2992
      %3189 = vmatpush1.msra.mxu0 %v2996
      %3190 = vmatprep.subr.mxu0 %v2993
      %3191 = vmatpush1.msra.mxu0 %v2997
      %3192 = vmatprep.subr.mxu0 %v2994
      %3193 = vmatpush1.msra.mxu0 %v2998
      %3194 = vmatprep.subr.mxu0 %v2995
      %3195 = vmatpush1.msra.mxu0 %v2999
      %3196 = vmatprep.subr.mxu0 %v3028
      %3197 = vmatpush1.msra.mxu0 %v3032
      %3198 = vmatprep.subr.mxu0 %v3029
      %3199 = vmatpush1.msra.mxu0 %v3033
      %3200 = vmatprep.subr.mxu0 %v3030
      %3201 = vmatpush1.msra.mxu0 %v3034
      %3202 = vmatprep.subr.mxu0 %v3031
      %3203 = vmatpush1.msra.mxu0 %v3035
      %3204 = vmatprep.subr.mxu0 %v3064
      %3205 = vmatpush1.msra.mxu0 %v3068
      %3206 = vmatprep.subr.mxu0 %v3065
      %3207 = vmatpush1.msra.mxu0 %v3069
      %3208 = vmatprep.subr.mxu0 %v3066
      %3209 = vmatpush1.msra.mxu0 %v3070
      %3210 = vmatprep.subr.mxu0 %v3067
      %3211 = vmatpush1.msra.mxu0 %v3071
      %3212 = vmatprep.mubr.f32.mxu0 %v3125
      %3213 = vmatmul.mubr.f32.gmra.mrb[0].mxu0 %v3124
      %v3214 = vpop.f32.mrb[0].mxu0
      %v3215 = vadd.f32 0.0, %v3214
      %v3216 = vpop.f32.mrb[0].mxu0
      %v3217 = vadd.f32 0.0, %v3216
      %3218 = vmatprep.mubr.f32.mxu0 %v3128
      %3219 = vmatmul.mubr.f32.gmra.mrb[0].mxu0 %v3127
      %v3220 = vpop.f32.mrb[0].mxu0
      %v3221 = vadd.f32 0.0, %v3220
      %v3222 = vpop.f32.mrb[0].mxu0
      %v3223 = vadd.f32 0.0, %v3222
      %3224 = vmatprep.mubr.f32.mxu0 %v3131
      %3225 = vmatmul.mubr.f32.gmra.mrb[0].mxu0 %v3130
      %v3226 = vpop.f32.mrb[0].mxu0
      %v3227 = vadd.f32 0.0, %v3226
      %v3228 = vpop.f32.mrb[0].mxu0
      %v3229 = vadd.f32 0.0, %v3228
      %3230 = vmatprep.mubr.f32.mxu0 %v3134
      %3231 = vmatmul.mubr.f32.gmra.mrb[0].mxu0 %v3133
      %v3232 = vpop.f32.mrb[0].mxu0
      %v3233 = vadd.f32 0.0, %v3232
      %v3234 = vpop.f32.mrb[0].mxu0
      %v3235 = vadd.f32 0.0, %v3234
      %3236 = vdwg.mxu0
      %3237 = vmatprep.subr.mxu0 %v3100
      %3238 = vmatpush1.msra.mxu0 %v3104
      %3239 = vmatprep.subr.mxu0 %v3101
      %3240 = vmatpush1.msra.mxu0 %v3105
      %3241 = vmatprep.subr.mxu0 %v3102
      %3242 = vmatpush1.msra.mxu0 %v3106
      %3243 = vmatprep.subr.mxu0 %v3103
      %3244 = vmatpush1.msra.mxu0 %v3107
      %3245 = vmatprep.subr.mxu0 0.0
      %3246 = vmatpush1.msra.mxu0 0.0
      %3247 = vmatprep.subr.mxu0 0.0
      %3248 = vmatpush1.msra.mxu0 0.0
      %3249 = vmatprep.subr.mxu0 0.0
      %3250 = vmatpush1.msra.mxu0 0.0
      %3251 = vmatprep.subr.mxu0 0.0
      %3252 = vmatpush1.msra.mxu0 0.0
      %3253 = vmatprep.subr.mxu0 0.0
      %3254 = vmatpush1.msra.mxu0 0.0
      %3255 = vmatprep.subr.mxu0 0.0
      %3256 = vmatpush1.msra.mxu0 0.0
      %3257 = vmatprep.subr.mxu0 0.0
      %3258 = vmatpush1.msra.mxu0 0.0
      %3259 = vmatprep.subr.mxu0 0.0
      %3260 = vmatpush1.msra.mxu0 0.0
      %3261 = vmatprep.subr.mxu0 0.0
      %3262 = vmatpush1.msra.mxu0 0.0
      %3263 = vmatprep.subr.mxu0 0.0
      %3264 = vmatpush1.msra.mxu0 0.0
      %3265 = vmatprep.subr.mxu0 0.0
      %3266 = vmatpush1.msra.mxu0 0.0
      %3267 = vmatprep.subr.mxu0 0.0
      %3268 = vmatpush1.msra.mxu0 0.0
      %3269 = vmatprep.subr.mxu0 0.0
      %3270 = vmatpush1.msra.mxu0 0.0
      %3271 = vmatprep.subr.mxu0 0.0
      %3272 = vmatpush1.msra.mxu0 0.0
      %3273 = vmatprep.subr.mxu0 0.0
      %3274 = vmatpush1.msra.mxu0 0.0
      %3275 = vmatprep.subr.mxu0 0.0
      %3276 = vmatpush1.msra.mxu0 0.0
      %3277 = vmatprep.subr.mxu0 0.0
      %3278 = vmatpush1.msra.mxu0 0.0
      %3279 = vmatprep.subr.mxu0 0.0
      %3280 = vmatpush1.msra.mxu0 0.0
      %3281 = vmatprep.subr.mxu0 0.0
      %3282 = vmatpush1.msra.mxu0 0.0
      %3283 = vmatprep.subr.mxu0 0.0
      %3284 = vmatpush1.msra.mxu0 0.0
      %3285 = vmatprep.subr.mxu0 0.0
      %3286 = vmatpush1.msra.mxu0 0.0
      %3287 = vmatprep.subr.mxu0 0.0
      %3288 = vmatpush1.msra.mxu0 0.0
      %3289 = vmatprep.subr.mxu0 0.0
      %3290 = vmatpush1.msra.mxu0 0.0
      %3291 = vmatprep.subr.mxu0 0.0
      %3292 = vmatpush1.msra.mxu0 0.0
      %3293 = vmatprep.subr.mxu0 0.0
      %3294 = vmatpush1.msra.mxu0 0.0
      %3295 = vmatprep.subr.mxu0 0.0
      %3296 = vmatpush1.msra.mxu0 0.0
      %3297 = vmatprep.subr.mxu0 0.0
      %3298 = vmatpush1.msra.mxu0 0.0
      %3299 = vmatprep.subr.mxu0 0.0
      %3300 = vmatpush1.msra.mxu0 0.0
      %3301 = vmatprep.mubr.f32.mxu0 0.0
      %3302 = vmatmul.mubr.f32.gmra.mrb[0].mxu0 %v3137
      %v3303 = vpop.f32.mrb[0].mxu0
      %v3304 = vadd.f32 %v3215, %v3303
      %v3305 = vpop.f32.mrb[0].mxu0
      %v3306 = vadd.f32 %v3217, %v3305
      %3307 = vmatprep.mubr.f32.mxu0 0.0
      %3308 = vmatmul.mubr.f32.gmra.mrb[0].mxu0 %v3140
      %v3309 = vpop.f32.mrb[0].mxu0
      %v3310 = vadd.f32 %v3221, %v3309
      %v3311 = vpop.f32.mrb[0].mxu0
      %v3312 = vadd.f32 %v3223, %v3311
      %3313 = vmatprep.mubr.f32.mxu0 0.0
      %3314 = vmatmul.mubr.f32.gmra.mrb[0].mxu0 %v3143
      %v3315 = vpop.f32.mrb[0].mxu0
      %v3316 = vadd.f32 %v3227, %v3315
      %v3317 = vpop.f32.mrb[0].mxu0
      %v3318 = vadd.f32 %v3229, %v3317
      %3319 = vmatprep.mubr.f32.mxu0 0.0
      %3320 = vmatmul.mubr.f32.gmra.mrb[0].mxu0 %v3146
      %v3321 = vpop.f32.mrb[0].mxu0
      %v3322 = vadd.f32 %v3233, %v3321
      %v3323 = vpop.f32.mrb[0].mxu0
      %v3324 = vadd.f32 %v3235, %v3323
      %3325 = vdwg.mxu0
      %3326 = vmatprep.subr.mxu0 0.0
      %3327 = vmatpush1.msra.mxu0 %v2848
      %3328 = vmatprep.subr.mxu0 0.0
      %3329 = vmatpush1.msra.mxu0 %v2849
      %3330 = vmatprep.subr.mxu0 0.0
      %3331 = vmatpush1.msra.mxu0 %v2850
      %3332 = vmatprep.subr.mxu0 0.0
      %3333 = vmatpush1.msra.mxu0 %v2851
      %3334 = vmatprep.subr.mxu0 0.0
      %3335 = vmatpush1.msra.mxu0 %v2884
      %3336 = vmatprep.subr.mxu0 0.0
      %3337 = vmatpush1.msra.mxu0 %v2885
      %3338 = vmatprep.subr.mxu0 0.0
      %3339 = vmatpush1.msra.mxu0 %v2886
      %3340 = vmatprep.subr.mxu0 0.0
      %3341 = vmatpush1.msra.mxu0 %v2887
      %3342 = vmatprep.subr.mxu0 0.0
      %3343 = vmatpush1.msra.mxu0 %v2920
      %3344 = vmatprep.subr.mxu0 0.0
      %3345 = vmatpush1.msra.mxu0 %v2921
      %3346 = vmatprep.subr.mxu0 0.0
      %3347 = vmatpush1.msra.mxu0 %v2922
      %3348 = vmatprep.subr.mxu0 0.0
      %3349 = vmatpush1.msra.mxu0 %v2923
      %3350 = vmatprep.subr.mxu0 0.0
      %3351 = vmatpush1.msra.mxu0 %v2956
      %3352 = vmatprep.subr.mxu0 0.0
      %3353 = vmatpush1.msra.mxu0 %v2957
      %3354 = vmatprep.subr.mxu0 0.0
      %3355 = vmatpush1.msra.mxu0 %v2958
      %3356 = vmatprep.subr.mxu0 0.0
      %3357 = vmatpush1.msra.mxu0 %v2959
      %3358 = vmatprep.subr.mxu0 0.0
      %3359 = vmatpush1.msra.mxu0 %v2814
      %3360 = vmatprep.subr.mxu0 0.0
      %3361 = vmatpush1.msra.mxu0 %v2817
      %3362 = vmatprep.subr.mxu0 0.0
      %3363 = vmatpush1.msra.mxu0 %v2820
      %3364 = vmatprep.subr.mxu0 0.0
      %3365 = vmatpush1.msra.mxu0 %v2823
      %3366 = vmatprep.subr.mxu0 0.0
      %3367 = vmatpush1.msra.mxu0 %v3000
      %3368 = vmatprep.subr.mxu0 0.0
      %3369 = vmatpush1.msra.mxu0 %v3001
      %3370 = vmatprep.subr.mxu0 0.0
      %3371 = vmatpush1.msra.mxu0 %v3002
      %3372 = vmatprep.subr.mxu0 0.0
      %3373 = vmatpush1.msra.mxu0 %v3003
      %3374 = vmatprep.subr.mxu0 0.0
      %3375 = vmatpush1.msra.mxu0 %v3036
      %3376 = vmatprep.subr.mxu0 0.0
      %3377 = vmatpush1.msra.mxu0 %v3037
      %3378 = vmatprep.subr.mxu0 0.0
      %3379 = vmatpush1.msra.mxu0 %v3038
      %3380 = vmatprep.subr.mxu0 0.0
      %3381 = vmatpush1.msra.mxu0 %v3039
      %3382 = vmatprep.subr.mxu0 0.0
      %3383 = vmatpush1.msra.mxu0 %v3072
      %3384 = vmatprep.subr.mxu0 0.0
      %3385 = vmatpush1.msra.mxu0 %v3073
      %3386 = vmatprep.subr.mxu0 0.0
      %3387 = vmatpush1.msra.mxu0 %v3074
      %3388 = vmatprep.subr.mxu0 0.0
      %3389 = vmatpush1.msra.mxu0 %v3075
      %3390 = vmatprep.mubr.f32.mxu0 %v3125
      %3391 = vmatmul.mubr.f32.gmra.mrb[0].mxu0 %v3124
      %v3392 = vpop.f32.mrb[0].mxu0
      %v3393 = vadd.f32 0.0, %v3392
      %v3394 = vpop.f32.mrb[0].mxu0
      %3395 = vmatprep.mubr.f32.mxu0 %v3128
      %3396 = vmatmul.mubr.f32.gmra.mrb[0].mxu0 %v3127
      %v3397 = vpop.f32.mrb[0].mxu0
      %v3398 = vadd.f32 0.0, %v3397
      %v3399 = vpop.f32.mrb[0].mxu0
      %3400 = vmatprep.mubr.f32.mxu0 %v3131
      %3401 = vmatmul.mubr.f32.gmra.mrb[0].mxu0 %v3130
      %v3402 = vpop.f32.mrb[0].mxu0
      %v3403 = vadd.f32 0.0, %v3402
      %v3404 = vpop.f32.mrb[0].mxu0
      %3405 = vmatprep.mubr.f32.mxu0 %v3134
      %3406 = vmatmul.mubr.f32.gmra.mrb[0].mxu0 %v3133
      %v3407 = vpop.f32.mrb[0].mxu0
      %v3408 = vadd.f32 0.0, %v3407
      %v3409 = vpop.f32.mrb[0].mxu0
      %3410 = vdwg.mxu0
      %3411 = vmatprep.subr.mxu0 0.0
      %3412 = vmatpush1.msra.mxu0 %v3108
      %3413 = vmatprep.subr.mxu0 0.0
      %3414 = vmatpush1.msra.mxu0 %v3109
      %3415 = vmatprep.subr.mxu0 0.0
      %3416 = vmatpush1.msra.mxu0 %v3110
      %3417 = vmatprep.subr.mxu0 0.0
      %3418 = vmatpush1.msra.mxu0 %v3111
      %3419 = vmatprep.subr.mxu0 0.0
      %3420 = vmatpush1.msra.mxu0 0.0
      %3421 = vmatprep.subr.mxu0 0.0
      %3422 = vmatpush1.msra.mxu0 0.0
      %3423 = vmatprep.subr.mxu0 0.0
      %3424 = vmatpush1.msra.mxu0 0.0
      %3425 = vmatprep.subr.mxu0 0.0
      %3426 = vmatpush1.msra.mxu0 0.0
      %3427 = vmatprep.subr.mxu0 0.0
      %3428 = vmatpush1.msra.mxu0 0.0
      %3429 = vmatprep.subr.mxu0 0.0
      %3430 = vmatpush1.msra.mxu0 0.0
      %3431 = vmatprep.subr.mxu0 0.0
      %3432 = vmatpush1.msra.mxu0 0.0
      %3433 = vmatprep.subr.mxu0 0.0
      %3434 = vmatpush1.msra.mxu0 0.0
      %3435 = vmatprep.subr.mxu0 0.0
      %3436 = vmatpush1.msra.mxu0 0.0
      %3437 = vmatprep.subr.mxu0 0.0
      %3438 = vmatpush1.msra.mxu0 0.0
      %3439 = vmatprep.subr.mxu0 0.0
      %3440 = vmatpush1.msra.mxu0 0.0
      %3441 = vmatprep.subr.mxu0 0.0
      %3442 = vmatpush1.msra.mxu0 0.0
      %3443 = vmatprep.subr.mxu0 0.0
      %3444 = vmatpush1.msra.mxu0 0.0
      %3445 = vmatprep.subr.mxu0 0.0
      %3446 = vmatpush1.msra.mxu0 0.0
      %3447 = vmatprep.subr.mxu0 0.0
      %3448 = vmatpush1.msra.mxu0 0.0
      %3449 = vmatprep.subr.mxu0 0.0
      %3450 = vmatpush1.msra.mxu0 0.0
      %3451 = vmatprep.subr.mxu0 0.0
      %3452 = vmatpush1.msra.mxu0 0.0
      %3453 = vmatprep.subr.mxu0 0.0
      %3454 = vmatpush1.msra.mxu0 0.0
      %3455 = vmatprep.subr.mxu0 0.0
      %3456 = vmatpush1.msra.mxu0 0.0
      %3457 = vmatprep.subr.mxu0 0.0
      %3458 = vmatpush1.msra.mxu0 0.0
      %3459 = vmatprep.subr.mxu0 0.0
      %3460 = vmatpush1.msra.mxu0 0.0
      %3461 = vmatprep.subr.mxu0 0.0
      %3462 = vmatpush1.msra.mxu0 0.0
      %3463 = vmatprep.subr.mxu0 0.0
      %3464 = vmatpush1.msra.mxu0 0.0
      %3465 = vmatprep.subr.mxu0 0.0
      %3466 = vmatpush1.msra.mxu0 0.0
      %3467 = vmatprep.subr.mxu0 0.0
      %3468 = vmatpush1.msra.mxu0 0.0
      %3469 = vmatprep.subr.mxu0 0.0
      %3470 = vmatpush1.msra.mxu0 0.0
      %3471 = vmatprep.subr.mxu0 0.0
      %3472 = vmatpush1.msra.mxu0 0.0
      %3473 = vmatprep.subr.mxu0 0.0
      %3474 = vmatpush1.msra.mxu0 0.0
      %3475 = vmatprep.mubr.f32.mxu0 0.0
      %3476 = vmatmul.mubr.f32.gmra.mrb[0].mxu0 %v3137
      %v3477 = vpop.f32.mrb[0].mxu0
      %v3478 = vadd.f32 %v3393, %v3477
      %v3479 = vpop.f32.mrb[0].mxu0
      %3480 = vmatprep.mubr.f32.mxu0 0.0
      %3481 = vmatmul.mubr.f32.gmra.mrb[0].mxu0 %v3140
      %v3482 = vpop.f32.mrb[0].mxu0
      %v3483 = vadd.f32 %v3398, %v3482
      %v3484 = vpop.f32.mrb[0].mxu0
      %3485 = vmatprep.mubr.f32.mxu0 0.0
      %3486 = vmatmul.mubr.f32.gmra.mrb[0].mxu0 %v3143
      %v3487 = vpop.f32.mrb[0].mxu0
      %v3488 = vadd.f32 %v3403, %v3487
      %v3489 = vpop.f32.mrb[0].mxu0
      %3490 = vmatprep.mubr.f32.mxu0 0.0
      %3491 = vmatmul.mubr.f32.gmra.mrb[0].mxu0 %v3146
      %v3492 = vpop.f32.mrb[0].mxu0
      %v3493 = vadd.f32 %v3408, %v3492
      %v3494 = vpop.f32.mrb[0].mxu0
      %3495 = vdwg.mxu0
      %v3497 = vsel %vm1119, %v3114, 0
      %v3500 = vsel %vm1119, %v3117, 0
      %v3503 = vsel %vm1119, %v3120, 0
      %v3506 = vsel %vm1119, %v3123, 0
      %3508 = vmatprep.subr.mxu0 %v2192
      %3509 = vmatpush1.msra.mxu0 %v2196
      %3510 = vmatprep.subr.mxu0 %v2193
      %3511 = vmatpush1.msra.mxu0 %v2197
      %3512 = vmatprep.subr.mxu0 %v2194
      %3513 = vmatpush1.msra.mxu0 %v2198
      %3514 = vmatprep.subr.mxu0 %v2195
      %3515 = vmatpush1.msra.mxu0 %v2199
      %3516 = vmatprep.subr.mxu0 %v2228
      %3517 = vmatpush1.msra.mxu0 %v2232
      %3518 = vmatprep.subr.mxu0 %v2229
      %3519 = vmatpush1.msra.mxu0 %v2233
      %3520 = vmatprep.subr.mxu0 %v2230
      %3521 = vmatpush1.msra.mxu0 %v2234
      %3522 = vmatprep.subr.mxu0 %v2231
      %3523 = vmatpush1.msra.mxu0 %v2235
      %3524 = vmatprep.subr.mxu0 %v2264
      %3525 = vmatpush1.msra.mxu0 %v2268
      %3526 = vmatprep.subr.mxu0 %v2265
      %3527 = vmatpush1.msra.mxu0 %v2269
      %3528 = vmatprep.subr.mxu0 %v2266
      %3529 = vmatpush1.msra.mxu0 %v2270
      %3530 = vmatprep.subr.mxu0 %v2267
      %3531 = vmatpush1.msra.mxu0 %v2271
      %3532 = vmatprep.subr.mxu0 %v2300
      %3533 = vmatpush1.msra.mxu0 %v2304
      %3534 = vmatprep.subr.mxu0 %v2301
      %3535 = vmatpush1.msra.mxu0 %v2305
      %3536 = vmatprep.subr.mxu0 %v2302
      %3537 = vmatpush1.msra.mxu0 %v2306
      %3538 = vmatprep.subr.mxu0 %v2303
      %3539 = vmatpush1.msra.mxu0 %v2307
      %3540 = vmatprep.subr.mxu0 %v2153
      %3541 = vmatpush1.msra.mxu0 %v2152
      %3542 = vmatprep.subr.mxu0 %v2156
      %3543 = vmatpush1.msra.mxu0 %v2155
      %3544 = vmatprep.subr.mxu0 %v2159
      %3545 = vmatpush1.msra.mxu0 %v2158
      %3546 = vmatprep.subr.mxu0 %v2162
      %3547 = vmatpush1.msra.mxu0 %v2161
      %3548 = vmatprep.subr.mxu0 %v2332
      %3549 = vmatpush1.msra.mxu0 %v2336
      %3550 = vmatprep.subr.mxu0 %v2333
      %3551 = vmatpush1.msra.mxu0 %v2337
      %3552 = vmatprep.subr.mxu0 %v2334
      %3553 = vmatpush1.msra.mxu0 %v2338
      %3554 = vmatprep.subr.mxu0 %v2335
      %3555 = vmatpush1.msra.mxu0 %v2339
      %3556 = vmatprep.subr.mxu0 %v2368
      %3557 = vmatpush1.msra.mxu0 %v2372
      %3558 = vmatprep.subr.mxu0 %v2369
      %3559 = vmatpush1.msra.mxu0 %v2373
      %3560 = vmatprep.subr.mxu0 %v2370
      %3561 = vmatpush1.msra.mxu0 %v2374
      %3562 = vmatprep.subr.mxu0 %v2371
      %3563 = vmatpush1.msra.mxu0 %v2375
      %3564 = vmatprep.subr.mxu0 %v2404
      %3565 = vmatpush1.msra.mxu0 %v2408
      %3566 = vmatprep.subr.mxu0 %v2405
      %3567 = vmatpush1.msra.mxu0 %v2409
      %3568 = vmatprep.subr.mxu0 %v2406
      %3569 = vmatpush1.msra.mxu0 %v2410
      %3570 = vmatprep.subr.mxu0 %v2407
      %3571 = vmatpush1.msra.mxu0 %v2411
      %3572 = vmatprep.mubr.f32.mxu0 %v3113
      %3573 = vmatmul.mubr.f32.gmra.mrb[0].mxu0 %v3112
      %v3574 = vpop.f32.mrb[0].mxu0
      %v3575 = vadd.f32 %v3304, %v3574
      %v3576 = vpop.f32.mrb[0].mxu0
      %v3577 = vadd.f32 %v3306, %v3576
      %3578 = vmatprep.mubr.f32.mxu0 %v3116
      %3579 = vmatmul.mubr.f32.gmra.mrb[0].mxu0 %v3115
      %v3580 = vpop.f32.mrb[0].mxu0
      %v3581 = vadd.f32 %v3310, %v3580
      %v3582 = vpop.f32.mrb[0].mxu0
      %v3583 = vadd.f32 %v3312, %v3582
      %3584 = vmatprep.mubr.f32.mxu0 %v3119
      %3585 = vmatmul.mubr.f32.gmra.mrb[0].mxu0 %v3118
      %v3586 = vpop.f32.mrb[0].mxu0
      %v3587 = vadd.f32 %v3316, %v3586
      %v3588 = vpop.f32.mrb[0].mxu0
      %v3589 = vadd.f32 %v3318, %v3588
      %3590 = vmatprep.mubr.f32.mxu0 %v3122
      %3591 = vmatmul.mubr.f32.gmra.mrb[0].mxu0 %v3121
      %v3592 = vpop.f32.mrb[0].mxu0
      %v3593 = vadd.f32 %v3322, %v3592
      %v3594 = vpop.f32.mrb[0].mxu0
      %v3595 = vadd.f32 %v3324, %v3594
      %3596 = vdwg.mxu0
      %3597 = vmatprep.subr.mxu0 %v2440
      %3598 = vmatpush1.msra.mxu0 %v2444
      %3599 = vmatprep.subr.mxu0 %v2441
      %3600 = vmatpush1.msra.mxu0 %v2445
      %3601 = vmatprep.subr.mxu0 %v2442
      %3602 = vmatpush1.msra.mxu0 %v2446
      %3603 = vmatprep.subr.mxu0 %v2443
      %3604 = vmatpush1.msra.mxu0 %v2447
      %3605 = vmatprep.subr.mxu0 0.0
      %3606 = vmatpush1.msra.mxu0 0.0
      %3607 = vmatprep.subr.mxu0 0.0
      %3608 = vmatpush1.msra.mxu0 0.0
      %3609 = vmatprep.subr.mxu0 0.0
      %3610 = vmatpush1.msra.mxu0 0.0
      %3611 = vmatprep.subr.mxu0 0.0
      %3612 = vmatpush1.msra.mxu0 0.0
      %3613 = vmatprep.subr.mxu0 0.0
      %3614 = vmatpush1.msra.mxu0 0.0
      %3615 = vmatprep.subr.mxu0 0.0
      %3616 = vmatpush1.msra.mxu0 0.0
      %3617 = vmatprep.subr.mxu0 0.0
      %3618 = vmatpush1.msra.mxu0 0.0
      %3619 = vmatprep.subr.mxu0 0.0
      %3620 = vmatpush1.msra.mxu0 0.0
      %3621 = vmatprep.subr.mxu0 0.0
      %3622 = vmatpush1.msra.mxu0 0.0
      %3623 = vmatprep.subr.mxu0 0.0
      %3624 = vmatpush1.msra.mxu0 0.0
      %3625 = vmatprep.subr.mxu0 0.0
      %3626 = vmatpush1.msra.mxu0 0.0
      %3627 = vmatprep.subr.mxu0 0.0
      %3628 = vmatpush1.msra.mxu0 0.0
      %3629 = vmatprep.subr.mxu0 0.0
      %3630 = vmatpush1.msra.mxu0 0.0
      %3631 = vmatprep.subr.mxu0 0.0
      %3632 = vmatpush1.msra.mxu0 0.0
      %3633 = vmatprep.subr.mxu0 0.0
      %3634 = vmatpush1.msra.mxu0 0.0
      %3635 = vmatprep.subr.mxu0 0.0
      %3636 = vmatpush1.msra.mxu0 0.0
      %3637 = vmatprep.subr.mxu0 0.0
      %3638 = vmatpush1.msra.mxu0 0.0
      %3639 = vmatprep.subr.mxu0 0.0
      %3640 = vmatpush1.msra.mxu0 0.0
      %3641 = vmatprep.subr.mxu0 0.0
      %3642 = vmatpush1.msra.mxu0 0.0
      %3643 = vmatprep.subr.mxu0 0.0
      %3644 = vmatpush1.msra.mxu0 0.0
      %3645 = vmatprep.subr.mxu0 0.0
      %3646 = vmatpush1.msra.mxu0 0.0
      %3647 = vmatprep.subr.mxu0 0.0
      %3648 = vmatpush1.msra.mxu0 0.0
      %3649 = vmatprep.subr.mxu0 0.0
      %3650 = vmatpush1.msra.mxu0 0.0
      %3651 = vmatprep.subr.mxu0 0.0
      %3652 = vmatpush1.msra.mxu0 0.0
      %3653 = vmatprep.subr.mxu0 0.0
      %3654 = vmatpush1.msra.mxu0 0.0
      %3655 = vmatprep.subr.mxu0 0.0
      %3656 = vmatpush1.msra.mxu0 0.0
      %3657 = vmatprep.subr.mxu0 0.0
      %3658 = vmatpush1.msra.mxu0 0.0
      %3659 = vmatprep.subr.mxu0 0.0
      %3660 = vmatpush1.msra.mxu0 0.0
      %3661 = vmatprep.mubr.f32.mxu0 0.0
      %3662 = vmatmul.mubr.f32.gmra.mrb[0].mxu0 %v3497
      %v3663 = vpop.f32.mrb[0].mxu0
      %v3664 = vadd.f32 %v3575, %v3663
      %v3665 = vpop.f32.mrb[0].mxu0
      %v3666 = vadd.f32 %v3577, %v3665
      %3667 = vmatprep.mubr.f32.mxu0 0.0
      %3668 = vmatmul.mubr.f32.gmra.mrb[0].mxu0 %v3500
      %v3669 = vpop.f32.mrb[0].mxu0
      %v3670 = vadd.f32 %v3581, %v3669
      %v3671 = vpop.f32.mrb[0].mxu0
      %v3672 = vadd.f32 %v3583, %v3671
      %3673 = vmatprep.mubr.f32.mxu0 0.0
      %3674 = vmatmul.mubr.f32.gmra.mrb[0].mxu0 %v3503
      %v3675 = vpop.f32.mrb[0].mxu0
      %v3676 = vadd.f32 %v3587, %v3675
      %v3677 = vpop.f32.mrb[0].mxu0
      %v3678 = vadd.f32 %v3589, %v3677
      %3679 = vmatprep.mubr.f32.mxu0 0.0
      %3680 = vmatmul.mubr.f32.gmra.mrb[0].mxu0 %v3506
      %v3681 = vpop.f32.mrb[0].mxu0
      %v3682 = vadd.f32 %v3593, %v3681
      %v3683 = vpop.f32.mrb[0].mxu0
      %v3684 = vadd.f32 %v3595, %v3683
      %3685 = vdwg.mxu0
      %3686 = vmatprep.subr.mxu0 0.0
      %3687 = vmatpush1.msra.mxu0 %v2188
      %3688 = vmatprep.subr.mxu0 0.0
      %3689 = vmatpush1.msra.mxu0 %v2189
      %3690 = vmatprep.subr.mxu0 0.0
      %3691 = vmatpush1.msra.mxu0 %v2190
      %3692 = vmatprep.subr.mxu0 0.0
      %3693 = vmatpush1.msra.mxu0 %v2191
      %3694 = vmatprep.subr.mxu0 0.0
      %3695 = vmatpush1.msra.mxu0 %v2224
      %3696 = vmatprep.subr.mxu0 0.0
      %3697 = vmatpush1.msra.mxu0 %v2225
      %3698 = vmatprep.subr.mxu0 0.0
      %3699 = vmatpush1.msra.mxu0 %v2226
      %3700 = vmatprep.subr.mxu0 0.0
      %3701 = vmatpush1.msra.mxu0 %v2227
      %3702 = vmatprep.subr.mxu0 0.0
      %3703 = vmatpush1.msra.mxu0 %v2260
      %3704 = vmatprep.subr.mxu0 0.0
      %3705 = vmatpush1.msra.mxu0 %v2261
      %3706 = vmatprep.subr.mxu0 0.0
      %3707 = vmatpush1.msra.mxu0 %v2262
      %3708 = vmatprep.subr.mxu0 0.0
      %3709 = vmatpush1.msra.mxu0 %v2263
      %3710 = vmatprep.subr.mxu0 0.0
      %3711 = vmatpush1.msra.mxu0 %v2296
      %3712 = vmatprep.subr.mxu0 0.0
      %3713 = vmatpush1.msra.mxu0 %v2297
      %3714 = vmatprep.subr.mxu0 0.0
      %3715 = vmatpush1.msra.mxu0 %v2298
      %3716 = vmatprep.subr.mxu0 0.0
      %3717 = vmatpush1.msra.mxu0 %v2299
      %3718 = vmatprep.subr.mxu0 0.0
      %3719 = vmatpush1.msra.mxu0 %v2154
      %3720 = vmatprep.subr.mxu0 0.0
      %3721 = vmatpush1.msra.mxu0 %v2157
      %3722 = vmatprep.subr.mxu0 0.0
      %3723 = vmatpush1.msra.mxu0 %v2160
      %3724 = vmatprep.subr.mxu0 0.0
      %3725 = vmatpush1.msra.mxu0 %v2163
      %3726 = vmatprep.subr.mxu0 0.0
      %3727 = vmatpush1.msra.mxu0 %v2340
      %3728 = vmatprep.subr.mxu0 0.0
      %3729 = vmatpush1.msra.mxu0 %v2341
      %3730 = vmatprep.subr.mxu0 0.0
      %3731 = vmatpush1.msra.mxu0 %v2342
      %3732 = vmatprep.subr.mxu0 0.0
      %3733 = vmatpush1.msra.mxu0 %v2343
      %3734 = vmatprep.subr.mxu0 0.0
      %3735 = vmatpush1.msra.mxu0 %v2376
      %3736 = vmatprep.subr.mxu0 0.0
      %3737 = vmatpush1.msra.mxu0 %v2377
      %3738 = vmatprep.subr.mxu0 0.0
      %3739 = vmatpush1.msra.mxu0 %v2378
      %3740 = vmatprep.subr.mxu0 0.0
      %3741 = vmatpush1.msra.mxu0 %v2379
      %3742 = vmatprep.subr.mxu0 0.0
      %3743 = vmatpush1.msra.mxu0 %v2412
      %3744 = vmatprep.subr.mxu0 0.0
      %3745 = vmatpush1.msra.mxu0 %v2413
      %3746 = vmatprep.subr.mxu0 0.0
      %3747 = vmatpush1.msra.mxu0 %v2414
      %3748 = vmatprep.subr.mxu0 0.0
      %3749 = vmatpush1.msra.mxu0 %v2415
      %3750 = vmatprep.mubr.f32.mxu0 %v3113
      %3751 = vmatmul.mubr.f32.gmra.mrb[0].mxu0 %v3112
      %v3752 = vpop.f32.mrb[0].mxu0
      %v3753 = vadd.f32 %v3478, %v3752
      %v3754 = vpop.f32.mrb[0].mxu0
      %3755 = vmatprep.mubr.f32.mxu0 %v3116
      %3756 = vmatmul.mubr.f32.gmra.mrb[0].mxu0 %v3115
      %v3757 = vpop.f32.mrb[0].mxu0
      %v3758 = vadd.f32 %v3483, %v3757
      %v3759 = vpop.f32.mrb[0].mxu0
      %3760 = vmatprep.mubr.f32.mxu0 %v3119
      %3761 = vmatmul.mubr.f32.gmra.mrb[0].mxu0 %v3118
      %v3762 = vpop.f32.mrb[0].mxu0
      %v3763 = vadd.f32 %v3488, %v3762
      %v3764 = vpop.f32.mrb[0].mxu0
      %3765 = vmatprep.mubr.f32.mxu0 %v3122
      %3766 = vmatmul.mubr.f32.gmra.mrb[0].mxu0 %v3121
      %v3767 = vpop.f32.mrb[0].mxu0
      %v3768 = vadd.f32 %v3493, %v3767
      %v3769 = vpop.f32.mrb[0].mxu0
      %3770 = vdwg.mxu0
      %3771 = vmatprep.subr.mxu0 0.0
      %3772 = vmatpush1.msra.mxu0 %v2448
      %3773 = vmatprep.subr.mxu0 0.0
      %3774 = vmatpush1.msra.mxu0 %v2449
      %3775 = vmatprep.subr.mxu0 0.0
      %3776 = vmatpush1.msra.mxu0 %v2450
      %3777 = vmatprep.subr.mxu0 0.0
      %3778 = vmatpush1.msra.mxu0 %v2451
      %3779 = vmatprep.subr.mxu0 0.0
      %3780 = vmatpush1.msra.mxu0 0.0
      %3781 = vmatprep.subr.mxu0 0.0
      %3782 = vmatpush1.msra.mxu0 0.0
      %3783 = vmatprep.subr.mxu0 0.0
      %3784 = vmatpush1.msra.mxu0 0.0
      %3785 = vmatprep.subr.mxu0 0.0
      %3786 = vmatpush1.msra.mxu0 0.0
      %3787 = vmatprep.subr.mxu0 0.0
      %3788 = vmatpush1.msra.mxu0 0.0
      %3789 = vmatprep.subr.mxu0 0.0
      %3790 = vmatpush1.msra.mxu0 0.0
      %3791 = vmatprep.subr.mxu0 0.0
      %3792 = vmatpush1.msra.mxu0 0.0
      %3793 = vmatprep.subr.mxu0 0.0
      %3794 = vmatpush1.msra.mxu0 0.0
      %3795 = vmatprep.subr.mxu0 0.0
      %3796 = vmatpush1.msra.mxu0 0.0
      %3797 = vmatprep.subr.mxu0 0.0
      %3798 = vmatpush1.msra.mxu0 0.0
      %3799 = vmatprep.subr.mxu0 0.0
      %3800 = vmatpush1.msra.mxu0 0.0
      %3801 = vmatprep.subr.mxu0 0.0
      %3802 = vmatpush1.msra.mxu0 0.0
      %3803 = vmatprep.subr.mxu0 0.0
      %3804 = vmatpush1.msra.mxu0 0.0
      %3805 = vmatprep.subr.mxu0 0.0
      %3806 = vmatpush1.msra.mxu0 0.0
      %3807 = vmatprep.subr.mxu0 0.0
      %3808 = vmatpush1.msra.mxu0 0.0
      %3809 = vmatprep.subr.mxu0 0.0
      %3810 = vmatpush1.msra.mxu0 0.0
      %3811 = vmatprep.subr.mxu0 0.0
      %3812 = vmatpush1.msra.mxu0 0.0
      %3813 = vmatprep.subr.mxu0 0.0
      %3814 = vmatpush1.msra.mxu0 0.0
      %3815 = vmatprep.subr.mxu0 0.0
      %3816 = vmatpush1.msra.mxu0 0.0
      %3817 = vmatprep.subr.mxu0 0.0
      %3818 = vmatpush1.msra.mxu0 0.0
      %3819 = vmatprep.subr.mxu0 0.0
      %3820 = vmatpush1.msra.mxu0 0.0
      %3821 = vmatprep.subr.mxu0 0.0
      %3822 = vmatpush1.msra.mxu0 0.0
      %3823 = vmatprep.subr.mxu0 0.0
      %3824 = vmatpush1.msra.mxu0 0.0
      %3825 = vmatprep.subr.mxu0 0.0
      %3826 = vmatpush1.msra.mxu0 0.0
      %3827 = vmatprep.subr.mxu0 0.0
      %3828 = vmatpush1.msra.mxu0 0.0
      %3829 = vmatprep.subr.mxu0 0.0
      %3830 = vmatpush1.msra.mxu0 0.0
      %3831 = vmatprep.subr.mxu0 0.0
      %3832 = vmatpush1.msra.mxu0 0.0
      %3833 = vmatprep.subr.mxu0 0.0
      %3834 = vmatpush1.msra.mxu0 0.0
      %3835 = vmatprep.mubr.f32.mxu0 0.0
      %3836 = vmatmul.mubr.f32.gmra.mrb[0].mxu0 %v3497
      %v3837 = vpop.f32.mrb[0].mxu0
      %v3838 = vadd.f32 %v3753, %v3837
      %v3839 = vpop.f32.mrb[0].mxu0
      %3840 = vmatprep.mubr.f32.mxu0 0.0
      %3841 = vmatmul.mubr.f32.gmra.mrb[0].mxu0 %v3500
      %v3842 = vpop.f32.mrb[0].mxu0
      %v3843 = vadd.f32 %v3758, %v3842
      %v3844 = vpop.f32.mrb[0].mxu0
      %3845 = vmatprep.mubr.f32.mxu0 0.0
      %3846 = vmatmul.mubr.f32.gmra.mrb[0].mxu0 %v3503
      %v3847 = vpop.f32.mrb[0].mxu0
      %v3848 = vadd.f32 %v3763, %v3847
      %v3849 = vpop.f32.mrb[0].mxu0
      %3850 = vmatprep.mubr.f32.mxu0 0.0
      %3851 = vmatmul.mubr.f32.gmra.mrb[0].mxu0 %v3506
      %v3852 = vpop.f32.mrb[0].mxu0
      %v3853 = vadd.f32 %v3768, %v3852
      %v3854 = vpop.f32.mrb[0].mxu0
      %3855 = vdwg.mxu0
      %v3856 = vld [vmem:[%s8] sm:$0xff]
      %v3857 = vld [vmem:[%s8 + $0x8] sm:$0xff]
      %v3858 = vld [vmem:[%s8 + $0x10] sm:$0xff]
      %v3859 = vld [vmem:[%s8 + $0x18] sm:$0xff]
      %3861 = vset.pattern.permute.xlu0 0
      %3862 = vperm.xlu0 %3861, %v3856
      %v3863 = vpop.permute.xlu0 %3862
      %3866 = vset.pattern.permute.xlu0 0
      %3867 = vperm.xlu0 %3866, %v3857
      %v3868 = vpop.permute.xlu0 %3867
      %3871 = vset.pattern.permute.xlu0 0
      %3872 = vperm.xlu0 %3871, %v3858
      %v3873 = vpop.permute.xlu0 %3872
      %3876 = vset.pattern.permute.xlu0 0
      %3877 = vperm.xlu0 %3876, %v3859
      %v3878 = vpop.permute.xlu0 %3877
      %v3880 = vadd.f32 %v3664, %v3863
      %v3881 = vadd.f32 %v3666, %v3863
      %v3882 = vadd.f32 %v3838, %v3863
      %v3883 = vadd.f32 %v3670, %v3868
      %v3884 = vadd.f32 %v3672, %v3868
      %v3885 = vadd.f32 %v3843, %v3868
      %v3886 = vadd.f32 %v3676, %v3873
      %v3887 = vadd.f32 %v3678, %v3873
      %v3888 = vadd.f32 %v3848, %v3873
      %v3889 = vadd.f32 %v3682, %v3878
      %v3890 = vadd.f32 %v3684, %v3878
      %v3891 = vadd.f32 %v3853, %v3878
      %v3892 = vmax.f32 %v3880, 0.0
      %v3893 = vmax.f32 %v3881, 0.0
      %v3894 = vmax.f32 %v3882, 0.0
      %v3895 = vmax.f32 %v3883, 0.0
      %v3896 = vmax.f32 %v3884, 0.0
      %v3897 = vmax.f32 %v3885, 0.0
      %v3898 = vmax.f32 %v3886, 0.0
      %v3899 = vmax.f32 %v3887, 0.0
      %v3900 = vmax.f32 %v3888, 0.0
      %v3901 = vmax.f32 %v3889, 0.0
      %v3902 = vmax.f32 %v3890, 0.0
      %v3903 = vmax.f32 %v3891, 0.0
      %v3904 = vmul.f32 %v3892, %v771
      %v3905 = vmul.f32 %v3893, %v775
      %v3906 = vmul.f32 %v3894, %v779
      %v3907 = vmul.f32 %v3895, %v771
      %v3908 = vmul.f32 %v3896, %v775
      %v3909 = vmul.f32 %v3897, %v779
      %v3910 = vmul.f32 %v3898, %v771
      %v3911 = vmul.f32 %v3899, %v775
      %v3912 = vmul.f32 %v3900, %v779
      %v3913 = vmul.f32 %v3901, %v771
      %v3914 = vmul.f32 %v3902, %v775
      %v3915 = vmul.f32 %v3903, %v779
      %3916 = vrot.lane.b32.xlu0 %v3904, 19
      %v3917 = vpop.permute.xlu0 %3916
      %3918 = vrot.lane.b32.xlu0 %v3907, 19
      %v3919 = vpop.permute.xlu0 %3918
      %3920 = vrot.lane.b32.xlu0 %v3910, 19
      %v3921 = vpop.permute.xlu0 %3920
      %3922 = vrot.lane.b32.xlu0 %v3913, 19
      %v3923 = vpop.permute.xlu0 %3922
      %3924 = vrot.lane.b32.xlu0 %v3905, 19
      %v3925 = vpop.permute.xlu0 %3924
      %3926 = vrot.lane.b32.xlu0 %v3908, 19
      %v3927 = vpop.permute.xlu0 %3926
      %3928 = vrot.lane.b32.xlu0 %v3911, 19
      %v3929 = vpop.permute.xlu0 %3928
      %3930 = vrot.lane.b32.xlu0 %v3914, 19
      %v3931 = vpop.permute.xlu0 %3930
      %3932 = vrot.lane.b32.xlu0 %v3906, 19
      %v3933 = vpop.permute.xlu0 %3932
      %3934 = vrot.lane.b32.xlu0 %v3909, 19
      %v3935 = vpop.permute.xlu0 %3934
      %3936 = vrot.lane.b32.xlu0 %v3912, 19
      %v3937 = vpop.permute.xlu0 %3936
      %3938 = vrot.lane.b32.xlu0 %v3915, 19
      %v3939 = vpop.permute.xlu0 %3938
      %v3940 = vsel %vm466, %v3925, %v3933
      %v3941 = vsel %vm466, %v3927, %v3935
      %v3942 = vsel %vm466, %v3929, %v3937
      %v3943 = vsel %vm466, %v3931, %v3939
      %v3944 = vsel %vm466, %v3917, %v3925
      %v3945 = vsel %vm466, %v3919, %v3927
      %v3946 = vsel %vm466, %v3921, %v3929
      %v3947 = vsel %vm466, %v3923, %v3931
      %v3948 = vsel %vm466, %v3933, %v3917
      %v3949 = vsel %vm466, %v3935, %v3919
      %v3950 = vsel %vm466, %v3937, %v3921
      %v3951 = vsel %vm466, %v3939, %v3923
      %3952 = vrot.lane.b32.xlu0 %v3904, 18
      %v3953 = vpop.permute.xlu0 %3952
      %3954 = vrot.lane.b32.xlu0 %v3907, 18
      %v3955 = vpop.permute.xlu0 %3954
      %3956 = vrot.lane.b32.xlu0 %v3910, 18
      %v3957 = vpop.permute.xlu0 %3956
      %3958 = vrot.lane.b32.xlu0 %v3913, 18
      %v3959 = vpop.permute.xlu0 %3958
      %3960 = vrot.lane.b32.xlu0 %v3905, 18
      %v3961 = vpop.permute.xlu0 %3960
      %3962 = vrot.lane.b32.xlu0 %v3908, 18
      %v3963 = vpop.permute.xlu0 %3962
      %3964 = vrot.lane.b32.xlu0 %v3911, 18
      %v3965 = vpop.permute.xlu0 %3964
      %3966 = vrot.lane.b32.xlu0 %v3914, 18
      %v3967 = vpop.permute.xlu0 %3966
      %3968 = vrot.lane.b32.xlu0 %v3906, 18
      %v3969 = vpop.permute.xlu0 %3968
      %3970 = vrot.lane.b32.xlu0 %v3909, 18
      %v3971 = vpop.permute.xlu0 %3970
      %3972 = vrot.lane.b32.xlu0 %v3912, 18
      %v3973 = vpop.permute.xlu0 %3972
      %3974 = vrot.lane.b32.xlu0 %v3915, 18
      %v3975 = vpop.permute.xlu0 %3974
      %v3976 = vsel %vm476, %v3961, %v3969
      %v3977 = vsel %vm476, %v3963, %v3971
      %v3978 = vsel %vm476, %v3965, %v3973
      %v3979 = vsel %vm476, %v3967, %v3975
      %v3980 = vsel %vm476, %v3953, %v3961
      %v3981 = vsel %vm476, %v3955, %v3963
      %v3982 = vsel %vm476, %v3957, %v3965
      %v3983 = vsel %vm476, %v3959, %v3967
      %v3984 = vsel %vm476, %v3969, %v3953
      %v3985 = vsel %vm476, %v3971, %v3955
      %v3986 = vsel %vm476, %v3973, %v3957
      %v3987 = vsel %vm476, %v3975, %v3959
      %3988 = vrot.lane.b32.xlu0 %v3904, 17
      %v3989 = vpop.permute.xlu0 %3988
      %3990 = vrot.lane.b32.xlu0 %v3907, 17
      %v3991 = vpop.permute.xlu0 %3990
      %3992 = vrot.lane.b32.xlu0 %v3910, 17
      %v3993 = vpop.permute.xlu0 %3992
      %3994 = vrot.lane.b32.xlu0 %v3913, 17
      %v3995 = vpop.permute.xlu0 %3994
      %3996 = vrot.lane.b32.xlu0 %v3905, 17
      %v3997 = vpop.permute.xlu0 %3996
      %3998 = vrot.lane.b32.xlu0 %v3908, 17
      %v3999 = vpop.permute.xlu0 %3998
      %4000 = vrot.lane.b32.xlu0 %v3911, 17
      %v4001 = vpop.permute.xlu0 %4000
      %4002 = vrot.lane.b32.xlu0 %v3914, 17
      %v4003 = vpop.permute.xlu0 %4002
      %4004 = vrot.lane.b32.xlu0 %v3906, 17
      %v4005 = vpop.permute.xlu0 %4004
      %4006 = vrot.lane.b32.xlu0 %v3909, 17
      %v4007 = vpop.permute.xlu0 %4006
      %4008 = vrot.lane.b32.xlu0 %v3912, 17
      %v4009 = vpop.permute.xlu0 %4008
      %4010 = vrot.lane.b32.xlu0 %v3915, 17
      %v4011 = vpop.permute.xlu0 %4010
      %v4012 = vsel %vm486, %v3997, %v4005
      %v4013 = vsel %vm486, %v3999, %v4007
      %v4014 = vsel %vm486, %v4001, %v4009
      %v4015 = vsel %vm486, %v4003, %v4011
      %v4016 = vsel %vm486, %v3989, %v3997
      %v4017 = vsel %vm486, %v3991, %v3999
      %v4018 = vsel %vm486, %v3993, %v4001
      %v4019 = vsel %vm486, %v3995, %v4003
      %v4020 = vsel %vm486, %v4005, %v3989
      %v4021 = vsel %vm486, %v4007, %v3991
      %v4022 = vsel %vm486, %v4009, %v3993
      %v4023 = vsel %vm486, %v4011, %v3995
      %4024 = vrot.lane.b32.xlu0 %v3904, 1
      %v4025 = vpop.permute.xlu0 %4024
      %4026 = vrot.lane.b32.xlu0 %v3907, 1
      %v4027 = vpop.permute.xlu0 %4026
      %4028 = vrot.lane.b32.xlu0 %v3910, 1
      %v4029 = vpop.permute.xlu0 %4028
      %4030 = vrot.lane.b32.xlu0 %v3913, 1
      %v4031 = vpop.permute.xlu0 %4030
      %4032 = vrot.lane.b32.xlu0 %v3905, 1
      %v4033 = vpop.permute.xlu0 %4032
      %4034 = vrot.lane.b32.xlu0 %v3908, 1
      %v4035 = vpop.permute.xlu0 %4034
      %4036 = vrot.lane.b32.xlu0 %v3911, 1
      %v4037 = vpop.permute.xlu0 %4036
      %4038 = vrot.lane.b32.xlu0 %v3914, 1
      %v4039 = vpop.permute.xlu0 %4038
      %4040 = vrot.lane.b32.xlu0 %v3906, 1
      %v4041 = vpop.permute.xlu0 %4040
      %4042 = vrot.lane.b32.xlu0 %v3909, 1
      %v4043 = vpop.permute.xlu0 %4042
      %4044 = vrot.lane.b32.xlu0 %v3912, 1
      %v4045 = vpop.permute.xlu0 %4044
      %4046 = vrot.lane.b32.xlu0 %v3915, 1
      %v4047 = vpop.permute.xlu0 %4046
      %v4048 = vsel %vm496, %v4033, %v4041
      %v4049 = vsel %vm496, %v4035, %v4043
      %v4050 = vsel %vm496, %v4037, %v4045
      %v4051 = vsel %vm496, %v4039, %v4047
      %v4052 = vsel %vm496, %v4025, %v4033
      %v4053 = vsel %vm496, %v4027, %v4035
      %v4054 = vsel %vm496, %v4029, %v4037
      %v4055 = vsel %vm496, %v4031, %v4039
      %v4056 = vsel %vm496, %v4041, %v4025
      %v4057 = vsel %vm496, %v4043, %v4027
      %v4058 = vsel %vm496, %v4045, %v4029
      %v4059 = vsel %vm496, %v4047, %v4031
      %4060 = vrot.lane.b32.xlu0 %v3904, 127
      %v4061 = vpop.permute.xlu0 %4060
      %4062 = vrot.lane.b32.xlu0 %v3907, 127
      %v4063 = vpop.permute.xlu0 %4062
      %4064 = vrot.lane.b32.xlu0 %v3910, 127
      %v4065 = vpop.permute.xlu0 %4064
      %4066 = vrot.lane.b32.xlu0 %v3913, 127
      %v4067 = vpop.permute.xlu0 %4066
      %4068 = vrot.lane.b32.xlu0 %v3905, 127
      %v4069 = vpop.permute.xlu0 %4068
      %4070 = vrot.lane.b32.xlu0 %v3908, 127
      %v4071 = vpop.permute.xlu0 %4070
      %4072 = vrot.lane.b32.xlu0 %v3911, 127
      %v4073 = vpop.permute.xlu0 %4072
      %4074 = vrot.lane.b32.xlu0 %v3914, 127
      %v4075 = vpop.permute.xlu0 %4074
      %4076 = vrot.lane.b32.xlu0 %v3906, 127
      %v4077 = vpop.permute.xlu0 %4076
      %4078 = vrot.lane.b32.xlu0 %v3909, 127
      %v4079 = vpop.permute.xlu0 %4078
      %4080 = vrot.lane.b32.xlu0 %v3912, 127
      %v4081 = vpop.permute.xlu0 %4080
      %4082 = vrot.lane.b32.xlu0 %v3915, 127
      %v4083 = vpop.permute.xlu0 %4082
      %v4084 = vsel %vm506, %v4069, %v4077
      %v4085 = vsel %vm506, %v4071, %v4079
      %v4086 = vsel %vm506, %v4073, %v4081
      %v4087 = vsel %vm506, %v4075, %v4083
      %v4088 = vsel %vm506, %v4061, %v4069
      %v4089 = vsel %vm506, %v4063, %v4071
      %v4090 = vsel %vm506, %v4065, %v4073
      %v4091 = vsel %vm506, %v4067, %v4075
      %v4092 = vsel %vm506, %v4077, %v4061
      %v4093 = vsel %vm506, %v4079, %v4063
      %v4094 = vsel %vm506, %v4081, %v4065
      %v4095 = vsel %vm506, %v4083, %v4067
      %4096 = vrot.lane.b32.xlu0 %v3904, 111
      %v4097 = vpop.permute.xlu0 %4096
      %4098 = vrot.lane.b32.xlu0 %v3907, 111
      %v4099 = vpop.permute.xlu0 %4098
      %4100 = vrot.lane.b32.xlu0 %v3910, 111
      %v4101 = vpop.permute.xlu0 %4100
      %4102 = vrot.lane.b32.xlu0 %v3913, 111
      %v4103 = vpop.permute.xlu0 %4102
      %4104 = vrot.lane.b32.xlu0 %v3905, 111
      %v4105 = vpop.permute.xlu0 %4104
      %4106 = vrot.lane.b32.xlu0 %v3908, 111
      %v4107 = vpop.permute.xlu0 %4106
      %4108 = vrot.lane.b32.xlu0 %v3911, 111
      %v4109 = vpop.permute.xlu0 %4108
      %4110 = vrot.lane.b32.xlu0 %v3914, 111
      %v4111 = vpop.permute.xlu0 %4110
      %4112 = vrot.lane.b32.xlu0 %v3906, 111
      %v4113 = vpop.permute.xlu0 %4112
      %4114 = vrot.lane.b32.xlu0 %v3909, 111
      %v4115 = vpop.permute.xlu0 %4114
      %4116 = vrot.lane.b32.xlu0 %v3912, 111
      %v4117 = vpop.permute.xlu0 %4116
      %4118 = vrot.lane.b32.xlu0 %v3915, 111
      %v4119 = vpop.permute.xlu0 %4118
      %v4120 = vsel %vm516, %v4105, %v4113
      %v4121 = vsel %vm516, %v4107, %v4115
      %v4122 = vsel %vm516, %v4109, %v4117
      %v4123 = vsel %vm516, %v4111, %v4119
      %v4124 = vsel %vm516, %v4097, %v4105
      %v4125 = vsel %vm516, %v4099, %v4107
      %v4126 = vsel %vm516, %v4101, %v4109
      %v4127 = vsel %vm516, %v4103, %v4111
      %v4128 = vsel %vm516, %v4113, %v4097
      %v4129 = vsel %vm516, %v4115, %v4099
      %v4130 = vsel %vm516, %v4117, %v4101
      %v4131 = vsel %vm516, %v4119, %v4103
      %4132 = vrot.lane.b32.xlu0 %v3904, 110
      %v4133 = vpop.permute.xlu0 %4132
      %4134 = vrot.lane.b32.xlu0 %v3907, 110
      %v4135 = vpop.permute.xlu0 %4134
      %4136 = vrot.lane.b32.xlu0 %v3910, 110
      %v4137 = vpop.permute.xlu0 %4136
      %4138 = vrot.lane.b32.xlu0 %v3913, 110
      %v4139 = vpop.permute.xlu0 %4138
      %4140 = vrot.lane.b32.xlu0 %v3905, 110
      %v4141 = vpop.permute.xlu0 %4140
      %4142 = vrot.lane.b32.xlu0 %v3908, 110
      %v4143 = vpop.permute.xlu0 %4142
      %4144 = vrot.lane.b32.xlu0 %v3911, 110
      %v4145 = vpop.permute.xlu0 %4144
      %4146 = vrot.lane.b32.xlu0 %v3914, 110
      %v4147 = vpop.permute.xlu0 %4146
      %4148 = vrot.lane.b32.xlu0 %v3906, 110
      %v4149 = vpop.permute.xlu0 %4148
      %4150 = vrot.lane.b32.xlu0 %v3909, 110
      %v4151 = vpop.permute.xlu0 %4150
      %4152 = vrot.lane.b32.xlu0 %v3912, 110
      %v4153 = vpop.permute.xlu0 %4152
      %4154 = vrot.lane.b32.xlu0 %v3915, 110
      %v4155 = vpop.permute.xlu0 %4154
      %v4156 = vsel %vm526, %v4141, %v4149
      %v4157 = vsel %vm526, %v4143, %v4151
      %v4158 = vsel %vm526, %v4145, %v4153
      %v4159 = vsel %vm526, %v4147, %v4155
      %v4160 = vsel %vm526, %v4133, %v4141
      %v4161 = vsel %vm526, %v4135, %v4143
      %v4162 = vsel %vm526, %v4137, %v4145
      %v4163 = vsel %vm526, %v4139, %v4147
      %v4164 = vsel %vm526, %v4149, %v4133
      %v4165 = vsel %vm526, %v4151, %v4135
      %v4166 = vsel %vm526, %v4153, %v4137
      %v4167 = vsel %vm526, %v4155, %v4139
      %4168 = vrot.lane.b32.xlu0 %v3904, 109
      %v4169 = vpop.permute.xlu0 %4168
      %4170 = vrot.lane.b32.xlu0 %v3907, 109
      %v4171 = vpop.permute.xlu0 %4170
      %4172 = vrot.lane.b32.xlu0 %v3910, 109
      %v4173 = vpop.permute.xlu0 %4172
      %4174 = vrot.lane.b32.xlu0 %v3913, 109
      %v4175 = vpop.permute.xlu0 %4174
      %4176 = vrot.lane.b32.xlu0 %v3905, 109
      %v4177 = vpop.permute.xlu0 %4176
      %4178 = vrot.lane.b32.xlu0 %v3908, 109
      %v4179 = vpop.permute.xlu0 %4178
      %4180 = vrot.lane.b32.xlu0 %v3911, 109
      %v4181 = vpop.permute.xlu0 %4180
      %4182 = vrot.lane.b32.xlu0 %v3914, 109
      %v4183 = vpop.permute.xlu0 %4182
      %4184 = vrot.lane.b32.xlu0 %v3906, 109
      %v4185 = vpop.permute.xlu0 %4184
      %4186 = vrot.lane.b32.xlu0 %v3909, 109
      %v4187 = vpop.permute.xlu0 %4186
      %4188 = vrot.lane.b32.xlu0 %v3912, 109
      %v4189 = vpop.permute.xlu0 %4188
      %4190 = vrot.lane.b32.xlu0 %v3915, 109
      %v4191 = vpop.permute.xlu0 %4190
      %v4192 = vsel %vm536, %v4177, %v4185
      %v4193 = vsel %vm536, %v4179, %v4187
      %v4194 = vsel %vm536, %v4181, %v4189
      %v4195 = vsel %vm536, %v4183, %v4191
      %v4196 = vsel %vm536, %v4169, %v4177
      %v4197 = vsel %vm536, %v4171, %v4179
      %v4198 = vsel %vm536, %v4173, %v4181
      %v4199 = vsel %vm536, %v4175, %v4183
      %v4200 = vsel %vm536, %v4185, %v4169
      %v4201 = vsel %vm536, %v4187, %v4171
      %v4202 = vsel %vm536, %v4189, %v4173
      %v4203 = vsel %vm536, %v4191, %v4175
      %4204 = vmatprep.subr.mxu0 %v3944
      %4205 = vmatpush1.msra.mxu0 %v3948
      %4206 = vmatprep.subr.mxu0 %v3945
      %4207 = vmatpush1.msra.mxu0 %v3949
      %4208 = vmatprep.subr.mxu0 %v3946
      %4209 = vmatpush1.msra.mxu0 %v3950
      %4210 = vmatprep.subr.mxu0 %v3947
      %4211 = vmatpush1.msra.mxu0 %v3951
      %4212 = vmatprep.subr.mxu0 %v3980
      %4213 = vmatpush1.msra.mxu0 %v3984
      %4214 = vmatprep.subr.mxu0 %v3981
      %4215 = vmatpush1.msra.mxu0 %v3985
      %4216 = vmatprep.subr.mxu0 %v3982
      %4217 = vmatpush1.msra.mxu0 %v3986
      %4218 = vmatprep.subr.mxu0 %v3983
      %4219 = vmatpush1.msra.mxu0 %v3987
      %4220 = vmatprep.subr.mxu0 %v4016
      %4221 = vmatpush1.msra.mxu0 %v4020
      %4222 = vmatprep.subr.mxu0 %v4017
      %4223 = vmatpush1.msra.mxu0 %v4021
      %4224 = vmatprep.subr.mxu0 %v4018
      %4225 = vmatpush1.msra.mxu0 %v4022
      %4226 = vmatprep.subr.mxu0 %v4019
      %4227 = vmatpush1.msra.mxu0 %v4023
      %4228 = vmatprep.subr.mxu0 %v4052
      %4229 = vmatpush1.msra.mxu0 %v4056
      %4230 = vmatprep.subr.mxu0 %v4053
      %4231 = vmatpush1.msra.mxu0 %v4057
      %4232 = vmatprep.subr.mxu0 %v4054
      %4233 = vmatpush1.msra.mxu0 %v4058
      %4234 = vmatprep.subr.mxu0 %v4055
      %4235 = vmatpush1.msra.mxu0 %v4059
      %4236 = vmatprep.subr.mxu0 %v3905
      %4237 = vmatpush1.msra.mxu0 %v3904
      %4238 = vmatprep.subr.mxu0 %v3908
      %4239 = vmatpush1.msra.mxu0 %v3907
      %4240 = vmatprep.subr.mxu0 %v3911
      %4241 = vmatpush1.msra.mxu0 %v3910
      %4242 = vmatprep.subr.mxu0 %v3914
      %4243 = vmatpush1.msra.mxu0 %v3913
      %4244 = vmatprep.subr.mxu0 %v4084
      %4245 = vmatpush1.msra.mxu0 %v4088
      %4246 = vmatprep.subr.mxu0 %v4085
      %4247 = vmatpush1.msra.mxu0 %v4089
      %4248 = vmatprep.subr.mxu0 %v4086
      %4249 = vmatpush1.msra.mxu0 %v4090
      %4250 = vmatprep.subr.mxu0 %v4087
      %4251 = vmatpush1.msra.mxu0 %v4091
      %4252 = vmatprep.subr.mxu0 %v4120
      %4253 = vmatpush1.msra.mxu0 %v4124
      %4254 = vmatprep.subr.mxu0 %v4121
      %4255 = vmatpush1.msra.mxu0 %v4125
      %4256 = vmatprep.subr.mxu0 %v4122
      %4257 = vmatpush1.msra.mxu0 %v4126
      %4258 = vmatprep.subr.mxu0 %v4123
      %4259 = vmatpush1.msra.mxu0 %v4127
      %4260 = vmatprep.subr.mxu0 %v4156
      %4261 = vmatpush1.msra.mxu0 %v4160
      %4262 = vmatprep.subr.mxu0 %v4157
      %4263 = vmatpush1.msra.mxu0 %v4161
      %4264 = vmatprep.subr.mxu0 %v4158
      %4265 = vmatpush1.msra.mxu0 %v4162
      %4266 = vmatprep.subr.mxu0 %v4159
      %4267 = vmatpush1.msra.mxu0 %v4163
      %4268 = vmatprep.mubr.f32.mxu0 %v3125
      %4269 = vmatmul.mubr.f32.gmra.mrb[0].mxu0 %v3124
      %v4270 = vpop.f32.mrb[0].mxu0
      %v4271 = vadd.f32 0.0, %v4270
      %v4272 = vpop.f32.mrb[0].mxu0
      %v4273 = vadd.f32 0.0, %v4272
      %4274 = vmatprep.mubr.f32.mxu0 %v3128
      %4275 = vmatmul.mubr.f32.gmra.mrb[0].mxu0 %v3127
      %v4276 = vpop.f32.mrb[0].mxu0
      %v4277 = vadd.f32 0.0, %v4276
      %v4278 = vpop.f32.mrb[0].mxu0
      %v4279 = vadd.f32 0.0, %v4278
      %4280 = vmatprep.mubr.f32.mxu0 %v3131
      %4281 = vmatmul.mubr.f32.gmra.mrb[0].mxu0 %v3130
      %v4282 = vpop.f32.mrb[0].mxu0
      %v4283 = vadd.f32 0.0, %v4282
      %v4284 = vpop.f32.mrb[0].mxu0
      %v4285 = vadd.f32 0.0, %v4284
      %4286 = vmatprep.mubr.f32.mxu0 %v3134
      %4287 = vmatmul.mubr.f32.gmra.mrb[0].mxu0 %v3133
      %v4288 = vpop.f32.mrb[0].mxu0
      %v4289 = vadd.f32 0.0, %v4288
      %v4290 = vpop.f32.mrb[0].mxu0
      %v4291 = vadd.f32 0.0, %v4290
      %4292 = vdwg.mxu0
      %4293 = vmatprep.subr.mxu0 %v4192
      %4294 = vmatpush1.msra.mxu0 %v4196
      %4295 = vmatprep.subr.mxu0 %v4193
      %4296 = vmatpush1.msra.mxu0 %v4197
      %4297 = vmatprep.subr.mxu0 %v4194
      %4298 = vmatpush1.msra.mxu0 %v4198
      %4299 = vmatprep.subr.mxu0 %v4195
      %4300 = vmatpush1.msra.mxu0 %v4199
      %4301 = vmatprep.subr.mxu0 0.0
      %4302 = vmatpush1.msra.mxu0 0.0
      %4303 = vmatprep.subr.mxu0 0.0
      %4304 = vmatpush1.msra.mxu0 0.0
      %4305 = vmatprep.subr.mxu0 0.0
      %4306 = vmatpush1.msra.mxu0 0.0
      %4307 = vmatprep.subr.mxu0 0.0
      %4308 = vmatpush1.msra.mxu0 0.0
      %4309 = vmatprep.subr.mxu0 0.0
      %4310 = vmatpush1.msra.mxu0 0.0
      %4311 = vmatprep.subr.mxu0 0.0
      %4312 = vmatpush1.msra.mxu0 0.0
      %4313 = vmatprep.subr.mxu0 0.0
      %4314 = vmatpush1.msra.mxu0 0.0
      %4315 = vmatprep.subr.mxu0 0.0
      %4316 = vmatpush1.msra.mxu0 0.0
      %4317 = vmatprep.subr.mxu0 0.0
      %4318 = vmatpush1.msra.mxu0 0.0
      %4319 = vmatprep.subr.mxu0 0.0
      %4320 = vmatpush1.msra.mxu0 0.0
      %4321 = vmatprep.subr.mxu0 0.0
      %4322 = vmatpush1.msra.mxu0 0.0
      %4323 = vmatprep.subr.mxu0 0.0
      %4324 = vmatpush1.msra.mxu0 0.0
      %4325 = vmatprep.subr.mxu0 0.0
      %4326 = vmatpush1.msra.mxu0 0.0
      %4327 = vmatprep.subr.mxu0 0.0
      %4328 = vmatpush1.msra.mxu0 0.0
      %4329 = vmatprep.subr.mxu0 0.0
      %4330 = vmatpush1.msra.mxu0 0.0
      %4331 = vmatprep.subr.mxu0 0.0
      %4332 = vmatpush1.msra.mxu0 0.0
      %4333 = vmatprep.subr.mxu0 0.0
      %4334 = vmatpush1.msra.mxu0 0.0
      %4335 = vmatprep.subr.mxu0 0.0
      %4336 = vmatpush1.msra.mxu0 0.0
      %4337 = vmatprep.subr.mxu0 0.0
      %4338 = vmatpush1.msra.mxu0 0.0
      %4339 = vmatprep.subr.mxu0 0.0
      %4340 = vmatpush1.msra.mxu0 0.0
      %4341 = vmatprep.subr.mxu0 0.0
      %4342 = vmatpush1.msra.mxu0 0.0
      %4343 = vmatprep.subr.mxu0 0.0
      %4344 = vmatpush1.msra.mxu0 0.0
      %4345 = vmatprep.subr.mxu0 0.0
      %4346 = vmatpush1.msra.mxu0 0.0
      %4347 = vmatprep.subr.mxu0 0.0
      %4348 = vmatpush1.msra.mxu0 0.0
      %4349 = vmatprep.subr.mxu0 0.0
      %4350 = vmatpush1.msra.mxu0 0.0
      %4351 = vmatprep.subr.mxu0 0.0
      %4352 = vmatpush1.msra.mxu0 0.0
      %4353 = vmatprep.subr.mxu0 0.0
      %4354 = vmatpush1.msra.mxu0 0.0
      %4355 = vmatprep.subr.mxu0 0.0
      %4356 = vmatpush1.msra.mxu0 0.0
      %4357 = vmatprep.mubr.f32.mxu0 0.0
      %4358 = vmatmul.mubr.f32.gmra.mrb[0].mxu0 %v3137
      %v4359 = vpop.f32.mrb[0].mxu0
      %v4360 = vadd.f32 %v4271, %v4359
      %v4361 = vpop.f32.mrb[0].mxu0
      %v4362 = vadd.f32 %v4273, %v4361
      %4363 = vmatprep.mubr.f32.mxu0 0.0
      %4364 = vmatmul.mubr.f32.gmra.mrb[0].mxu0 %v3140
      %v4365 = vpop.f32.mrb[0].mxu0
      %v4366 = vadd.f32 %v4277, %v4365
      %v4367 = vpop.f32.mrb[0].mxu0
      %v4368 = vadd.f32 %v4279, %v4367
      %4369 = vmatprep.mubr.f32.mxu0 0.0
      %4370 = vmatmul.mubr.f32.gmra.mrb[0].mxu0 %v3143
      %v4371 = vpop.f32.mrb[0].mxu0
      %v4372 = vadd.f32 %v4283, %v4371
      %v4373 = vpop.f32.mrb[0].mxu0
      %v4374 = vadd.f32 %v4285, %v4373
      %4375 = vmatprep.mubr.f32.mxu0 0.0
      %4376 = vmatmul.mubr.f32.gmra.mrb[0].mxu0 %v3146
      %v4377 = vpop.f32.mrb[0].mxu0
      %v4378 = vadd.f32 %v4289, %v4377
      %v4379 = vpop.f32.mrb[0].mxu0
      %v4380 = vadd.f32 %v4291, %v4379
      %4381 = vdwg.mxu0
      %4382 = vmatprep.subr.mxu0 0.0
      %4383 = vmatpush1.msra.mxu0 %v3940
      %4384 = vmatprep.subr.mxu0 0.0
      %4385 = vmatpush1.msra.mxu0 %v3941
      %4386 = vmatprep.subr.mxu0 0.0
      %4387 = vmatpush1.msra.mxu0 %v3942
      %4388 = vmatprep.subr.mxu0 0.0
      %4389 = vmatpush1.msra.mxu0 %v3943
      %4390 = vmatprep.subr.mxu0 0.0
      %4391 = vmatpush1.msra.mxu0 %v3976
      %4392 = vmatprep.subr.mxu0 0.0
      %4393 = vmatpush1.msra.mxu0 %v3977
      %4394 = vmatprep.subr.mxu0 0.0
      %4395 = vmatpush1.msra.mxu0 %v3978
      %4396 = vmatprep.subr.mxu0 0.0
      %4397 = vmatpush1.msra.mxu0 %v3979
      %4398 = vmatprep.subr.mxu0 0.0
      %4399 = vmatpush1.msra.mxu0 %v4012
      %4400 = vmatprep.subr.mxu0 0.0
      %4401 = vmatpush1.msra.mxu0 %v4013
      %4402 = vmatprep.subr.mxu0 0.0
      %4403 = vmatpush1.msra.mxu0 %v4014
      %4404 = vmatprep.subr.mxu0 0.0
      %4405 = vmatpush1.msra.mxu0 %v4015
      %4406 = vmatprep.subr.mxu0 0.0
      %4407 = vmatpush1.msra.mxu0 %v4048
      %4408 = vmatprep.subr.mxu0 0.0
      %4409 = vmatpush1.msra.mxu0 %v4049
      %4410 = vmatprep.subr.mxu0 0.0
      %4411 = vmatpush1.msra.mxu0 %v4050
      %4412 = vmatprep.subr.mxu0 0.0
      %4413 = vmatpush1.msra.mxu0 %v4051
      %4414 = vmatprep.subr.mxu0 0.0
      %4415 = vmatpush1.msra.mxu0 %v3906
      %4416 = vmatprep.subr.mxu0 0.0
      %4417 = vmatpush1.msra.mxu0 %v3909
      %4418 = vmatprep.subr.mxu0 0.0
      %4419 = vmatpush1.msra.mxu0 %v3912
      %4420 = vmatprep.subr.mxu0 0.0
      %4421 = vmatpush1.msra.mxu0 %v3915
      %4422 = vmatprep.subr.mxu0 0.0
      %4423 = vmatpush1.msra.mxu0 %v4092
      %4424 = vmatprep.subr.mxu0 0.0
      %4425 = vmatpush1.msra.mxu0 %v4093
      %4426 = vmatprep.subr.mxu0 0.0
      %4427 = vmatpush1.msra.mxu0 %v4094
      %4428 = vmatprep.subr.mxu0 0.0
      %4429 = vmatpush1.msra.mxu0 %v4095
      %4430 = vmatprep.subr.mxu0 0.0
      %4431 = vmatpush1.msra.mxu0 %v4128
      %4432 = vmatprep.subr.mxu0 0.0
      %4433 = vmatpush1.msra.mxu0 %v4129
      %4434 = vmatprep.subr.mxu0 0.0
      %4435 = vmatpush1.msra.mxu0 %v4130
      %4436 = vmatprep.subr.mxu0 0.0
      %4437 = vmatpush1.msra.mxu0 %v4131
      %4438 = vmatprep.subr.mxu0 0.0
      %4439 = vmatpush1.msra.mxu0 %v4164
      %4440 = vmatprep.subr.mxu0 0.0
      %4441 = vmatpush1.msra.mxu0 %v4165
      %4442 = vmatprep.subr.mxu0 0.0
      %4443 = vmatpush1.msra.mxu0 %v4166
      %4444 = vmatprep.subr.mxu0 0.0
      %4445 = vmatpush1.msra.mxu0 %v4167
      %4446 = vmatprep.mubr.f32.mxu0 %v3125
      %4447 = vmatmul.mubr.f32.gmra.mrb[0].mxu0 %v3124
      %v4448 = vpop.f32.mrb[0].mxu0
      %v4449 = vadd.f32 0.0, %v4448
      %v4450 = vpop.f32.mrb[0].mxu0
      %4451 = vmatprep.mubr.f32.mxu0 %v3128
      %4452 = vmatmul.mubr.f32.gmra.mrb[0].mxu0 %v3127
      %v4453 = vpop.f32.mrb[0].mxu0
      %v4454 = vadd.f32 0.0, %v4453
      %v4455 = vpop.f32.mrb[0].mxu0
      %4456 = vmatprep.mubr.f32.mxu0 %v3131
      %4457 = vmatmul.mubr.f32.gmra.mrb[0].mxu0 %v3130
      %v4458 = vpop.f32.mrb[0].mxu0
      %v4459 = vadd.f32 0.0, %v4458
      %v4460 = vpop.f32.mrb[0].mxu0
      %4461 = vmatprep.mubr.f32.mxu0 %v3134
      %4462 = vmatmul.mubr.f32.gmra.mrb[0].mxu0 %v3133
      %v4463 = vpop.f32.mrb[0].mxu0
      %v4464 = vadd.f32 0.0, %v4463
      %v4465 = vpop.f32.mrb[0].mxu0
      %4466 = vdwg.mxu0
      %4467 = vmatprep.subr.mxu0 0.0
      %4468 = vmatpush1.msra.mxu0 %v4200
      %4469 = vmatprep.subr.mxu0 0.0
      %4470 = vmatpush1.msra.mxu0 %v4201
      %4471 = vmatprep.subr.mxu0 0.0
      %4472 = vmatpush1.msra.mxu0 %v4202
      %4473 = vmatprep.subr.mxu0 0.0
      %4474 = vmatpush1.msra.mxu0 %v4203
      %4475 = vmatprep.subr.mxu0 0.0
      %4476 = vmatpush1.msra.mxu0 0.0
      %4477 = vmatprep.subr.mxu0 0.0
      %4478 = vmatpush1.msra.mxu0 0.0
      %4479 = vmatprep.subr.mxu0 0.0
      %4480 = vmatpush1.msra.mxu0 0.0
      %4481 = vmatprep.subr.mxu0 0.0
      %4482 = vmatpush1.msra.mxu0 0.0
      %4483 = vmatprep.subr.mxu0 0.0
      %4484 = vmatpush1.msra.mxu0 0.0
      %4485 = vmatprep.subr.mxu0 0.0
      %4486 = vmatpush1.msra.mxu0 0.0
      %4487 = vmatprep.subr.mxu0 0.0
      %4488 = vmatpush1.msra.mxu0 0.0
      %4489 = vmatprep.subr.mxu0 0.0
      %4490 = vmatpush1.msra.mxu0 0.0
      %4491 = vmatprep.subr.mxu0 0.0
      %4492 = vmatpush1.msra.mxu0 0.0
      %4493 = vmatprep.subr.mxu0 0.0
      %4494 = vmatpush1.msra.mxu0 0.0
      %4495 = vmatprep.subr.mxu0 0.0
      %4496 = vmatpush1.msra.mxu0 0.0
      %4497 = vmatprep.subr.mxu0 0.0
      %4498 = vmatpush1.msra.mxu0 0.0
      %4499 = vmatprep.subr.mxu0 0.0
      %4500 = vmatpush1.msra.mxu0 0.0
      %4501 = vmatprep.subr.mxu0 0.0
      %4502 = vmatpush1.msra.mxu0 0.0
      %4503 = vmatprep.subr.mxu0 0.0
      %4504 = vmatpush1.msra.mxu0 0.0
      %4505 = vmatprep.subr.mxu0 0.0
      %4506 = vmatpush1.msra.mxu0 0.0
      %4507 = vmatprep.subr.mxu0 0.0
      %4508 = vmatpush1.msra.mxu0 0.0
      %4509 = vmatprep.subr.mxu0 0.0
      %4510 = vmatpush1.msra.mxu0 0.0
      %4511 = vmatprep.subr.mxu0 0.0
      %4512 = vmatpush1.msra.mxu0 0.0
      %4513 = vmatprep.subr.mxu0 0.0
      %4514 = vmatpush1.msra.mxu0 0.0
      %4515 = vmatprep.subr.mxu0 0.0
      %4516 = vmatpush1.msra.mxu0 0.0
      %4517 = vmatprep.subr.mxu0 0.0
      %4518 = vmatpush1.msra.mxu0 0.0
      %4519 = vmatprep.subr.mxu0 0.0
      %4520 = vmatpush1.msra.mxu0 0.0
      %4521 = vmatprep.subr.mxu0 0.0
      %4522 = vmatpush1.msra.mxu0 0.0
      %4523 = vmatprep.subr.mxu0 0.0
      %4524 = vmatpush1.msra.mxu0 0.0
      %4525 = vmatprep.subr.mxu0 0.0
      %4526 = vmatpush1.msra.mxu0 0.0
      %4527 = vmatprep.subr.mxu0 0.0
      %4528 = vmatpush1.msra.mxu0 0.0
      %4529 = vmatprep.subr.mxu0 0.0
      %4530 = vmatpush1.msra.mxu0 0.0
      %4531 = vmatprep.mubr.f32.mxu0 0.0
      %4532 = vmatmul.mubr.f32.gmra.mrb[0].mxu0 %v3137
      %v4533 = vpop.f32.mrb[0].mxu0
      %v4534 = vadd.f32 %v4449, %v4533
      %v4535 = vpop.f32.mrb[0].mxu0
      %4536 = vmatprep.mubr.f32.mxu0 0.0
      %4537 = vmatmul.mubr.f32.gmra.mrb[0].mxu0 %v3140
      %v4538 = vpop.f32.mrb[0].mxu0
      %v4539 = vadd.f32 %v4454, %v4538
      %v4540 = vpop.f32.mrb[0].mxu0
      %4541 = vmatprep.mubr.f32.mxu0 0.0
      %4542 = vmatmul.mubr.f32.gmra.mrb[0].mxu0 %v3143
      %v4543 = vpop.f32.mrb[0].mxu0
      %v4544 = vadd.f32 %v4459, %v4543
      %v4545 = vpop.f32.mrb[0].mxu0
      %4546 = vmatprep.mubr.f32.mxu0 0.0
      %4547 = vmatmul.mubr.f32.gmra.mrb[0].mxu0 %v3146
      %v4548 = vpop.f32.mrb[0].mxu0
      %v4549 = vadd.f32 %v4464, %v4548
      %v4550 = vpop.f32.mrb[0].mxu0
      %4551 = vdwg.mxu0
      %4552 = vmatprep.subr.mxu0 %v1532
      %4553 = vmatpush1.msra.mxu0 %v1536
      %4554 = vmatprep.subr.mxu0 %v1533
      %4555 = vmatpush1.msra.mxu0 %v1537
      %4556 = vmatprep.subr.mxu0 %v1534
      %4557 = vmatpush1.msra.mxu0 %v1538
      %4558 = vmatprep.subr.mxu0 %v1535
      %4559 = vmatpush1.msra.mxu0 %v1539
      %4560 = vmatprep.subr.mxu0 %v1568
      %4561 = vmatpush1.msra.mxu0 %v1572
      %4562 = vmatprep.subr.mxu0 %v1569
      %4563 = vmatpush1.msra.mxu0 %v1573
      %4564 = vmatprep.subr.mxu0 %v1570
      %4565 = vmatpush1.msra.mxu0 %v1574
      %4566 = vmatprep.subr.mxu0 %v1571
      %4567 = vmatpush1.msra.mxu0 %v1575
      %4568 = vmatprep.subr.mxu0 %v1604
      %4569 = vmatpush1.msra.mxu0 %v1608
      %4570 = vmatprep.subr.mxu0 %v1605
      %4571 = vmatpush1.msra.mxu0 %v1609
      %4572 = vmatprep.subr.mxu0 %v1606
      %4573 = vmatpush1.msra.mxu0 %v1610
      %4574 = vmatprep.subr.mxu0 %v1607
      %4575 = vmatpush1.msra.mxu0 %v1611
      %4576 = vmatprep.subr.mxu0 %v1640
      %4577 = vmatpush1.msra.mxu0 %v1644
      %4578 = vmatprep.subr.mxu0 %v1641
      %4579 = vmatpush1.msra.mxu0 %v1645
      %4580 = vmatprep.subr.mxu0 %v1642
      %4581 = vmatpush1.msra.mxu0 %v1646
      %4582 = vmatprep.subr.mxu0 %v1643
      %4583 = vmatpush1.msra.mxu0 %v1647
      %4584 = vmatprep.subr.mxu0 %v1493
      %4585 = vmatpush1.msra.mxu0 %v1492
      %4586 = vmatprep.subr.mxu0 %v1496
      %4587 = vmatpush1.msra.mxu0 %v1495
      %4588 = vmatprep.subr.mxu0 %v1499
      %4589 = vmatpush1.msra.mxu0 %v1498
      %4590 = vmatprep.subr.mxu0 %v1502
      %4591 = vmatpush1.msra.mxu0 %v1501
      %4592 = vmatprep.subr.mxu0 %v1672
      %4593 = vmatpush1.msra.mxu0 %v1676
      %4594 = vmatprep.subr.mxu0 %v1673
      %4595 = vmatpush1.msra.mxu0 %v1677
      %4596 = vmatprep.subr.mxu0 %v1674
      %4597 = vmatpush1.msra.mxu0 %v1678
      %4598 = vmatprep.subr.mxu0 %v1675
      %4599 = vmatpush1.msra.mxu0 %v1679
      %4600 = vmatprep.subr.mxu0 %v1708
      %4601 = vmatpush1.msra.mxu0 %v1712
      %4602 = vmatprep.subr.mxu0 %v1709
      %4603 = vmatpush1.msra.mxu0 %v1713
      %4604 = vmatprep.subr.mxu0 %v1710
      %4605 = vmatpush1.msra.mxu0 %v1714
      %4606 = vmatprep.subr.mxu0 %v1711
      %4607 = vmatpush1.msra.mxu0 %v1715
      %4608 = vmatprep.subr.mxu0 %v1744
      %4609 = vmatpush1.msra.mxu0 %v1748
      %4610 = vmatprep.subr.mxu0 %v1745
      %4611 = vmatpush1.msra.mxu0 %v1749
      %4612 = vmatprep.subr.mxu0 %v1746
      %4613 = vmatpush1.msra.mxu0 %v1750
      %4614 = vmatprep.subr.mxu0 %v1747
      %4615 = vmatpush1.msra.mxu0 %v1751
      %4616 = vmatprep.mubr.f32.mxu0 %v3113
      %4617 = vmatmul.mubr.f32.gmra.mrb[0].mxu0 %v3112
      %v4618 = vpop.f32.mrb[0].mxu0
      %v4619 = vadd.f32 %v4360, %v4618
      %v4620 = vpop.f32.mrb[0].mxu0
      %v4621 = vadd.f32 %v4362, %v4620
      %4622 = vmatprep.mubr.f32.mxu0 %v3116
      %4623 = vmatmul.mubr.f32.gmra.mrb[0].mxu0 %v3115
      %v4624 = vpop.f32.mrb[0].mxu0
      %v4625 = vadd.f32 %v4366, %v4624
      %v4626 = vpop.f32.mrb[0].mxu0
      %v4627 = vadd.f32 %v4368, %v4626
      %4628 = vmatprep.mubr.f32.mxu0 %v3119
      %4629 = vmatmul.mubr.f32.gmra.mrb[0].mxu0 %v3118
      %v4630 = vpop.f32.mrb[0].mxu0
      %v4631 = vadd.f32 %v4372, %v4630
      %v4632 = vpop.f32.mrb[0].mxu0
      %v4633 = vadd.f32 %v4374, %v4632
      %4634 = vmatprep.mubr.f32.mxu0 %v3122
      %4635 = vmatmul.mubr.f32.gmra.mrb[0].mxu0 %v3121
      %v4636 = vpop.f32.mrb[0].mxu0
      %v4637 = vadd.f32 %v4378, %v4636
      %v4638 = vpop.f32.mrb[0].mxu0
      %v4639 = vadd.f32 %v4380, %v4638
      %4640 = vdwg.mxu0
      %4641 = vmatprep.subr.mxu0 %v1780
      %4642 = vmatpush1.msra.mxu0 %v1784
      %4643 = vmatprep.subr.mxu0 %v1781
      %4644 = vmatpush1.msra.mxu0 %v1785
      %4645 = vmatprep.subr.mxu0 %v1782
      %4646 = vmatpush1.msra.mxu0 %v1786
      %4647 = vmatprep.subr.mxu0 %v1783
      %4648 = vmatpush1.msra.mxu0 %v1787
      %4649 = vmatprep.subr.mxu0 0.0
      %4650 = vmatpush1.msra.mxu0 0.0
      %4651 = vmatprep.subr.mxu0 0.0
      %4652 = vmatpush1.msra.mxu0 0.0
      %4653 = vmatprep.subr.mxu0 0.0
      %4654 = vmatpush1.msra.mxu0 0.0
      %4655 = vmatprep.subr.mxu0 0.0
      %4656 = vmatpush1.msra.mxu0 0.0
      %4657 = vmatprep.subr.mxu0 0.0
      %4658 = vmatpush1.msra.mxu0 0.0
      %4659 = vmatprep.subr.mxu0 0.0
      %4660 = vmatpush1.msra.mxu0 0.0
      %4661 = vmatprep.subr.mxu0 0.0
      %4662 = vmatpush1.msra.mxu0 0.0
      %4663 = vmatprep.subr.mxu0 0.0
      %4664 = vmatpush1.msra.mxu0 0.0
      %4665 = vmatprep.subr.mxu0 0.0
      %4666 = vmatpush1.msra.mxu0 0.0
      %4667 = vmatprep.subr.mxu0 0.0
      %4668 = vmatpush1.msra.mxu0 0.0
      %4669 = vmatprep.subr.mxu0 0.0
      %4670 = vmatpush1.msra.mxu0 0.0
      %4671 = vmatprep.subr.mxu0 0.0
      %4672 = vmatpush1.msra.mxu0 0.0
      %4673 = vmatprep.subr.mxu0 0.0
      %4674 = vmatpush1.msra.mxu0 0.0
      %4675 = vmatprep.subr.mxu0 0.0
      %4676 = vmatpush1.msra.mxu0 0.0
      %4677 = vmatprep.subr.mxu0 0.0
      %4678 = vmatpush1.msra.mxu0 0.0
      %4679 = vmatprep.subr.mxu0 0.0
      %4680 = vmatpush1.msra.mxu0 0.0
      %4681 = vmatprep.subr.mxu0 0.0
      %4682 = vmatpush1.msra.mxu0 0.0
      %4683 = vmatprep.subr.mxu0 0.0
      %4684 = vmatpush1.msra.mxu0 0.0
      %4685 = vmatprep.subr.mxu0 0.0
      %4686 = vmatpush1.msra.mxu0 0.0
      %4687 = vmatprep.subr.mxu0 0.0
      %4688 = vmatpush1.msra.mxu0 0.0
      %4689 = vmatprep.subr.mxu0 0.0
      %4690 = vmatpush1.msra.mxu0 0.0
      %4691 = vmatprep.subr.mxu0 0.0
      %4692 = vmatpush1.msra.mxu0 0.0
      %4693 = vmatprep.subr.mxu0 0.0
      %4694 = vmatpush1.msra.mxu0 0.0
      %4695 = vmatprep.subr.mxu0 0.0
      %4696 = vmatpush1.msra.mxu0 0.0
      %4697 = vmatprep.subr.mxu0 0.0
      %4698 = vmatpush1.msra.mxu0 0.0
      %4699 = vmatprep.subr.mxu0 0.0
      %4700 = vmatpush1.msra.mxu0 0.0
      %4701 = vmatprep.subr.mxu0 0.0
      %4702 = vmatpush1.msra.mxu0 0.0
      %4703 = vmatprep.subr.mxu0 0.0
      %4704 = vmatpush1.msra.mxu0 0.0
      %4705 = vmatprep.mubr.f32.mxu0 0.0
      %4706 = vmatmul.mubr.f32.gmra.mrb[0].mxu0 %v3497
      %v4707 = vpop.f32.mrb[0].mxu0
      %v4708 = vadd.f32 %v4619, %v4707
      %v4709 = vpop.f32.mrb[0].mxu0
      %v4710 = vadd.f32 %v4621, %v4709
      %4711 = vmatprep.mubr.f32.mxu0 0.0
      %4712 = vmatmul.mubr.f32.gmra.mrb[0].mxu0 %v3500
      %v4713 = vpop.f32.mrb[0].mxu0
      %v4714 = vadd.f32 %v4625, %v4713
      %v4715 = vpop.f32.mrb[0].mxu0
      %v4716 = vadd.f32 %v4627, %v4715
      %4717 = vmatprep.mubr.f32.mxu0 0.0
      %4718 = vmatmul.mubr.f32.gmra.mrb[0].mxu0 %v3503
      %v4719 = vpop.f32.mrb[0].mxu0
      %v4720 = vadd.f32 %v4631, %v4719
      %v4721 = vpop.f32.mrb[0].mxu0
      %v4722 = vadd.f32 %v4633, %v4721
      %4723 = vmatprep.mubr.f32.mxu0 0.0
      %4724 = vmatmul.mubr.f32.gmra.mrb[0].mxu0 %v3506
      %v4725 = vpop.f32.mrb[0].mxu0
      %v4726 = vadd.f32 %v4637, %v4725
      %v4727 = vpop.f32.mrb[0].mxu0
      %v4728 = vadd.f32 %v4639, %v4727
      %4729 = vdwg.mxu0
      %4730 = vmatprep.subr.mxu0 0.0
      %4731 = vmatpush1.msra.mxu0 %v1528
      %4732 = vmatprep.subr.mxu0 0.0
      %4733 = vmatpush1.msra.mxu0 %v1529
      %4734 = vmatprep.subr.mxu0 0.0
      %4735 = vmatpush1.msra.mxu0 %v1530
      %4736 = vmatprep.subr.mxu0 0.0
      %4737 = vmatpush1.msra.mxu0 %v1531
      %4738 = vmatprep.subr.mxu0 0.0
      %4739 = vmatpush1.msra.mxu0 %v1564
      %4740 = vmatprep.subr.mxu0 0.0
      %4741 = vmatpush1.msra.mxu0 %v1565
      %4742 = vmatprep.subr.mxu0 0.0
      %4743 = vmatpush1.msra.mxu0 %v1566
      %4744 = vmatprep.subr.mxu0 0.0
      %4745 = vmatpush1.msra.mxu0 %v1567
      %4746 = vmatprep.subr.mxu0 0.0
      %4747 = vmatpush1.msra.mxu0 %v1600
      %4748 = vmatprep.subr.mxu0 0.0
      %4749 = vmatpush1.msra.mxu0 %v1601
      %4750 = vmatprep.subr.mxu0 0.0
      %4751 = vmatpush1.msra.mxu0 %v1602
      %4752 = vmatprep.subr.mxu0 0.0
      %4753 = vmatpush1.msra.mxu0 %v1603
      %4754 = vmatprep.subr.mxu0 0.0
      %4755 = vmatpush1.msra.mxu0 %v1636
      %4756 = vmatprep.subr.mxu0 0.0
      %4757 = vmatpush1.msra.mxu0 %v1637
      %4758 = vmatprep.subr.mxu0 0.0
      %4759 = vmatpush1.msra.mxu0 %v1638
      %4760 = vmatprep.subr.mxu0 0.0
      %4761 = vmatpush1.msra.mxu0 %v1639
      %4762 = vmatprep.subr.mxu0 0.0
      %4763 = vmatpush1.msra.mxu0 %v1494
      %4764 = vmatprep.subr.mxu0 0.0
      %4765 = vmatpush1.msra.mxu0 %v1497
      %4766 = vmatprep.subr.mxu0 0.0
      %4767 = vmatpush1.msra.mxu0 %v1500
      %4768 = vmatprep.subr.mxu0 0.0
      %4769 = vmatpush1.msra.mxu0 %v1503
      %4770 = vmatprep.subr.mxu0 0.0
      %4771 = vmatpush1.msra.mxu0 %v1680
      %4772 = vmatprep.subr.mxu0 0.0
      %4773 = vmatpush1.msra.mxu0 %v1681
      %4774 = vmatprep.subr.mxu0 0.0
      %4775 = vmatpush1.msra.mxu0 %v1682
      %4776 = vmatprep.subr.mxu0 0.0
      %4777 = vmatpush1.msra.mxu0 %v1683
      %4778 = vmatprep.subr.mxu0 0.0
      %4779 = vmatpush1.msra.mxu0 %v1716
      %4780 = vmatprep.subr.mxu0 0.0
      %4781 = vmatpush1.msra.mxu0 %v1717
      %4782 = vmatprep.subr.mxu0 0.0
      %4783 = vmatpush1.msra.mxu0 %v1718
      %4784 = vmatprep.subr.mxu0 0.0
      %4785 = vmatpush1.msra.mxu0 %v1719
      %4786 = vmatprep.subr.mxu0 0.0
      %4787 = vmatpush1.msra.mxu0 %v1752
      %4788 = vmatprep.subr.mxu0 0.0
      %4789 = vmatpush1.msra.mxu0 %v1753
      %4790 = vmatprep.subr.mxu0 0.0
      %4791 = vmatpush1.msra.mxu0 %v1754
      %4792 = vmatprep.subr.mxu0 0.0
      %4793 = vmatpush1.msra.mxu0 %v1755
      %4794 = vmatprep.mubr.f32.mxu0 %v3113
      %4795 = vmatmul.mubr.f32.gmra.mrb[0].mxu0 %v3112
      %v4796 = vpop.f32.mrb[0].mxu0
      %v4797 = vadd.f32 %v4534, %v4796
      %v4798 = vpop.f32.mrb[0].mxu0
      %4799 = vmatprep.mubr.f32.mxu0 %v3116
      %4800 = vmatmul.mubr.f32.gmra.mrb[0].mxu0 %v3115
      %v4801 = vpop.f32.mrb[0].mxu0
      %v4802 = vadd.f32 %v4539, %v4801
      %v4803 = vpop.f32.mrb[0].mxu0
      %4804 = vmatprep.mubr.f32.mxu0 %v3119
      %4805 = vmatmul.mubr.f32.gmra.mrb[0].mxu0 %v3118
      %v4806 = vpop.f32.mrb[0].mxu0
      %v4807 = vadd.f32 %v4544, %v4806
      %v4808 = vpop.f32.mrb[0].mxu0
      %4809 = vmatprep.mubr.f32.mxu0 %v3122
      %4810 = vmatmul.mubr.f32.gmra.mrb[0].mxu0 %v3121
      %v4811 = vpop.f32.mrb[0].mxu0
      %v4812 = vadd.f32 %v4549, %v4811
      %v4813 = vpop.f32.mrb[0].mxu0
      %4814 = vdwg.mxu0
      %4815 = vmatprep.subr.mxu0 0.0
      %4816 = vmatpush1.msra.mxu0 %v1788
      %4817 = vmatprep.subr.mxu0 0.0
      %4818 = vmatpush1.msra.mxu0 %v1789
      %4819 = vmatprep.subr.mxu0 0.0
      %4820 = vmatpush1.msra.mxu0 %v1790
      %4821 = vmatprep.subr.mxu0 0.0
      %4822 = vmatpush1.msra.mxu0 %v1791
      %4823 = vmatprep.subr.mxu0 0.0
      %4824 = vmatpush1.msra.mxu0 0.0
      %4825 = vmatprep.subr.mxu0 0.0
      %4826 = vmatpush1.msra.mxu0 0.0
      %4827 = vmatprep.subr.mxu0 0.0
      %4828 = vmatpush1.msra.mxu0 0.0
      %4829 = vmatprep.subr.mxu0 0.0
      %4830 = vmatpush1.msra.mxu0 0.0
      %4831 = vmatprep.subr.mxu0 0.0
      %4832 = vmatpush1.msra.mxu0 0.0
      %4833 = vmatprep.subr.mxu0 0.0
      %4834 = vmatpush1.msra.mxu0 0.0
      %4835 = vmatprep.subr.mxu0 0.0
      %4836 = vmatpush1.msra.mxu0 0.0
      %4837 = vmatprep.subr.mxu0 0.0
      %4838 = vmatpush1.msra.mxu0 0.0
      %4839 = vmatprep.subr.mxu0 0.0
      %4840 = vmatpush1.msra.mxu0 0.0
      %4841 = vmatprep.subr.mxu0 0.0
      %4842 = vmatpush1.msra.mxu0 0.0
      %4843 = vmatprep.subr.mxu0 0.0
      %4844 = vmatpush1.msra.mxu0 0.0
      %4845 = vmatprep.subr.mxu0 0.0
      %4846 = vmatpush1.msra.mxu0 0.0
      %4847 = vmatprep.subr.mxu0 0.0
      %4848 = vmatpush1.msra.mxu0 0.0
      %4849 = vmatprep.subr.mxu0 0.0
      %4850 = vmatpush1.msra.mxu0 0.0
      %4851 = vmatprep.subr.mxu0 0.0
      %4852 = vmatpush1.msra.mxu0 0.0
      %4853 = vmatprep.subr.mxu0 0.0
      %4854 = vmatpush1.msra.mxu0 0.0
      %4855 = vmatprep.subr.mxu0 0.0
      %4856 = vmatpush1.msra.mxu0 0.0
      %4857 = vmatprep.subr.mxu0 0.0
      %4858 = vmatpush1.msra.mxu0 0.0
      %4859 = vmatprep.subr.mxu0 0.0
      %4860 = vmatpush1.msra.mxu0 0.0
      %4861 = vmatprep.subr.mxu0 0.0
      %4862 = vmatpush1.msra.mxu0 0.0
      %4863 = vmatprep.subr.mxu0 0.0
      %4864 = vmatpush1.msra.mxu0 0.0
      %4865 = vmatprep.subr.mxu0 0.0
      %4866 = vmatpush1.msra.mxu0 0.0
      %4867 = vmatprep.subr.mxu0 0.0
      %4868 = vmatpush1.msra.mxu0 0.0
      %4869 = vmatprep.subr.mxu0 0.0
      %4870 = vmatpush1.msra.mxu0 0.0
      %4871 = vmatprep.subr.mxu0 0.0
      %4872 = vmatpush1.msra.mxu0 0.0
      %4873 = vmatprep.subr.mxu0 0.0
      %4874 = vmatpush1.msra.mxu0 0.0
      %4875 = vmatprep.subr.mxu0 0.0
      %4876 = vmatpush1.msra.mxu0 0.0
      %4877 = vmatprep.subr.mxu0 0.0
      %4878 = vmatpush1.msra.mxu0 0.0
      %4879 = vmatprep.mubr.f32.mxu0 0.0
      %4880 = vmatmul.mubr.f32.gmra.mrb[0].mxu0 %v3497
      %v4881 = vpop.f32.mrb[0].mxu0
      %v4882 = vadd.f32 %v4797, %v4881
      %v4883 = vpop.f32.mrb[0].mxu0
      %4884 = vmatprep.mubr.f32.mxu0 0.0
      %4885 = vmatmul.mubr.f32.gmra.mrb[0].mxu0 %v3500
      %v4886 = vpop.f32.mrb[0].mxu0
      %v4887 = vadd.f32 %v4802, %v4886
      %v4888 = vpop.f32.mrb[0].mxu0
      %4889 = vmatprep.mubr.f32.mxu0 0.0
      %4890 = vmatmul.mubr.f32.gmra.mrb[0].mxu0 %v3503
      %v4891 = vpop.f32.mrb[0].mxu0
      %v4892 = vadd.f32 %v4807, %v4891
      %v4893 = vpop.f32.mrb[0].mxu0
      %4894 = vmatprep.mubr.f32.mxu0 0.0
      %4895 = vmatmul.mubr.f32.gmra.mrb[0].mxu0 %v3506
      %v4896 = vpop.f32.mrb[0].mxu0
      %v4897 = vadd.f32 %v4812, %v4896
      %v4898 = vpop.f32.mrb[0].mxu0
      %4899 = vdwg.mxu0
      %v4900 = vadd.f32 %v4708, %v3863
      %v4901 = vadd.f32 %v4710, %v3863
      %v4902 = vadd.f32 %v4882, %v3863
      %v4903 = vadd.f32 %v4714, %v3868
      %v4904 = vadd.f32 %v4716, %v3868
      %v4905 = vadd.f32 %v4887, %v3868
      %v4906 = vadd.f32 %v4720, %v3873
      %v4907 = vadd.f32 %v4722, %v3873
      %v4908 = vadd.f32 %v4892, %v3873
      %v4909 = vadd.f32 %v4726, %v3878
      %v4910 = vadd.f32 %v4728, %v3878
      %v4911 = vadd.f32 %v4897, %v3878
      %v4912 = vmax.f32 %v4900, 0.0
      %v4913 = vmax.f32 %v4901, 0.0
      %v4914 = vmax.f32 %v4902, 0.0
      %v4915 = vmax.f32 %v4903, 0.0
      %v4916 = vmax.f32 %v4904, 0.0
      %v4917 = vmax.f32 %v4905, 0.0
      %v4918 = vmax.f32 %v4906, 0.0
      %v4919 = vmax.f32 %v4907, 0.0
      %v4920 = vmax.f32 %v4908, 0.0
      %v4921 = vmax.f32 %v4909, 0.0
      %v4922 = vmax.f32 %v4910, 0.0
      %v4923 = vmax.f32 %v4911, 0.0
      %v4924 = vmul.f32 %v4912, %v771
      %v4925 = vmul.f32 %v4913, %v775
      %v4926 = vmul.f32 %v4914, %v779
      %v4927 = vmul.f32 %v4915, %v771
      %v4928 = vmul.f32 %v4916, %v775
      %v4929 = vmul.f32 %v4917, %v779
      %v4930 = vmul.f32 %v4918, %v771
      %v4931 = vmul.f32 %v4919, %v775
      %v4932 = vmul.f32 %v4920, %v779
      %v4933 = vmul.f32 %v4921, %v771
      %v4934 = vmul.f32 %v4922, %v775
      %v4935 = vmul.f32 %v4923, %v779
      %4936 = vrot.lane.b32.xlu0 %v4924, 19
      %v4937 = vpop.permute.xlu0 %4936
      %4938 = vrot.lane.b32.xlu0 %v4927, 19
      %v4939 = vpop.permute.xlu0 %4938
      %4940 = vrot.lane.b32.xlu0 %v4930, 19
      %v4941 = vpop.permute.xlu0 %4940
      %4942 = vrot.lane.b32.xlu0 %v4933, 19
      %v4943 = vpop.permute.xlu0 %4942
      %4944 = vrot.lane.b32.xlu0 %v4925, 19
      %v4945 = vpop.permute.xlu0 %4944
      %4946 = vrot.lane.b32.xlu0 %v4928, 19
      %v4947 = vpop.permute.xlu0 %4946
      %4948 = vrot.lane.b32.xlu0 %v4931, 19
      %v4949 = vpop.permute.xlu0 %4948
      %4950 = vrot.lane.b32.xlu0 %v4934, 19
      %v4951 = vpop.permute.xlu0 %4950
      %4952 = vrot.lane.b32.xlu0 %v4926, 19
      %v4953 = vpop.permute.xlu0 %4952
      %4954 = vrot.lane.b32.xlu0 %v4929, 19
      %v4955 = vpop.permute.xlu0 %4954
      %4956 = vrot.lane.b32.xlu0 %v4932, 19
      %v4957 = vpop.permute.xlu0 %4956
      %4958 = vrot.lane.b32.xlu0 %v4935, 19
      %v4959 = vpop.permute.xlu0 %4958
      %v4960 = vsel %vm466, %v4945, %v4953
      %v4961 = vsel %vm466, %v4947, %v4955
      %v4962 = vsel %vm466, %v4949, %v4957
      %v4963 = vsel %vm466, %v4951, %v4959
      %v4964 = vsel %vm466, %v4937, %v4945
      %v4965 = vsel %vm466, %v4939, %v4947
      %v4966 = vsel %vm466, %v4941, %v4949
      %v4967 = vsel %vm466, %v4943, %v4951
      %v4968 = vsel %vm466, %v4953, %v4937
      %v4969 = vsel %vm466, %v4955, %v4939
      %v4970 = vsel %vm466, %v4957, %v4941
      %v4971 = vsel %vm466, %v4959, %v4943
      %4972 = vrot.lane.b32.xlu0 %v4924, 18
      %v4973 = vpop.permute.xlu0 %4972
      %4974 = vrot.lane.b32.xlu0 %v4927, 18
      %v4975 = vpop.permute.xlu0 %4974
      %4976 = vrot.lane.b32.xlu0 %v4930, 18
      %v4977 = vpop.permute.xlu0 %4976
      %4978 = vrot.lane.b32.xlu0 %v4933, 18
      %v4979 = vpop.permute.xlu0 %4978
      %4980 = vrot.lane.b32.xlu0 %v4925, 18
      %v4981 = vpop.permute.xlu0 %4980
      %4982 = vrot.lane.b32.xlu0 %v4928, 18
      %v4983 = vpop.permute.xlu0 %4982
      %4984 = vrot.lane.b32.xlu0 %v4931, 18
      %v4985 = vpop.permute.xlu0 %4984
      %4986 = vrot.lane.b32.xlu0 %v4934, 18
      %v4987 = vpop.permute.xlu0 %4986
      %4988 = vrot.lane.b32.xlu0 %v4926, 18
      %v4989 = vpop.permute.xlu0 %4988
      %4990 = vrot.lane.b32.xlu0 %v4929, 18
      %v4991 = vpop.permute.xlu0 %4990
      %4992 = vrot.lane.b32.xlu0 %v4932, 18
      %v4993 = vpop.permute.xlu0 %4992
      %4994 = vrot.lane.b32.xlu0 %v4935, 18
      %v4995 = vpop.permute.xlu0 %4994
      %v4996 = vsel %vm476, %v4981, %v4989
      %v4997 = vsel %vm476, %v4983, %v4991
      %v4998 = vsel %vm476, %v4985, %v4993
      %v4999 = vsel %vm476, %v4987, %v4995
      %v5000 = vsel %vm476, %v4973, %v4981
      %v5001 = vsel %vm476, %v4975, %v4983
      %v5002 = vsel %vm476, %v4977, %v4985
      %v5003 = vsel %vm476, %v4979, %v4987
      %v5004 = vsel %vm476, %v4989, %v4973
      %v5005 = vsel %vm476, %v4991, %v4975
      %v5006 = vsel %vm476, %v4993, %v4977
      %v5007 = vsel %vm476, %v4995, %v4979
      %5008 = vrot.lane.b32.xlu0 %v4924, 17
      %v5009 = vpop.permute.xlu0 %5008
      %5010 = vrot.lane.b32.xlu0 %v4927, 17
      %v5011 = vpop.permute.xlu0 %5010
      %5012 = vrot.lane.b32.xlu0 %v4930, 17
      %v5013 = vpop.permute.xlu0 %5012
      %5014 = vrot.lane.b32.xlu0 %v4933, 17
      %v5015 = vpop.permute.xlu0 %5014
      %5016 = vrot.lane.b32.xlu0 %v4925, 17
      %v5017 = vpop.permute.xlu0 %5016
      %5018 = vrot.lane.b32.xlu0 %v4928, 17
      %v5019 = vpop.permute.xlu0 %5018
      %5020 = vrot.lane.b32.xlu0 %v4931, 17
      %v5021 = vpop.permute.xlu0 %5020
      %5022 = vrot.lane.b32.xlu0 %v4934, 17
      %v5023 = vpop.permute.xlu0 %5022
      %5024 = vrot.lane.b32.xlu0 %v4926, 17
      %v5025 = vpop.permute.xlu0 %5024
      %5026 = vrot.lane.b32.xlu0 %v4929, 17
      %v5027 = vpop.permute.xlu0 %5026
      %5028 = vrot.lane.b32.xlu0 %v4932, 17
      %v5029 = vpop.permute.xlu0 %5028
      %5030 = vrot.lane.b32.xlu0 %v4935, 17
      %v5031 = vpop.permute.xlu0 %5030
      %v5032 = vsel %vm486, %v5017, %v5025
      %v5033 = vsel %vm486, %v5019, %v5027
      %v5034 = vsel %vm486, %v5021, %v5029
      %v5035 = vsel %vm486, %v5023, %v5031
      %v5036 = vsel %vm486, %v5009, %v5017
      %v5037 = vsel %vm486, %v5011, %v5019
      %v5038 = vsel %vm486, %v5013, %v5021
      %v5039 = vsel %vm486, %v5015, %v5023
      %v5040 = vsel %vm486, %v5025, %v5009
      %v5041 = vsel %vm486, %v5027, %v5011
      %v5042 = vsel %vm486, %v5029, %v5013
      %v5043 = vsel %vm486, %v5031, %v5015
      %5044 = vrot.lane.b32.xlu0 %v4924, 1
      %v5045 = vpop.permute.xlu0 %5044
      %5046 = vrot.lane.b32.xlu0 %v4927, 1
      %v5047 = vpop.permute.xlu0 %5046
      %5048 = vrot.lane.b32.xlu0 %v4930, 1
      %v5049 = vpop.permute.xlu0 %5048
      %5050 = vrot.lane.b32.xlu0 %v4933, 1
      %v5051 = vpop.permute.xlu0 %5050
      %5052 = vrot.lane.b32.xlu0 %v4925, 1
      %v5053 = vpop.permute.xlu0 %5052
      %5054 = vrot.lane.b32.xlu0 %v4928, 1
      %v5055 = vpop.permute.xlu0 %5054
      %5056 = vrot.lane.b32.xlu0 %v4931, 1
      %v5057 = vpop.permute.xlu0 %5056
      %5058 = vrot.lane.b32.xlu0 %v4934, 1
      %v5059 = vpop.permute.xlu0 %5058
      %5060 = vrot.lane.b32.xlu0 %v4926, 1
      %v5061 = vpop.permute.xlu0 %5060
      %5062 = vrot.lane.b32.xlu0 %v4929, 1
      %v5063 = vpop.permute.xlu0 %5062
      %5064 = vrot.lane.b32.xlu0 %v4932, 1
      %v5065 = vpop.permute.xlu0 %5064
      %5066 = vrot.lane.b32.xlu0 %v4935, 1
      %v5067 = vpop.permute.xlu0 %5066
      %v5068 = vsel %vm496, %v5053, %v5061
      %v5069 = vsel %vm496, %v5055, %v5063
      %v5070 = vsel %vm496, %v5057, %v5065
      %v5071 = vsel %vm496, %v5059, %v5067
      %v5072 = vsel %vm496, %v5045, %v5053
      %v5073 = vsel %vm496, %v5047, %v5055
      %v5074 = vsel %vm496, %v5049, %v5057
      %v5075 = vsel %vm496, %v5051, %v5059
      %v5076 = vsel %vm496, %v5061, %v5045
      %v5077 = vsel %vm496, %v5063, %v5047
      %v5078 = vsel %vm496, %v5065, %v5049
      %v5079 = vsel %vm496, %v5067, %v5051
      %5080 = vrot.lane.b32.xlu0 %v4924, 127
      %v5081 = vpop.permute.xlu0 %5080
      %5082 = vrot.lane.b32.xlu0 %v4927, 127
      %v5083 = vpop.permute.xlu0 %5082
      %5084 = vrot.lane.b32.xlu0 %v4930, 127
      %v5085 = vpop.permute.xlu0 %5084
      %5086 = vrot.lane.b32.xlu0 %v4933, 127
      %v5087 = vpop.permute.xlu0 %5086
      %5088 = vrot.lane.b32.xlu0 %v4925, 127
      %v5089 = vpop.permute.xlu0 %5088
      %5090 = vrot.lane.b32.xlu0 %v4928, 127
      %v5091 = vpop.permute.xlu0 %5090
      %5092 = vrot.lane.b32.xlu0 %v4931, 127
      %v5093 = vpop.permute.xlu0 %5092
      %5094 = vrot.lane.b32.xlu0 %v4934, 127
      %v5095 = vpop.permute.xlu0 %5094
      %5096 = vrot.lane.b32.xlu0 %v4926, 127
      %v5097 = vpop.permute.xlu0 %5096
      %5098 = vrot.lane.b32.xlu0 %v4929, 127
      %v5099 = vpop.permute.xlu0 %5098
      %5100 = vrot.lane.b32.xlu0 %v4932, 127
      %v5101 = vpop.permute.xlu0 %5100
      %5102 = vrot.lane.b32.xlu0 %v4935, 127
      %v5103 = vpop.permute.xlu0 %5102
      %v5104 = vsel %vm506, %v5089, %v5097
      %v5105 = vsel %vm506, %v5091, %v5099
      %v5106 = vsel %vm506, %v5093, %v5101
      %v5107 = vsel %vm506, %v5095, %v5103
      %v5108 = vsel %vm506, %v5081, %v5089
      %v5109 = vsel %vm506, %v5083, %v5091
      %v5110 = vsel %vm506, %v5085, %v5093
      %v5111 = vsel %vm506, %v5087, %v5095
      %v5112 = vsel %vm506, %v5097, %v5081
      %v5113 = vsel %vm506, %v5099, %v5083
      %v5114 = vsel %vm506, %v5101, %v5085
      %v5115 = vsel %vm506, %v5103, %v5087
      %5116 = vrot.lane.b32.xlu0 %v4924, 111
      %v5117 = vpop.permute.xlu0 %5116
      %5118 = vrot.lane.b32.xlu0 %v4927, 111
      %v5119 = vpop.permute.xlu0 %5118
      %5120 = vrot.lane.b32.xlu0 %v4930, 111
      %v5121 = vpop.permute.xlu0 %5120
      %5122 = vrot.lane.b32.xlu0 %v4933, 111
      %v5123 = vpop.permute.xlu0 %5122
      %5124 = vrot.lane.b32.xlu0 %v4925, 111
      %v5125 = vpop.permute.xlu0 %5124
      %5126 = vrot.lane.b32.xlu0 %v4928, 111
      %v5127 = vpop.permute.xlu0 %5126
      %5128 = vrot.lane.b32.xlu0 %v4931, 111
      %v5129 = vpop.permute.xlu0 %5128
      %5130 = vrot.lane.b32.xlu0 %v4934, 111
      %v5131 = vpop.permute.xlu0 %5130
      %5132 = vrot.lane.b32.xlu0 %v4926, 111
      %v5133 = vpop.permute.xlu0 %5132
      %5134 = vrot.lane.b32.xlu0 %v4929, 111
      %v5135 = vpop.permute.xlu0 %5134
      %5136 = vrot.lane.b32.xlu0 %v4932, 111
      %v5137 = vpop.permute.xlu0 %5136
      %5138 = vrot.lane.b32.xlu0 %v4935, 111
      %v5139 = vpop.permute.xlu0 %5138
      %v5140 = vsel %vm516, %v5125, %v5133
      %v5141 = vsel %vm516, %v5127, %v5135
      %v5142 = vsel %vm516, %v5129, %v5137
      %v5143 = vsel %vm516, %v5131, %v5139
      %v5144 = vsel %vm516, %v5117, %v5125
      %v5145 = vsel %vm516, %v5119, %v5127
      %v5146 = vsel %vm516, %v5121, %v5129
      %v5147 = vsel %vm516, %v5123, %v5131
      %v5148 = vsel %vm516, %v5133, %v5117
      %v5149 = vsel %vm516, %v5135, %v5119
      %v5150 = vsel %vm516, %v5137, %v5121
      %v5151 = vsel %vm516, %v5139, %v5123
      %5152 = vrot.lane.b32.xlu0 %v4924, 110
      %v5153 = vpop.permute.xlu0 %5152
      %5154 = vrot.lane.b32.xlu0 %v4927, 110
      %v5155 = vpop.permute.xlu0 %5154
      %5156 = vrot.lane.b32.xlu0 %v4930, 110
      %v5157 = vpop.permute.xlu0 %5156
      %5158 = vrot.lane.b32.xlu0 %v4933, 110
      %v5159 = vpop.permute.xlu0 %5158
      %5160 = vrot.lane.b32.xlu0 %v4925, 110
      %v5161 = vpop.permute.xlu0 %5160
      %5162 = vrot.lane.b32.xlu0 %v4928, 110
      %v5163 = vpop.permute.xlu0 %5162
      %5164 = vrot.lane.b32.xlu0 %v4931, 110
      %v5165 = vpop.permute.xlu0 %5164
      %5166 = vrot.lane.b32.xlu0 %v4934, 110
      %v5167 = vpop.permute.xlu0 %5166
      %5168 = vrot.lane.b32.xlu0 %v4926, 110
      %v5169 = vpop.permute.xlu0 %5168
      %5170 = vrot.lane.b32.xlu0 %v4929, 110
      %v5171 = vpop.permute.xlu0 %5170
      %5172 = vrot.lane.b32.xlu0 %v4932, 110
      %v5173 = vpop.permute.xlu0 %5172
      %5174 = vrot.lane.b32.xlu0 %v4935, 110
      %v5175 = vpop.permute.xlu0 %5174
      %v5176 = vsel %vm526, %v5161, %v5169
      %v5177 = vsel %vm526, %v5163, %v5171
      %v5178 = vsel %vm526, %v5165, %v5173
      %v5179 = vsel %vm526, %v5167, %v5175
      %v5180 = vsel %vm526, %v5153, %v5161
      %v5181 = vsel %vm526, %v5155, %v5163
      %v5182 = vsel %vm526, %v5157, %v5165
      %v5183 = vsel %vm526, %v5159, %v5167
      %v5184 = vsel %vm526, %v5169, %v5153
      %v5185 = vsel %vm526, %v5171, %v5155
      %v5186 = vsel %vm526, %v5173, %v5157
      %v5187 = vsel %vm526, %v5175, %v5159
      %5188 = vrot.lane.b32.xlu0 %v4924, 109
      %v5189 = vpop.permute.xlu0 %5188
      %5190 = vrot.lane.b32.xlu0 %v4927, 109
      %v5191 = vpop.permute.xlu0 %5190
      %5192 = vrot.lane.b32.xlu0 %v4930, 109
      %v5193 = vpop.permute.xlu0 %5192
      %5194 = vrot.lane.b32.xlu0 %v4933, 109
      %v5195 = vpop.permute.xlu0 %5194
      %5196 = vrot.lane.b32.xlu0 %v4925, 109
      %v5197 = vpop.permute.xlu0 %5196
      %5198 = vrot.lane.b32.xlu0 %v4928, 109
      %v5199 = vpop.permute.xlu0 %5198
      %5200 = vrot.lane.b32.xlu0 %v4931, 109
      %v5201 = vpop.permute.xlu0 %5200
      %5202 = vrot.lane.b32.xlu0 %v4934, 109
      %v5203 = vpop.permute.xlu0 %5202
      %5204 = vrot.lane.b32.xlu0 %v4926, 109
      %v5205 = vpop.permute.xlu0 %5204
      %5206 = vrot.lane.b32.xlu0 %v4929, 109
      %v5207 = vpop.permute.xlu0 %5206
      %5208 = vrot.lane.b32.xlu0 %v4932, 109
      %v5209 = vpop.permute.xlu0 %5208
      %5210 = vrot.lane.b32.xlu0 %v4935, 109
      %v5211 = vpop.permute.xlu0 %5210
      %v5212 = vsel %vm536, %v5197, %v5205
      %v5213 = vsel %vm536, %v5199, %v5207
      %v5214 = vsel %vm536, %v5201, %v5209
      %v5215 = vsel %vm536, %v5203, %v5211
      %v5216 = vsel %vm536, %v5189, %v5197
      %v5217 = vsel %vm536, %v5191, %v5199
      %v5218 = vsel %vm536, %v5193, %v5201
      %v5219 = vsel %vm536, %v5195, %v5203
      %v5220 = vsel %vm536, %v5205, %v5189
      %v5221 = vsel %vm536, %v5207, %v5191
      %v5222 = vsel %vm536, %v5209, %v5193
      %v5223 = vsel %vm536, %v5211, %v5195
      %v5224 = vld [vmem:[%s9] sm:$0xff]
      %v5225 = vld [vmem:[%s9 + $0x8] sm:$0xff]
      %v5226 = vld [vmem:[%s9 + $0x10] sm:$0xff]
      %v5227 = vld [vmem:[%s9 + $0x18] sm:$0xff]
      %v5228 = vld [vmem:[%s9 + $0x20] sm:$0xff]
      %v5229 = vld [vmem:[%s9 + $0x28] sm:$0xff]
      %v5230 = vld [vmem:[%s9 + $0x30] sm:$0xff]
      %v5231 = vld [vmem:[%s9 + $0x38] sm:$0xff]
      %v5232 = vld [vmem:[%s9 + $0x40] sm:$0xff]
      %v5233 = vld [vmem:[%s10] sm:$0xff]
      %v5234 = vld [vmem:[%s10 + $0x8] sm:$0xff]
      %v5235 = vld [vmem:[%s10 + $0x10] sm:$0xff]
      %v5236 = vld [vmem:[%s10 + $0x18] sm:$0xff]
      %v5237 = vld [vmem:[%s10 + $0x20] sm:$0xff]
      %v5238 = vld [vmem:[%s10 + $0x28] sm:$0xff]
      %v5239 = vld [vmem:[%s10 + $0x30] sm:$0xff]
      %v5240 = vld [vmem:[%s10 + $0x38] sm:$0xff]
      %v5241 = vld [vmem:[%s10 + $0x40] sm:$0xff]
      %v5243 = vsel %vm1119, %v5235, 0
      %v5246 = vsel %vm1119, %v5238, 0
      %v5249 = vsel %vm1119, %v5241, 0
      %5251 = vmatprep.subr.mxu0 %v4964
      %5252 = vmatpush1.msra.mxu0 %v4968
      %5253 = vmatprep.subr.mxu0 %v4965
      %5254 = vmatpush1.msra.mxu0 %v4969
      %5255 = vmatprep.subr.mxu0 %v4966
      %5256 = vmatpush1.msra.mxu0 %v4970
      %5257 = vmatprep.subr.mxu0 %v4967
      %5258 = vmatpush1.msra.mxu0 %v4971
      %5259 = vmatprep.subr.mxu0 %v5000
      %5260 = vmatpush1.msra.mxu0 %v5004
      %5261 = vmatprep.subr.mxu0 %v5001
      %5262 = vmatpush1.msra.mxu0 %v5005
      %5263 = vmatprep.subr.mxu0 %v5002
      %5264 = vmatpush1.msra.mxu0 %v5006
      %5265 = vmatprep.subr.mxu0 %v5003
      %5266 = vmatpush1.msra.mxu0 %v5007
      %5267 = vmatprep.subr.mxu0 %v5036
      %5268 = vmatpush1.msra.mxu0 %v5040
      %5269 = vmatprep.subr.mxu0 %v5037
      %5270 = vmatpush1.msra.mxu0 %v5041
      %5271 = vmatprep.subr.mxu0 %v5038
      %5272 = vmatpush1.msra.mxu0 %v5042
      %5273 = vmatprep.subr.mxu0 %v5039
      %5274 = vmatpush1.msra.mxu0 %v5043
      %5275 = vmatprep.subr.mxu0 %v5072
      %5276 = vmatpush1.msra.mxu0 %v5076
      %5277 = vmatprep.subr.mxu0 %v5073
      %5278 = vmatpush1.msra.mxu0 %v5077
      %5279 = vmatprep.subr.mxu0 %v5074
      %5280 = vmatpush1.msra.mxu0 %v5078
      %5281 = vmatprep.subr.mxu0 %v5075
      %5282 = vmatpush1.msra.mxu0 %v5079
      %5283 = vmatprep.subr.mxu0 %v4925
      %5284 = vmatpush1.msra.mxu0 %v4924
      %5285 = vmatprep.subr.mxu0 %v4928
      %5286 = vmatpush1.msra.mxu0 %v4927
      %5287 = vmatprep.subr.mxu0 %v4931
      %5288 = vmatpush1.msra.mxu0 %v4930
      %5289 = vmatprep.subr.mxu0 %v4934
      %5290 = vmatpush1.msra.mxu0 %v4933
      %5291 = vmatprep.subr.mxu0 %v5104
      %5292 = vmatpush1.msra.mxu0 %v5108
      %5293 = vmatprep.subr.mxu0 %v5105
      %5294 = vmatpush1.msra.mxu0 %v5109
      %5295 = vmatprep.subr.mxu0 %v5106
      %5296 = vmatpush1.msra.mxu0 %v5110
      %5297 = vmatprep.subr.mxu0 %v5107
      %5298 = vmatpush1.msra.mxu0 %v5111
      %5299 = vmatprep.subr.mxu0 %v5140
      %5300 = vmatpush1.msra.mxu0 %v5144
      %5301 = vmatprep.subr.mxu0 %v5141
      %5302 = vmatpush1.msra.mxu0 %v5145
      %5303 = vmatprep.subr.mxu0 %v5142
      %5304 = vmatpush1.msra.mxu0 %v5146
      %5305 = vmatprep.subr.mxu0 %v5143
      %5306 = vmatpush1.msra.mxu0 %v5147
      %5307 = vmatprep.subr.mxu0 %v5176
      %5308 = vmatpush1.msra.mxu0 %v5180
      %5309 = vmatprep.subr.mxu0 %v5177
      %5310 = vmatpush1.msra.mxu0 %v5181
      %5311 = vmatprep.subr.mxu0 %v5178
      %5312 = vmatpush1.msra.mxu0 %v5182
      %5313 = vmatprep.subr.mxu0 %v5179
      %5314 = vmatpush1.msra.mxu0 %v5183
      %5315 = vmatprep.mubr.f32.mxu0 %v5234
      %5316 = vmatmul.mubr.f32.gmra.mrb[0].mxu0 %v5233
      %v5317 = vpop.f32.mrb[0].mxu0
      %v5318 = vadd.f32 0.0, %v5317
      %v5319 = vpop.f32.mrb[0].mxu0
      %v5320 = vadd.f32 0.0, %v5319
      %5321 = vmatprep.mubr.f32.mxu0 %v5237
      %5322 = vmatmul.mubr.f32.gmra.mrb[0].mxu0 %v5236
      %v5323 = vpop.f32.mrb[0].mxu0
      %v5324 = vadd.f32 0.0, %v5323
      %v5325 = vpop.f32.mrb[0].mxu0
      %v5326 = vadd.f32 0.0, %v5325
      %5327 = vmatprep.mubr.f32.mxu0 %v5240
      %5328 = vmatmul.mubr.f32.gmra.mrb[0].mxu0 %v5239
      %v5329 = vpop.f32.mrb[0].mxu0
      %v5330 = vadd.f32 0.0, %v5329
      %v5331 = vpop.f32.mrb[0].mxu0
      %v5332 = vadd.f32 0.0, %v5331
      %5333 = vdwg.mxu0
      %5334 = vmatprep.subr.mxu0 %v5212
      %5335 = vmatpush1.msra.mxu0 %v5216
      %5336 = vmatprep.subr.mxu0 %v5213
      %5337 = vmatpush1.msra.mxu0 %v5217
      %5338 = vmatprep.subr.mxu0 %v5214
      %5339 = vmatpush1.msra.mxu0 %v5218
      %5340 = vmatprep.subr.mxu0 %v5215
      %5341 = vmatpush1.msra.mxu0 %v5219
      %5342 = vmatprep.subr.mxu0 0.0
      %5343 = vmatpush1.msra.mxu0 0.0
      %5344 = vmatprep.subr.mxu0 0.0
      %5345 = vmatpush1.msra.mxu0 0.0
      %5346 = vmatprep.subr.mxu0 0.0
      %5347 = vmatpush1.msra.mxu0 0.0
      %5348 = vmatprep.subr.mxu0 0.0
      %5349 = vmatpush1.msra.mxu0 0.0
      %5350 = vmatprep.subr.mxu0 0.0
      %5351 = vmatpush1.msra.mxu0 0.0
      %5352 = vmatprep.subr.mxu0 0.0
      %5353 = vmatpush1.msra.mxu0 0.0
      %5354 = vmatprep.subr.mxu0 0.0
      %5355 = vmatpush1.msra.mxu0 0.0
      %5356 = vmatprep.subr.mxu0 0.0
      %5357 = vmatpush1.msra.mxu0 0.0
      %5358 = vmatprep.subr.mxu0 0.0
      %5359 = vmatpush1.msra.mxu0 0.0
      %5360 = vmatprep.subr.mxu0 0.0
      %5361 = vmatpush1.msra.mxu0 0.0
      %5362 = vmatprep.subr.mxu0 0.0
      %5363 = vmatpush1.msra.mxu0 0.0
      %5364 = vmatprep.subr.mxu0 0.0
      %5365 = vmatpush1.msra.mxu0 0.0
      %5366 = vmatprep.subr.mxu0 0.0
      %5367 = vmatpush1.msra.mxu0 0.0
      %5368 = vmatprep.subr.mxu0 0.0
      %5369 = vmatpush1.msra.mxu0 0.0
      %5370 = vmatprep.subr.mxu0 0.0
      %5371 = vmatpush1.msra.mxu0 0.0
      %5372 = vmatprep.subr.mxu0 0.0
      %5373 = vmatpush1.msra.mxu0 0.0
      %5374 = vmatprep.subr.mxu0 0.0
      %5375 = vmatpush1.msra.mxu0 0.0
      %5376 = vmatprep.subr.mxu0 0.0
      %5377 = vmatpush1.msra.mxu0 0.0
      %5378 = vmatprep.subr.mxu0 0.0
      %5379 = vmatpush1.msra.mxu0 0.0
      %5380 = vmatprep.subr.mxu0 0.0
      %5381 = vmatpush1.msra.mxu0 0.0
      %5382 = vmatprep.subr.mxu0 0.0
      %5383 = vmatpush1.msra.mxu0 0.0
      %5384 = vmatprep.subr.mxu0 0.0
      %5385 = vmatpush1.msra.mxu0 0.0
      %5386 = vmatprep.subr.mxu0 0.0
      %5387 = vmatpush1.msra.mxu0 0.0
      %5388 = vmatprep.subr.mxu0 0.0
      %5389 = vmatpush1.msra.mxu0 0.0
      %5390 = vmatprep.subr.mxu0 0.0
      %5391 = vmatpush1.msra.mxu0 0.0
      %5392 = vmatprep.subr.mxu0 0.0
      %5393 = vmatpush1.msra.mxu0 0.0
      %5394 = vmatprep.subr.mxu0 0.0
      %5395 = vmatpush1.msra.mxu0 0.0
      %5396 = vmatprep.subr.mxu0 0.0
      %5397 = vmatpush1.msra.mxu0 0.0
      %5398 = vmatprep.mubr.f32.mxu0 0.0
      %5399 = vmatmul.mubr.f32.gmra.mrb[0].mxu0 %v5243
      %v5400 = vpop.f32.mrb[0].mxu0
      %v5401 = vadd.f32 %v5318, %v5400
      %v5402 = vpop.f32.mrb[0].mxu0
      %v5403 = vadd.f32 %v5320, %v5402
      %5404 = vmatprep.mubr.f32.mxu0 0.0
      %5405 = vmatmul.mubr.f32.gmra.mrb[0].mxu0 %v5246
      %v5406 = vpop.f32.mrb[0].mxu0
      %v5407 = vadd.f32 %v5324, %v5406
      %v5408 = vpop.f32.mrb[0].mxu0
      %v5409 = vadd.f32 %v5326, %v5408
      %5410 = vmatprep.mubr.f32.mxu0 0.0
      %5411 = vmatmul.mubr.f32.gmra.mrb[0].mxu0 %v5249
      %v5412 = vpop.f32.mrb[0].mxu0
      %v5413 = vadd.f32 %v5330, %v5412
      %v5414 = vpop.f32.mrb[0].mxu0
      %v5415 = vadd.f32 %v5332, %v5414
      %5416 = vdwg.mxu0
      %5417 = vmatprep.subr.mxu0 0.0
      %5418 = vmatpush1.msra.mxu0 %v4960
      %5419 = vmatprep.subr.mxu0 0.0
      %5420 = vmatpush1.msra.mxu0 %v4961
      %5421 = vmatprep.subr.mxu0 0.0
      %5422 = vmatpush1.msra.mxu0 %v4962
      %5423 = vmatprep.subr.mxu0 0.0
      %5424 = vmatpush1.msra.mxu0 %v4963
      %5425 = vmatprep.subr.mxu0 0.0
      %5426 = vmatpush1.msra.mxu0 %v4996
      %5427 = vmatprep.subr.mxu0 0.0
      %5428 = vmatpush1.msra.mxu0 %v4997
      %5429 = vmatprep.subr.mxu0 0.0
      %5430 = vmatpush1.msra.mxu0 %v4998
      %5431 = vmatprep.subr.mxu0 0.0
      %5432 = vmatpush1.msra.mxu0 %v4999
      %5433 = vmatprep.subr.mxu0 0.0
      %5434 = vmatpush1.msra.mxu0 %v5032
      %5435 = vmatprep.subr.mxu0 0.0
      %5436 = vmatpush1.msra.mxu0 %v5033
      %5437 = vmatprep.subr.mxu0 0.0
      %5438 = vmatpush1.msra.mxu0 %v5034
      %5439 = vmatprep.subr.mxu0 0.0
      %5440 = vmatpush1.msra.mxu0 %v5035
      %5441 = vmatprep.subr.mxu0 0.0
      %5442 = vmatpush1.msra.mxu0 %v5068
      %5443 = vmatprep.subr.mxu0 0.0
      %5444 = vmatpush1.msra.mxu0 %v5069
      %5445 = vmatprep.subr.mxu0 0.0
      %5446 = vmatpush1.msra.mxu0 %v5070
      %5447 = vmatprep.subr.mxu0 0.0
      %5448 = vmatpush1.msra.mxu0 %v5071
      %5449 = vmatprep.subr.mxu0 0.0
      %5450 = vmatpush1.msra.mxu0 %v4926
      %5451 = vmatprep.subr.mxu0 0.0
      %5452 = vmatpush1.msra.mxu0 %v4929
      %5453 = vmatprep.subr.mxu0 0.0
      %5454 = vmatpush1.msra.mxu0 %v4932
      %5455 = vmatprep.subr.mxu0 0.0
      %5456 = vmatpush1.msra.mxu0 %v4935
      %5457 = vmatprep.subr.mxu0 0.0
      %5458 = vmatpush1.msra.mxu0 %v5112
      %5459 = vmatprep.subr.mxu0 0.0
      %5460 = vmatpush1.msra.mxu0 %v5113
      %5461 = vmatprep.subr.mxu0 0.0
      %5462 = vmatpush1.msra.mxu0 %v5114
      %5463 = vmatprep.subr.mxu0 0.0
      %5464 = vmatpush1.msra.mxu0 %v5115
      %5465 = vmatprep.subr.mxu0 0.0
      %5466 = vmatpush1.msra.mxu0 %v5148
      %5467 = vmatprep.subr.mxu0 0.0
      %5468 = vmatpush1.msra.mxu0 %v5149
      %5469 = vmatprep.subr.mxu0 0.0
      %5470 = vmatpush1.msra.mxu0 %v5150
      %5471 = vmatprep.subr.mxu0 0.0
      %5472 = vmatpush1.msra.mxu0 %v5151
      %5473 = vmatprep.subr.mxu0 0.0
      %5474 = vmatpush1.msra.mxu0 %v5184
      %5475 = vmatprep.subr.mxu0 0.0
      %5476 = vmatpush1.msra.mxu0 %v5185
      %5477 = vmatprep.subr.mxu0 0.0
      %5478 = vmatpush1.msra.mxu0 %v5186
      %5479 = vmatprep.subr.mxu0 0.0
      %5480 = vmatpush1.msra.mxu0 %v5187
      %5481 = vmatprep.mubr.f32.mxu0 %v5234
      %5482 = vmatmul.mubr.f32.gmra.mrb[0].mxu0 %v5233
      %v5483 = vpop.f32.mrb[0].mxu0
      %v5484 = vadd.f32 0.0, %v5483
      %v5485 = vpop.f32.mrb[0].mxu0
      %5486 = vmatprep.mubr.f32.mxu0 %v5237
      %5487 = vmatmul.mubr.f32.gmra.mrb[0].mxu0 %v5236
      %v5488 = vpop.f32.mrb[0].mxu0
      %v5489 = vadd.f32 0.0, %v5488
      %v5490 = vpop.f32.mrb[0].mxu0
      %5491 = vmatprep.mubr.f32.mxu0 %v5240
      %5492 = vmatmul.mubr.f32.gmra.mrb[0].mxu0 %v5239
      %v5493 = vpop.f32.mrb[0].mxu0
      %v5494 = vadd.f32 0.0, %v5493
      %v5495 = vpop.f32.mrb[0].mxu0
      %5496 = vdwg.mxu0
      %5497 = vmatprep.subr.mxu0 0.0
      %5498 = vmatpush1.msra.mxu0 %v5220
      %5499 = vmatprep.subr.mxu0 0.0
      %5500 = vmatpush1.msra.mxu0 %v5221
      %5501 = vmatprep.subr.mxu0 0.0
      %5502 = vmatpush1.msra.mxu0 %v5222
      %5503 = vmatprep.subr.mxu0 0.0
      %5504 = vmatpush1.msra.mxu0 %v5223
      %5505 = vmatprep.subr.mxu0 0.0
      %5506 = vmatpush1.msra.mxu0 0.0
      %5507 = vmatprep.subr.mxu0 0.0
      %5508 = vmatpush1.msra.mxu0 0.0
      %5509 = vmatprep.subr.mxu0 0.0
      %5510 = vmatpush1.msra.mxu0 0.0
      %5511 = vmatprep.subr.mxu0 0.0
      %5512 = vmatpush1.msra.mxu0 0.0
      %5513 = vmatprep.subr.mxu0 0.0
      %5514 = vmatpush1.msra.mxu0 0.0
      %5515 = vmatprep.subr.mxu0 0.0
      %5516 = vmatpush1.msra.mxu0 0.0
      %5517 = vmatprep.subr.mxu0 0.0
      %5518 = vmatpush1.msra.mxu0 0.0
      %5519 = vmatprep.subr.mxu0 0.0
      %5520 = vmatpush1.msra.mxu0 0.0
      %5521 = vmatprep.subr.mxu0 0.0
      %5522 = vmatpush1.msra.mxu0 0.0
      %5523 = vmatprep.subr.mxu0 0.0
      %5524 = vmatpush1.msra.mxu0 0.0
      %5525 = vmatprep.subr.mxu0 0.0
      %5526 = vmatpush1.msra.mxu0 0.0
      %5527 = vmatprep.subr.mxu0 0.0
      %5528 = vmatpush1.msra.mxu0 0.0
      %5529 = vmatprep.subr.mxu0 0.0
      %5530 = vmatpush1.msra.mxu0 0.0
      %5531 = vmatprep.subr.mxu0 0.0
      %5532 = vmatpush1.msra.mxu0 0.0
      %5533 = vmatprep.subr.mxu0 0.0
      %5534 = vmatpush1.msra.mxu0 0.0
      %5535 = vmatprep.subr.mxu0 0.0
      %5536 = vmatpush1.msra.mxu0 0.0
      %5537 = vmatprep.subr.mxu0 0.0
      %5538 = vmatpush1.msra.mxu0 0.0
      %5539 = vmatprep.subr.mxu0 0.0
      %5540 = vmatpush1.msra.mxu0 0.0
      %5541 = vmatprep.subr.mxu0 0.0
      %5542 = vmatpush1.msra.mxu0 0.0
      %5543 = vmatprep.subr.mxu0 0.0
      %5544 = vmatpush1.msra.mxu0 0.0
      %5545 = vmatprep.subr.mxu0 0.0
      %5546 = vmatpush1.msra.mxu0 0.0
      %5547 = vmatprep.subr.mxu0 0.0
      %5548 = vmatpush1.msra.mxu0 0.0
      %5549 = vmatprep.subr.mxu0 0.0
      %5550 = vmatpush1.msra.mxu0 0.0
      %5551 = vmatprep.subr.mxu0 0.0
      %5552 = vmatpush1.msra.mxu0 0.0
      %5553 = vmatprep.subr.mxu0 0.0
      %5554 = vmatpush1.msra.mxu0 0.0
      %5555 = vmatprep.subr.mxu0 0.0
      %5556 = vmatpush1.msra.mxu0 0.0
      %5557 = vmatprep.subr.mxu0 0.0
      %5558 = vmatpush1.msra.mxu0 0.0
      %5559 = vmatprep.subr.mxu0 0.0
      %5560 = vmatpush1.msra.mxu0 0.0
      %5561 = vmatprep.mubr.f32.mxu0 0.0
      %5562 = vmatmul.mubr.f32.gmra.mrb[0].mxu0 %v5243
      %v5563 = vpop.f32.mrb[0].mxu0
      %v5564 = vadd.f32 %v5484, %v5563
      %v5565 = vpop.f32.mrb[0].mxu0
      %5566 = vmatprep.mubr.f32.mxu0 0.0
      %5567 = vmatmul.mubr.f32.gmra.mrb[0].mxu0 %v5246
      %v5568 = vpop.f32.mrb[0].mxu0
      %v5569 = vadd.f32 %v5489, %v5568
      %v5570 = vpop.f32.mrb[0].mxu0
      %5571 = vmatprep.mubr.f32.mxu0 0.0
      %5572 = vmatmul.mubr.f32.gmra.mrb[0].mxu0 %v5249
      %v5573 = vpop.f32.mrb[0].mxu0
      %v5574 = vadd.f32 %v5494, %v5573
      %v5575 = vpop.f32.mrb[0].mxu0
      %5576 = vdwg.mxu0
      %v5578 = vsel %vm1119, %v5226, 0
      %v5581 = vsel %vm1119, %v5229, 0
      %v5584 = vsel %vm1119, %v5232, 0
      %5586 = vmatprep.subr.mxu0 %v823
      %5587 = vmatpush1.msra.mxu0 %v827
      %5588 = vmatprep.subr.mxu0 %v824
      %5589 = vmatpush1.msra.mxu0 %v828
      %5590 = vmatprep.subr.mxu0 %v825
      %5591 = vmatpush1.msra.mxu0 %v829
      %5592 = vmatprep.subr.mxu0 %v826
      %5593 = vmatpush1.msra.mxu0 %v830
      %5594 = vmatprep.subr.mxu0 %v859
      %5595 = vmatpush1.msra.mxu0 %v863
      %5596 = vmatprep.subr.mxu0 %v860
      %5597 = vmatpush1.msra.mxu0 %v864
      %5598 = vmatprep.subr.mxu0 %v861
      %5599 = vmatpush1.msra.mxu0 %v865
      %5600 = vmatprep.subr.mxu0 %v862
      %5601 = vmatpush1.msra.mxu0 %v866
      %5602 = vmatprep.subr.mxu0 %v895
      %5603 = vmatpush1.msra.mxu0 %v899
      %5604 = vmatprep.subr.mxu0 %v896
      %5605 = vmatpush1.msra.mxu0 %v900
      %5606 = vmatprep.subr.mxu0 %v897
      %5607 = vmatpush1.msra.mxu0 %v901
      %5608 = vmatprep.subr.mxu0 %v898
      %5609 = vmatpush1.msra.mxu0 %v902
      %5610 = vmatprep.subr.mxu0 %v931
      %5611 = vmatpush1.msra.mxu0 %v935
      %5612 = vmatprep.subr.mxu0 %v932
      %5613 = vmatpush1.msra.mxu0 %v936
      %5614 = vmatprep.subr.mxu0 %v933
      %5615 = vmatpush1.msra.mxu0 %v937
      %5616 = vmatprep.subr.mxu0 %v934
      %5617 = vmatpush1.msra.mxu0 %v938
      %5618 = vmatprep.subr.mxu0 %v784
      %5619 = vmatpush1.msra.mxu0 %v783
      %5620 = vmatprep.subr.mxu0 %v787
      %5621 = vmatpush1.msra.mxu0 %v786
      %5622 = vmatprep.subr.mxu0 %v790
      %5623 = vmatpush1.msra.mxu0 %v789
      %5624 = vmatprep.subr.mxu0 %v793
      %5625 = vmatpush1.msra.mxu0 %v792
      %5626 = vmatprep.subr.mxu0 %v963
      %5627 = vmatpush1.msra.mxu0 %v967
      %5628 = vmatprep.subr.mxu0 %v964
      %5629 = vmatpush1.msra.mxu0 %v968
      %5630 = vmatprep.subr.mxu0 %v965
      %5631 = vmatpush1.msra.mxu0 %v969
      %5632 = vmatprep.subr.mxu0 %v966
      %5633 = vmatpush1.msra.mxu0 %v970
      %5634 = vmatprep.subr.mxu0 %v999
      %5635 = vmatpush1.msra.mxu0 %v1003
      %5636 = vmatprep.subr.mxu0 %v1000
      %5637 = vmatpush1.msra.mxu0 %v1004
      %5638 = vmatprep.subr.mxu0 %v1001
      %5639 = vmatpush1.msra.mxu0 %v1005
      %5640 = vmatprep.subr.mxu0 %v1002
      %5641 = vmatpush1.msra.mxu0 %v1006
      %5642 = vmatprep.subr.mxu0 %v1035
      %5643 = vmatpush1.msra.mxu0 %v1039
      %5644 = vmatprep.subr.mxu0 %v1036
      %5645 = vmatpush1.msra.mxu0 %v1040
      %5646 = vmatprep.subr.mxu0 %v1037
      %5647 = vmatpush1.msra.mxu0 %v1041
      %5648 = vmatprep.subr.mxu0 %v1038
      %5649 = vmatpush1.msra.mxu0 %v1042
      %5650 = vmatprep.mubr.f32.mxu0 %v5225
      %5651 = vmatmul.mubr.f32.gmra.mrb[0].mxu0 %v5224
      %v5652 = vpop.f32.mrb[0].mxu0
      %v5653 = vadd.f32 %v5401, %v5652
      %v5654 = vpop.f32.mrb[0].mxu0
      %v5655 = vadd.f32 %v5403, %v5654
      %5656 = vmatprep.mubr.f32.mxu0 %v5228
      %5657 = vmatmul.mubr.f32.gmra.mrb[0].mxu0 %v5227
      %v5658 = vpop.f32.mrb[0].mxu0
      %v5659 = vadd.f32 %v5407, %v5658
      %v5660 = vpop.f32.mrb[0].mxu0
      %v5661 = vadd.f32 %v5409, %v5660
      %5662 = vmatprep.mubr.f32.mxu0 %v5231
      %5663 = vmatmul.mubr.f32.gmra.mrb[0].mxu0 %v5230
      %v5664 = vpop.f32.mrb[0].mxu0
      %v5665 = vadd.f32 %v5413, %v5664
      %v5666 = vpop.f32.mrb[0].mxu0
      %v5667 = vadd.f32 %v5415, %v5666
      %5668 = vdwg.mxu0
      %5669 = vmatprep.subr.mxu0 %v1071
      %5670 = vmatpush1.msra.mxu0 %v1075
      %5671 = vmatprep.subr.mxu0 %v1072
      %5672 = vmatpush1.msra.mxu0 %v1076
      %5673 = vmatprep.subr.mxu0 %v1073
      %5674 = vmatpush1.msra.mxu0 %v1077
      %5675 = vmatprep.subr.mxu0 %v1074
      %5676 = vmatpush1.msra.mxu0 %v1078
      %5677 = vmatprep.subr.mxu0 0.0
      %5678 = vmatpush1.msra.mxu0 0.0
      %5679 = vmatprep.subr.mxu0 0.0
      %5680 = vmatpush1.msra.mxu0 0.0
      %5681 = vmatprep.subr.mxu0 0.0
      %5682 = vmatpush1.msra.mxu0 0.0
      %5683 = vmatprep.subr.mxu0 0.0
      %5684 = vmatpush1.msra.mxu0 0.0
      %5685 = vmatprep.subr.mxu0 0.0
      %5686 = vmatpush1.msra.mxu0 0.0
      %5687 = vmatprep.subr.mxu0 0.0
      %5688 = vmatpush1.msra.mxu0 0.0
      %5689 = vmatprep.subr.mxu0 0.0
      %5690 = vmatpush1.msra.mxu0 0.0
      %5691 = vmatprep.subr.mxu0 0.0
      %5692 = vmatpush1.msra.mxu0 0.0
      %5693 = vmatprep.subr.mxu0 0.0
      %5694 = vmatpush1.msra.mxu0 0.0
      %5695 = vmatprep.subr.mxu0 0.0
      %5696 = vmatpush1.msra.mxu0 0.0
      %5697 = vmatprep.subr.mxu0 0.0
      %5698 = vmatpush1.msra.mxu0 0.0
      %5699 = vmatprep.subr.mxu0 0.0
      %5700 = vmatpush1.msra.mxu0 0.0
      %5701 = vmatprep.subr.mxu0 0.0
      %5702 = vmatpush1.msra.mxu0 0.0
      %5703 = vmatprep.subr.mxu0 0.0
      %5704 = vmatpush1.msra.mxu0 0.0
      %5705 = vmatprep.subr.mxu0 0.0
      %5706 = vmatpush1.msra.mxu0 0.0
      %5707 = vmatprep.subr.mxu0 0.0
      %5708 = vmatpush1.msra.mxu0 0.0
      %5709 = vmatprep.subr.mxu0 0.0
      %5710 = vmatpush1.msra.mxu0 0.0
      %5711 = vmatprep.subr.mxu0 0.0
      %5712 = vmatpush1.msra.mxu0 0.0
      %5713 = vmatprep.subr.mxu0 0.0
      %5714 = vmatpush1.msra.mxu0 0.0
      %5715 = vmatprep.subr.mxu0 0.0
      %5716 = vmatpush1.msra.mxu0 0.0
      %5717 = vmatprep.subr.mxu0 0.0
      %5718 = vmatpush1.msra.mxu0 0.0
      %5719 = vmatprep.subr.mxu0 0.0
      %5720 = vmatpush1.msra.mxu0 0.0
      %5721 = vmatprep.subr.mxu0 0.0
      %5722 = vmatpush1.msra.mxu0 0.0
      %5723 = vmatprep.subr.mxu0 0.0
      %5724 = vmatpush1.msra.mxu0 0.0
      %5725 = vmatprep.subr.mxu0 0.0
      %5726 = vmatpush1.msra.mxu0 0.0
      %5727 = vmatprep.subr.mxu0 0.0
      %5728 = vmatpush1.msra.mxu0 0.0
      %5729 = vmatprep.subr.mxu0 0.0
      %5730 = vmatpush1.msra.mxu0 0.0
      %5731 = vmatprep.subr.mxu0 0.0
      %5732 = vmatpush1.msra.mxu0 0.0
      %5733 = vmatprep.mubr.f32.mxu0 0.0
      %5734 = vmatmul.mubr.f32.gmra.mrb[0].mxu0 %v5578
      %v5735 = vpop.f32.mrb[0].mxu0
      %v5736 = vadd.f32 %v5653, %v5735
      %v5737 = vpop.f32.mrb[0].mxu0
      %v5738 = vadd.f32 %v5655, %v5737
      %5739 = vmatprep.mubr.f32.mxu0 0.0
      %5740 = vmatmul.mubr.f32.gmra.mrb[0].mxu0 %v5581
      %v5741 = vpop.f32.mrb[0].mxu0
      %v5742 = vadd.f32 %v5659, %v5741
      %v5743 = vpop.f32.mrb[0].mxu0
      %v5744 = vadd.f32 %v5661, %v5743
      %5745 = vmatprep.mubr.f32.mxu0 0.0
      %5746 = vmatmul.mubr.f32.gmra.mrb[0].mxu0 %v5584
      %v5747 = vpop.f32.mrb[0].mxu0
      %v5748 = vadd.f32 %v5665, %v5747
      %v5749 = vpop.f32.mrb[0].mxu0
      %v5750 = vadd.f32 %v5667, %v5749
      %5751 = vdwg.mxu0
      %5752 = vmatprep.subr.mxu0 0.0
      %5753 = vmatpush1.msra.mxu0 %v819
      %5754 = vmatprep.subr.mxu0 0.0
      %5755 = vmatpush1.msra.mxu0 %v820
      %5756 = vmatprep.subr.mxu0 0.0
      %5757 = vmatpush1.msra.mxu0 %v821
      %5758 = vmatprep.subr.mxu0 0.0
      %5759 = vmatpush1.msra.mxu0 %v822
      %5760 = vmatprep.subr.mxu0 0.0
      %5761 = vmatpush1.msra.mxu0 %v855
      %5762 = vmatprep.subr.mxu0 0.0
      %5763 = vmatpush1.msra.mxu0 %v856
      %5764 = vmatprep.subr.mxu0 0.0
      %5765 = vmatpush1.msra.mxu0 %v857
      %5766 = vmatprep.subr.mxu0 0.0
      %5767 = vmatpush1.msra.mxu0 %v858
      %5768 = vmatprep.subr.mxu0 0.0
      %5769 = vmatpush1.msra.mxu0 %v891
      %5770 = vmatprep.subr.mxu0 0.0
      %5771 = vmatpush1.msra.mxu0 %v892
      %5772 = vmatprep.subr.mxu0 0.0
      %5773 = vmatpush1.msra.mxu0 %v893
      %5774 = vmatprep.subr.mxu0 0.0
      %5775 = vmatpush1.msra.mxu0 %v894
      %5776 = vmatprep.subr.mxu0 0.0
      %5777 = vmatpush1.msra.mxu0 %v927
      %5778 = vmatprep.subr.mxu0 0.0
      %5779 = vmatpush1.msra.mxu0 %v928
      %5780 = vmatprep.subr.mxu0 0.0
      %5781 = vmatpush1.msra.mxu0 %v929
      %5782 = vmatprep.subr.mxu0 0.0
      %5783 = vmatpush1.msra.mxu0 %v930
      %5784 = vmatprep.subr.mxu0 0.0
      %5785 = vmatpush1.msra.mxu0 %v785
      %5786 = vmatprep.subr.mxu0 0.0
      %5787 = vmatpush1.msra.mxu0 %v788
      %5788 = vmatprep.subr.mxu0 0.0
      %5789 = vmatpush1.msra.mxu0 %v791
      %5790 = vmatprep.subr.mxu0 0.0
      %5791 = vmatpush1.msra.mxu0 %v794
      %5792 = vmatprep.subr.mxu0 0.0
      %5793 = vmatpush1.msra.mxu0 %v971
      %5794 = vmatprep.subr.mxu0 0.0
      %5795 = vmatpush1.msra.mxu0 %v972
      %5796 = vmatprep.subr.mxu0 0.0
      %5797 = vmatpush1.msra.mxu0 %v973
      %5798 = vmatprep.subr.mxu0 0.0
      %5799 = vmatpush1.msra.mxu0 %v974
      %5800 = vmatprep.subr.mxu0 0.0
      %5801 = vmatpush1.msra.mxu0 %v1007
      %5802 = vmatprep.subr.mxu0 0.0
      %5803 = vmatpush1.msra.mxu0 %v1008
      %5804 = vmatprep.subr.mxu0 0.0
      %5805 = vmatpush1.msra.mxu0 %v1009
      %5806 = vmatprep.subr.mxu0 0.0
      %5807 = vmatpush1.msra.mxu0 %v1010
      %5808 = vmatprep.subr.mxu0 0.0
      %5809 = vmatpush1.msra.mxu0 %v1043
      %5810 = vmatprep.subr.mxu0 0.0
      %5811 = vmatpush1.msra.mxu0 %v1044
      %5812 = vmatprep.subr.mxu0 0.0
      %5813 = vmatpush1.msra.mxu0 %v1045
      %5814 = vmatprep.subr.mxu0 0.0
      %5815 = vmatpush1.msra.mxu0 %v1046
      %5816 = vmatprep.mubr.f32.mxu0 %v5225
      %5817 = vmatmul.mubr.f32.gmra.mrb[0].mxu0 %v5224
      %v5818 = vpop.f32.mrb[0].mxu0
      %v5819 = vadd.f32 %v5564, %v5818
      %v5820 = vpop.f32.mrb[0].mxu0
      %5821 = vmatprep.mubr.f32.mxu0 %v5228
      %5822 = vmatmul.mubr.f32.gmra.mrb[0].mxu0 %v5227
      %v5823 = vpop.f32.mrb[0].mxu0
      %v5824 = vadd.f32 %v5569, %v5823
      %v5825 = vpop.f32.mrb[0].mxu0
      %5826 = vmatprep.mubr.f32.mxu0 %v5231
      %5827 = vmatmul.mubr.f32.gmra.mrb[0].mxu0 %v5230
      %v5828 = vpop.f32.mrb[0].mxu0
      %v5829 = vadd.f32 %v5574, %v5828
      %v5830 = vpop.f32.mrb[0].mxu0
      %5831 = vdwg.mxu0
      %5832 = vmatprep.subr.mxu0 0.0
      %5833 = vmatpush1.msra.mxu0 %v1079
      %5834 = vmatprep.subr.mxu0 0.0
      %5835 = vmatpush1.msra.mxu0 %v1080
      %5836 = vmatprep.subr.mxu0 0.0
      %5837 = vmatpush1.msra.mxu0 %v1081
      %5838 = vmatprep.subr.mxu0 0.0
      %5839 = vmatpush1.msra.mxu0 %v1082
      %5840 = vmatprep.subr.mxu0 0.0
      %5841 = vmatpush1.msra.mxu0 0.0
      %5842 = vmatprep.subr.mxu0 0.0
      %5843 = vmatpush1.msra.mxu0 0.0
      %5844 = vmatprep.subr.mxu0 0.0
      %5845 = vmatpush1.msra.mxu0 0.0
      %5846 = vmatprep.subr.mxu0 0.0
      %5847 = vmatpush1.msra.mxu0 0.0
      %5848 = vmatprep.subr.mxu0 0.0
      %5849 = vmatpush1.msra.mxu0 0.0
      %5850 = vmatprep.subr.mxu0 0.0
      %5851 = vmatpush1.msra.mxu0 0.0
      %5852 = vmatprep.subr.mxu0 0.0
      %5853 = vmatpush1.msra.mxu0 0.0
      %5854 = vmatprep.subr.mxu0 0.0
      %5855 = vmatpush1.msra.mxu0 0.0
      %5856 = vmatprep.subr.mxu0 0.0
      %5857 = vmatpush1.msra.mxu0 0.0
      %5858 = vmatprep.subr.mxu0 0.0
      %5859 = vmatpush1.msra.mxu0 0.0
      %5860 = vmatprep.subr.mxu0 0.0
      %5861 = vmatpush1.msra.mxu0 0.0
      %5862 = vmatprep.subr.mxu0 0.0
      %5863 = vmatpush1.msra.mxu0 0.0
      %5864 = vmatprep.subr.mxu0 0.0
      %5865 = vmatpush1.msra.mxu0 0.0
      %5866 = vmatprep.subr.mxu0 0.0
      %5867 = vmatpush1.msra.mxu0 0.0
      %5868 = vmatprep.subr.mxu0 0.0
      %5869 = vmatpush1.msra.mxu0 0.0
      %5870 = vmatprep.subr.mxu0 0.0
      %5871 = vmatpush1.msra.mxu0 0.0
      %5872 = vmatprep.subr.mxu0 0.0
      %5873 = vmatpush1.msra.mxu0 0.0
      %5874 = vmatprep.subr.mxu0 0.0
      %5875 = vmatpush1.msra.mxu0 0.0
      %5876 = vmatprep.subr.mxu0 0.0
      %5877 = vmatpush1.msra.mxu0 0.0
      %5878 = vmatprep.subr.mxu0 0.0
      %5879 = vmatpush1.msra.mxu0 0.0
      %5880 = vmatprep.subr.mxu0 0.0
      %5881 = vmatpush1.msra.mxu0 0.0
      %5882 = vmatprep.subr.mxu0 0.0
      %5883 = vmatpush1.msra.mxu0 0.0
      %5884 = vmatprep.subr.mxu0 0.0
      %5885 = vmatpush1.msra.mxu0 0.0
      %5886 = vmatprep.subr.mxu0 0.0
      %5887 = vmatpush1.msra.mxu0 0.0
      %5888 = vmatprep.subr.mxu0 0.0
      %5889 = vmatpush1.msra.mxu0 0.0
      %5890 = vmatprep.subr.mxu0 0.0
      %5891 = vmatpush1.msra.mxu0 0.0
      %5892 = vmatprep.subr.mxu0 0.0
      %5893 = vmatpush1.msra.mxu0 0.0
      %5894 = vmatprep.subr.mxu0 0.0
      %5895 = vmatpush1.msra.mxu0 0.0
      %5896 = vmatprep.mubr.f32.mxu0 0.0
      %5897 = vmatmul.mubr.f32.gmra.mrb[0].mxu0 %v5578
      %v5898 = vpop.f32.mrb[0].mxu0
      %v5899 = vadd.f32 %v5819, %v5898
      %v5900 = vpop.f32.mrb[0].mxu0
      %5901 = vmatprep.mubr.f32.mxu0 0.0
      %5902 = vmatmul.mubr.f32.gmra.mrb[0].mxu0 %v5581
      %v5903 = vpop.f32.mrb[0].mxu0
      %v5904 = vadd.f32 %v5824, %v5903
      %v5905 = vpop.f32.mrb[0].mxu0
      %5906 = vmatprep.mubr.f32.mxu0 0.0
      %5907 = vmatmul.mubr.f32.gmra.mrb[0].mxu0 %v5584
      %v5908 = vpop.f32.mrb[0].mxu0
      %v5909 = vadd.f32 %v5829, %v5908
      %v5910 = vpop.f32.mrb[0].mxu0
      %5911 = vdwg.mxu0
      %v5912 = vld [vmem:[%s11] sm:$0xff]
      %v5913 = vld [vmem:[%s11 + $0x8] sm:$0xff]
      %v5914 = vld [vmem:[%s11 + $0x10] sm:$0xff]
      %5916 = vset.pattern.permute.xlu0 0
      %5917 = vperm.xlu0 %5916, %v5912
      %v5918 = vpop.permute.xlu0 %5917
      %5921 = vset.pattern.permute.xlu0 0
      %5922 = vperm.xlu0 %5921, %v5913
      %v5923 = vpop.permute.xlu0 %5922
      %5926 = vset.pattern.permute.xlu0 0
      %5927 = vperm.xlu0 %5926, %v5914
      %v5928 = vpop.permute.xlu0 %5927
      %v5930 = vadd.f32 %v5736, %v5918
      %v5931 = vadd.f32 %v5738, %v5918
      %v5932 = vadd.f32 %v5899, %v5918
      %v5933 = vadd.f32 %v5742, %v5923
      %v5934 = vadd.f32 %v5744, %v5923
      %v5935 = vadd.f32 %v5904, %v5923
      %v5936 = vadd.f32 %v5748, %v5928
      %v5937 = vadd.f32 %v5750, %v5928
      %v5938 = vadd.f32 %v5909, %v5928
      %v5939 = vmul.f32 %v5930, %v771
      %v5940 = vmul.f32 %v5931, %v775
      %v5941 = vmul.f32 %v5932, %v779
      %v5942 = vmul.f32 %v5933, %v771
      %v5943 = vmul.f32 %v5934, %v775
      %v5944 = vmul.f32 %v5935, %v779
      %v5945 = vmul.f32 %v5936, %v771
      %v5946 = vmul.f32 %v5937, %v775
      %v5947 = vmul.f32 %v5938, %v779
      %v5948 = vtanh.pop %v5939
      %v5949 = vtanh.pop %v5940
      %v5950 = vtanh.pop %v5941
      %v5951 = vtanh.pop %v5942
      %v5952 = vtanh.pop %v5943
      %v5953 = vtanh.pop %v5944
      %v5954 = vtanh.pop %v5945
      %v5955 = vtanh.pop %v5946
      %v5956 = vtanh.pop %v5947
      %v5957 = vmul.f32 %v455, %v455
      %v5958 = vmul.f32 %v456, %v456
      %v5959 = vmul.f32 %v457, %v457
      %v5960 = vsub.f32 %v5957, %v455
      %v5961 = vsub.f32 %v5958, %v456
      %v5962 = vsub.f32 %v5959, %v457
      %v5963 = vmul.f32 %v5948, %v5960
      %v5964 = vmul.f32 %v5949, %v5961
      %v5965 = vmul.f32 %v5950, %v5962
      %v5966 = vadd.f32 %v455, %v5963
      %v5967 = vadd.f32 %v456, %v5964
      %v5968 = vadd.f32 %v457, %v5965
      %v5969 = vmul.f32 %v5966, %v5966
      %v5970 = vmul.f32 %v5967, %v5967
      %v5971 = vmul.f32 %v5968, %v5968
      %v5972 = vsub.f32 %v5969, %v5966
      %v5973 = vsub.f32 %v5970, %v5967
      %v5974 = vsub.f32 %v5971, %v5968
      %v5978 = vrot.slane %v5972, 5
      %v5979 = vrot.slane %v5973, 5
      %v5980 = vrot.slane %v5974, 5
      %v5984 = vmul.f32 %v5948, %v5978
      %v5985 = vmul.f32 %v5949, %v5979
      %v5986 = vmul.f32 %v5950, %v5980
      %v5990 = vrot.slane %v5984, 3
      %v5991 = vrot.slane %v5985, 3
      %v5992 = vrot.slane %v5986, 3
      %v5996 = vadd.f32 %v5966, %v5990
      %v5997 = vadd.f32 %v5967, %v5991
      %v5998 = vadd.f32 %v5968, %v5992
      %v5999 = vmul.f32 %v5996, %v5996
      %v6000 = vmul.f32 %v5997, %v5997
      %v6001 = vmul.f32 %v5998, %v5998
      %v6002 = vsub.f32 %v5999, %v5996
      %v6003 = vsub.f32 %v6000, %v5997
      %v6004 = vsub.f32 %v6001, %v5998
      %v6008 = vrot.slane %v6002, 2
      %v6009 = vrot.slane %v6003, 2
      %v6010 = vrot.slane %v6004, 2
      %v6014 = vmul.f32 %v5948, %v6008
      %v6015 = vmul.f32 %v5949, %v6009
      %v6016 = vmul.f32 %v5950, %v6010
      %v6017 = vmul.f32 %v5951, %v6008
      %v6018 = vmul.f32 %v5952, %v6009
      %v6019 = vmul.f32 %v5953, %v6010
      %vm6026 = vcmask 1041408
      %v6027 = vrot.slane %v6014, 6
      %v6028 = vrot.slane %v6017, 6
      %v6029 = vsel %vm6026, %v6027, %v6028
      %v6030 = vrot.slane %v6015, 6
      %v6031 = vrot.slane %v6018, 6
      %v6032 = vsel %vm6026, %v6030, %v6031
      %v6033 = vrot.slane %v6016, 6
      %v6034 = vrot.slane %v6019, 6
      %v6035 = vsel %vm6026, %v6033, %v6034
      %v6039 = vadd.f32 %v5996, %v6029
      %v6040 = vadd.f32 %v5997, %v6032
      %v6041 = vadd.f32 %v5998, %v6035
      %v6042 = vmul.f32 %v6039, %v6039
      %v6043 = vmul.f32 %v6040, %v6040
      %v6044 = vmul.f32 %v6041, %v6041
      %v6045 = vsub.f32 %v6042, %v6039
      %v6046 = vsub.f32 %v6043, %v6040
      %v6047 = vsub.f32 %v6044, %v6041
      %v6051 = vrot.slane %v6045, 7
      %v6052 = vrot.slane %v6046, 7
      %v6053 = vrot.slane %v6047, 7
      %v6057 = vmul.f32 %v5951, %v6051
      %v6058 = vmul.f32 %v5952, %v6052
      %v6059 = vmul.f32 %v5953, %v6053
      %v6063 = vrot.slane %v6057, 1
      %v6064 = vrot.slane %v6058, 1
      %v6065 = vrot.slane %v6059, 1
      %v6069 = vadd.f32 %v6039, %v6063
      %v6070 = vadd.f32 %v6040, %v6064
      %v6071 = vadd.f32 %v6041, %v6065
      %v6072 = vmul.f32 %v6069, %v6069
      %v6073 = vmul.f32 %v6070, %v6070
      %v6074 = vmul.f32 %v6071, %v6071
      %v6075 = vsub.f32 %v6072, %v6069
      %v6076 = vsub.f32 %v6073, %v6070
      %v6077 = vsub.f32 %v6074, %v6071
      %v6081 = vrot.slane %v6075, 4
      %v6082 = vrot.slane %v6076, 4
      %v6083 = vrot.slane %v6077, 4
      %v6087 = vmul.f32 %v5951, %v6081
      %v6088 = vmul.f32 %v5952, %v6082
      %v6089 = vmul.f32 %v5953, %v6083
      %v6093 = vrot.slane %v6087, 4
      %v6094 = vrot.slane %v6088, 4
      %v6095 = vrot.slane %v6089, 4
      %v6099 = vadd.f32 %v6069, %v6093
      %v6100 = vadd.f32 %v6070, %v6094
      %v6101 = vadd.f32 %v6071, %v6095
      %v6102 = vmul.f32 %v6099, %v6099
      %v6103 = vmul.f32 %v6100, %v6100
      %v6104 = vmul.f32 %v6101, %v6101
      %v6105 = vsub.f32 %v6102, %v6099
      %v6106 = vsub.f32 %v6103, %v6100
      %v6107 = vsub.f32 %v6104, %v6101
      %v6111 = vrot.slane %v6105, 1
      %v6112 = vrot.slane %v6106, 1
      %v6113 = vrot.slane %v6107, 1
      %v6117 = vmul.f32 %v5951, %v6111
      %v6118 = vmul.f32 %v5952, %v6112
      %v6119 = vmul.f32 %v5953, %v6113
      %v6120 = vmul.f32 %v5954, %v6111
      %v6121 = vmul.f32 %v5955, %v6112
      %v6122 = vmul.f32 %v5956, %v6113
      %vm6129 = vcmask 1040384
      %v6130 = vrot.slane %v6117, 7
      %v6131 = vrot.slane %v6120, 7
      %v6132 = vsel %vm6129, %v6130, %v6131
      %v6133 = vrot.slane %v6118, 7
      %v6134 = vrot.slane %v6121, 7
      %v6135 = vsel %vm6129, %v6133, %v6134
      %v6136 = vrot.slane %v6119, 7
      %v6137 = vrot.slane %v6122, 7
      %v6138 = vsel %vm6129, %v6136, %v6137
      %v6142 = vadd.f32 %v6099, %v6132
      %v6143 = vadd.f32 %v6100, %v6135
      %v6144 = vadd.f32 %v6101, %v6138
      %v6145 = vmul.f32 %v6142, %v6142
      %v6146 = vmul.f32 %v6143, %v6143
      %v6147 = vmul.f32 %v6144, %v6144
      %v6148 = vsub.f32 %v6145, %v6142
      %v6149 = vsub.f32 %v6146, %v6143
      %v6150 = vsub.f32 %v6147, %v6144
      %v6154 = vrot.slane %v6148, 6
      %v6155 = vrot.slane %v6149, 6
      %v6156 = vrot.slane %v6150, 6
      %v6160 = vmul.f32 %v5954, %v6154
      %v6161 = vmul.f32 %v5955, %v6155
      %v6162 = vmul.f32 %v5956, %v6156
      %v6166 = vrot.slane %v6160, 2
      %v6167 = vrot.slane %v6161, 2
      %v6168 = vrot.slane %v6162, 2
      %v6172 = vadd.f32 %v6142, %v6166
      %v6173 = vadd.f32 %v6143, %v6167
      %v6174 = vadd.f32 %v6144, %v6168
      %v6175 = vmul.f32 %v6172, %v6172
      %v6176 = vmul.f32 %v6173, %v6173
      %v6177 = vmul.f32 %v6174, %v6174
      %v6178 = vsub.f32 %v6175, %v6172
      %v6179 = vsub.f32 %v6176, %v6173
      %v6180 = vsub.f32 %v6177, %v6174
      %v6184 = vrot.slane %v6178, 3
      %v6185 = vrot.slane %v6179, 3
      %v6186 = vrot.slane %v6180, 3
      %v6190 = vmul.f32 %v5954, %v6184
      %v6191 = vmul.f32 %v5955, %v6185
      %v6192 = vmul.f32 %v5956, %v6186
      %v6196 = vrot.slane %v6190, 5
      %v6197 = vrot.slane %v6191, 5
      %v6198 = vrot.slane %v6192, 5
      %v6202 = vadd.f32 %v6172, %v6196
      %v6203 = vadd.f32 %v6173, %v6197
      %v6204 = vadd.f32 %v6174, %v6198
      %v6207 = vcombine.low %v6202, %v6203
      %6209 = vst [vmem:[%s448] sm:$0x77] %v6207
      %6210 = vst [vmem:[%s448 + $0x8] sm:$0x7] %v6204
      %6211 = vst [vmem:[%s453] sm:$0xff] %v5948
      %6212 = vst [vmem:[%s453 + $0x8] sm:$0xff] %v5949
      %6213 = vst [vmem:[%s453 + $0x10] sm:$0xff] %v5950
      %6214 = vst [vmem:[%s453 + $0x18] sm:$0xff] %v5951
      %6215 = vst [vmem:[%s453 + $0x20] sm:$0xff] %v5952
      %6216 = vst [vmem:[%s453 + $0x28] sm:$0xff] %v5953
      %6217 = vst [vmem:[%s453 + $0x30] sm:$0xff] %v5954
      %6218 = vst [vmem:[%s453 + $0x38] sm:$0xff] %v5955
      %6219 = vst [vmem:[%s453 + $0x40] sm:$0xff] %v5956
      %p6220 = scmp.lt.s32.totalorder %s25, 1
      %s6221 = scalar_select %p6220, %s25, 1
      %s6222 = smul.addr %s6221, 3
      %s6223 = smul.addr %s6222, 4
      %s6224 = scalar_lea.vmem %s12, %s6223
      %p6225 = scmp.lt.s32.totalorder %s25, 1
      %s6226 = scalar_select %p6225, %s25, 1
      %s6227 = smul.addr %s6226, 9
      %s6228 = smul.addr %s6227, 8
      %s6229 = scalar_lea.vmem %s13, %s6228
      // Predicated region
      $region69: #{zrdce_forward.1} parent=67 // pred_check
        %p6230 = pneg %p300
      $region70: #{zrdce_forward.1} parent=67 // pred_check_branch
        %6232 = sbr.rel (%p6230) target = $region72
      $region71: #{zrdce_forward.1} parent=67 // pred_region
        _
      $region72: #{zrdce_forward.1} parent=67 // pred_fallthru
        _
      // Predicated region
      $region73: #{zrdce_forward.1} parent=67 // pred_check
        %p6233 = pneg %p326
      $region74: #{zrdce_forward.1} parent=67 // pred_check_branch
        %6235 = sbr.rel (%p6233) target = $region76
      $region75: #{zrdce_forward.1} parent=67 // pred_region
        _
      $region76: #{zrdce_forward.1} parent=67 // pred_fallthru
        _
    $region68: #{zrdce_forward.1} parent=5 // pred_fallthru
      _
    %p6236 = scmp.le.s32.totalorder 2, %s20
    // Predicated region
    $region77: #{zrdce_forward.1} parent=5 // pred_check
      %p6237 = pneg %p6236
    $region78: #{zrdce_forward.1} parent=5 // pred_check_branch
      %6239 = sbr.rel (%p6237) target = $region80
    $region79: #{zrdce_forward.1} parent=5 // pred_region
      %s6240 = ssub.s32 %s20, 2
      // Predicated region
      $region81: #{zrdce_forward.1} parent=79 // pred_check
        %p6241 = pneg %p306
      $region82: #{zrdce_forward.1} parent=79 // pred_check_branch
        %6243 = sbr.rel (%p6241) target = $region84
      $region83: #{zrdce_forward.1} parent=79 // pred_region
        %p6244 = scmp.lt.s32.totalorder %s26, 1
        %s6245 = scalar_select %p6244, %s26, 1
        %s6246 = smul.addr %s6245, 3
        %s6247 = smul.addr %s6246, 4
        %s6248 = scalar_lea.vmem %s12, %s6247
      $region84: #{zrdce_forward.1} parent=79 // pred_fallthru
        _
      // Predicated region
      $region85: #{zrdce_forward.1} parent=79 // pred_check
        %p6249 = pneg %p332
      $region86: #{zrdce_forward.1} parent=79 // pred_check_branch
        %6251 = sbr.rel (%p6249) target = $region88
      $region87: #{zrdce_forward.1} parent=79 // pred_region
        %p6252 = scmp.lt.s32.totalorder %s26, 1
        %s6253 = scalar_select %p6252, %s26, 1
        %s6254 = smul.addr %s6253, 9
        %s6255 = smul.addr %s6254, 8
        %s6256 = scalar_lea.vmem %s13, %s6255
      $region88: #{zrdce_forward.1} parent=79 // pred_fallthru
        _
    $region80: #{zrdce_forward.1} parent=5 // pred_fallthru
      _
  $region6: #{zrdce_forward.1} parent=0 // loop_footer
    %s24 = sadd.s32 1, %s20
  $region7: #{zrdce_forward.1} parent=0 // loop_footer_branch
    %19 = sbr.rel target = $region3
  $region8: #{zrdce_forward.1} parent=0 // loop_exit
    _

</llo_original>
